<compile_context>
chip_gen: v5e
topology: v5e:2x2
jax: 0.10.0
libtpu: 0.0.40
codegen_flags: <defaults>
</compile_context>

<pallas_src>
import functools

import jax
import jax.numpy as jnp
from jax import lax
from jax.experimental import pallas as pl
from jax.experimental.pallas import tpu as pltpu


# ----------------------------------------------------------------------------
# Wrapper-side layout preparation (plain XLA, runs once per call).
# ----------------------------------------------------------------------------
def _banded_weights(w_hwio, W):
    """Dense (3,3,C,F) conv weights -> banded matrices (3, W*C, W*F).

    big[kh, u*C + c, v*F + f] = w[kh, kw, c, f] with kw = u - v + 1 if valid,
    else 0.  A 3x3 SAME conv over a lane-packed activation row (W*C lanes)
    then becomes 3 plain matmuls (one per kh) accumulated in f32; the
    W-direction zero padding is implicit in the band structure.
    """
    KH, KW, C, F = w_hwio.shape
    u = jnp.arange(W)[None, :, None]                     # input column
    v = jnp.arange(W)[None, None, :]                     # output column
    k = jnp.arange(KW)[:, None, None]                    # kw tap
    ind = (u == v + k - 1).astype(w_hwio.dtype)          # (KW, W, W)
    big = jnp.einsum("hkcf,kuv->hucvf", w_hwio, ind)     # (KH, W, C, W, F)
    return big.reshape(KH, W * C, W * F)


def _tile_lane(p, W):
    """Per-channel (F,) BN param -> lane-packed (1, W*F): out[0, w*F+f] = p[f]."""
    return jnp.tile(p, W).reshape(1, W * p.shape[0])


# ----------------------------------------------------------------------------
# Fused tower kernel.  grid = (batch, n_blocks); block weights streamed per i.
# ----------------------------------------------------------------------------
def _conv_banded(src_buf, wget, scale, bias, H, residual=None):
    """3x3 SAME conv + folded-BN affine [+ residual] + ReLU, lane-packed rows.

    src_buf : VMEM ref (H+2, W*C) bf16; rows 0 and H+1 are zero (H halo),
              rows 1..H hold the activation (lane = w*C + c).
    wget    : wget(kh) -> (W*C, W*F) bf16 banded weight for row-tap kh.
    scale   : (1, W*F) f32 folded-BN scale (lane-packed).
    bias    : (1, W*F) f32 folded-BN bias (lane-packed).
    residual: optional (H, W*F) f32.
    returns : (H, W*F) f32 post-ReLU activation.
    """
    acc = jnp.dot(src_buf[0:H, :], wget(0), preferred_element_type=jnp.float32)
    acc = acc + jnp.dot(src_buf[1:H + 1, :], wget(1),
                        preferred_element_type=jnp.float32)
    acc = acc + jnp.dot(src_buf[2:H + 2, :], wget(2),
                        preferred_element_type=jnp.float32)
    y = acc * scale + bias
    if residual is not None:
        y = y + residual
    return jnp.maximum(y, 0.0)


def _tower_kernel(x_ref, w1_ref, s1_ref, b1_ref,
                  bw1_ref, bs1_ref, bb1_ref,
                  bw2_ref, bs2_ref, bb2_ref,
                  o_ref,
                  xin_buf, act_buf,
                  *, H, W, Cin, F):
    i = pl.program_id(1)          # residual-block index (weights streamed per i)
    WF = W * F

    # -- block step 0: zero halo rows (only) once per image + run the stem ----
    @pl.when(i == 0)
    def _stem():
        zi = jnp.zeros((1, W * Cin), jnp.bfloat16)
        za = jnp.zeros((1, WF), jnp.bfloat16)
        xin_buf[0:1, :] = zi
        xin_buf[H + 1:H + 2, :] = zi
        act_buf[0:1, :] = za
        act_buf[H + 1:H + 2, :] = za
        xin_buf[1:H + 1, :] = x_ref[0]                    # bf16, lane-packed
        y0 = _conv_banded(xin_buf, lambda kh: w1_ref[kh],
                          s1_ref[...], b1_ref[...], H)
        act_buf[1:H + 1, :] = y0.astype(jnp.bfloat16)

    # -- residual block i: activations never leave VMEM -----------------------
    identity = act_buf[1:H + 1, :]                        # bf16, kept narrow
    y = _conv_banded(act_buf, lambda kh: bw1_ref[0, kh],
                     bs1_ref[0], bb1_ref[0], H)
    act_buf[1:H + 1, :] = y.astype(jnp.bfloat16)
    y = _conv_banded(act_buf, lambda kh: bw2_ref[0, kh],
                     bs2_ref[0], bb2_ref[0], H,
                     residual=identity.astype(jnp.float32))
    act_buf[1:H + 1, :] = y.astype(jnp.bfloat16)

    # -- single lane-dense f32 store of the whole image ----------------------
    @pl.when(i == pl.num_programs(1) - 1)
    def _write():
        o_ref[0] = y


def _forward_packed(x_p, w1b, s1p, b1p, bw1b, bs1p, bb1p, bw2b, bs2p, bb2p,
                    *, H, W, Cin, F, n_blocks):
    N = x_p.shape[0]
    WF, WC = W * F, W * Cin

    kernel = functools.partial(_tower_kernel, H=H, W=W, Cin=Cin, F=F)

    # Advisory cost estimate (actual banded-matmul flops, streamed bytes).
    flops = 2 * N * H * 3 * (WC * WF + 2 * n_blocks * WF * WF)
    bytes_accessed = (N * H * WC * 2                            # input (bf16)
                      + 3 * WC * WF * 2                         # stem weights
                      + N * n_blocks * 2 * 3 * WF * WF * 2      # streamed block W
                      + (2 + 4 * n_blocks) * WF * 4             # BN params
                      + N * H * WF * 4)                         # output (f32)

    return pl.pallas_call(
        kernel,
        out_shape=jax.ShapeDtypeStruct((N, H, WF), jnp.float32),
        grid=(N, n_blocks),
        in_specs=[
            pl.BlockSpec((1, H, WC), lambda n, i: (n, 0, 0)),          # x
            pl.BlockSpec((3, WC, WF), lambda n, i: (0, 0, 0)),         # stem W
            pl.BlockSpec((1, WF), lambda n, i: (0, 0)),                # stem scale
            pl.BlockSpec((1, WF), lambda n, i: (0, 0)),                # stem bias
            pl.BlockSpec((1, 3, WF, WF), lambda n, i: (i, 0, 0, 0)),   # blk conv1 W
            pl.BlockSpec((1, 1, WF), lambda n, i: (i, 0, 0)),          # blk bn1 scale
            pl.BlockSpec((1, 1, WF), lambda n, i: (i, 0, 0)),          # blk bn1 bias
            pl.BlockSpec((1, 3, WF, WF), lambda n, i: (i, 0, 0, 0)),   # blk conv2 W
            pl.BlockSpec((1, 1, WF), lambda n, i: (i, 0, 0)),          # blk bn2 scale
            pl.BlockSpec((1, 1, WF), lambda n, i: (i, 0, 0)),          # blk bn2 bias
        ],
        out_specs=pl.BlockSpec((1, H, WF), lambda n, i: (n, 0, 0)),
        scratch_shapes=[
            pltpu.VMEM((H + 2, WC), jnp.bfloat16),   # stem input + H halo rows
            pltpu.VMEM((H + 2, WF), jnp.bfloat16),   # resident activation + halo
        ],
        compiler_params=pltpu.CompilerParams(
            dimension_semantics=("parallel", "arbitrary")),
        cost_estimate=pl.CostEstimate(flops=flops, transcendentals=0,
                                      bytes_accessed=bytes_accessed),
    )(x_p, w1b, s1p, b1p, bw1b, bs1p, bb1p, bw2b, bs2p, bb2p)


def alphazero_image_block(x_nchw, params):
    N, Cin, H, W = x_nchw.shape
    w1 = params["conv1_w"]                                 # (3,3,Cin,F)
    F = w1.shape[-1]
    blocks = params["blocks"]
    n_blocks = len(blocks)
    assert n_blocks >= 1

    # Lane-packed input (N, H, W*Cin) in bf16 (MXU input precision).
    x_p = jnp.transpose(x_nchw, (0, 2, 3, 1)).reshape(N, H, W * Cin)
    x_p = x_p.astype(jnp.bfloat16)

    # Banded weights + lane-packed folded-BN params (layout glue, outside kernel).
    s1, b1 = params["bn1"]
    w1b = _banded_weights(w1, W).astype(jnp.bfloat16)
    s1p, b1p = _tile_lane(s1, W), _tile_lane(b1, W)
    bw1b = jnp.stack([_banded_weights(b["w1"], W) for b in blocks]).astype(jnp.bfloat16)
    bw2b = jnp.stack([_banded_weights(b["w2"], W) for b in blocks]).astype(jnp.bfloat16)
    bs1p = jnp.stack([_tile_lane(b["s1"], W) for b in blocks])
    bb1p = jnp.stack([_tile_lane(b["b1"], W) for b in blocks])
    bs2p = jnp.stack([_tile_lane(b["s2"], W) for b in blocks])
    bb2p = jnp.stack([_tile_lane(b["b2"], W) for b in blocks])

    out_p = _forward_packed(x_p, w1b, s1p, b1p, bw1b, bs1p, bb1p,
                            bw2b, bs2p, bb2p,
                            H=H, W=W, Cin=Cin, F=F, n_blocks=n_blocks)
    return jnp.transpose(out_p.reshape(N, H, W, F), (0, 3, 1, 2))   # -> NCHW


# ----------------------------------------------------------------------------
# Parameter init (eval-mode BN folded into scale/bias).
# ----------------------------------------------------------------------------
def init_params(key, in_ch, filters, n_blocks):
    eps = 1e-5

    def conv_w(k, cin, cout):
        return 0.05 * jax.random.normal(k, (3, 3, cin, cout), jnp.float32)

    def bn(k, c):
        k1, k2, k3, k4 = jax.random.split(k, 4)
        gamma = 1.0 + 0.1 * jax.random.normal(k1, (c,), jnp.float32)
        beta = 0.1 * jax.random.normal(k2, (c,), jnp.float32)
        running_mean = 0.1 * jax.random.normal(k3, (c,), jnp.float32)
        running_var = 0.5 + jnp.abs(jax.random.normal(k4, (c,), jnp.float32))
        scale = gamma / jnp.sqrt(running_var + eps)
        bias = beta - running_mean * scale
        return scale, bias

    keys = jax.random.split(key, 2 + 4 * n_blocks)
    params = {"conv1_w": conv_w(keys[0], in_ch, filters),
              "bn1": bn(keys[1], filters)}
    blocks = []
    for i in range(n_blocks):
        k0, k1, k2, k3 = keys[2 + 4 * i: 2 + 4 * (i + 1)]
        s1, b1 = bn(k1, filters)
        s2, b2 = bn(k3, filters)
        blocks.append({
            "w1": conv_w(k0, filters, filters), "s1": s1, "b1": b1,
            "w2": conv_w(k2, filters, filters), "s2": s2, "b2": b2,
        })
    params["blocks"] = blocks
    return params


# ----------------------------------------------------------------------------
# Pure-JAX references.  mm_dtype=bf16 mirrors the kernel's MXU input precision
# (f32 accumulation / BN / residual); mm_dtype=f32 is the exact PyTorch-eval
# math.
# ----------------------------------------------------------------------------
def _ref_conv_bn(x, w, scale, bias, residual=None, mm_dtype=jnp.float32):
    y = lax.conv_general_dilated(
        x.astype(mm_dtype), w.astype(mm_dtype),
        window_strides=(1, 1), padding="SAME",
        dimension_numbers=("NHWC", "HWIO", "NHWC"),
        preferred_element_type=jnp.float32)
    y = y * scale + bias
    if residual is not None:
        y = y + residual
    return jnp.maximum(y, 0.0)


def reference_forward(x_nchw, params, mm_dtype=jnp.float32):
    x = jnp.transpose(x_nchw, (0, 2, 3, 1))
    s1, b1 = params["bn1"]
    x = _ref_conv_bn(x, params["conv1_w"], s1, b1, mm_dtype=mm_dtype)
    for blk in params["blocks"]:
        identity = x
        y = _ref_conv_bn(x, blk["w1"], blk["s1"], blk["b1"], mm_dtype=mm_dtype)
        x = _ref_conv_bn(y, blk["w2"], blk["s2"], blk["b2"], residual=identity,
                         mm_dtype=mm_dtype)
    return jnp.transpose(x, (0, 3, 1, 2))


if __name__ == "__main__":
    # Small shapes consistent with the module: in_shape=(C,H,W)=(4,16,16),
    # batch=2, filters=32, n_blocks=2.
    batch, in_ch, H, W = 2, 4, 16, 16
    filters, n_blocks = 32, 2

    key = jax.random.PRNGKey(0)
    k_params, k_x = jax.random.split(key)
    params = init_params(k_params, in_ch, filters, n_blocks)
    x = jax.random.normal(k_x, (batch, in_ch, H, W), jnp.float32)

    fwd = jax.jit(alphazero_image_block)
    out = jax.block_until_ready(fwd(x, params))
    assert out.shape == (batch, filters, H, W), out.shape

    # Check vs. a reference that uses the same bf16 MXU inputs / f32 accum
    # (bf16-rounded residual identity widens this slightly vs. v1).
    ref_bf16 = jax.block_until_ready(reference_forward(x, params, jnp.bfloat16))
    err_bf16 = float(jnp.max(jnp.abs(out - ref_bf16)))
    assert jnp.allclose(out, ref_bf16, rtol=3e-2, atol=3e-2), err_bf16

    # Spec-level check vs. the full-f32 reference.
    ref_f32 = jax.block_until_ready(reference_forward(x, params, jnp.float32))
    err_f32 = float(jnp.max(jnp.abs(out - ref_f32)))
    assert jnp.allclose(out, ref_f32, rtol=6e-2, atol=6e-2), err_f32

    print("KERNEL_OK")
</pallas_src>

<mosaic_0001>
module attributes {stable_mosaic.version = 11 : i64} {
  func.func @_tower_kernel(%arg0: i32, %arg1: i32, %arg2: memref<1x16x64xbf16, #tpu.memory_space<vmem>>, %arg3: memref<3x64x512xbf16, #tpu.memory_space<vmem>>, %arg4: memref<1x512xf32, #tpu.memory_space<vmem>>, %arg5: memref<1x512xf32, #tpu.memory_space<vmem>>, %arg6: memref<1x3x512x512xbf16, #tpu.memory_space<vmem>>, %arg7: memref<1x1x512xf32, #tpu.memory_space<vmem>>, %arg8: memref<1x1x512xf32, #tpu.memory_space<vmem>>, %arg9: memref<1x3x512x512xbf16, #tpu.memory_space<vmem>>, %arg10: memref<1x1x512xf32, #tpu.memory_space<vmem>>, %arg11: memref<1x1x512xf32, #tpu.memory_space<vmem>>, %arg12: memref<1x16x512xf32, #tpu.memory_space<vmem>>, %arg13: memref<18x64xbf16, #tpu.memory_space<vmem>>, %arg14: memref<18x512xbf16, #tpu.memory_space<vmem>>) attributes {dimension_semantics = [#tpu.dimension_semantics<parallel>, #tpu.dimension_semantics<arbitrary>], iteration_bounds = array<i64: 2, 2>, scalar_prefetch = 0 : i64, scratch_operands = 2 : i64, tpu.core_type = #tpu.core_type<tc>, window_params = [{transform_indices = @transform_0, window_bounds = array<i64: 1, 16, 64>}, {pipeline_mode = #tpu.pipeline_mode<synchronous>, transform_indices = @transform_1, window_bounds = array<i64: 3, 64, 512>}, {pipeline_mode = #tpu.pipeline_mode<synchronous>, transform_indices = @transform_2, window_bounds = array<i64: 1, 512>}, {pipeline_mode = #tpu.pipeline_mode<synchronous>, transform_indices = @transform_3, window_bounds = array<i64: 1, 512>}, {transform_indices = @transform_4, window_bounds = array<i64: 1, 3, 512, 512>}, {transform_indices = @transform_5, window_bounds = array<i64: 1, 1, 512>}, {transform_indices = @transform_6, window_bounds = array<i64: 1, 1, 512>}, {transform_indices = @transform_7, window_bounds = array<i64: 1, 3, 512, 512>}, {transform_indices = @transform_8, window_bounds = array<i64: 1, 1, 512>}, {transform_indices = @transform_9, window_bounds = array<i64: 1, 1, 512>}, {transform_indices = @transform_10, window_bounds = array<i64: 1, 16, 512>}]} {
    %c0_i32 = arith.constant 0 : i32
    %0 = arith.cmpi eq, %arg1, %c0_i32 : i32
    %1 = arith.extui %0 : i1 to i32
    %c0_i32_0 = arith.constant 0 : i32
    %2 = arith.cmpi ne, %1, %c0_i32_0 : i32
    scf.if %2 {
      %cst_60 = arith.constant 0.000000e+00 : bf16
      %61 = vector.broadcast %cst_60 : bf16 to vector<1x64xbf16>
      %cst_61 = arith.constant 0.000000e+00 : bf16
      %62 = vector.broadcast %cst_61 : bf16 to vector<1x512xbf16>
      %c0_62 = arith.constant 0 : index
      %c0_63 = arith.constant 0 : index
      %63 = vector.load %arg13[%c0_62, %c0_63] : memref<18x64xbf16, #tpu.memory_space<vmem>>, vector<1x64xbf16>
      tpu.vector_store %arg13[%c0_62, %c0_63], %61 {strides = array<i32>} : memref<18x64xbf16, #tpu.memory_space<vmem>>, vector<1x64xbf16>,
      %c17 = arith.constant 17 : index
      %c0_64 = arith.constant 0 : index
      %64 = vector.load %arg13[%c17, %c0_64] : memref<18x64xbf16, #tpu.memory_space<vmem>>, vector<1x64xbf16>
      tpu.vector_store %arg13[%c17, %c0_64], %61 {strides = array<i32>} : memref<18x64xbf16, #tpu.memory_space<vmem>>, vector<1x64xbf16>,
      %c0_65 = arith.constant 0 : index
      %c0_66 = arith.constant 0 : index
      %65 = vector.load %arg14[%c0_65, %c0_66] : memref<18x512xbf16, #tpu.memory_space<vmem>>, vector<1x512xbf16>
      tpu.vector_store %arg14[%c0_65, %c0_66], %62 {strides = array<i32>} : memref<18x512xbf16, #tpu.memory_space<vmem>>, vector<1x512xbf16>,
      %c17_67 = arith.constant 17 : index
      %c0_68 = arith.constant 0 : index
      %66 = vector.load %arg14[%c17_67, %c0_68] : memref<18x512xbf16, #tpu.memory_space<vmem>>, vector<1x512xbf16>
      tpu.vector_store %arg14[%c17_67, %c0_68], %62 {strides = array<i32>} : memref<18x512xbf16, #tpu.memory_space<vmem>>, vector<1x512xbf16>,
      %c0_69 = arith.constant 0 : index
      %c0_70 = arith.constant 0 : index
      %c0_71 = arith.constant 0 : index
      %67 = vector.load %arg2[%c0_69, %c0_70, %c0_71] : memref<1x16x64xbf16, #tpu.memory_space<vmem>>, vector<1x16x64xbf16>
      %68 = vector.shape_cast %67 : vector<1x16x64xbf16> to vector<16x64xbf16>
      %c1_72 = arith.constant 1 : index
      %c0_73 = arith.constant 0 : index
      %69 = vector.load %arg13[%c1_72, %c0_73] : memref<18x64xbf16, #tpu.memory_space<vmem>>, vector<16x64xbf16>
      tpu.vector_store %arg13[%c1_72, %c0_73], %68 {strides = array<i32>} : memref<18x64xbf16, #tpu.memory_space<vmem>>, vector<16x64xbf16>,
      %c0_74 = arith.constant 0 : index
      %c0_75 = arith.constant 0 : index
      %70 = vector.load %arg4[%c0_74, %c0_75] : memref<1x512xf32, #tpu.memory_space<vmem>>, vector<1x512xf32>
      %c0_76 = arith.constant 0 : index
      %c0_77 = arith.constant 0 : index
      %71 = vector.load %arg5[%c0_76, %c0_77] : memref<1x512xf32, #tpu.memory_space<vmem>>, vector<1x512xf32>
      %c0_78 = arith.constant 0 : index
      %c0_79 = arith.constant 0 : index
      %72 = vector.load %arg13[%c0_78, %c0_79] : memref<18x64xbf16, #tpu.memory_space<vmem>>, vector<16x64xbf16>
      %c0_80 = arith.constant 0 : index
      %c0_81 = arith.constant 0 : index
      %c0_82 = arith.constant 0 : index
      %73 = vector.load %arg3[%c0_80, %c0_81, %c0_82] : memref<3x64x512xbf16, #tpu.memory_space<vmem>>, vector<1x64x512xbf16>
      %74 = vector.shape_cast %73 : vector<1x64x512xbf16> to vector<64x512xbf16>
      %cst_83 = arith.constant dense<0.000000e+00> : vector<16x512xf32>
      %75 = tpu.matmul %72, %74, %cst_83 {dimension_numbers = #tpu.dot_dimension_numbers<[1], [0], [0], [1], [0, 0, 1, 1], [], []>} : vector<16x64xbf16>, vector<64x512xbf16>, vector<16x512xf32> -> vector<16x512xf32>
      %c1_84 = arith.constant 1 : index
      %c0_85 = arith.constant 0 : index
      %76 = vector.load %arg13[%c1_84, %c0_85] : memref<18x64xbf16, #tpu.memory_space<vmem>>, vector<16x64xbf16>
      %c1_86 = arith.constant 1 : index
      %c0_87 = arith.constant 0 : index
      %c0_88 = arith.constant 0 : index
      %77 = vector.load %arg3[%c1_86, %c0_87, %c0_88] : memref<3x64x512xbf16, #tpu.memory_space<vmem>>, vector<1x64x512xbf16>
      %78 = vector.shape_cast %77 : vector<1x64x512xbf16> to vector<64x512xbf16>
      %cst_89 = arith.constant dense<0.000000e+00> : vector<16x512xf32>
      %79 = tpu.matmul %76, %78, %cst_89 {dimension_numbers = #tpu.dot_dimension_numbers<[1], [0], [0], [1], [0, 0, 1, 1], [], []>} : vector<16x64xbf16>, vector<64x512xbf16>, vector<16x512xf32> -> vector<16x512xf32>
      %80 = arith.addf %75, %79 : vector<16x512xf32>
      %c2_90 = arith.constant 2 : index
      %c0_91 = arith.constant 0 : index
      %81 = vector.load %arg13[%c2_90, %c0_91] : memref<18x64xbf16, #tpu.memory_space<vmem>>, vector<16x64xbf16>
      %c2_92 = arith.constant 2 : index
      %c0_93 = arith.constant 0 : index
      %c0_94 = arith.constant 0 : index
      %82 = vector.load %arg3[%c2_92, %c0_93, %c0_94] : memref<3x64x512xbf16, #tpu.memory_space<vmem>>, vector<1x64x512xbf16>
      %83 = vector.shape_cast %82 : vector<1x64x512xbf16> to vector<64x512xbf16>
      %cst_95 = arith.constant dense<0.000000e+00> : vector<16x512xf32>
      %84 = tpu.matmul %81, %83, %cst_95 {dimension_numbers = #tpu.dot_dimension_numbers<[1], [0], [0], [1], [0, 0, 1, 1], [], []>} : vector<16x64xbf16>, vector<64x512xbf16>, vector<16x512xf32> -> vector<16x512xf32>
      %85 = arith.addf %80, %84 : vector<16x512xf32>
      %86 = vector.broadcast %70 : vector<1x512xf32> to vector<16x512xf32>
      %87 = arith.mulf %85, %86 : vector<16x512xf32>
      %88 = vector.broadcast %71 : vector<1x512xf32> to vector<16x512xf32>
      %89 = arith.addf %87, %88 : vector<16x512xf32>
      %cst_96 = arith.constant 0.000000e+00 : f32
      %90 = vector.broadcast %cst_96 : f32 to vector<16x512xf32>
      %91 = arith.maximumf %89, %90 : vector<16x512xf32>
      %92 = arith.truncf %91 : vector<16x512xf32> to vector<16x512xbf16>
      %c1_97 = arith.constant 1 : index
      %c0_98 = arith.constant 0 : index
      %93 = vector.load %arg14[%c1_97, %c0_98] : memref<18x512xbf16, #tpu.memory_space<vmem>>, vector<16x512xbf16>
      tpu.vector_store %arg14[%c1_97, %c0_98], %92 {strides = array<i32>} : memref<18x512xbf16, #tpu.memory_space<vmem>>, vector<16x512xbf16>,
    } else {
    }
    %c1 = arith.constant 1 : index
    %c0 = arith.constant 0 : index
    %3 = vector.load %arg14[%c1, %c0] : memref<18x512xbf16, #tpu.memory_space<vmem>>, vector<16x512xbf16>
    %c0_1 = arith.constant 0 : index
    %c0_2 = arith.constant 0 : index
    %c0_3 = arith.constant 0 : index
    %4 = vector.load %arg7[%c0_1, %c0_2, %c0_3] : memref<1x1x512xf32, #tpu.memory_space<vmem>>, vector<1x1x512xf32>
    %5 = vector.shape_cast %4 : vector<1x1x512xf32> to vector<1x512xf32>
    %c0_4 = arith.constant 0 : index
    %c0_5 = arith.constant 0 : index
    %c0_6 = arith.constant 0 : index
    %6 = vector.load %arg8[%c0_4, %c0_5, %c0_6] : memref<1x1x512xf32, #tpu.memory_space<vmem>>, vector<1x1x512xf32>
    %7 = vector.shape_cast %6 : vector<1x1x512xf32> to vector<1x512xf32>
    %c0_7 = arith.constant 0 : index
    %c0_8 = arith.constant 0 : index
    %8 = vector.load %arg14[%c0_7, %c0_8] : memref<18x512xbf16, #tpu.memory_space<vmem>>, vector<16x512xbf16>
    %c0_9 = arith.constant 0 : index
    %c0_10 = arith.constant 0 : index
    %c0_11 = arith.constant 0 : index
    %c0_12 = arith.constant 0 : index
    %9 = vector.load %arg6[%c0_9, %c0_10, %c0_11, %c0_12] : memref<1x3x512x512xbf16, #tpu.memory_space<vmem>>, vector<1x1x512x512xbf16>
    %10 = vector.shape_cast %9 : vector<1x1x512x512xbf16> to vector<512x512xbf16>
    %cst = arith.constant dense<0.000000e+00> : vector<16x512xf32>
    %11 = tpu.matmul %8, %10, %cst {dimension_numbers = #tpu.dot_dimension_numbers<[1], [0], [0], [1], [0, 0, 1, 1], [], []>} : vector<16x512xbf16>, vector<512x512xbf16>, vector<16x512xf32> -> vector<16x512xf32>
    %c1_13 = arith.constant 1 : index
    %c0_14 = arith.constant 0 : index
    %12 = vector.load %arg14[%c1_13, %c0_14] : memref<18x512xbf16, #tpu.memory_space<vmem>>, vector<16x512xbf16>
    %c0_15 = arith.constant 0 : index
    %c1_16 = arith.constant 1 : index
    %c0_17 = arith.constant 0 : index
    %c0_18 = arith.constant 0 : index
    %13 = vector.load %arg6[%c0_15, %c1_16, %c0_17, %c0_18] : memref<1x3x512x512xbf16, #tpu.memory_space<vmem>>, vector<1x1x512x512xbf16>
    %14 = vector.shape_cast %13 : vector<1x1x512x512xbf16> to vector<512x512xbf16>
    %cst_19 = arith.constant dense<0.000000e+00> : vector<16x512xf32>
    %15 = tpu.matmul %12, %14, %cst_19 {dimension_numbers = #tpu.dot_dimension_numbers<[1], [0], [0], [1], [0, 0, 1, 1], [], []>} : vector<16x512xbf16>, vector<512x512xbf16>, vector<16x512xf32> -> vector<16x512xf32>
    %16 = arith.addf %11, %15 : vector<16x512xf32>
    %c2 = arith.constant 2 : index
    %c0_20 = arith.constant 0 : index
    %17 = vector.load %arg14[%c2, %c0_20] : memref<18x512xbf16, #tpu.memory_space<vmem>>, vector<16x512xbf16>
    %c0_21 = arith.constant 0 : index
    %c2_22 = arith.constant 2 : index
    %c0_23 = arith.constant 0 : index
    %c0_24 = arith.constant 0 : index
    %18 = vector.load %arg6[%c0_21, %c2_22, %c0_23, %c0_24] : memref<1x3x512x512xbf16, #tpu.memory_space<vmem>>, vector<1x1x512x512xbf16>
    %19 = vector.shape_cast %18 : vector<1x1x512x512xbf16> to vector<512x512xbf16>
    %cst_25 = arith.constant dense<0.000000e+00> : vector<16x512xf32>
    %20 = tpu.matmul %17, %19, %cst_25 {dimension_numbers = #tpu.dot_dimension_numbers<[1], [0], [0], [1], [0, 0, 1, 1], [], []>} : vector<16x512xbf16>, vector<512x512xbf16>, vector<16x512xf32> -> vector<16x512xf32>
    %21 = arith.addf %16, %20 : vector<16x512xf32>
    %22 = vector.broadcast %5 : vector<1x512xf32> to vector<16x512xf32>
    %23 = arith.mulf %21, %22 : vector<16x512xf32>
    %24 = vector.broadcast %7 : vector<1x512xf32> to vector<16x512xf32>
    %25 = arith.addf %23, %24 : vector<16x512xf32>
    %cst_26 = arith.constant 0.000000e+00 : f32
    %26 = vector.broadcast %cst_26 : f32 to vector<16x512xf32>
    %27 = arith.maximumf %25, %26 : vector<16x512xf32>
    %28 = arith.truncf %27 : vector<16x512xf32> to vector<16x512xbf16>
    %c1_27 = arith.constant 1 : index
    %c0_28 = arith.constant 0 : index
    %29 = vector.load %arg14[%c1_27, %c0_28] : memref<18x512xbf16, #tpu.memory_space<vmem>>, vector<16x512xbf16>
    tpu.vector_store %arg14[%c1_27, %c0_28], %28 {strides = array<i32>} : memref<18x512xbf16, #tpu.memory_space<vmem>>, vector<16x512xbf16>,
    %c0_29 = arith.constant 0 : index
    %c0_30 = arith.constant 0 : index
    %c0_31 = arith.constant 0 : index
    %30 = vector.load %arg10[%c0_29, %c0_30, %c0_31] : memref<1x1x512xf32, #tpu.memory_space<vmem>>, vector<1x1x512xf32>
    %31 = vector.shape_cast %30 : vector<1x1x512xf32> to vector<1x512xf32>
    %c0_32 = arith.constant 0 : index
    %c0_33 = arith.constant 0 : index
    %c0_34 = arith.constant 0 : index
    %32 = vector.load %arg11[%c0_32, %c0_33, %c0_34] : memref<1x1x512xf32, #tpu.memory_space<vmem>>, vector<1x1x512xf32>
    %33 = vector.shape_cast %32 : vector<1x1x512xf32> to vector<1x512xf32>
    %34 = arith.extf %3 : vector<16x512xbf16> to vector<16x512xf32>
    %c0_35 = arith.constant 0 : index
    %c0_36 = arith.constant 0 : index
    %35 = vector.load %arg14[%c0_35, %c0_36] : memref<18x512xbf16, #tpu.memory_space<vmem>>, vector<16x512xbf16>
    %c0_37 = arith.constant 0 : index
    %c0_38 = arith.constant 0 : index
    %c0_39 = arith.constant 0 : index
    %c0_40 = arith.constant 0 : index
    %36 = vector.load %arg9[%c0_37, %c0_38, %c0_39, %c0_40] : memref<1x3x512x512xbf16, #tpu.memory_space<vmem>>, vector<1x1x512x512xbf16>
    %37 = vector.shape_cast %36 : vector<1x1x512x512xbf16> to vector<512x512xbf16>
    %cst_41 = arith.constant dense<0.000000e+00> : vector<16x512xf32>
    %38 = tpu.matmul %35, %37, %cst_41 {dimension_numbers = #tpu.dot_dimension_numbers<[1], [0], [0], [1], [0, 0, 1, 1], [], []>} : vector<16x512xbf16>, vector<512x512xbf16>, vector<16x512xf32> -> vector<16x512xf32>
    %c1_42 = arith.constant 1 : index
    %c0_43 = arith.constant 0 : index
    %39 = vector.load %arg14[%c1_42, %c0_43] : memref<18x512xbf16, #tpu.memory_space<vmem>>, vector<16x512xbf16>
    %c0_44 = arith.constant 0 : index
    %c1_45 = arith.constant 1 : index
    %c0_46 = arith.constant 0 : index
    %c0_47 = arith.constant 0 : index
    %40 = vector.load %arg9[%c0_44, %c1_45, %c0_46, %c0_47] : memref<1x3x512x512xbf16, #tpu.memory_space<vmem>>, vector<1x1x512x512xbf16>
    %41 = vector.shape_cast %40 : vector<1x1x512x512xbf16> to vector<512x512xbf16>
    %cst_48 = arith.constant dense<0.000000e+00> : vector<16x512xf32>
    %42 = tpu.matmul %39, %41, %cst_48 {dimension_numbers = #tpu.dot_dimension_numbers<[1], [0], [0], [1], [0, 0, 1, 1], [], []>} : vector<16x512xbf16>, vector<512x512xbf16>, vector<16x512xf32> -> vector<16x512xf32>
    %43 = arith.addf %38, %42 : vector<16x512xf32>
    %c2_49 = arith.constant 2 : index
    %c0_50 = arith.constant 0 : index
    %44 = vector.load %arg14[%c2_49, %c0_50] : memref<18x512xbf16, #tpu.memory_space<vmem>>, vector<16x512xbf16>
    %c0_51 = arith.constant 0 : index
    %c2_52 = arith.constant 2 : index
    %c0_53 = arith.constant 0 : index
    %c0_54 = arith.constant 0 : index
    %45 = vector.load %arg9[%c0_51, %c2_52, %c0_53, %c0_54] : memref<1x3x512x512xbf16, #tpu.memory_space<vmem>>, vector<1x1x512x512xbf16>
    %46 = vector.shape_cast %45 : vector<1x1x512x512xbf16> to vector<512x512xbf16>
    %cst_55 = arith.constant dense<0.000000e+00> : vector<16x512xf32>
    %47 = tpu.matmul %44, %46, %cst_55 {dimension_numbers = #tpu.dot_dimension_numbers<[1], [0], [0], [1], [0, 0, 1, 1], [], []>} : vector<16x512xbf16>, vector<512x512xbf16>, vector<16x512xf32> -> vector<16x512xf32>
    %48 = arith.addf %43, %47 : vector<16x512xf32>
    %49 = vector.broadcast %31 : vector<1x512xf32> to vector<16x512xf32>
    %50 = arith.mulf %48, %49 : vector<16x512xf32>
    %51 = vector.broadcast %33 : vector<1x512xf32> to vector<16x512xf32>
    %52 = arith.addf %50, %51 : vector<16x512xf32>
    %53 = arith.addf %52, %34 : vector<16x512xf32>
    %cst_56 = arith.constant 0.000000e+00 : f32
    %54 = vector.broadcast %cst_56 : f32 to vector<16x512xf32>
    %55 = arith.maximumf %53, %54 : vector<16x512xf32>
    %56 = arith.truncf %55 : vector<16x512xf32> to vector<16x512xbf16>
    %c1_57 = arith.constant 1 : index
    %c0_58 = arith.constant 0 : index
    %57 = vector.load %arg14[%c1_57, %c0_58] : memref<18x512xbf16, #tpu.memory_space<vmem>>, vector<16x512xbf16>
    tpu.vector_store %arg14[%c1_57, %c0_58], %56 {strides = array<i32>} : memref<18x512xbf16, #tpu.memory_space<vmem>>, vector<16x512xbf16>,
    %c1_i32 = arith.constant 1 : i32
    %58 = arith.cmpi eq, %arg1, %c1_i32 : i32
    %59 = arith.extui %58 : i1 to i32
    %c0_i32_59 = arith.constant 0 : i32
    %60 = arith.cmpi ne, %59, %c0_i32_59 : i32
    scf.if %60 {
      %c0_60 = arith.constant 0 : index
      %c0_61 = arith.constant 0 : index
      %c0_62 = arith.constant 0 : index
      %61 = vector.load %arg12[%c0_60, %c0_61, %c0_62] : memref<1x16x512xf32, #tpu.memory_space<vmem>>, vector<1x16x512xf32>
      %62 = vector.shape_cast %61 : vector<1x16x512xf32> to vector<16x512xf32>
      %63 = vector.shape_cast %55 : vector<16x512xf32> to vector<1x16x512xf32>
      tpu.vector_store %arg12[%c0_60, %c0_61, %c0_62], %63 {strides = array<i32>} : memref<1x16x512xf32, #tpu.memory_space<vmem>>, vector<1x16x512xf32>,
    } else {
    }
    return
  }
  func.func @transform_0(%arg0: i32, %arg1: i32) -> (i32, i32, i32) {
    %c0_i32 = arith.constant 0 : i32
    %c0_i32_0 = arith.constant 0 : i32
    %c0_i32_1 = arith.constant 0 : i32
    return %arg0, %c0_i32, %c0_i32_0 : i32, i32, i32
  }
  func.func @transform_1(%arg0: i32, %arg1: i32) -> (i32, i32, i32) {
    %c0_i32 = arith.constant 0 : i32
    %c0_i32_0 = arith.constant 0 : i32
    %c0_i32_1 = arith.constant 0 : i32
    %c0_i32_2 = arith.constant 0 : i32
    return %c0_i32, %c0_i32_0, %c0_i32_1 : i32, i32, i32
  }
  func.func @transform_2(%arg0: i32, %arg1: i32) -> (i32, i32) {
    %c0_i32 = arith.constant 0 : i32
    %c0_i32_0 = arith.constant 0 : i32
    %c0_i32_1 = arith.constant 0 : i32
    return %c0_i32, %c0_i32_0 : i32, i32
  }
  func.func @transform_3(%arg0: i32, %arg1: i32) -> (i32, i32) {
    %c0_i32 = arith.constant 0 : i32
    %c0_i32_0 = arith.constant 0 : i32
    %c0_i32_1 = arith.constant 0 : i32
    return %c0_i32, %c0_i32_0 : i32, i32
  }
  func.func @transform_4(%arg0: i32, %arg1: i32) -> (i32, i32, i32, i32) {
    %c0_i32 = arith.constant 0 : i32
    %c0_i32_0 = arith.constant 0 : i32
    %c0_i32_1 = arith.constant 0 : i32
    %c0_i32_2 = arith.constant 0 : i32
    return %arg1, %c0_i32, %c0_i32_0, %c0_i32_1 : i32, i32, i32, i32
  }
  func.func @transform_5(%arg0: i32, %arg1: i32) -> (i32, i32, i32) {
    %c0_i32 = arith.constant 0 : i32
    %c0_i32_0 = arith.constant 0 : i32
    %c0_i32_1 = arith.constant 0 : i32
    return %arg1, %c0_i32, %c0_i32_0 : i32, i32, i32
  }
  func.func @transform_6(%arg0: i32, %arg1: i32) -> (i32, i32, i32) {
    %c0_i32 = arith.constant 0 : i32
    %c0_i32_0 = arith.constant 0 : i32
    %c0_i32_1 = arith.constant 0 : i32
    return %arg1, %c0_i32, %c0_i32_0 : i32, i32, i32
  }
  func.func @transform_7(%arg0: i32, %arg1: i32) -> (i32, i32, i32, i32) {
    %c0_i32 = arith.constant 0 : i32
    %c0_i32_0 = arith.constant 0 : i32
    %c0_i32_1 = arith.constant 0 : i32
    %c0_i32_2 = arith.constant 0 : i32
    return %arg1, %c0_i32, %c0_i32_0, %c0_i32_1 : i32, i32, i32, i32
  }
  func.func @transform_8(%arg0: i32, %arg1: i32) -> (i32, i32, i32) {
    %c0_i32 = arith.constant 0 : i32
    %c0_i32_0 = arith.constant 0 : i32
    %c0_i32_1 = arith.constant 0 : i32
    return %arg1, %c0_i32, %c0_i32_0 : i32, i32, i32
  }
  func.func @transform_9(%arg0: i32, %arg1: i32) -> (i32, i32, i32) {
    %c0_i32 = arith.constant 0 : i32
    %c0_i32_0 = arith.constant 0 : i32
    %c0_i32_1 = arith.constant 0 : i32
    return %arg1, %c0_i32, %c0_i32_0 : i32, i32, i32
  }
  func.func @transform_10(%arg0: i32, %arg1: i32) -> (i32, i32, i32) {
    %c0_i32 = arith.constant 0 : i32
    %c0_i32_0 = arith.constant 0 : i32
    %c0_i32_1 = arith.constant 0 : i32
    return %arg0, %c0_i32, %c0_i32_0 : i32, i32, i32
  }
}

</mosaic_0001>

<llo_original>
// kernel: tile.63
$region0: #{tile.63}
  #allocation0 [shape = 's32[1]{0}', space=sflag, size = 0x4, scoped, tag = 'scoped memory for tile.63']
  %s0 = inlined_call_operand.vmem [shape: f32[32], index: 0, kind: input, shape index: {}]
  %s1 = inlined_call_operand.vmem [shape: f32[16,32], index: 1, kind: output, shape index: {}]
  // Predicated region
  $region2: #{tile.63} parent=0 // pred_check
    _
  $region3: #{tile.63} parent=0 // pred_check_branch
    %3 = sbr.rel (0) target = $region5
  $region4: #{tile.63} parent=0 // pred_region
    _
  $region5: #{tile.63} parent=0 // pred_fallthru
    _
  %v4 = vld [vmem:[%s0] ss:$0 sm:$0xff]
  %5 = vst [vmem:[%s1] sm:$0xff] %v4
  %s6 = scalar_lea.vmem %s1, 8
  %7 = vst [vmem:[%s6] sm:$0xff] %v4

// kernel: tile.68
$region0: #{tile.68}
  %s0 = inlined_call_operand.vmem [shape: f32[16,32], index: 0, kind: input, shape index: {}]
  %s1 = inlined_call_operand.vmem [shape: f32[1,1,512], index: 1, kind: output, shape index: {}]
  $region1: #{tile.68} parent=0
    #allocation0 [shape = 'u8[16384]{0}', space=vmem, size = 0x4000, scoped, tag = 'scoped mem for output reshape']
    %v2 = vld [vmem:[%s0] ss:$4 sm:$0xf]
    %vm3 = vcmask 261120
    %4 = vst.msk [vmem:[#allocation0] ss:$8 sm:$0xf] %vm3, %v2
    %s5 = scalar_lea.vmem %s0, 3
    %v6 = vld [vmem:[%s5] ss:$4 sm:$0xf]
    %7 = vrot.lane.b32.xlu0 %v6, 96
    %v8 = vpop.permute.xlu0 %7
    %vm9 = vcmask 1048320
    %10 = vst.msk [vmem:[#allocation0] ss:$8 sm:$0xf] %vm9, %v8
    %s11 = scalar_lea.vmem %s0, 2
    %v12 = vld [vmem:[%s11] ss:$4 sm:$0xf]
    %13 = vrot.lane.b32.xlu0 %v12, 64
    %v14 = vpop.permute.xlu0 %13
    %vm15 = vcmask 785920
    %16 = vst.msk [vmem:[#allocation0] ss:$8 sm:$0xf] %vm15, %v14
    %s17 = scalar_lea.vmem %s0, 1
    %v18 = vld [vmem:[%s17] ss:$4 sm:$0xf]
    %19 = vrot.lane.b32.xlu0 %v18, 32
    %v20 = vpop.permute.xlu0 %19
    %vm21 = vcmask 523520
    %22 = vst.msk [vmem:[#allocation0] ss:$8 sm:$0xf] %vm21, %v20
    %s24 = ssub.s32 2, 1
    %v25 = vld [vmem:[#allocation0] sm:%s24]
    %s27 = ssub.s32 2, 1
    %28 = vst [vmem:[%s1] sm:%s27] %v25
    %s29 = scalar_lea.vmem [#allocation0], 8
    %v30 = vld [vmem:[%s29] sm:%s24]
    %s32 = ssub.s32 2, 1
    %s33 = scalar_lea.vmem %s1, 1
    %34 = vst [vmem:[%s33] sm:%s32] %v30
    %s35 = scalar_lea.vmem [#allocation0], 16
    %v36 = vld [vmem:[%s35] sm:%s24]
    %s38 = ssub.s32 2, 1
    %s39 = scalar_lea.vmem %s1, 2
    %40 = vst [vmem:[%s39] sm:%s38] %v36
    %s41 = scalar_lea.vmem [#allocation0], 24
    %v42 = vld [vmem:[%s41] sm:%s24]
    %s44 = ssub.s32 2, 1
    %s45 = scalar_lea.vmem %s1, 3
    %46 = vst [vmem:[%s45] sm:%s44] %v42

// kernel: tile.54
$region0: #{tile.54}
  %s0 = inlined_call_operand.vmem [shape: f32[16,32], index: 0, kind: input, shape index: {}]
  %s1 = inlined_call_operand.vmem [shape: f32[1,512], index: 1, kind: output, shape index: {}]
  $region1: #{tile.54} parent=0
    #allocation0 [shape = 'u8[16384]{0}', space=vmem, size = 0x4000, scoped, tag = 'scoped mem for output reshape']
    %v2 = vld [vmem:[%s0] ss:$4 sm:$0xf]
    %vm3 = vcmask 261120
    %4 = vst.msk [vmem:[#allocation0] ss:$8 sm:$0xf] %vm3, %v2
    %s5 = scalar_lea.vmem %s0, 3
    %v6 = vld [vmem:[%s5] ss:$4 sm:$0xf]
    %7 = vrot.lane.b32.xlu0 %v6, 96
    %v8 = vpop.permute.xlu0 %7
    %vm9 = vcmask 1048320
    %10 = vst.msk [vmem:[#allocation0] ss:$8 sm:$0xf] %vm9, %v8
    %s11 = scalar_lea.vmem %s0, 2
    %v12 = vld [vmem:[%s11] ss:$4 sm:$0xf]
    %13 = vrot.lane.b32.xlu0 %v12, 64
    %v14 = vpop.permute.xlu0 %13
    %vm15 = vcmask 785920
    %16 = vst.msk [vmem:[#allocation0] ss:$8 sm:$0xf] %vm15, %v14
    %s17 = scalar_lea.vmem %s0, 1
    %v18 = vld [vmem:[%s17] ss:$4 sm:$0xf]
    %19 = vrot.lane.b32.xlu0 %v18, 32
    %v20 = vpop.permute.xlu0 %19
    %vm21 = vcmask 523520
    %22 = vst.msk [vmem:[#allocation0] ss:$8 sm:$0xf] %vm21, %v20
    %s24 = ssub.s32 2, 1
    %v25 = vld [vmem:[#allocation0] sm:%s24]
    %s27 = ssub.s32 2, 1
    %28 = vst [vmem:[%s1] sm:%s27] %v25
    %s29 = scalar_lea.vmem [#allocation0], 8
    %v30 = vld [vmem:[%s29] sm:%s24]
    %s32 = ssub.s32 2, 1
    %s33 = scalar_lea.vmem %s1, 1
    %34 = vst [vmem:[%s33] sm:%s32] %v30
    %s35 = scalar_lea.vmem [#allocation0], 16
    %v36 = vld [vmem:[%s35] sm:%s24]
    %s38 = ssub.s32 2, 1
    %s39 = scalar_lea.vmem %s1, 2
    %40 = vst [vmem:[%s39] sm:%s38] %v36
    %s41 = scalar_lea.vmem [#allocation0], 24
    %v42 = vld [vmem:[%s41] sm:%s24]
    %s44 = ssub.s32 2, 1
    %s45 = scalar_lea.vmem %s1, 3
    %46 = vst [vmem:[%s45] sm:%s44] %v42

// kernel: alphazero_image_block.1
$region0: #{alphazero_image_block.1}
  #allocation0 [shape = 'u32[]', space=smem, size = 0x4, offset = 0x4, fixed_abs, tag = 'smem constant byte address 0x4 - core index']
  #allocation1 [shape = 'u32[72,128]{1,0:T(1,128)}', space=vmem, size = 0x9000, scoped, tag = 'internal scratch']
  #allocation2 [shape = 'bf16[18,64]{1,0:T(8,128)(2,1)}', space=vmem, size = 0x1800, scoped, tag = 'scratch operand']
  #allocation3 [shape = 'bf16[18,512]{1,0:T(8,128)(2,1)}', space=vmem, size = 0x6000, scoped, tag = 'scratch operand']
  %s0 = inlined_call_operand.vmem [shape: bf16[2,16,64], index: 0, kind: input, shape index: {}]
  %s1 = inlined_call_operand.vmem [shape: bf16[3,64,512], index: 1, kind: input, shape index: {}]
  %s2 = inlined_call_operand.vmem [shape: f32[1,512], index: 2, kind: input, shape index: {}]
  %s3 = inlined_call_operand.vmem [shape: f32[1,512], index: 3, kind: input, shape index: {}]
  %s4 = inlined_call_operand.vmem [shape: bf16[2,3,512,512], index: 4, kind: input, shape index: {}]
  %s5 = inlined_call_operand.vmem [shape: f32[2,1,512], index: 5, kind: input, shape index: {}]
  %s6 = inlined_call_operand.vmem [shape: f32[2,1,512], index: 6, kind: input, shape index: {}]
  %s7 = inlined_call_operand.vmem [shape: bf16[2,3,512,512], index: 7, kind: input, shape index: {}]
  %s8 = inlined_call_operand.vmem [shape: f32[2,1,512], index: 8, kind: input, shape index: {}]
  %s9 = inlined_call_operand.vmem [shape: f32[2,1,512], index: 9, kind: input, shape index: {}]
  %s10 = inlined_call_operand.vmem [shape: f32[2,16,512], index: 10, kind: output, shape index: {}]
  %s11 = sld [smem:[#allocation0]]
  $region81: #{alphazero_image_block.1} parent=0
    _
  %s13 = ssub.s32 1, %s11
  %s14 = scalar_select 0, %s13, %s11
  loop: start=0, step=1, limit=6
  $region2: #{alphazero_image_block.1} parent=0 // loop_pre_header
    _
  $region3: #{alphazero_image_block.1} parent=0 // loop_header
    %s16 = sphi 0, %s20
    %p17 = scmp.ge.s32.totalorder %s16, 6
    %s23 = sphi 0, %s35
    %s24 = sphi 0, %s31
    %s25 = sphi 0, %s23
    %s26 = sphi 0, %s24
    %s27 = sphi 0, %s25
    %s28 = sphi 0, %s26
    %s38 = sphi 0, %s40
    %s41 = sphi 0, %s38
    %s42 = sphi 0, %s41
    %s58 = sphi 0, %s42
    %s62 = sphi 0, %s62
    %s64 = sphi 0, %s62
    %s65 = sphi 0, %s64
    %s79 = sphi 0, %s65
    %s83 = sphi 0, %s83
    %s85 = sphi 0, %s83
    %s86 = sphi 0, %s85
    %s100 = sphi 0, %s86
    %s104 = sphi 0, %s104
    %s106 = sphi 0, %s104
    %s107 = sphi 0, %s106
    %s121 = sphi 0, %s107
    %s127 = sphi 0, %s129
    %s130 = sphi 0, %s127
    %s131 = sphi 0, %s130
    %s147 = sphi 0, %s131
    %s153 = sphi 0, %s155
    %s156 = sphi 0, %s153
    %s157 = sphi 0, %s156
    %s173 = sphi 0, %s157
    %s179 = sphi 0, %s181
    %s182 = sphi 0, %s179
    %s183 = sphi 0, %s182
    %s199 = sphi 0, %s183
    %s205 = sphi 0, %s207
    %s208 = sphi 0, %s205
    %s209 = sphi 0, %s208
    %s225 = sphi 0, %s209
    %s231 = sphi 0, %s233
    %s234 = sphi 0, %s231
    %s235 = sphi 0, %s234
    %s251 = sphi 0, %s235
    %s257 = sphi 0, %s259
    %s260 = sphi 0, %s257
    %s261 = sphi 0, %s260
    %s277 = sphi 0, %s261
    %s283 = sphi 0, %s285
    %s286 = sphi 0, %s283
    %s287 = sphi 0, %s286
    %s303 = sphi 0, %s287
  $region4: #{alphazero_image_block.1} parent=0 // loop_header_branch
    %19 = sbr.rel (%p17) target = $region8
  $region5: #{alphazero_image_block.1} parent=0 // loop_body
    %s21 = ssub.s32 %s16, 1
    %s22 = ssub.s32 %s16, 2
    %s29 = sadd.s32 1, %s24
    %p30 = scmp.ge.s32.totalorder %s29, 2
    %s31 = scalar_select %p30, 0, %s29
    %s32 = sadd.s32 1, %s23
    %s33 = scalar_select %p30, %s32, %s23
    %p34 = scmp.ge.s32.totalorder %s33, 2
    %s35 = scalar_select %p34, 0, %s33
    %s36 = ssub.s32 %s23, %s35
    %p37 = scmp.eq.s32.totalorder %s36, 0
    %s39 = sadd.s32 %s38, 1
    %s40 = scalar_select %p37, %s38, %s39
    %p43 = pneg %p37
    %p44 = scmp.eq.s32.totalorder %s16, 3
    %p45 = por %p43, %p44
    %p46 = scmp.ne.s32.totalorder %s38, %s41
    %p47 = scmp.eq.s32.totalorder %s16, 0
    %p48 = por %p46, %p47
    %p49 = scmp.ne.s32.totalorder %s38, %s41
    %p50 = scmp.eq.s32.totalorder %s21, 3
    %p51 = por %p49, %p50
    %p52 = scmp.ne.s32.totalorder %s41, %s42
    %p53 = scmp.eq.s32.totalorder %s21, 0
    %p54 = por %p52, %p53
    %p55 = scmp.ne.s32.totalorder %s41, %s42
    %p56 = scmp.eq.s32.totalorder %s22, 3
    %p57 = por %p55, %p56
    %p59 = scmp.ne.s32.totalorder %s42, %s58
    %p60 = scmp.eq.s32.totalorder %s22, 0
    %p61 = por %p59, %p60
    %s63 = sadd.s32 %s62, 1
    %p66 = scmp.eq.s32.totalorder %s16, 3
    %p67 = scmp.ne.s32.totalorder %s62, %s64
    %p68 = scmp.eq.s32.totalorder %s16, 0
    %p69 = por %p67, %p68
    %p70 = scmp.ne.s32.totalorder %s62, %s64
    %p71 = scmp.eq.s32.totalorder %s21, 3
    %p72 = por %p70, %p71
    %p73 = scmp.ne.s32.totalorder %s64, %s65
    %p74 = scmp.eq.s32.totalorder %s21, 0
    %p75 = por %p73, %p74
    %p76 = scmp.ne.s32.totalorder %s64, %s65
    %p77 = scmp.eq.s32.totalorder %s22, 3
    %p78 = por %p76, %p77
    %p80 = scmp.ne.s32.totalorder %s65, %s79
    %p81 = scmp.eq.s32.totalorder %s22, 0
    %p82 = por %p80, %p81
    %s84 = sadd.s32 %s83, 1
    %p87 = scmp.eq.s32.totalorder %s16, 3
    %p88 = scmp.ne.s32.totalorder %s83, %s85
    %p89 = scmp.eq.s32.totalorder %s16, 0
    %p90 = por %p88, %p89
    %p91 = scmp.ne.s32.totalorder %s83, %s85
    %p92 = scmp.eq.s32.totalorder %s21, 3
    %p93 = por %p91, %p92
    %p94 = scmp.ne.s32.totalorder %s85, %s86
    %p95 = scmp.eq.s32.totalorder %s21, 0
    %p96 = por %p94, %p95
    %p97 = scmp.ne.s32.totalorder %s85, %s86
    %p98 = scmp.eq.s32.totalorder %s22, 3
    %p99 = por %p97, %p98
    %p101 = scmp.ne.s32.totalorder %s86, %s100
    %p102 = scmp.eq.s32.totalorder %s22, 0
    %p103 = por %p101, %p102
    %s105 = sadd.s32 %s104, 1
    %p108 = scmp.eq.s32.totalorder %s16, 3
    %p109 = scmp.ne.s32.totalorder %s104, %s106
    %p110 = scmp.eq.s32.totalorder %s16, 0
    %p111 = por %p109, %p110
    %p112 = scmp.ne.s32.totalorder %s104, %s106
    %p113 = scmp.eq.s32.totalorder %s21, 3
    %p114 = por %p112, %p113
    %p115 = scmp.ne.s32.totalorder %s106, %s107
    %p116 = scmp.eq.s32.totalorder %s21, 0
    %p117 = por %p115, %p116
    %p118 = scmp.ne.s32.totalorder %s106, %s107
    %p119 = scmp.eq.s32.totalorder %s22, 3
    %p120 = por %p118, %p119
    %p122 = scmp.ne.s32.totalorder %s107, %s121
    %p123 = scmp.eq.s32.totalorder %s22, 0
    %p124 = por %p122, %p123
    %s125 = ssub.s32 %s24, %s31
    %p126 = scmp.eq.s32.totalorder %s125, 0
    %s128 = sadd.s32 %s127, 1
    %s129 = scalar_select %p126, %s127, %s128
    %p132 = pneg %p126
    %p133 = scmp.eq.s32.totalorder %s16, 3
    %p134 = por %p132, %p133
    %p135 = scmp.ne.s32.totalorder %s127, %s130
    %p136 = scmp.eq.s32.totalorder %s16, 0
    %p137 = por %p135, %p136
    %p138 = scmp.ne.s32.totalorder %s127, %s130
    %p139 = scmp.eq.s32.totalorder %s21, 3
    %p140 = por %p138, %p139
    %p141 = scmp.ne.s32.totalorder %s130, %s131
    %p142 = scmp.eq.s32.totalorder %s21, 0
    %p143 = por %p141, %p142
    %p144 = scmp.ne.s32.totalorder %s130, %s131
    %p145 = scmp.eq.s32.totalorder %s22, 3
    %p146 = por %p144, %p145
    %p148 = scmp.ne.s32.totalorder %s131, %s147
    %p149 = scmp.eq.s32.totalorder %s22, 0
    %p150 = por %p148, %p149
    %s151 = ssub.s32 %s24, %s31
    %p152 = scmp.eq.s32.totalorder %s151, 0
    %s154 = sadd.s32 %s153, 1
    %s155 = scalar_select %p152, %s153, %s154
    %p158 = pneg %p152
    %p159 = scmp.eq.s32.totalorder %s16, 3
    %p160 = por %p158, %p159
    %p161 = scmp.ne.s32.totalorder %s153, %s156
    %p162 = scmp.eq.s32.totalorder %s16, 0
    %p163 = por %p161, %p162
    %p164 = scmp.ne.s32.totalorder %s153, %s156
    %p165 = scmp.eq.s32.totalorder %s21, 3
    %p166 = por %p164, %p165
    %p167 = scmp.ne.s32.totalorder %s156, %s157
    %p168 = scmp.eq.s32.totalorder %s21, 0
    %p169 = por %p167, %p168
    %p170 = scmp.ne.s32.totalorder %s156, %s157
    %p171 = scmp.eq.s32.totalorder %s22, 3
    %p172 = por %p170, %p171
    %p174 = scmp.ne.s32.totalorder %s157, %s173
    %p175 = scmp.eq.s32.totalorder %s22, 0
    %p176 = por %p174, %p175
    %s177 = ssub.s32 %s24, %s31
    %p178 = scmp.eq.s32.totalorder %s177, 0
    %s180 = sadd.s32 %s179, 1
    %s181 = scalar_select %p178, %s179, %s180
    %p184 = pneg %p178
    %p185 = scmp.eq.s32.totalorder %s16, 3
    %p186 = por %p184, %p185
    %p187 = scmp.ne.s32.totalorder %s179, %s182
    %p188 = scmp.eq.s32.totalorder %s16, 0
    %p189 = por %p187, %p188
    %p190 = scmp.ne.s32.totalorder %s179, %s182
    %p191 = scmp.eq.s32.totalorder %s21, 3
    %p192 = por %p190, %p191
    %p193 = scmp.ne.s32.totalorder %s182, %s183
    %p194 = scmp.eq.s32.totalorder %s21, 0
    %p195 = por %p193, %p194
    %p196 = scmp.ne.s32.totalorder %s182, %s183
    %p197 = scmp.eq.s32.totalorder %s22, 3
    %p198 = por %p196, %p197
    %p200 = scmp.ne.s32.totalorder %s183, %s199
    %p201 = scmp.eq.s32.totalorder %s22, 0
    %p202 = por %p200, %p201
    %s203 = ssub.s32 %s24, %s31
    %p204 = scmp.eq.s32.totalorder %s203, 0
    %s206 = sadd.s32 %s205, 1
    %s207 = scalar_select %p204, %s205, %s206
    %p210 = pneg %p204
    %p211 = scmp.eq.s32.totalorder %s16, 3
    %p212 = por %p210, %p211
    %p213 = scmp.ne.s32.totalorder %s205, %s208
    %p214 = scmp.eq.s32.totalorder %s16, 0
    %p215 = por %p213, %p214
    %p216 = scmp.ne.s32.totalorder %s205, %s208
    %p217 = scmp.eq.s32.totalorder %s21, 3
    %p218 = por %p216, %p217
    %p219 = scmp.ne.s32.totalorder %s208, %s209
    %p220 = scmp.eq.s32.totalorder %s21, 0
    %p221 = por %p219, %p220
    %p222 = scmp.ne.s32.totalorder %s208, %s209
    %p223 = scmp.eq.s32.totalorder %s22, 3
    %p224 = por %p222, %p223
    %p226 = scmp.ne.s32.totalorder %s209, %s225
    %p227 = scmp.eq.s32.totalorder %s22, 0
    %p228 = por %p226, %p227
    %s229 = ssub.s32 %s24, %s31
    %p230 = scmp.eq.s32.totalorder %s229, 0
    %s232 = sadd.s32 %s231, 1
    %s233 = scalar_select %p230, %s231, %s232
    %p236 = pneg %p230
    %p237 = scmp.eq.s32.totalorder %s16, 3
    %p238 = por %p236, %p237
    %p239 = scmp.ne.s32.totalorder %s231, %s234
    %p240 = scmp.eq.s32.totalorder %s16, 0
    %p241 = por %p239, %p240
    %p242 = scmp.ne.s32.totalorder %s231, %s234
    %p243 = scmp.eq.s32.totalorder %s21, 3
    %p244 = por %p242, %p243
    %p245 = scmp.ne.s32.totalorder %s234, %s235
    %p246 = scmp.eq.s32.totalorder %s21, 0
    %p247 = por %p245, %p246
    %p248 = scmp.ne.s32.totalorder %s234, %s235
    %p249 = scmp.eq.s32.totalorder %s22, 3
    %p250 = por %p248, %p249
    %p252 = scmp.ne.s32.totalorder %s235, %s251
    %p253 = scmp.eq.s32.totalorder %s22, 0
    %p254 = por %p252, %p253
    %s255 = ssub.s32 %s24, %s31
    %p256 = scmp.eq.s32.totalorder %s255, 0
    %s258 = sadd.s32 %s257, 1
    %s259 = scalar_select %p256, %s257, %s258
    %p262 = pneg %p256
    %p263 = scmp.eq.s32.totalorder %s16, 3
    %p264 = por %p262, %p263
    %p265 = scmp.ne.s32.totalorder %s257, %s260
    %p266 = scmp.eq.s32.totalorder %s16, 0
    %p267 = por %p265, %p266
    %p268 = scmp.ne.s32.totalorder %s257, %s260
    %p269 = scmp.eq.s32.totalorder %s21, 3
    %p270 = por %p268, %p269
    %p271 = scmp.ne.s32.totalorder %s260, %s261
    %p272 = scmp.eq.s32.totalorder %s21, 0
    %p273 = por %p271, %p272
    %p274 = scmp.ne.s32.totalorder %s260, %s261
    %p275 = scmp.eq.s32.totalorder %s22, 3
    %p276 = por %p274, %p275
    %p278 = scmp.ne.s32.totalorder %s261, %s277
    %p279 = scmp.eq.s32.totalorder %s22, 0
    %p280 = por %p278, %p279
    %s281 = ssub.s32 %s23, %s35
    %p282 = scmp.eq.s32.totalorder %s281, 0
    %s284 = sadd.s32 %s283, 1
    %s285 = scalar_select %p282, %s283, %s284
    %p288 = pneg %p282
    %p289 = scmp.eq.s32.totalorder %s16, 3
    %p290 = por %p288, %p289
    %p291 = scmp.ne.s32.totalorder %s283, %s286
    %p292 = scmp.eq.s32.totalorder %s16, 0
    %p293 = por %p291, %p292
    %p294 = scmp.ne.s32.totalorder %s283, %s286
    %p295 = scmp.eq.s32.totalorder %s21, 3
    %p296 = por %p294, %p295
    %p297 = scmp.ne.s32.totalorder %s286, %s287
    %p298 = scmp.eq.s32.totalorder %s21, 0
    %p299 = por %p297, %p298
    %p300 = scmp.ne.s32.totalorder %s286, %s287
    %p301 = scmp.eq.s32.totalorder %s22, 3
    %p302 = por %p300, %p301
    %p304 = scmp.ne.s32.totalorder %s287, %s303
    %p305 = scmp.eq.s32.totalorder %s22, 0
    %p306 = por %p304, %p305
    %p307 = scmp.le.s32.totalorder 1, %s16
    %p308 = scmp.lt.s32.totalorder %s16, 5
    %p309 = pnand %p307, %p308
    %p310 = pneg %p309
    // Predicated region
    $region9: #{alphazero_image_block.1} parent=5 // pred_check
      _
    $region10: #{alphazero_image_block.1} parent=5 // pred_check_branch
      %312 = sbr.rel (%p309) target = $region12
    $region11: #{alphazero_image_block.1} parent=5 // pred_region
      %s313 = ssub.s32 %s16, 1
      // Predicated region
      $region13: #{alphazero_image_block.1} parent=11 // pred_check
        %p314 = pneg %p75
      $region14: #{alphazero_image_block.1} parent=11 // pred_check_branch
        %316 = sbr.rel (%p314) target = $region16
      $region15: #{alphazero_image_block.1} parent=11 // pred_region
        _
      $region16: #{alphazero_image_block.1} parent=11 // pred_fallthru
        _
      // Predicated region
      $region17: #{alphazero_image_block.1} parent=11 // pred_check
        %p317 = pneg %p96
      $region18: #{alphazero_image_block.1} parent=11 // pred_check_branch
        %319 = sbr.rel (%p317) target = $region20
      $region19: #{alphazero_image_block.1} parent=11 // pred_region
        _
      $region20: #{alphazero_image_block.1} parent=11 // pred_fallthru
        _
      // Predicated region
      $region21: #{alphazero_image_block.1} parent=11 // pred_check
        %p320 = pneg %p117
      $region22: #{alphazero_image_block.1} parent=11 // pred_check_branch
        %322 = sbr.rel (%p320) target = $region24
      $region23: #{alphazero_image_block.1} parent=11 // pred_region
        _
      $region24: #{alphazero_image_block.1} parent=11 // pred_fallthru
        _
    $region12: #{alphazero_image_block.1} parent=5 // pred_fallthru
      _
    %p323 = scmp.lt.s32.totalorder %s16, 4
    // Predicated region
    $region25: #{alphazero_image_block.1} parent=5 // pred_check
      %p324 = pneg %p323
    $region26: #{alphazero_image_block.1} parent=5 // pred_check_branch
      %326 = sbr.rel (%p324) target = $region28
    $region27: #{alphazero_image_block.1} parent=5 // pred_region
      // Predicated region
      $region29: #{alphazero_image_block.1} parent=27 // pred_check
        %p327 = pneg %p48
      $region30: #{alphazero_image_block.1} parent=27 // pred_check_branch
        %329 = sbr.rel (%p327) target = $region32
      $region31: #{alphazero_image_block.1} parent=27 // pred_region
        %p330 = scmp.lt.s32.totalorder %s23, 1
        %s331 = scalar_select %p330, %s23, 1
        %s332 = smul.addr %s331, 2
        %s333 = smul.addr %s332, 4
        %s334 = scalar_lea.vmem %s0, %s333
      $region32: #{alphazero_image_block.1} parent=27 // pred_fallthru
        _
      // Predicated region
      $region33: #{alphazero_image_block.1} parent=27 // pred_check
        %p335 = pneg %p137
      $region34: #{alphazero_image_block.1} parent=27 // pred_check_branch
        %337 = sbr.rel (%p335) target = $region36
      $region35: #{alphazero_image_block.1} parent=27 // pred_region
        %p338 = scmp.lt.s32.totalorder %s24, 1
        %s339 = scalar_select %p338, %s24, 1
        %s340 = smul.addr %s339, 768
        %s341 = smul.addr %s340, 4
        %s342 = scalar_lea.vmem %s4, %s341
      $region36: #{alphazero_image_block.1} parent=27 // pred_fallthru
        _
      // Predicated region
      $region37: #{alphazero_image_block.1} parent=27 // pred_check
        %p343 = pneg %p163
      $region38: #{alphazero_image_block.1} parent=27 // pred_check_branch
        %345 = sbr.rel (%p343) target = $region40
      $region39: #{alphazero_image_block.1} parent=27 // pred_region
        %p346 = scmp.lt.s32.totalorder %s24, 1
        %s347 = scalar_select %p346, %s24, 1
        %s348 = smul.addr %s347, 4
        %s349 = scalar_lea.vmem %s5, %s348
      $region40: #{alphazero_image_block.1} parent=27 // pred_fallthru
        _
      // Predicated region
      $region41: #{alphazero_image_block.1} parent=27 // pred_check
        %p350 = pneg %p189
      $region42: #{alphazero_image_block.1} parent=27 // pred_check_branch
        %352 = sbr.rel (%p350) target = $region44
      $region43: #{alphazero_image_block.1} parent=27 // pred_region
        %p353 = scmp.lt.s32.totalorder %s24, 1
        %s354 = scalar_select %p353, %s24, 1
        %s355 = smul.addr %s354, 4
        %s356 = scalar_lea.vmem %s6, %s355
      $region44: #{alphazero_image_block.1} parent=27 // pred_fallthru
        _
      // Predicated region
      $region45: #{alphazero_image_block.1} parent=27 // pred_check
        %p357 = pneg %p215
      $region46: #{alphazero_image_block.1} parent=27 // pred_check_branch
        %359 = sbr.rel (%p357) target = $region48
      $region47: #{alphazero_image_block.1} parent=27 // pred_region
        %p360 = scmp.lt.s32.totalorder %s24, 1
        %s361 = scalar_select %p360, %s24, 1
        %s362 = smul.addr %s361, 768
        %s363 = smul.addr %s362, 4
        %s364 = scalar_lea.vmem %s7, %s363
      $region48: #{alphazero_image_block.1} parent=27 // pred_fallthru
        _
      // Predicated region
      $region49: #{alphazero_image_block.1} parent=27 // pred_check
        %p365 = pneg %p241
      $region50: #{alphazero_image_block.1} parent=27 // pred_check_branch
        %367 = sbr.rel (%p365) target = $region52
      $region51: #{alphazero_image_block.1} parent=27 // pred_region
        %p368 = scmp.lt.s32.totalorder %s24, 1
        %s369 = scalar_select %p368, %s24, 1
        %s370 = smul.addr %s369, 4
        %s371 = scalar_lea.vmem %s8, %s370
      $region52: #{alphazero_image_block.1} parent=27 // pred_fallthru
        _
      // Predicated region
      $region53: #{alphazero_image_block.1} parent=27 // pred_check
        %p372 = pneg %p267
      $region54: #{alphazero_image_block.1} parent=27 // pred_check_branch
        %374 = sbr.rel (%p372) target = $region56
      $region55: #{alphazero_image_block.1} parent=27 // pred_region
        %p375 = scmp.lt.s32.totalorder %s24, 1
        %s376 = scalar_select %p375, %s24, 1
        %s377 = smul.addr %s376, 4
        %s378 = scalar_lea.vmem %s9, %s377
      $region56: #{alphazero_image_block.1} parent=27 // pred_fallthru
        _
    $region28: #{alphazero_image_block.1} parent=5 // pred_fallthru
      _
    %p379 = scmp.le.s32.totalorder 1, %s16
    %p380 = scmp.lt.s32.totalorder %s16, 5
    %p381 = pnand %p379, %p380
    %p382 = pneg %p381
    // Predicated region
    $region57: #{alphazero_image_block.1} parent=5 // pred_check
      _
    $region58: #{alphazero_image_block.1} parent=5 // pred_check_branch
      %384 = sbr.rel (%p381) target = $region60
    $region59: #{alphazero_image_block.1} parent=5 // pred_region
      %s385 = ssub.s32 %s16, 1
      %p386 = scmp.lt.s32.totalorder %s25, 1
      %s387 = scalar_select %p386, %s25, 1
      %s388 = smul.addr %s387, 2
      %s389 = smul.addr %s388, 4
      %s390 = scalar_lea.vmem %s0, %s389
      %p391 = pneg %p54
      %p392 = pneg %p51
      %p393 = pneg %p75
      %p394 = pneg %p72
      %p395 = pneg %p96
      %p396 = pneg %p93
      %p397 = pneg %p117
      %p398 = pneg %p114
      %p399 = scmp.lt.s32.totalorder %s26, 1
      %s400 = scalar_select %p399, %s26, 1
      %s401 = smul.addr %s400, 768
      %s402 = smul.addr %s401, 4
      %s403 = scalar_lea.vmem %s4, %s402
      %p404 = pneg %p143
      %p405 = pneg %p140
      %p406 = scmp.lt.s32.totalorder %s26, 1
      %s407 = scalar_select %p406, %s26, 1
      %s408 = smul.addr %s407, 4
      %s409 = scalar_lea.vmem %s5, %s408
      %p410 = pneg %p169
      %p411 = pneg %p166
      %p412 = scmp.lt.s32.totalorder %s26, 1
      %s413 = scalar_select %p412, %s26, 1
      %s414 = smul.addr %s413, 4
      %s415 = scalar_lea.vmem %s6, %s414
      %p416 = pneg %p195
      %p417 = pneg %p192
      %p418 = scmp.lt.s32.totalorder %s26, 1
      %s419 = scalar_select %p418, %s26, 1
      %s420 = smul.addr %s419, 768
      %s421 = smul.addr %s420, 4
      %s422 = scalar_lea.vmem %s7, %s421
      %p423 = pneg %p221
      %p424 = pneg %p218
      %p425 = scmp.lt.s32.totalorder %s26, 1
      %s426 = scalar_select %p425, %s26, 1
      %s427 = smul.addr %s426, 4
      %s428 = scalar_lea.vmem %s8, %s427
      %p429 = pneg %p247
      %p430 = pneg %p244
      %p431 = scmp.lt.s32.totalorder %s26, 1
      %s432 = scalar_select %p431, %s26, 1
      %s433 = smul.addr %s432, 4
      %s434 = scalar_lea.vmem %s9, %s433
      %p435 = pneg %p273
      %p436 = pneg %p270
      %p437 = pneg %p299
      %p438 = pneg %p296
      %p439 = scmp.lt.s32.totalorder %s25, 1
      %s440 = scalar_select %p439, %s25, 1
      %s441 = smul.addr %s440, 8
      %s442 = smul.addr %s441, 8
      %s443 = scalar_lea.vmem %s10, %s442
      %p444 = scmp.lt.s32.totalorder %s25, 1
      %s445 = scalar_select %p444, %s25, 1
      %s446 = smul.addr %s445, 2
      %s447 = smul.addr %s446, 4
      %s448 = scalar_lea.vmem %s0, %s447
      %p449 = scmp.lt.s32.totalorder %s26, 1
      %s450 = scalar_select %p449, %s26, 1
      %s451 = smul.addr %s450, 768
      %s452 = smul.addr %s451, 4
      %s453 = scalar_lea.vmem %s4, %s452
      %p454 = scmp.lt.s32.totalorder %s26, 1
      %s455 = scalar_select %p454, %s26, 1
      %s456 = smul.addr %s455, 4
      %s457 = scalar_lea.vmem %s5, %s456
      %p458 = scmp.lt.s32.totalorder %s26, 1
      %s459 = scalar_select %p458, %s26, 1
      %s460 = smul.addr %s459, 4
      %s461 = scalar_lea.vmem %s6, %s460
      %p462 = scmp.lt.s32.totalorder %s26, 1
      %s463 = scalar_select %p462, %s26, 1
      %s464 = smul.addr %s463, 768
      %s465 = smul.addr %s464, 4
      %s466 = scalar_lea.vmem %s7, %s465
      %p467 = scmp.lt.s32.totalorder %s26, 1
      %s468 = scalar_select %p467, %s26, 1
      %s469 = smul.addr %s468, 4
      %s470 = scalar_lea.vmem %s8, %s469
      %p471 = scmp.lt.s32.totalorder %s26, 1
      %s472 = scalar_select %p471, %s26, 1
      %s473 = smul.addr %s472, 4
      %s474 = scalar_lea.vmem %s9, %s473
      %p475 = scmp.lt.s32.totalorder %s25, 1
      %s476 = scalar_select %p475, %s25, 1
      %s477 = smul.addr %s476, 8
      %s478 = smul.addr %s477, 8
      %s479 = scalar_lea.vmem %s10, %s478
      %p481 = scmp.eq.s32.totalorder %s26, 0
      // Predicated region
      $region61: #{alphazero_image_block.1} parent=59 // pred_check
        %p482 = pneg %p481
      $region62: #{alphazero_image_block.1} parent=59 // pred_check_branch
        %484 = sbr.rel (%p482) target = $region64
      $region63: #{alphazero_image_block.1} parent=59 // pred_region
        %vm485 = vcmask 516096
        %vm486 = vsmask.f32 256
        %vm487 = vmand %vm485, %vm486
        %v488 = vld [vmem:[#allocation2] sm:$0x1]
        %v489 = vsel %vm487, 0, %v488
        %490 = vst [vmem:[#allocation2] sm:$0x1] %v489
        %vm491 = vsmask.f32 7938
        %vm492 = vmand %vm485, %vm491
        %v493 = vld [vmem:[#allocation2 + $0x8] sm:$0x1]
        %v494 = vsel %vm492, 0, %v493
        %495 = vst [vmem:[#allocation2 + $0x8] sm:$0x1] %v494
        %vm496 = vcmask 1040384
        %vm497 = vmand %vm496, %vm486
        %vm498 = vcmask 1044484
        %vm499 = vsmask.f32 4352
        %vm500 = vmand %vm498, %vm499
        %vm501 = vmor %vm500, %vm497
        %v502 = vld [vmem:[#allocation3] sm:$0x11]
        %v503 = vsel %vm501, 0, %v502
        %504 = vst [vmem:[#allocation3] sm:$0x11] %v503
        %v505 = vld [vmem:[#allocation3 + $0x8] sm:$0x11]
        %v506 = vsel %vm501, 0, %v505
        %507 = vst [vmem:[#allocation3 + $0x8] sm:$0x11] %v506
        %vm508 = vmand %vm496, %vm491
        %vm509 = vsmask.f32 7954
        %vm510 = vmand %vm498, %vm509
        %vm511 = vmor %vm510, %vm508
        %v512 = vld [vmem:[#allocation3 + $0x20] sm:$0x11]
        %v513 = vsel %vm511, 0, %v512
        %514 = vst [vmem:[#allocation3 + $0x20] sm:$0x11] %v513
        %v515 = vld [vmem:[#allocation3 + $0x28] sm:$0x11]
        %v516 = vsel %vm511, 0, %v515
        %517 = vst [vmem:[#allocation3 + $0x28] sm:$0x11] %v516
        %v518 = vld [vmem:[%s448] sm:$0xf]
        %v519 = vld [vmem:[%s448 + $0x4] sm:$0xf]
        %vm520 = vsmask.f32 4368
        %vm521 = vmor %vm486, %vm520
        %v523 = vshrl.u32 %v518, 16
        %v525 = vrot.slane %v523, 7
        %v526 = vshll.u32 %v518, 16
        %v528 = vor.u32 %v525, %v526
        %v529 = vrot.slane %v525, 4
        %v531 = vshrl.u32 %v519, 16
        %v533 = vrot.slane %v531, 7
        %v534 = vshll.u32 %v519, 16
        %v536 = vor.u32 %v533, %v534
        %v537 = vsel %vm521, %v529, %v536
        %v538 = vrot.slane %v533, 4
        %vm542 = vcmask 519168
        %vm543 = vmand %vm542, %vm491
        %v544 = vld [vmem:[#allocation2] sm:$0xf]
        %v545 = vsel %vm543, %v528, %v544
        %546 = vst [vmem:[#allocation2] sm:$0xf] %v545
        %vm547 = vcmask 519168
        %548 = vst.msk [vmem:[#allocation2 + $0x4] sm:$0xf] %vm547, %v537
        %v549 = vld [vmem:[#allocation2 + $0x8] sm:$0x1]
        %v550 = vsel %vm487, %v538, %v549
        %551 = vst [vmem:[#allocation2 + $0x8] sm:$0x1] %v550
        %v552 = vld [vmem:[%s2] sm:$0xf]
        %v553 = vld [vmem:[%s3] sm:$0xf]
        %v554 = vld [vmem:[#allocation2] sm:$0xf]
        %v555 = vld [vmem:[#allocation2 + $0x4] sm:$0xf]
        %v556 = vld [vmem:[%s1] sm:$0xff]
        %v557 = vld [vmem:[%s1 + $0x8] sm:$0xff]
        %v558 = vld [vmem:[%s1 + $0x10] sm:$0xff]
        %v559 = vld [vmem:[%s1 + $0x18] sm:$0xff]
        %v560 = vld [vmem:[%s1 + $0x20] sm:$0xff]
        %v561 = vld [vmem:[%s1 + $0x28] sm:$0xff]
        %v562 = vld [vmem:[%s1 + $0x30] sm:$0xff]
        %v563 = vld [vmem:[%s1 + $0x38] sm:$0xff]
        %v564 = vld [vmem:[%s1 + $0x40] sm:$0xff]
        %v565 = vld [vmem:[%s1 + $0x48] sm:$0xff]
        %v566 = vld [vmem:[%s1 + $0x50] sm:$0xff]
        %v567 = vld [vmem:[%s1 + $0x58] sm:$0xff]
        %v568 = vld [vmem:[%s1 + $0x60] sm:$0xff]
        %v569 = vld [vmem:[%s1 + $0x68] sm:$0xff]
        %v570 = vld [vmem:[%s1 + $0x70] sm:$0xff]
        %v571 = vld [vmem:[%s1 + $0x78] sm:$0xff]
        %v572 = vld [vmem:[#allocation2 + $0x8] sm:$0x1]
        %s573 = scalar_lea.vmem %s1, 128
        %v574 = vld [vmem:[%s573] sm:$0xff]
        %v575 = vld [vmem:[%s573 + $0x8] sm:$0xff]
        %v576 = vld [vmem:[%s573 + $0x10] sm:$0xff]
        %v577 = vld [vmem:[%s573 + $0x18] sm:$0xff]
        %v578 = vld [vmem:[%s573 + $0x20] sm:$0xff]
        %v579 = vld [vmem:[%s573 + $0x28] sm:$0xff]
        %v580 = vld [vmem:[%s573 + $0x30] sm:$0xff]
        %v581 = vld [vmem:[%s573 + $0x38] sm:$0xff]
        %v582 = vld [vmem:[%s573 + $0x40] sm:$0xff]
        %v583 = vld [vmem:[%s573 + $0x48] sm:$0xff]
        %v584 = vld [vmem:[%s573 + $0x50] sm:$0xff]
        %v585 = vld [vmem:[%s573 + $0x58] sm:$0xff]
        %v586 = vld [vmem:[%s573 + $0x60] sm:$0xff]
        %v587 = vld [vmem:[%s573 + $0x68] sm:$0xff]
        %v588 = vld [vmem:[%s573 + $0x70] sm:$0xff]
        %v589 = vld [vmem:[%s573 + $0x78] sm:$0xff]
        %v593 = vunpack.c.l.b16 %v554
        %v594 = vunpack.c.l.b16 %v555
        %v595 = vunpack.c.l.b16 %v572
        %v596 = vpack.c.b16 %v594, %v593
        %v597 = vpack.c.b16 %v595, %v595
        %vm598 = vsmask.f32 7424
        %v600 = vshrl.u32 %v596, 16
        %v602 = vshll.u32 %v596, 16
        %v604 = vrot.slane %v602, 1
        %v605 = vor.u32 %v600, %v604
        %v607 = vshll.u32 %v597, 16
        %v609 = vrot.slane %v607, 1
        %v610 = vsel %vm598, %v605, %v609
        %v627 = vunpack.c.l.b16 %v574
        %v628 = vunpack.c.h.b16 %v574
        %v629 = vunpack.c.l.b16 %v575
        %v630 = vunpack.c.h.b16 %v575
        %v631 = vunpack.c.l.b16 %v576
        %v632 = vunpack.c.h.b16 %v576
        %v633 = vunpack.c.l.b16 %v577
        %v634 = vunpack.c.h.b16 %v577
        %v635 = vunpack.c.l.b16 %v578
        %v636 = vunpack.c.h.b16 %v578
        %v637 = vunpack.c.l.b16 %v579
        %v638 = vunpack.c.h.b16 %v579
        %v639 = vunpack.c.l.b16 %v580
        %v640 = vunpack.c.h.b16 %v580
        %v641 = vunpack.c.l.b16 %v581
        %v642 = vunpack.c.h.b16 %v581
        %v643 = vunpack.c.l.b16 %v582
        %v644 = vunpack.c.h.b16 %v582
        %v645 = vunpack.c.l.b16 %v583
        %v646 = vunpack.c.h.b16 %v583
        %v647 = vunpack.c.l.b16 %v584
        %v648 = vunpack.c.h.b16 %v584
        %v649 = vunpack.c.l.b16 %v585
        %v650 = vunpack.c.h.b16 %v585
        %v651 = vunpack.c.l.b16 %v586
        %v652 = vunpack.c.h.b16 %v586
        %v653 = vunpack.c.l.b16 %v587
        %v654 = vunpack.c.h.b16 %v587
        %v655 = vunpack.c.l.b16 %v588
        %v656 = vunpack.c.h.b16 %v588
        %v657 = vunpack.c.l.b16 %v589
        %v658 = vunpack.c.h.b16 %v589
        %v659 = vpack.c.b16 %v631, %v627
        %v660 = vpack.c.b16 %v632, %v628
        %v661 = vpack.c.b16 %v633, %v629
        %v662 = vpack.c.b16 %v634, %v630
        %v663 = vpack.c.b16 %v639, %v635
        %v664 = vpack.c.b16 %v640, %v636
        %v665 = vpack.c.b16 %v641, %v637
        %v666 = vpack.c.b16 %v642, %v638
        %v667 = vpack.c.b16 %v647, %v643
        %v668 = vpack.c.b16 %v648, %v644
        %v669 = vpack.c.b16 %v649, %v645
        %v670 = vpack.c.b16 %v650, %v646
        %v671 = vpack.c.b16 %v655, %v651
        %v672 = vpack.c.b16 %v656, %v652
        %v673 = vpack.c.b16 %v657, %v653
        %v674 = vpack.c.b16 %v658, %v654
        %vm691 = vcmask 523264
        %v693 = vsel %vm691, %v610, 0
        %695 = vmatpush.bf16.msra.mxu0 0
        %696 = vmatpush.bf16.msra.mxu0 0
        %697 = vmatpush.bf16.msra.mxu0 0
        %698 = vmatpush.bf16.msra.mxu0 0
        %699 = vmatpush.bf16.msra.mxu0 %v671
        %700 = vmatpush.bf16.msra.mxu0 %v667
        %701 = vmatpush.bf16.msra.mxu0 %v663
        %702 = vmatpush.bf16.msra.mxu0 %v659
        %703 = vmatmul.bf16.gmra.mxu0 %v693
        %v704 = vpop.f32.mrf.mxu0
        %v705 = vadd.f32 0.0, %v704
        %v706 = vpop.f32.mrf.mxu0
        %v707 = vadd.f32 0.0, %v706
        %708 = vdwg.mxu0
        %709 = vmatpush.bf16.msra.mxu0 0
        %710 = vmatpush.bf16.msra.mxu0 0
        %711 = vmatpush.bf16.msra.mxu0 0
        %712 = vmatpush.bf16.msra.mxu0 0
        %713 = vmatpush.bf16.msra.mxu0 %v672
        %714 = vmatpush.bf16.msra.mxu0 %v668
        %715 = vmatpush.bf16.msra.mxu0 %v664
        %716 = vmatpush.bf16.msra.mxu0 %v660
        %717 = vmatmul.bf16.gmra.mxu0 %v693
        %v718 = vpop.f32.mrf.mxu0
        %v719 = vadd.f32 0.0, %v718
        %v720 = vpop.f32.mrf.mxu0
        %v721 = vadd.f32 0.0, %v720
        %722 = vdwg.mxu0
        %723 = vmatpush.bf16.msra.mxu0 0
        %724 = vmatpush.bf16.msra.mxu0 0
        %725 = vmatpush.bf16.msra.mxu0 0
        %726 = vmatpush.bf16.msra.mxu0 0
        %727 = vmatpush.bf16.msra.mxu0 %v673
        %728 = vmatpush.bf16.msra.mxu0 %v669
        %729 = vmatpush.bf16.msra.mxu0 %v665
        %730 = vmatpush.bf16.msra.mxu0 %v661
        %731 = vmatmul.bf16.gmra.mxu0 %v693
        %v732 = vpop.f32.mrf.mxu0
        %v733 = vadd.f32 0.0, %v732
        %v734 = vpop.f32.mrf.mxu0
        %v735 = vadd.f32 0.0, %v734
        %736 = vdwg.mxu0
        %737 = vmatpush.bf16.msra.mxu0 0
        %738 = vmatpush.bf16.msra.mxu0 0
        %739 = vmatpush.bf16.msra.mxu0 0
        %740 = vmatpush.bf16.msra.mxu0 0
        %741 = vmatpush.bf16.msra.mxu0 %v674
        %742 = vmatpush.bf16.msra.mxu0 %v670
        %743 = vmatpush.bf16.msra.mxu0 %v666
        %744 = vmatpush.bf16.msra.mxu0 %v662
        %745 = vmatmul.bf16.gmra.mxu0 %v693
        %v746 = vpop.f32.mrf.mxu0
        %v747 = vadd.f32 0.0, %v746
        %v748 = vpop.f32.mrf.mxu0
        %v749 = vadd.f32 0.0, %v748
        %750 = vdwg.mxu0
        %v767 = vunpack.c.l.b16 %v556
        %v768 = vunpack.c.h.b16 %v556
        %v769 = vunpack.c.l.b16 %v557
        %v770 = vunpack.c.h.b16 %v557
        %v771 = vunpack.c.l.b16 %v558
        %v772 = vunpack.c.h.b16 %v558
        %v773 = vunpack.c.l.b16 %v559
        %v774 = vunpack.c.h.b16 %v559
        %v775 = vunpack.c.l.b16 %v560
        %v776 = vunpack.c.h.b16 %v560
        %v777 = vunpack.c.l.b16 %v561
        %v778 = vunpack.c.h.b16 %v561
        %v779 = vunpack.c.l.b16 %v562
        %v780 = vunpack.c.h.b16 %v562
        %v781 = vunpack.c.l.b16 %v563
        %v782 = vunpack.c.h.b16 %v563
        %v783 = vunpack.c.l.b16 %v564
        %v784 = vunpack.c.h.b16 %v564
        %v785 = vunpack.c.l.b16 %v565
        %v786 = vunpack.c.h.b16 %v565
        %v787 = vunpack.c.l.b16 %v566
        %v788 = vunpack.c.h.b16 %v566
        %v789 = vunpack.c.l.b16 %v567
        %v790 = vunpack.c.h.b16 %v567
        %v791 = vunpack.c.l.b16 %v568
        %v792 = vunpack.c.h.b16 %v568
        %v793 = vunpack.c.l.b16 %v569
        %v794 = vunpack.c.h.b16 %v569
        %v795 = vunpack.c.l.b16 %v570
        %v796 = vunpack.c.h.b16 %v570
        %v797 = vunpack.c.l.b16 %v571
        %v798 = vunpack.c.h.b16 %v571
        %v799 = vpack.c.b16 %v771, %v767
        %v800 = vpack.c.b16 %v772, %v768
        %v801 = vpack.c.b16 %v773, %v769
        %v802 = vpack.c.b16 %v774, %v770
        %v803 = vpack.c.b16 %v779, %v775
        %v804 = vpack.c.b16 %v780, %v776
        %v805 = vpack.c.b16 %v781, %v777
        %v806 = vpack.c.b16 %v782, %v778
        %v807 = vpack.c.b16 %v787, %v783
        %v808 = vpack.c.b16 %v788, %v784
        %v809 = vpack.c.b16 %v789, %v785
        %v810 = vpack.c.b16 %v790, %v786
        %v811 = vpack.c.b16 %v795, %v791
        %v812 = vpack.c.b16 %v796, %v792
        %v813 = vpack.c.b16 %v797, %v793
        %v814 = vpack.c.b16 %v798, %v794
        %v831 = vsel %vm691, %v596, 0
        %833 = vmatpush.bf16.msra.mxu0 0
        %834 = vmatpush.bf16.msra.mxu0 0
        %835 = vmatpush.bf16.msra.mxu0 0
        %836 = vmatpush.bf16.msra.mxu0 0
        %837 = vmatpush.bf16.msra.mxu0 %v811
        %838 = vmatpush.bf16.msra.mxu0 %v807
        %839 = vmatpush.bf16.msra.mxu0 %v803
        %840 = vmatpush.bf16.msra.mxu0 %v799
        %841 = vmatmul.bf16.gmra.mxu0 %v831
        %v842 = vpop.f32.mrf.mxu0
        %v843 = vadd.f32 %v705, %v842
        %v844 = vpop.f32.mrf.mxu0
        %v845 = vadd.f32 %v707, %v844
        %846 = vdwg.mxu0
        %847 = vmatpush.bf16.msra.mxu0 0
        %848 = vmatpush.bf16.msra.mxu0 0
        %849 = vmatpush.bf16.msra.mxu0 0
        %850 = vmatpush.bf16.msra.mxu0 0
        %851 = vmatpush.bf16.msra.mxu0 %v812
        %852 = vmatpush.bf16.msra.mxu0 %v808
        %853 = vmatpush.bf16.msra.mxu0 %v804
        %854 = vmatpush.bf16.msra.mxu0 %v800
        %855 = vmatmul.bf16.gmra.mxu0 %v831
        %v856 = vpop.f32.mrf.mxu0
        %v857 = vadd.f32 %v719, %v856
        %v858 = vpop.f32.mrf.mxu0
        %v859 = vadd.f32 %v721, %v858
        %860 = vdwg.mxu0
        %861 = vmatpush.bf16.msra.mxu0 0
        %862 = vmatpush.bf16.msra.mxu0 0
        %863 = vmatpush.bf16.msra.mxu0 0
        %864 = vmatpush.bf16.msra.mxu0 0
        %865 = vmatpush.bf16.msra.mxu0 %v813
        %866 = vmatpush.bf16.msra.mxu0 %v809
        %867 = vmatpush.bf16.msra.mxu0 %v805
        %868 = vmatpush.bf16.msra.mxu0 %v801
        %869 = vmatmul.bf16.gmra.mxu0 %v831
        %v870 = vpop.f32.mrf.mxu0
        %v871 = vadd.f32 %v733, %v870
        %v872 = vpop.f32.mrf.mxu0
        %v873 = vadd.f32 %v735, %v872
        %874 = vdwg.mxu0
        %875 = vmatpush.bf16.msra.mxu0 0
        %876 = vmatpush.bf16.msra.mxu0 0
        %877 = vmatpush.bf16.msra.mxu0 0
        %878 = vmatpush.bf16.msra.mxu0 0
        %879 = vmatpush.bf16.msra.mxu0 %v814
        %880 = vmatpush.bf16.msra.mxu0 %v810
        %881 = vmatpush.bf16.msra.mxu0 %v806
        %882 = vmatpush.bf16.msra.mxu0 %v802
        %883 = vmatmul.bf16.gmra.mxu0 %v831
        %v884 = vpop.f32.mrf.mxu0
        %v885 = vadd.f32 %v747, %v884
        %v886 = vpop.f32.mrf.mxu0
        %v887 = vadd.f32 %v749, %v886
        %888 = vdwg.mxu0
        %v889 = vld [vmem:[#allocation2] sm:$0xe]
        %s890 = scalar_lea.vmem %s1, 256
        %v891 = vld [vmem:[%s890] sm:$0xff]
        %v892 = vld [vmem:[%s890 + $0x8] sm:$0xff]
        %v893 = vld [vmem:[%s890 + $0x10] sm:$0xff]
        %v894 = vld [vmem:[%s890 + $0x18] sm:$0xff]
        %v895 = vld [vmem:[%s890 + $0x20] sm:$0xff]
        %v896 = vld [vmem:[%s890 + $0x28] sm:$0xff]
        %v897 = vld [vmem:[%s890 + $0x30] sm:$0xff]
        %v898 = vld [vmem:[%s890 + $0x38] sm:$0xff]
        %v899 = vld [vmem:[%s890 + $0x40] sm:$0xff]
        %v900 = vld [vmem:[%s890 + $0x48] sm:$0xff]
        %v901 = vld [vmem:[%s890 + $0x50] sm:$0xff]
        %v902 = vld [vmem:[%s890 + $0x58] sm:$0xff]
        %v903 = vld [vmem:[%s890 + $0x60] sm:$0xff]
        %v904 = vld [vmem:[%s890 + $0x68] sm:$0xff]
        %v905 = vld [vmem:[%s890 + $0x70] sm:$0xff]
        %v906 = vld [vmem:[%s890 + $0x78] sm:$0xff]
        %v908 = vunpack.c.l.b16 %v889
        %v909 = vpack.c.b16 %v594, %v908
        %vm910 = vcmask 1046528
        %v911 = vrot.slane %v909, 1
        %v912 = vrot.slane %v597, 1
        %v913 = vsel %vm910, %v911, %v912
        %v930 = vunpack.c.l.b16 %v891
        %v931 = vunpack.c.h.b16 %v891
        %v932 = vunpack.c.l.b16 %v892
        %v933 = vunpack.c.h.b16 %v892
        %v934 = vunpack.c.l.b16 %v893
        %v935 = vunpack.c.h.b16 %v893
        %v936 = vunpack.c.l.b16 %v894
        %v937 = vunpack.c.h.b16 %v894
        %v938 = vunpack.c.l.b16 %v895
        %v939 = vunpack.c.h.b16 %v895
        %v940 = vunpack.c.l.b16 %v896
        %v941 = vunpack.c.h.b16 %v896
        %v942 = vunpack.c.l.b16 %v897
        %v943 = vunpack.c.h.b16 %v897
        %v944 = vunpack.c.l.b16 %v898
        %v945 = vunpack.c.h.b16 %v898
        %v946 = vunpack.c.l.b16 %v899
        %v947 = vunpack.c.h.b16 %v899
        %v948 = vunpack.c.l.b16 %v900
        %v949 = vunpack.c.h.b16 %v900
        %v950 = vunpack.c.l.b16 %v901
        %v951 = vunpack.c.h.b16 %v901
        %v952 = vunpack.c.l.b16 %v902
        %v953 = vunpack.c.h.b16 %v902
        %v954 = vunpack.c.l.b16 %v903
        %v955 = vunpack.c.h.b16 %v903
        %v956 = vunpack.c.l.b16 %v904
        %v957 = vunpack.c.h.b16 %v904
        %v958 = vunpack.c.l.b16 %v905
        %v959 = vunpack.c.h.b16 %v905
        %v960 = vunpack.c.l.b16 %v906
        %v961 = vunpack.c.h.b16 %v906
        %v962 = vpack.c.b16 %v934, %v930
        %v963 = vpack.c.b16 %v935, %v931
        %v964 = vpack.c.b16 %v936, %v932
        %v965 = vpack.c.b16 %v937, %v933
        %v966 = vpack.c.b16 %v942, %v938
        %v967 = vpack.c.b16 %v943, %v939
        %v968 = vpack.c.b16 %v944, %v940
        %v969 = vpack.c.b16 %v945, %v941
        %v970 = vpack.c.b16 %v950, %v946
        %v971 = vpack.c.b16 %v951, %v947
        %v972 = vpack.c.b16 %v952, %v948
        %v973 = vpack.c.b16 %v953, %v949
        %v974 = vpack.c.b16 %v958, %v954
        %v975 = vpack.c.b16 %v959, %v955
        %v976 = vpack.c.b16 %v960, %v956
        %v977 = vpack.c.b16 %v961, %v957
        %v995 = vsel %vm691, %v913, 0
        %997 = vmatpush.bf16.msra.mxu0 0
        %998 = vmatpush.bf16.msra.mxu0 0
        %999 = vmatpush.bf16.msra.mxu0 0
        %1000 = vmatpush.bf16.msra.mxu0 0
        %1001 = vmatpush.bf16.msra.mxu0 %v974
        %1002 = vmatpush.bf16.msra.mxu0 %v970
        %1003 = vmatpush.bf16.msra.mxu0 %v966
        %1004 = vmatpush.bf16.msra.mxu0 %v962
        %1005 = vmatmul.bf16.gmra.mxu0 %v995
        %v1006 = vpop.f32.mrf.mxu0
        %v1007 = vadd.f32 0.0, %v1006
        %v1008 = vpop.f32.mrf.mxu0
        %v1009 = vadd.f32 0.0, %v1008
        %1010 = vdwg.mxu0
        %1011 = vmatpush.bf16.msra.mxu0 0
        %1012 = vmatpush.bf16.msra.mxu0 0
        %1013 = vmatpush.bf16.msra.mxu0 0
        %1014 = vmatpush.bf16.msra.mxu0 0
        %1015 = vmatpush.bf16.msra.mxu0 %v975
        %1016 = vmatpush.bf16.msra.mxu0 %v971
        %1017 = vmatpush.bf16.msra.mxu0 %v967
        %1018 = vmatpush.bf16.msra.mxu0 %v963
        %1019 = vmatmul.bf16.gmra.mxu0 %v995
        %v1020 = vpop.f32.mrf.mxu0
        %v1021 = vadd.f32 0.0, %v1020
        %v1022 = vpop.f32.mrf.mxu0
        %v1023 = vadd.f32 0.0, %v1022
        %1024 = vdwg.mxu0
        %1025 = vmatpush.bf16.msra.mxu0 0
        %1026 = vmatpush.bf16.msra.mxu0 0
        %1027 = vmatpush.bf16.msra.mxu0 0
        %1028 = vmatpush.bf16.msra.mxu0 0
        %1029 = vmatpush.bf16.msra.mxu0 %v976
        %1030 = vmatpush.bf16.msra.mxu0 %v972
        %1031 = vmatpush.bf16.msra.mxu0 %v968
        %1032 = vmatpush.bf16.msra.mxu0 %v964
        %1033 = vmatmul.bf16.gmra.mxu0 %v995
        %v1034 = vpop.f32.mrf.mxu0
        %v1035 = vadd.f32 0.0, %v1034
        %v1036 = vpop.f32.mrf.mxu0
        %v1037 = vadd.f32 0.0, %v1036
        %1038 = vdwg.mxu0
        %1039 = vmatpush.bf16.msra.mxu0 0
        %1040 = vmatpush.bf16.msra.mxu0 0
        %1041 = vmatpush.bf16.msra.mxu0 0
        %1042 = vmatpush.bf16.msra.mxu0 0
        %1043 = vmatpush.bf16.msra.mxu0 %v977
        %1044 = vmatpush.bf16.msra.mxu0 %v973
        %1045 = vmatpush.bf16.msra.mxu0 %v969
        %1046 = vmatpush.bf16.msra.mxu0 %v965
        %1047 = vmatmul.bf16.gmra.mxu0 %v995
        %v1048 = vpop.f32.mrf.mxu0
        %v1049 = vadd.f32 0.0, %v1048
        %v1050 = vpop.f32.mrf.mxu0
        %v1051 = vadd.f32 0.0, %v1050
        %1052 = vdwg.mxu0
        %v1053 = vadd.f32 %v843, %v1007
        %v1054 = vadd.f32 %v857, %v1021
        %v1055 = vadd.f32 %v871, %v1035
        %v1056 = vadd.f32 %v885, %v1049
        %v1057 = vadd.f32 %v845, %v1009
        %v1058 = vadd.f32 %v859, %v1023
        %v1059 = vadd.f32 %v873, %v1037
        %v1060 = vadd.f32 %v887, %v1051
        %v1062 = vperm.slane %v552, 0
        %v1063 = vperm.slane %v552, 1
        %v1064 = vperm.slane %v552, 2
        %v1065 = vperm.slane %v552, 3
        %v1070 = vmul.f32 %v1053, %v1062
        %v1071 = vmul.f32 %v1054, %v1063
        %v1072 = vmul.f32 %v1055, %v1064
        %v1073 = vmul.f32 %v1056, %v1065
        %v1074 = vmul.f32 %v1057, %v1062
        %v1075 = vmul.f32 %v1058, %v1063
        %v1076 = vmul.f32 %v1059, %v1064
        %v1077 = vmul.f32 %v1060, %v1065
        %v1079 = vperm.slane %v553, 0
        %v1080 = vperm.slane %v553, 1
        %v1081 = vperm.slane %v553, 2
        %v1082 = vperm.slane %v553, 3
        %v1087 = vadd.f32 %v1070, %v1079
        %v1088 = vadd.f32 %v1071, %v1080
        %v1089 = vadd.f32 %v1072, %v1081
        %v1090 = vadd.f32 %v1073, %v1082
        %v1091 = vadd.f32 %v1074, %v1079
        %v1092 = vadd.f32 %v1075, %v1080
        %v1093 = vadd.f32 %v1076, %v1081
        %v1094 = vadd.f32 %v1077, %v1082
        %v1095 = vmax.f32 %v1087, 0.0
        %v1096 = vmax.f32 %v1088, 0.0
        %v1097 = vmax.f32 %v1089, 0.0
        %v1098 = vmax.f32 %v1090, 0.0
        %v1099 = vmax.f32 %v1091, 0.0
        %v1100 = vmax.f32 %v1092, 0.0
        %v1101 = vmax.f32 %v1093, 0.0
        %v1102 = vmax.f32 %v1094, 0.0
        %v1103 = vpack.c.bf16 %v1096, %v1095
        %v1104 = vpack.c.bf16 %v1098, %v1097
        %v1105 = vpack.c.bf16 %v1100, %v1099
        %v1106 = vpack.c.bf16 %v1102, %v1101
        %v1108 = vshrl.u32 %v1103, 16
        %v1110 = vrot.slane %v1108, 7
        %v1111 = vshll.u32 %v1103, 16
        %v1113 = vor.u32 %v1110, %v1111
        %v1115 = vshrl.u32 %v1104, 16
        %v1117 = vrot.slane %v1115, 7
        %v1118 = vshll.u32 %v1104, 16
        %v1120 = vor.u32 %v1117, %v1118
        %v1121 = vrot.slane %v1110, 4
        %v1123 = vshrl.u32 %v1105, 16
        %v1125 = vrot.slane %v1123, 7
        %v1126 = vshll.u32 %v1105, 16
        %v1128 = vor.u32 %v1125, %v1126
        %v1129 = vsel %vm521, %v1121, %v1128
        %v1130 = vrot.slane %v1117, 4
        %v1132 = vshrl.u32 %v1106, 16
        %v1134 = vrot.slane %v1132, 7
        %v1135 = vshll.u32 %v1106, 16
        %v1137 = vor.u32 %v1134, %v1135
        %v1138 = vsel %vm521, %v1130, %v1137
        %v1139 = vrot.slane %v1125, 4
        %v1140 = vrot.slane %v1134, 4
        %vm1147 = vcmask 1043456
        %vm1148 = vmand %vm1147, %vm491
        %vm1149 = vcmask 1047556
        %vm1150 = vmand %vm1149, %vm509
        %vm1151 = vmor %vm1150, %vm1148
        %v1152 = vld [vmem:[#allocation3] sm:$0xff]
        %v1153 = vsel %vm1151, %v1113, %v1152
        %1154 = vst [vmem:[#allocation3] sm:$0xff] %v1153
        %v1155 = vld [vmem:[#allocation3 + $0x8] sm:$0xff]
        %v1156 = vsel %vm1151, %v1120, %v1155
        %1157 = vst [vmem:[#allocation3 + $0x8] sm:$0xff] %v1156
        %1158 = vst [vmem:[#allocation3 + $0x10] sm:$0xff] %v1129
        %1159 = vst [vmem:[#allocation3 + $0x18] sm:$0xff] %v1138
        %v1160 = vld [vmem:[#allocation3 + $0x20] sm:$0x11]
        %v1161 = vsel %vm501, %v1139, %v1160
        %1162 = vst [vmem:[#allocation3 + $0x20] sm:$0x11] %v1161
        %v1163 = vld [vmem:[#allocation3 + $0x28] sm:$0x11]
        %v1164 = vsel %vm501, %v1140, %v1163
        %1165 = vst [vmem:[#allocation3 + $0x28] sm:$0x11] %v1164
      $region64: #{alphazero_image_block.1} parent=59 // pred_fallthru
        _
      %v1166 = vld [vmem:[#allocation3] sm:$0xff]
      %v1167 = vld [vmem:[#allocation3 + $0x8] sm:$0xff]
      %v1168 = vld [vmem:[#allocation3 + $0x10] sm:$0xff]
      %v1169 = vld [vmem:[#allocation3 + $0x18] sm:$0xff]
      %v1170 = vld [vmem:[#allocation3 + $0x20] sm:$0x11]
      %v1171 = vld [vmem:[#allocation3 + $0x28] sm:$0x11]
      %v1172 = vld [vmem:[%s457] sm:$0xf]
      %v1173 = vld [vmem:[%s461] sm:$0xf]
      %v1174 = vld [vmem:[%s453] sm:$0xff]
      %v1175 = vld [vmem:[%s453 + $0x8] sm:$0xff]
      %v1176 = vld [vmem:[%s453 + $0x10] sm:$0xff]
      %v1177 = vld [vmem:[%s453 + $0x18] sm:$0xff]
      %v1178 = vld [vmem:[%s453 + $0x20] sm:$0xff]
      %v1179 = vld [vmem:[%s453 + $0x28] sm:$0xff]
      %v1180 = vld [vmem:[%s453 + $0x30] sm:$0xff]
      %v1181 = vld [vmem:[%s453 + $0x38] sm:$0xff]
      %v1182 = vld [vmem:[%s453 + $0x40] sm:$0xff]
      %v1183 = vld [vmem:[%s453 + $0x48] sm:$0xff]
      %v1184 = vld [vmem:[%s453 + $0x50] sm:$0xff]
      %v1185 = vld [vmem:[%s453 + $0x58] sm:$0xff]
      %v1186 = vld [vmem:[%s453 + $0x60] sm:$0xff]
      %v1187 = vld [vmem:[%s453 + $0x68] sm:$0xff]
      %v1188 = vld [vmem:[%s453 + $0x70] sm:$0xff]
      %v1189 = vld [vmem:[%s453 + $0x78] sm:$0xff]
      %v1190 = vld [vmem:[%s453 + $0x80] sm:$0xff]
      %v1191 = vld [vmem:[%s453 + $0x88] sm:$0xff]
      %v1192 = vld [vmem:[%s453 + $0x90] sm:$0xff]
      %v1193 = vld [vmem:[%s453 + $0x98] sm:$0xff]
      %v1194 = vld [vmem:[%s453 + $0xa0] sm:$0xff]
      %v1195 = vld [vmem:[%s453 + $0xa8] sm:$0xff]
      %v1196 = vld [vmem:[%s453 + $0xb0] sm:$0xff]
      %v1197 = vld [vmem:[%s453 + $0xb8] sm:$0xff]
      %v1198 = vld [vmem:[%s453 + $0xc0] sm:$0xff]
      %v1199 = vld [vmem:[%s453 + $0xc8] sm:$0xff]
      %v1200 = vld [vmem:[%s453 + $0xd0] sm:$0xff]
      %v1201 = vld [vmem:[%s453 + $0xd8] sm:$0xff]
      %v1202 = vld [vmem:[%s453 + $0xe0] sm:$0xff]
      %v1203 = vld [vmem:[%s453 + $0xe8] sm:$0xff]
      %v1204 = vld [vmem:[%s453 + $0xf0] sm:$0xff]
      %v1205 = vld [vmem:[%s453 + $0xf8] sm:$0xff]
      %v1206 = vld [vmem:[%s453 + $0x100] sm:$0xff]
      %v1207 = vld [vmem:[%s453 + $0x108] sm:$0xff]
      %v1208 = vld [vmem:[%s453 + $0x110] sm:$0xff]
      %v1209 = vld [vmem:[%s453 + $0x118] sm:$0xff]
      %v1210 = vld [vmem:[%s453 + $0x120] sm:$0xff]
      %v1211 = vld [vmem:[%s453 + $0x128] sm:$0xff]
      %v1212 = vld [vmem:[%s453 + $0x130] sm:$0xff]
      %v1213 = vld [vmem:[%s453 + $0x138] sm:$0xff]
      %v1214 = vld [vmem:[%s453 + $0x140] sm:$0xff]
      %v1215 = vld [vmem:[%s453 + $0x148] sm:$0xff]
      %v1216 = vld [vmem:[%s453 + $0x150] sm:$0xff]
      %v1217 = vld [vmem:[%s453 + $0x158] sm:$0xff]
      %v1218 = vld [vmem:[%s453 + $0x160] sm:$0xff]
      %v1219 = vld [vmem:[%s453 + $0x168] sm:$0xff]
      %v1220 = vld [vmem:[%s453 + $0x170] sm:$0xff]
      %v1221 = vld [vmem:[%s453 + $0x178] sm:$0xff]
      %v1222 = vld [vmem:[%s453 + $0x180] sm:$0xff]
      %v1223 = vld [vmem:[%s453 + $0x188] sm:$0xff]
      %v1224 = vld [vmem:[%s453 + $0x190] sm:$0xff]
      %v1225 = vld [vmem:[%s453 + $0x198] sm:$0xff]
      %v1226 = vld [vmem:[%s453 + $0x1a0] sm:$0xff]
      %v1227 = vld [vmem:[%s453 + $0x1a8] sm:$0xff]
      %v1228 = vld [vmem:[%s453 + $0x1b0] sm:$0xff]
      %v1229 = vld [vmem:[%s453 + $0x1b8] sm:$0xff]
      %v1230 = vld [vmem:[%s453 + $0x1c0] sm:$0xff]
      %v1231 = vld [vmem:[%s453 + $0x1c8] sm:$0xff]
      %v1232 = vld [vmem:[%s453 + $0x1d0] sm:$0xff]
      %v1233 = vld [vmem:[%s453 + $0x1d8] sm:$0xff]
      %v1234 = vld [vmem:[%s453 + $0x1e0] sm:$0xff]
      %v1235 = vld [vmem:[%s453 + $0x1e8] sm:$0xff]
      %v1236 = vld [vmem:[%s453 + $0x1f0] sm:$0xff]
      %v1237 = vld [vmem:[%s453 + $0x1f8] sm:$0xff]
      %v1238 = vld [vmem:[%s453 + $0x200] sm:$0xff]
      %v1239 = vld [vmem:[%s453 + $0x208] sm:$0xff]
      %v1240 = vld [vmem:[%s453 + $0x210] sm:$0xff]
      %v1241 = vld [vmem:[%s453 + $0x218] sm:$0xff]
      %v1242 = vld [vmem:[%s453 + $0x220] sm:$0xff]
      %v1243 = vld [vmem:[%s453 + $0x228] sm:$0xff]
      %v1244 = vld [vmem:[%s453 + $0x230] sm:$0xff]
      %v1245 = vld [vmem:[%s453 + $0x238] sm:$0xff]
      %v1246 = vld [vmem:[%s453 + $0x240] sm:$0xff]
      %v1247 = vld [vmem:[%s453 + $0x248] sm:$0xff]
      %v1248 = vld [vmem:[%s453 + $0x250] sm:$0xff]
      %v1249 = vld [vmem:[%s453 + $0x258] sm:$0xff]
      %v1250 = vld [vmem:[%s453 + $0x260] sm:$0xff]
      %v1251 = vld [vmem:[%s453 + $0x268] sm:$0xff]
      %v1252 = vld [vmem:[%s453 + $0x270] sm:$0xff]
      %v1253 = vld [vmem:[%s453 + $0x278] sm:$0xff]
      %v1254 = vld [vmem:[%s453 + $0x280] sm:$0xff]
      %v1255 = vld [vmem:[%s453 + $0x288] sm:$0xff]
      %v1256 = vld [vmem:[%s453 + $0x290] sm:$0xff]
      %v1257 = vld [vmem:[%s453 + $0x298] sm:$0xff]
      %v1258 = vld [vmem:[%s453 + $0x2a0] sm:$0xff]
      %v1259 = vld [vmem:[%s453 + $0x2a8] sm:$0xff]
      %v1260 = vld [vmem:[%s453 + $0x2b0] sm:$0xff]
      %v1261 = vld [vmem:[%s453 + $0x2b8] sm:$0xff]
      %v1262 = vld [vmem:[%s453 + $0x2c0] sm:$0xff]
      %v1263 = vld [vmem:[%s453 + $0x2c8] sm:$0xff]
      %v1264 = vld [vmem:[%s453 + $0x2d0] sm:$0xff]
      %v1265 = vld [vmem:[%s453 + $0x2d8] sm:$0xff]
      %v1266 = vld [vmem:[%s453 + $0x2e0] sm:$0xff]
      %v1267 = vld [vmem:[%s453 + $0x2e8] sm:$0xff]
      %v1268 = vld [vmem:[%s453 + $0x2f0] sm:$0xff]
      %v1269 = vld [vmem:[%s453 + $0x2f8] sm:$0xff]
      %v1270 = vld [vmem:[%s453 + $0x300] sm:$0xff]
      %v1271 = vld [vmem:[%s453 + $0x308] sm:$0xff]
      %v1272 = vld [vmem:[%s453 + $0x310] sm:$0xff]
      %v1273 = vld [vmem:[%s453 + $0x318] sm:$0xff]
      %v1274 = vld [vmem:[%s453 + $0x320] sm:$0xff]
      %v1275 = vld [vmem:[%s453 + $0x328] sm:$0xff]
      %v1276 = vld [vmem:[%s453 + $0x330] sm:$0xff]
      %v1277 = vld [vmem:[%s453 + $0x338] sm:$0xff]
      %v1278 = vld [vmem:[%s453 + $0x340] sm:$0xff]
      %v1279 = vld [vmem:[%s453 + $0x348] sm:$0xff]
      %v1280 = vld [vmem:[%s453 + $0x350] sm:$0xff]
      %v1281 = vld [vmem:[%s453 + $0x358] sm:$0xff]
      %v1282 = vld [vmem:[%s453 + $0x360] sm:$0xff]
      %v1283 = vld [vmem:[%s453 + $0x368] sm:$0xff]
      %v1284 = vld [vmem:[%s453 + $0x370] sm:$0xff]
      %v1285 = vld [vmem:[%s453 + $0x378] sm:$0xff]
      %v1286 = vld [vmem:[%s453 + $0x380] sm:$0xff]
      %v1287 = vld [vmem:[%s453 + $0x388] sm:$0xff]
      %v1288 = vld [vmem:[%s453 + $0x390] sm:$0xff]
      %v1289 = vld [vmem:[%s453 + $0x398] sm:$0xff]
      %v1290 = vld [vmem:[%s453 + $0x3a0] sm:$0xff]
      %v1291 = vld [vmem:[%s453 + $0x3a8] sm:$0xff]
      %v1292 = vld [vmem:[%s453 + $0x3b0] sm:$0xff]
      %v1293 = vld [vmem:[%s453 + $0x3b8] sm:$0xff]
      %v1294 = vld [vmem:[%s453 + $0x3c0] sm:$0xff]
      %v1295 = vld [vmem:[%s453 + $0x3c8] sm:$0xff]
      %v1296 = vld [vmem:[%s453 + $0x3d0] sm:$0xff]
      %v1297 = vld [vmem:[%s453 + $0x3d8] sm:$0xff]
      %v1298 = vld [vmem:[%s453 + $0x3e0] sm:$0xff]
      %v1299 = vld [vmem:[%s453 + $0x3e8] sm:$0xff]
      %v1300 = vld [vmem:[%s453 + $0x3f0] sm:$0xff]
      %v1301 = vld [vmem:[%s453 + $0x3f8] sm:$0xff]
      %s1302 = scalar_lea.vmem %s453, 1024
      %v1303 = vld [vmem:[%s1302] sm:$0xff]
      %v1304 = vld [vmem:[%s1302 + $0x8] sm:$0xff]
      %v1305 = vld [vmem:[%s1302 + $0x10] sm:$0xff]
      %v1306 = vld [vmem:[%s1302 + $0x18] sm:$0xff]
      %v1307 = vld [vmem:[%s1302 + $0x20] sm:$0xff]
      %v1308 = vld [vmem:[%s1302 + $0x28] sm:$0xff]
      %v1309 = vld [vmem:[%s1302 + $0x30] sm:$0xff]
      %v1310 = vld [vmem:[%s1302 + $0x38] sm:$0xff]
      %v1311 = vld [vmem:[%s1302 + $0x40] sm:$0xff]
      %v1312 = vld [vmem:[%s1302 + $0x48] sm:$0xff]
      %v1313 = vld [vmem:[%s1302 + $0x50] sm:$0xff]
      %v1314 = vld [vmem:[%s1302 + $0x58] sm:$0xff]
      %v1315 = vld [vmem:[%s1302 + $0x60] sm:$0xff]
      %v1316 = vld [vmem:[%s1302 + $0x68] sm:$0xff]
      %v1317 = vld [vmem:[%s1302 + $0x70] sm:$0xff]
      %v1318 = vld [vmem:[%s1302 + $0x78] sm:$0xff]
      %v1319 = vld [vmem:[%s1302 + $0x80] sm:$0xff]
      %v1320 = vld [vmem:[%s1302 + $0x88] sm:$0xff]
      %v1321 = vld [vmem:[%s1302 + $0x90] sm:$0xff]
      %v1322 = vld [vmem:[%s1302 + $0x98] sm:$0xff]
      %v1323 = vld [vmem:[%s1302 + $0xa0] sm:$0xff]
      %v1324 = vld [vmem:[%s1302 + $0xa8] sm:$0xff]
      %v1325 = vld [vmem:[%s1302 + $0xb0] sm:$0xff]
      %v1326 = vld [vmem:[%s1302 + $0xb8] sm:$0xff]
      %v1327 = vld [vmem:[%s1302 + $0xc0] sm:$0xff]
      %v1328 = vld [vmem:[%s1302 + $0xc8] sm:$0xff]
      %v1329 = vld [vmem:[%s1302 + $0xd0] sm:$0xff]
      %v1330 = vld [vmem:[%s1302 + $0xd8] sm:$0xff]
      %v1331 = vld [vmem:[%s1302 + $0xe0] sm:$0xff]
      %v1332 = vld [vmem:[%s1302 + $0xe8] sm:$0xff]
      %v1333 = vld [vmem:[%s1302 + $0xf0] sm:$0xff]
      %v1334 = vld [vmem:[%s1302 + $0xf8] sm:$0xff]
      %v1335 = vld [vmem:[%s1302 + $0x100] sm:$0xff]
      %v1336 = vld [vmem:[%s1302 + $0x108] sm:$0xff]
      %v1337 = vld [vmem:[%s1302 + $0x110] sm:$0xff]
      %v1338 = vld [vmem:[%s1302 + $0x118] sm:$0xff]
      %v1339 = vld [vmem:[%s1302 + $0x120] sm:$0xff]
      %v1340 = vld [vmem:[%s1302 + $0x128] sm:$0xff]
      %v1341 = vld [vmem:[%s1302 + $0x130] sm:$0xff]
      %v1342 = vld [vmem:[%s1302 + $0x138] sm:$0xff]
      %v1343 = vld [vmem:[%s1302 + $0x140] sm:$0xff]
      %v1344 = vld [vmem:[%s1302 + $0x148] sm:$0xff]
      %v1345 = vld [vmem:[%s1302 + $0x150] sm:$0xff]
      %v1346 = vld [vmem:[%s1302 + $0x158] sm:$0xff]
      %v1347 = vld [vmem:[%s1302 + $0x160] sm:$0xff]
      %v1348 = vld [vmem:[%s1302 + $0x168] sm:$0xff]
      %v1349 = vld [vmem:[%s1302 + $0x170] sm:$0xff]
      %v1350 = vld [vmem:[%s1302 + $0x178] sm:$0xff]
      %v1351 = vld [vmem:[%s1302 + $0x180] sm:$0xff]
      %v1352 = vld [vmem:[%s1302 + $0x188] sm:$0xff]
      %v1353 = vld [vmem:[%s1302 + $0x190] sm:$0xff]
      %v1354 = vld [vmem:[%s1302 + $0x198] sm:$0xff]
      %v1355 = vld [vmem:[%s1302 + $0x1a0] sm:$0xff]
      %v1356 = vld [vmem:[%s1302 + $0x1a8] sm:$0xff]
      %v1357 = vld [vmem:[%s1302 + $0x1b0] sm:$0xff]
      %v1358 = vld [vmem:[%s1302 + $0x1b8] sm:$0xff]
      %v1359 = vld [vmem:[%s1302 + $0x1c0] sm:$0xff]
      %v1360 = vld [vmem:[%s1302 + $0x1c8] sm:$0xff]
      %v1361 = vld [vmem:[%s1302 + $0x1d0] sm:$0xff]
      %v1362 = vld [vmem:[%s1302 + $0x1d8] sm:$0xff]
      %v1363 = vld [vmem:[%s1302 + $0x1e0] sm:$0xff]
      %v1364 = vld [vmem:[%s1302 + $0x1e8] sm:$0xff]
      %v1365 = vld [vmem:[%s1302 + $0x1f0] sm:$0xff]
      %v1366 = vld [vmem:[%s1302 + $0x1f8] sm:$0xff]
      %v1367 = vld [vmem:[%s1302 + $0x200] sm:$0xff]
      %v1368 = vld [vmem:[%s1302 + $0x208] sm:$0xff]
      %v1369 = vld [vmem:[%s1302 + $0x210] sm:$0xff]
      %v1370 = vld [vmem:[%s1302 + $0x218] sm:$0xff]
      %v1371 = vld [vmem:[%s1302 + $0x220] sm:$0xff]
      %v1372 = vld [vmem:[%s1302 + $0x228] sm:$0xff]
      %v1373 = vld [vmem:[%s1302 + $0x230] sm:$0xff]
      %v1374 = vld [vmem:[%s1302 + $0x238] sm:$0xff]
      %v1375 = vld [vmem:[%s1302 + $0x240] sm:$0xff]
      %v1376 = vld [vmem:[%s1302 + $0x248] sm:$0xff]
      %v1377 = vld [vmem:[%s1302 + $0x250] sm:$0xff]
      %v1378 = vld [vmem:[%s1302 + $0x258] sm:$0xff]
      %v1379 = vld [vmem:[%s1302 + $0x260] sm:$0xff]
      %v1380 = vld [vmem:[%s1302 + $0x268] sm:$0xff]
      %v1381 = vld [vmem:[%s1302 + $0x270] sm:$0xff]
      %v1382 = vld [vmem:[%s1302 + $0x278] sm:$0xff]
      %v1383 = vld [vmem:[%s1302 + $0x280] sm:$0xff]
      %v1384 = vld [vmem:[%s1302 + $0x288] sm:$0xff]
      %v1385 = vld [vmem:[%s1302 + $0x290] sm:$0xff]
      %v1386 = vld [vmem:[%s1302 + $0x298] sm:$0xff]
      %v1387 = vld [vmem:[%s1302 + $0x2a0] sm:$0xff]
      %v1388 = vld [vmem:[%s1302 + $0x2a8] sm:$0xff]
      %v1389 = vld [vmem:[%s1302 + $0x2b0] sm:$0xff]
      %v1390 = vld [vmem:[%s1302 + $0x2b8] sm:$0xff]
      %v1391 = vld [vmem:[%s1302 + $0x2c0] sm:$0xff]
      %v1392 = vld [vmem:[%s1302 + $0x2c8] sm:$0xff]
      %v1393 = vld [vmem:[%s1302 + $0x2d0] sm:$0xff]
      %v1394 = vld [vmem:[%s1302 + $0x2d8] sm:$0xff]
      %v1395 = vld [vmem:[%s1302 + $0x2e0] sm:$0xff]
      %v1396 = vld [vmem:[%s1302 + $0x2e8] sm:$0xff]
      %v1397 = vld [vmem:[%s1302 + $0x2f0] sm:$0xff]
      %v1398 = vld [vmem:[%s1302 + $0x2f8] sm:$0xff]
      %v1399 = vld [vmem:[%s1302 + $0x300] sm:$0xff]
      %v1400 = vld [vmem:[%s1302 + $0x308] sm:$0xff]
      %v1401 = vld [vmem:[%s1302 + $0x310] sm:$0xff]
      %v1402 = vld [vmem:[%s1302 + $0x318] sm:$0xff]
      %v1403 = vld [vmem:[%s1302 + $0x320] sm:$0xff]
      %v1404 = vld [vmem:[%s1302 + $0x328] sm:$0xff]
      %v1405 = vld [vmem:[%s1302 + $0x330] sm:$0xff]
      %v1406 = vld [vmem:[%s1302 + $0x338] sm:$0xff]
      %v1407 = vld [vmem:[%s1302 + $0x340] sm:$0xff]
      %v1408 = vld [vmem:[%s1302 + $0x348] sm:$0xff]
      %v1409 = vld [vmem:[%s1302 + $0x350] sm:$0xff]
      %v1410 = vld [vmem:[%s1302 + $0x358] sm:$0xff]
      %v1411 = vld [vmem:[%s1302 + $0x360] sm:$0xff]
      %v1412 = vld [vmem:[%s1302 + $0x368] sm:$0xff]
      %v1413 = vld [vmem:[%s1302 + $0x370] sm:$0xff]
      %v1414 = vld [vmem:[%s1302 + $0x378] sm:$0xff]
      %v1415 = vld [vmem:[%s1302 + $0x380] sm:$0xff]
      %v1416 = vld [vmem:[%s1302 + $0x388] sm:$0xff]
      %v1417 = vld [vmem:[%s1302 + $0x390] sm:$0xff]
      %v1418 = vld [vmem:[%s1302 + $0x398] sm:$0xff]
      %v1419 = vld [vmem:[%s1302 + $0x3a0] sm:$0xff]
      %v1420 = vld [vmem:[%s1302 + $0x3a8] sm:$0xff]
      %v1421 = vld [vmem:[%s1302 + $0x3b0] sm:$0xff]
      %v1422 = vld [vmem:[%s1302 + $0x3b8] sm:$0xff]
      %v1423 = vld [vmem:[%s1302 + $0x3c0] sm:$0xff]
      %v1424 = vld [vmem:[%s1302 + $0x3c8] sm:$0xff]
      %v1425 = vld [vmem:[%s1302 + $0x3d0] sm:$0xff]
      %v1426 = vld [vmem:[%s1302 + $0x3d8] sm:$0xff]
      %v1427 = vld [vmem:[%s1302 + $0x3e0] sm:$0xff]
      %v1428 = vld [vmem:[%s1302 + $0x3e8] sm:$0xff]
      %v1429 = vld [vmem:[%s1302 + $0x3f0] sm:$0xff]
      %v1430 = vld [vmem:[%s1302 + $0x3f8] sm:$0xff]
      %v1437 = vunpack.c.l.b16 %v1166
      %v1438 = vunpack.c.h.b16 %v1166
      %v1439 = vunpack.c.l.b16 %v1167
      %v1440 = vunpack.c.h.b16 %v1167
      %v1441 = vunpack.c.l.b16 %v1168
      %v1442 = vunpack.c.h.b16 %v1168
      %v1443 = vunpack.c.l.b16 %v1169
      %v1444 = vunpack.c.h.b16 %v1169
      %v1445 = vunpack.c.l.b16 %v1170
      %v1446 = vunpack.c.h.b16 %v1170
      %v1447 = vunpack.c.l.b16 %v1171
      %v1448 = vunpack.c.h.b16 %v1171
      %v1449 = vpack.c.b16 %v1441, %v1437
      %v1450 = vpack.c.b16 %v1442, %v1438
      %v1451 = vpack.c.b16 %v1443, %v1439
      %v1452 = vpack.c.b16 %v1444, %v1440
      %v1453 = vpack.c.b16 %v1445, %v1445
      %v1454 = vpack.c.b16 %v1446, %v1446
      %v1455 = vpack.c.b16 %v1447, %v1447
      %v1456 = vpack.c.b16 %v1448, %v1448
      %vm1457 = vsmask.f32 7424
      %v1459 = vshrl.u32 %v1449, 16
      %v1461 = vshll.u32 %v1449, 16
      %v1463 = vrot.slane %v1461, 1
      %v1464 = vor.u32 %v1459, %v1463
      %v1466 = vshll.u32 %v1453, 16
      %v1468 = vrot.slane %v1466, 1
      %v1469 = vsel %vm1457, %v1464, %v1468
      %v1471 = vshrl.u32 %v1450, 16
      %v1473 = vshll.u32 %v1450, 16
      %v1475 = vrot.slane %v1473, 1
      %v1476 = vor.u32 %v1471, %v1475
      %v1478 = vshll.u32 %v1454, 16
      %v1480 = vrot.slane %v1478, 1
      %v1481 = vsel %vm1457, %v1476, %v1480
      %v1483 = vshrl.u32 %v1451, 16
      %v1485 = vshll.u32 %v1451, 16
      %v1487 = vrot.slane %v1485, 1
      %v1488 = vor.u32 %v1483, %v1487
      %v1490 = vshll.u32 %v1455, 16
      %v1492 = vrot.slane %v1490, 1
      %v1493 = vsel %vm1457, %v1488, %v1492
      %v1495 = vshrl.u32 %v1452, 16
      %v1497 = vshll.u32 %v1452, 16
      %v1499 = vrot.slane %v1497, 1
      %v1500 = vor.u32 %v1495, %v1499
      %v1502 = vshll.u32 %v1456, 16
      %v1504 = vrot.slane %v1502, 1
      %v1505 = vsel %vm1457, %v1500, %v1504
      %v1638 = vunpack.c.l.b16 %v1303
      %v1639 = vunpack.c.h.b16 %v1303
      %v1640 = vunpack.c.l.b16 %v1304
      %v1641 = vunpack.c.h.b16 %v1304
      %v1642 = vunpack.c.l.b16 %v1305
      %v1643 = vunpack.c.h.b16 %v1305
      %v1644 = vunpack.c.l.b16 %v1306
      %v1645 = vunpack.c.h.b16 %v1306
      %v1646 = vunpack.c.l.b16 %v1307
      %v1647 = vunpack.c.h.b16 %v1307
      %v1648 = vunpack.c.l.b16 %v1308
      %v1649 = vunpack.c.h.b16 %v1308
      %v1650 = vunpack.c.l.b16 %v1309
      %v1651 = vunpack.c.h.b16 %v1309
      %v1652 = vunpack.c.l.b16 %v1310
      %v1653 = vunpack.c.h.b16 %v1310
      %v1654 = vunpack.c.l.b16 %v1311
      %v1655 = vunpack.c.h.b16 %v1311
      %v1656 = vunpack.c.l.b16 %v1312
      %v1657 = vunpack.c.h.b16 %v1312
      %v1658 = vunpack.c.l.b16 %v1313
      %v1659 = vunpack.c.h.b16 %v1313
      %v1660 = vunpack.c.l.b16 %v1314
      %v1661 = vunpack.c.h.b16 %v1314
      %v1662 = vunpack.c.l.b16 %v1315
      %v1663 = vunpack.c.h.b16 %v1315
      %v1664 = vunpack.c.l.b16 %v1316
      %v1665 = vunpack.c.h.b16 %v1316
      %v1666 = vunpack.c.l.b16 %v1317
      %v1667 = vunpack.c.h.b16 %v1317
      %v1668 = vunpack.c.l.b16 %v1318
      %v1669 = vunpack.c.h.b16 %v1318
      %v1670 = vunpack.c.l.b16 %v1319
      %v1671 = vunpack.c.h.b16 %v1319
      %v1672 = vunpack.c.l.b16 %v1320
      %v1673 = vunpack.c.h.b16 %v1320
      %v1674 = vunpack.c.l.b16 %v1321
      %v1675 = vunpack.c.h.b16 %v1321
      %v1676 = vunpack.c.l.b16 %v1322
      %v1677 = vunpack.c.h.b16 %v1322
      %v1678 = vunpack.c.l.b16 %v1323
      %v1679 = vunpack.c.h.b16 %v1323
      %v1680 = vunpack.c.l.b16 %v1324
      %v1681 = vunpack.c.h.b16 %v1324
      %v1682 = vunpack.c.l.b16 %v1325
      %v1683 = vunpack.c.h.b16 %v1325
      %v1684 = vunpack.c.l.b16 %v1326
      %v1685 = vunpack.c.h.b16 %v1326
      %v1686 = vunpack.c.l.b16 %v1327
      %v1687 = vunpack.c.h.b16 %v1327
      %v1688 = vunpack.c.l.b16 %v1328
      %v1689 = vunpack.c.h.b16 %v1328
      %v1690 = vunpack.c.l.b16 %v1329
      %v1691 = vunpack.c.h.b16 %v1329
      %v1692 = vunpack.c.l.b16 %v1330
      %v1693 = vunpack.c.h.b16 %v1330
      %v1694 = vunpack.c.l.b16 %v1331
      %v1695 = vunpack.c.h.b16 %v1331
      %v1696 = vunpack.c.l.b16 %v1332
      %v1697 = vunpack.c.h.b16 %v1332
      %v1698 = vunpack.c.l.b16 %v1333
      %v1699 = vunpack.c.h.b16 %v1333
      %v1700 = vunpack.c.l.b16 %v1334
      %v1701 = vunpack.c.h.b16 %v1334
      %v1702 = vunpack.c.l.b16 %v1335
      %v1703 = vunpack.c.h.b16 %v1335
      %v1704 = vunpack.c.l.b16 %v1336
      %v1705 = vunpack.c.h.b16 %v1336
      %v1706 = vunpack.c.l.b16 %v1337
      %v1707 = vunpack.c.h.b16 %v1337
      %v1708 = vunpack.c.l.b16 %v1338
      %v1709 = vunpack.c.h.b16 %v1338
      %v1710 = vunpack.c.l.b16 %v1339
      %v1711 = vunpack.c.h.b16 %v1339
      %v1712 = vunpack.c.l.b16 %v1340
      %v1713 = vunpack.c.h.b16 %v1340
      %v1714 = vunpack.c.l.b16 %v1341
      %v1715 = vunpack.c.h.b16 %v1341
      %v1716 = vunpack.c.l.b16 %v1342
      %v1717 = vunpack.c.h.b16 %v1342
      %v1718 = vunpack.c.l.b16 %v1343
      %v1719 = vunpack.c.h.b16 %v1343
      %v1720 = vunpack.c.l.b16 %v1344
      %v1721 = vunpack.c.h.b16 %v1344
      %v1722 = vunpack.c.l.b16 %v1345
      %v1723 = vunpack.c.h.b16 %v1345
      %v1724 = vunpack.c.l.b16 %v1346
      %v1725 = vunpack.c.h.b16 %v1346
      %v1726 = vunpack.c.l.b16 %v1347
      %v1727 = vunpack.c.h.b16 %v1347
      %v1728 = vunpack.c.l.b16 %v1348
      %v1729 = vunpack.c.h.b16 %v1348
      %v1730 = vunpack.c.l.b16 %v1349
      %v1731 = vunpack.c.h.b16 %v1349
      %v1732 = vunpack.c.l.b16 %v1350
      %v1733 = vunpack.c.h.b16 %v1350
      %v1734 = vunpack.c.l.b16 %v1351
      %v1735 = vunpack.c.h.b16 %v1351
      %v1736 = vunpack.c.l.b16 %v1352
      %v1737 = vunpack.c.h.b16 %v1352
      %v1738 = vunpack.c.l.b16 %v1353
      %v1739 = vunpack.c.h.b16 %v1353
      %v1740 = vunpack.c.l.b16 %v1354
      %v1741 = vunpack.c.h.b16 %v1354
      %v1742 = vunpack.c.l.b16 %v1355
      %v1743 = vunpack.c.h.b16 %v1355
      %v1744 = vunpack.c.l.b16 %v1356
      %v1745 = vunpack.c.h.b16 %v1356
      %v1746 = vunpack.c.l.b16 %v1357
      %v1747 = vunpack.c.h.b16 %v1357
      %v1748 = vunpack.c.l.b16 %v1358
      %v1749 = vunpack.c.h.b16 %v1358
      %v1750 = vunpack.c.l.b16 %v1359
      %v1751 = vunpack.c.h.b16 %v1359
      %v1752 = vunpack.c.l.b16 %v1360
      %v1753 = vunpack.c.h.b16 %v1360
      %v1754 = vunpack.c.l.b16 %v1361
      %v1755 = vunpack.c.h.b16 %v1361
      %v1756 = vunpack.c.l.b16 %v1362
      %v1757 = vunpack.c.h.b16 %v1362
      %v1758 = vunpack.c.l.b16 %v1363
      %v1759 = vunpack.c.h.b16 %v1363
      %v1760 = vunpack.c.l.b16 %v1364
      %v1761 = vunpack.c.h.b16 %v1364
      %v1762 = vunpack.c.l.b16 %v1365
      %v1763 = vunpack.c.h.b16 %v1365
      %v1764 = vunpack.c.l.b16 %v1366
      %v1765 = vunpack.c.h.b16 %v1366
      %v1766 = vunpack.c.l.b16 %v1367
      %v1767 = vunpack.c.h.b16 %v1367
      %v1768 = vunpack.c.l.b16 %v1368
      %v1769 = vunpack.c.h.b16 %v1368
      %v1770 = vunpack.c.l.b16 %v1369
      %v1771 = vunpack.c.h.b16 %v1369
      %v1772 = vunpack.c.l.b16 %v1370
      %v1773 = vunpack.c.h.b16 %v1370
      %v1774 = vunpack.c.l.b16 %v1371
      %v1775 = vunpack.c.h.b16 %v1371
      %v1776 = vunpack.c.l.b16 %v1372
      %v1777 = vunpack.c.h.b16 %v1372
      %v1778 = vunpack.c.l.b16 %v1373
      %v1779 = vunpack.c.h.b16 %v1373
      %v1780 = vunpack.c.l.b16 %v1374
      %v1781 = vunpack.c.h.b16 %v1374
      %v1782 = vunpack.c.l.b16 %v1375
      %v1783 = vunpack.c.h.b16 %v1375
      %v1784 = vunpack.c.l.b16 %v1376
      %v1785 = vunpack.c.h.b16 %v1376
      %v1786 = vunpack.c.l.b16 %v1377
      %v1787 = vunpack.c.h.b16 %v1377
      %v1788 = vunpack.c.l.b16 %v1378
      %v1789 = vunpack.c.h.b16 %v1378
      %v1790 = vunpack.c.l.b16 %v1379
      %v1791 = vunpack.c.h.b16 %v1379
      %v1792 = vunpack.c.l.b16 %v1380
      %v1793 = vunpack.c.h.b16 %v1380
      %v1794 = vunpack.c.l.b16 %v1381
      %v1795 = vunpack.c.h.b16 %v1381
      %v1796 = vunpack.c.l.b16 %v1382
      %v1797 = vunpack.c.h.b16 %v1382
      %v1798 = vunpack.c.l.b16 %v1383
      %v1799 = vunpack.c.h.b16 %v1383
      %v1800 = vunpack.c.l.b16 %v1384
      %v1801 = vunpack.c.h.b16 %v1384
      %v1802 = vunpack.c.l.b16 %v1385
      %v1803 = vunpack.c.h.b16 %v1385
      %v1804 = vunpack.c.l.b16 %v1386
      %v1805 = vunpack.c.h.b16 %v1386
      %v1806 = vunpack.c.l.b16 %v1387
      %v1807 = vunpack.c.h.b16 %v1387
      %v1808 = vunpack.c.l.b16 %v1388
      %v1809 = vunpack.c.h.b16 %v1388
      %v1810 = vunpack.c.l.b16 %v1389
      %v1811 = vunpack.c.h.b16 %v1389
      %v1812 = vunpack.c.l.b16 %v1390
      %v1813 = vunpack.c.h.b16 %v1390
      %v1814 = vunpack.c.l.b16 %v1391
      %v1815 = vunpack.c.h.b16 %v1391
      %v1816 = vunpack.c.l.b16 %v1392
      %v1817 = vunpack.c.h.b16 %v1392
      %v1818 = vunpack.c.l.b16 %v1393
      %v1819 = vunpack.c.h.b16 %v1393
      %v1820 = vunpack.c.l.b16 %v1394
      %v1821 = vunpack.c.h.b16 %v1394
      %v1822 = vunpack.c.l.b16 %v1395
      %v1823 = vunpack.c.h.b16 %v1395
      %v1824 = vunpack.c.l.b16 %v1396
      %v1825 = vunpack.c.h.b16 %v1396
      %v1826 = vunpack.c.l.b16 %v1397
      %v1827 = vunpack.c.h.b16 %v1397
      %v1828 = vunpack.c.l.b16 %v1398
      %v1829 = vunpack.c.h.b16 %v1398
      %v1830 = vunpack.c.l.b16 %v1399
      %v1831 = vunpack.c.h.b16 %v1399
      %v1832 = vunpack.c.l.b16 %v1400
      %v1833 = vunpack.c.h.b16 %v1400
      %v1834 = vunpack.c.l.b16 %v1401
      %v1835 = vunpack.c.h.b16 %v1401
      %v1836 = vunpack.c.l.b16 %v1402
      %v1837 = vunpack.c.h.b16 %v1402
      %v1838 = vunpack.c.l.b16 %v1403
      %v1839 = vunpack.c.h.b16 %v1403
      %v1840 = vunpack.c.l.b16 %v1404
      %v1841 = vunpack.c.h.b16 %v1404
      %v1842 = vunpack.c.l.b16 %v1405
      %v1843 = vunpack.c.h.b16 %v1405
      %v1844 = vunpack.c.l.b16 %v1406
      %v1845 = vunpack.c.h.b16 %v1406
      %v1846 = vunpack.c.l.b16 %v1407
      %v1847 = vunpack.c.h.b16 %v1407
      %v1848 = vunpack.c.l.b16 %v1408
      %v1849 = vunpack.c.h.b16 %v1408
      %v1850 = vunpack.c.l.b16 %v1409
      %v1851 = vunpack.c.h.b16 %v1409
      %v1852 = vunpack.c.l.b16 %v1410
      %v1853 = vunpack.c.h.b16 %v1410
      %v1854 = vunpack.c.l.b16 %v1411
      %v1855 = vunpack.c.h.b16 %v1411
      %v1856 = vunpack.c.l.b16 %v1412
      %v1857 = vunpack.c.h.b16 %v1412
      %v1858 = vunpack.c.l.b16 %v1413
      %v1859 = vunpack.c.h.b16 %v1413
      %v1860 = vunpack.c.l.b16 %v1414
      %v1861 = vunpack.c.h.b16 %v1414
      %v1862 = vunpack.c.l.b16 %v1415
      %v1863 = vunpack.c.h.b16 %v1415
      %v1864 = vunpack.c.l.b16 %v1416
      %v1865 = vunpack.c.h.b16 %v1416
      %v1866 = vunpack.c.l.b16 %v1417
      %v1867 = vunpack.c.h.b16 %v1417
      %v1868 = vunpack.c.l.b16 %v1418
      %v1869 = vunpack.c.h.b16 %v1418
      %v1870 = vunpack.c.l.b16 %v1419
      %v1871 = vunpack.c.h.b16 %v1419
      %v1872 = vunpack.c.l.b16 %v1420
      %v1873 = vunpack.c.h.b16 %v1420
      %v1874 = vunpack.c.l.b16 %v1421
      %v1875 = vunpack.c.h.b16 %v1421
      %v1876 = vunpack.c.l.b16 %v1422
      %v1877 = vunpack.c.h.b16 %v1422
      %v1878 = vunpack.c.l.b16 %v1423
      %v1879 = vunpack.c.h.b16 %v1423
      %v1880 = vunpack.c.l.b16 %v1424
      %v1881 = vunpack.c.h.b16 %v1424
      %v1882 = vunpack.c.l.b16 %v1425
      %v1883 = vunpack.c.h.b16 %v1425
      %v1884 = vunpack.c.l.b16 %v1426
      %v1885 = vunpack.c.h.b16 %v1426
      %v1886 = vunpack.c.l.b16 %v1427
      %v1887 = vunpack.c.h.b16 %v1427
      %v1888 = vunpack.c.l.b16 %v1428
      %v1889 = vunpack.c.h.b16 %v1428
      %v1890 = vunpack.c.l.b16 %v1429
      %v1891 = vunpack.c.h.b16 %v1429
      %v1892 = vunpack.c.l.b16 %v1430
      %v1893 = vunpack.c.h.b16 %v1430
      %v1894 = vpack.c.b16 %v1642, %v1638
      %v1895 = vpack.c.b16 %v1643, %v1639
      %v1896 = vpack.c.b16 %v1644, %v1640
      %v1897 = vpack.c.b16 %v1645, %v1641
      %v1898 = vpack.c.b16 %v1650, %v1646
      %v1899 = vpack.c.b16 %v1651, %v1647
      %v1900 = vpack.c.b16 %v1652, %v1648
      %v1901 = vpack.c.b16 %v1653, %v1649
      %v1902 = vpack.c.b16 %v1658, %v1654
      %v1903 = vpack.c.b16 %v1659, %v1655
      %v1904 = vpack.c.b16 %v1660, %v1656
      %v1905 = vpack.c.b16 %v1661, %v1657
      %v1906 = vpack.c.b16 %v1666, %v1662
      %v1907 = vpack.c.b16 %v1667, %v1663
      %v1908 = vpack.c.b16 %v1668, %v1664
      %v1909 = vpack.c.b16 %v1669, %v1665
      %v1910 = vpack.c.b16 %v1674, %v1670
      %v1911 = vpack.c.b16 %v1675, %v1671
      %v1912 = vpack.c.b16 %v1676, %v1672
      %v1913 = vpack.c.b16 %v1677, %v1673
      %v1914 = vpack.c.b16 %v1682, %v1678
      %v1915 = vpack.c.b16 %v1683, %v1679
      %v1916 = vpack.c.b16 %v1684, %v1680
      %v1917 = vpack.c.b16 %v1685, %v1681
      %v1918 = vpack.c.b16 %v1690, %v1686
      %v1919 = vpack.c.b16 %v1691, %v1687
      %v1920 = vpack.c.b16 %v1692, %v1688
      %v1921 = vpack.c.b16 %v1693, %v1689
      %v1922 = vpack.c.b16 %v1698, %v1694
      %v1923 = vpack.c.b16 %v1699, %v1695
      %v1924 = vpack.c.b16 %v1700, %v1696
      %v1925 = vpack.c.b16 %v1701, %v1697
      %v1926 = vpack.c.b16 %v1706, %v1702
      %v1927 = vpack.c.b16 %v1707, %v1703
      %v1928 = vpack.c.b16 %v1708, %v1704
      %v1929 = vpack.c.b16 %v1709, %v1705
      %v1930 = vpack.c.b16 %v1714, %v1710
      %v1931 = vpack.c.b16 %v1715, %v1711
      %v1932 = vpack.c.b16 %v1716, %v1712
      %v1933 = vpack.c.b16 %v1717, %v1713
      %v1934 = vpack.c.b16 %v1722, %v1718
      %v1935 = vpack.c.b16 %v1723, %v1719
      %v1936 = vpack.c.b16 %v1724, %v1720
      %v1937 = vpack.c.b16 %v1725, %v1721
      %v1938 = vpack.c.b16 %v1730, %v1726
      %v1939 = vpack.c.b16 %v1731, %v1727
      %v1940 = vpack.c.b16 %v1732, %v1728
      %v1941 = vpack.c.b16 %v1733, %v1729
      %v1942 = vpack.c.b16 %v1738, %v1734
      %v1943 = vpack.c.b16 %v1739, %v1735
      %v1944 = vpack.c.b16 %v1740, %v1736
      %v1945 = vpack.c.b16 %v1741, %v1737
      %v1946 = vpack.c.b16 %v1746, %v1742
      %v1947 = vpack.c.b16 %v1747, %v1743
      %v1948 = vpack.c.b16 %v1748, %v1744
      %v1949 = vpack.c.b16 %v1749, %v1745
      %v1950 = vpack.c.b16 %v1754, %v1750
      %v1951 = vpack.c.b16 %v1755, %v1751
      %v1952 = vpack.c.b16 %v1756, %v1752
      %v1953 = vpack.c.b16 %v1757, %v1753
      %v1954 = vpack.c.b16 %v1762, %v1758
      %v1955 = vpack.c.b16 %v1763, %v1759
      %v1956 = vpack.c.b16 %v1764, %v1760
      %v1957 = vpack.c.b16 %v1765, %v1761
      %v1958 = vpack.c.b16 %v1770, %v1766
      %v1959 = vpack.c.b16 %v1771, %v1767
      %v1960 = vpack.c.b16 %v1772, %v1768
      %v1961 = vpack.c.b16 %v1773, %v1769
      %v1962 = vpack.c.b16 %v1778, %v1774
      %v1963 = vpack.c.b16 %v1779, %v1775
      %v1964 = vpack.c.b16 %v1780, %v1776
      %v1965 = vpack.c.b16 %v1781, %v1777
      %v1966 = vpack.c.b16 %v1786, %v1782
      %v1967 = vpack.c.b16 %v1787, %v1783
      %v1968 = vpack.c.b16 %v1788, %v1784
      %v1969 = vpack.c.b16 %v1789, %v1785
      %v1970 = vpack.c.b16 %v1794, %v1790
      %v1971 = vpack.c.b16 %v1795, %v1791
      %v1972 = vpack.c.b16 %v1796, %v1792
      %v1973 = vpack.c.b16 %v1797, %v1793
      %v1974 = vpack.c.b16 %v1802, %v1798
      %v1975 = vpack.c.b16 %v1803, %v1799
      %v1976 = vpack.c.b16 %v1804, %v1800
      %v1977 = vpack.c.b16 %v1805, %v1801
      %v1978 = vpack.c.b16 %v1810, %v1806
      %v1979 = vpack.c.b16 %v1811, %v1807
      %v1980 = vpack.c.b16 %v1812, %v1808
      %v1981 = vpack.c.b16 %v1813, %v1809
      %v1982 = vpack.c.b16 %v1818, %v1814
      %v1983 = vpack.c.b16 %v1819, %v1815
      %v1984 = vpack.c.b16 %v1820, %v1816
      %v1985 = vpack.c.b16 %v1821, %v1817
      %v1986 = vpack.c.b16 %v1826, %v1822
      %v1987 = vpack.c.b16 %v1827, %v1823
      %v1988 = vpack.c.b16 %v1828, %v1824
      %v1989 = vpack.c.b16 %v1829, %v1825
      %v1990 = vpack.c.b16 %v1834, %v1830
      %v1991 = vpack.c.b16 %v1835, %v1831
      %v1992 = vpack.c.b16 %v1836, %v1832
      %v1993 = vpack.c.b16 %v1837, %v1833
      %v1994 = vpack.c.b16 %v1842, %v1838
      %v1995 = vpack.c.b16 %v1843, %v1839
      %v1996 = vpack.c.b16 %v1844, %v1840
      %v1997 = vpack.c.b16 %v1845, %v1841
      %v1998 = vpack.c.b16 %v1850, %v1846
      %v1999 = vpack.c.b16 %v1851, %v1847
      %v2000 = vpack.c.b16 %v1852, %v1848
      %v2001 = vpack.c.b16 %v1853, %v1849
      %v2002 = vpack.c.b16 %v1858, %v1854
      %v2003 = vpack.c.b16 %v1859, %v1855
      %v2004 = vpack.c.b16 %v1860, %v1856
      %v2005 = vpack.c.b16 %v1861, %v1857
      %v2006 = vpack.c.b16 %v1866, %v1862
      %v2007 = vpack.c.b16 %v1867, %v1863
      %v2008 = vpack.c.b16 %v1868, %v1864
      %v2009 = vpack.c.b16 %v1869, %v1865
      %v2010 = vpack.c.b16 %v1874, %v1870
      %v2011 = vpack.c.b16 %v1875, %v1871
      %v2012 = vpack.c.b16 %v1876, %v1872
      %v2013 = vpack.c.b16 %v1877, %v1873
      %v2014 = vpack.c.b16 %v1882, %v1878
      %v2015 = vpack.c.b16 %v1883, %v1879
      %v2016 = vpack.c.b16 %v1884, %v1880
      %v2017 = vpack.c.b16 %v1885, %v1881
      %v2018 = vpack.c.b16 %v1890, %v1886
      %v2019 = vpack.c.b16 %v1891, %v1887
      %v2020 = vpack.c.b16 %v1892, %v1888
      %v2021 = vpack.c.b16 %v1893, %v1889
      %2150 = vmatpush.bf16.msra.mxu0 %v1922
      %2151 = vmatpush.bf16.msra.mxu0 %v1918
      %2152 = vmatpush.bf16.msra.mxu0 %v1914
      %2153 = vmatpush.bf16.msra.mxu0 %v1910
      %2154 = vmatpush.bf16.msra.mxu0 %v1906
      %2155 = vmatpush.bf16.msra.mxu0 %v1902
      %2156 = vmatpush.bf16.msra.mxu0 %v1898
      %2157 = vmatpush.bf16.msra.mxu0 %v1894
      %2158 = vmatmul.bf16.gmra.mxu0 %v1469
      %v2159 = vpop.f32.mrf.mxu0
      %v2160 = vadd.f32 0.0, %v2159
      %v2161 = vpop.f32.mrf.mxu0
      %v2162 = vadd.f32 0.0, %v2161
      %2163 = vdwg.mxu0
      %2164 = vmatpush.bf16.msra.mxu0 %v1954
      %2165 = vmatpush.bf16.msra.mxu0 %v1950
      %2166 = vmatpush.bf16.msra.mxu0 %v1946
      %2167 = vmatpush.bf16.msra.mxu0 %v1942
      %2168 = vmatpush.bf16.msra.mxu0 %v1938
      %2169 = vmatpush.bf16.msra.mxu0 %v1934
      %2170 = vmatpush.bf16.msra.mxu0 %v1930
      %2171 = vmatpush.bf16.msra.mxu0 %v1926
      %2172 = vmatmul.bf16.gmra.mxu0 %v1481
      %v2173 = vpop.f32.mrf.mxu0
      %v2174 = vadd.f32 %v2160, %v2173
      %v2175 = vpop.f32.mrf.mxu0
      %v2176 = vadd.f32 %v2162, %v2175
      %2177 = vdwg.mxu0
      %2178 = vmatpush.bf16.msra.mxu0 %v1986
      %2179 = vmatpush.bf16.msra.mxu0 %v1982
      %2180 = vmatpush.bf16.msra.mxu0 %v1978
      %2181 = vmatpush.bf16.msra.mxu0 %v1974
      %2182 = vmatpush.bf16.msra.mxu0 %v1970
      %2183 = vmatpush.bf16.msra.mxu0 %v1966
      %2184 = vmatpush.bf16.msra.mxu0 %v1962
      %2185 = vmatpush.bf16.msra.mxu0 %v1958
      %2186 = vmatmul.bf16.gmra.mxu0 %v1493
      %v2187 = vpop.f32.mrf.mxu0
      %v2188 = vadd.f32 %v2174, %v2187
      %v2189 = vpop.f32.mrf.mxu0
      %v2190 = vadd.f32 %v2176, %v2189
      %2191 = vdwg.mxu0
      %2192 = vmatpush.bf16.msra.mxu0 %v2018
      %2193 = vmatpush.bf16.msra.mxu0 %v2014
      %2194 = vmatpush.bf16.msra.mxu0 %v2010
      %2195 = vmatpush.bf16.msra.mxu0 %v2006
      %2196 = vmatpush.bf16.msra.mxu0 %v2002
      %2197 = vmatpush.bf16.msra.mxu0 %v1998
      %2198 = vmatpush.bf16.msra.mxu0 %v1994
      %2199 = vmatpush.bf16.msra.mxu0 %v1990
      %2200 = vmatmul.bf16.gmra.mxu0 %v1505
      %v2201 = vpop.f32.mrf.mxu0
      %v2202 = vadd.f32 %v2188, %v2201
      %v2203 = vpop.f32.mrf.mxu0
      %v2204 = vadd.f32 %v2190, %v2203
      %2205 = vdwg.mxu0
      %2206 = vmatpush.bf16.msra.mxu0 %v1923
      %2207 = vmatpush.bf16.msra.mxu0 %v1919
      %2208 = vmatpush.bf16.msra.mxu0 %v1915
      %2209 = vmatpush.bf16.msra.mxu0 %v1911
      %2210 = vmatpush.bf16.msra.mxu0 %v1907
      %2211 = vmatpush.bf16.msra.mxu0 %v1903
      %2212 = vmatpush.bf16.msra.mxu0 %v1899
      %2213 = vmatpush.bf16.msra.mxu0 %v1895
      %2214 = vmatmul.bf16.gmra.mxu0 %v1469
      %v2215 = vpop.f32.mrf.mxu0
      %v2216 = vadd.f32 0.0, %v2215
      %v2217 = vpop.f32.mrf.mxu0
      %v2218 = vadd.f32 0.0, %v2217
      %2219 = vdwg.mxu0
      %2220 = vmatpush.bf16.msra.mxu0 %v1955
      %2221 = vmatpush.bf16.msra.mxu0 %v1951
      %2222 = vmatpush.bf16.msra.mxu0 %v1947
      %2223 = vmatpush.bf16.msra.mxu0 %v1943
      %2224 = vmatpush.bf16.msra.mxu0 %v1939
      %2225 = vmatpush.bf16.msra.mxu0 %v1935
      %2226 = vmatpush.bf16.msra.mxu0 %v1931
      %2227 = vmatpush.bf16.msra.mxu0 %v1927
      %2228 = vmatmul.bf16.gmra.mxu0 %v1481
      %v2229 = vpop.f32.mrf.mxu0
      %v2230 = vadd.f32 %v2216, %v2229
      %v2231 = vpop.f32.mrf.mxu0
      %v2232 = vadd.f32 %v2218, %v2231
      %2233 = vdwg.mxu0
      %2234 = vmatpush.bf16.msra.mxu0 %v1987
      %2235 = vmatpush.bf16.msra.mxu0 %v1983
      %2236 = vmatpush.bf16.msra.mxu0 %v1979
      %2237 = vmatpush.bf16.msra.mxu0 %v1975
      %2238 = vmatpush.bf16.msra.mxu0 %v1971
      %2239 = vmatpush.bf16.msra.mxu0 %v1967
      %2240 = vmatpush.bf16.msra.mxu0 %v1963
      %2241 = vmatpush.bf16.msra.mxu0 %v1959
      %2242 = vmatmul.bf16.gmra.mxu0 %v1493
      %v2243 = vpop.f32.mrf.mxu0
      %v2244 = vadd.f32 %v2230, %v2243
      %v2245 = vpop.f32.mrf.mxu0
      %v2246 = vadd.f32 %v2232, %v2245
      %2247 = vdwg.mxu0
      %2248 = vmatpush.bf16.msra.mxu0 %v2019
      %2249 = vmatpush.bf16.msra.mxu0 %v2015
      %2250 = vmatpush.bf16.msra.mxu0 %v2011
      %2251 = vmatpush.bf16.msra.mxu0 %v2007
      %2252 = vmatpush.bf16.msra.mxu0 %v2003
      %2253 = vmatpush.bf16.msra.mxu0 %v1999
      %2254 = vmatpush.bf16.msra.mxu0 %v1995
      %2255 = vmatpush.bf16.msra.mxu0 %v1991
      %2256 = vmatmul.bf16.gmra.mxu0 %v1505
      %v2257 = vpop.f32.mrf.mxu0
      %v2258 = vadd.f32 %v2244, %v2257
      %v2259 = vpop.f32.mrf.mxu0
      %v2260 = vadd.f32 %v2246, %v2259
      %2261 = vdwg.mxu0
      %2262 = vmatpush.bf16.msra.mxu0 %v1924
      %2263 = vmatpush.bf16.msra.mxu0 %v1920
      %2264 = vmatpush.bf16.msra.mxu0 %v1916
      %2265 = vmatpush.bf16.msra.mxu0 %v1912
      %2266 = vmatpush.bf16.msra.mxu0 %v1908
      %2267 = vmatpush.bf16.msra.mxu0 %v1904
      %2268 = vmatpush.bf16.msra.mxu0 %v1900
      %2269 = vmatpush.bf16.msra.mxu0 %v1896
      %2270 = vmatmul.bf16.gmra.mxu0 %v1469
      %v2271 = vpop.f32.mrf.mxu0
      %v2272 = vadd.f32 0.0, %v2271
      %v2273 = vpop.f32.mrf.mxu0
      %v2274 = vadd.f32 0.0, %v2273
      %2275 = vdwg.mxu0
      %2276 = vmatpush.bf16.msra.mxu0 %v1956
      %2277 = vmatpush.bf16.msra.mxu0 %v1952
      %2278 = vmatpush.bf16.msra.mxu0 %v1948
      %2279 = vmatpush.bf16.msra.mxu0 %v1944
      %2280 = vmatpush.bf16.msra.mxu0 %v1940
      %2281 = vmatpush.bf16.msra.mxu0 %v1936
      %2282 = vmatpush.bf16.msra.mxu0 %v1932
      %2283 = vmatpush.bf16.msra.mxu0 %v1928
      %2284 = vmatmul.bf16.gmra.mxu0 %v1481
      %v2285 = vpop.f32.mrf.mxu0
      %v2286 = vadd.f32 %v2272, %v2285
      %v2287 = vpop.f32.mrf.mxu0
      %v2288 = vadd.f32 %v2274, %v2287
      %2289 = vdwg.mxu0
      %2290 = vmatpush.bf16.msra.mxu0 %v1988
      %2291 = vmatpush.bf16.msra.mxu0 %v1984
      %2292 = vmatpush.bf16.msra.mxu0 %v1980
      %2293 = vmatpush.bf16.msra.mxu0 %v1976
      %2294 = vmatpush.bf16.msra.mxu0 %v1972
      %2295 = vmatpush.bf16.msra.mxu0 %v1968
      %2296 = vmatpush.bf16.msra.mxu0 %v1964
      %2297 = vmatpush.bf16.msra.mxu0 %v1960
      %2298 = vmatmul.bf16.gmra.mxu0 %v1493
      %v2299 = vpop.f32.mrf.mxu0
      %v2300 = vadd.f32 %v2286, %v2299
      %v2301 = vpop.f32.mrf.mxu0
      %v2302 = vadd.f32 %v2288, %v2301
      %2303 = vdwg.mxu0
      %2304 = vmatpush.bf16.msra.mxu0 %v2020
      %2305 = vmatpush.bf16.msra.mxu0 %v2016
      %2306 = vmatpush.bf16.msra.mxu0 %v2012
      %2307 = vmatpush.bf16.msra.mxu0 %v2008
      %2308 = vmatpush.bf16.msra.mxu0 %v2004
      %2309 = vmatpush.bf16.msra.mxu0 %v2000
      %2310 = vmatpush.bf16.msra.mxu0 %v1996
      %2311 = vmatpush.bf16.msra.mxu0 %v1992
      %2312 = vmatmul.bf16.gmra.mxu0 %v1505
      %v2313 = vpop.f32.mrf.mxu0
      %v2314 = vadd.f32 %v2300, %v2313
      %v2315 = vpop.f32.mrf.mxu0
      %v2316 = vadd.f32 %v2302, %v2315
      %2317 = vdwg.mxu0
      %2318 = vmatpush.bf16.msra.mxu0 %v1925
      %2319 = vmatpush.bf16.msra.mxu0 %v1921
      %2320 = vmatpush.bf16.msra.mxu0 %v1917
      %2321 = vmatpush.bf16.msra.mxu0 %v1913
      %2322 = vmatpush.bf16.msra.mxu0 %v1909
      %2323 = vmatpush.bf16.msra.mxu0 %v1905
      %2324 = vmatpush.bf16.msra.mxu0 %v1901
      %2325 = vmatpush.bf16.msra.mxu0 %v1897
      %2326 = vmatmul.bf16.gmra.mxu0 %v1469
      %v2327 = vpop.f32.mrf.mxu0
      %v2328 = vadd.f32 0.0, %v2327
      %v2329 = vpop.f32.mrf.mxu0
      %v2330 = vadd.f32 0.0, %v2329
      %2331 = vdwg.mxu0
      %2332 = vmatpush.bf16.msra.mxu0 %v1957
      %2333 = vmatpush.bf16.msra.mxu0 %v1953
      %2334 = vmatpush.bf16.msra.mxu0 %v1949
      %2335 = vmatpush.bf16.msra.mxu0 %v1945
      %2336 = vmatpush.bf16.msra.mxu0 %v1941
      %2337 = vmatpush.bf16.msra.mxu0 %v1937
      %2338 = vmatpush.bf16.msra.mxu0 %v1933
      %2339 = vmatpush.bf16.msra.mxu0 %v1929
      %2340 = vmatmul.bf16.gmra.mxu0 %v1481
      %v2341 = vpop.f32.mrf.mxu0
      %v2342 = vadd.f32 %v2328, %v2341
      %v2343 = vpop.f32.mrf.mxu0
      %v2344 = vadd.f32 %v2330, %v2343
      %2345 = vdwg.mxu0
      %2346 = vmatpush.bf16.msra.mxu0 %v1989
      %2347 = vmatpush.bf16.msra.mxu0 %v1985
      %2348 = vmatpush.bf16.msra.mxu0 %v1981
      %2349 = vmatpush.bf16.msra.mxu0 %v1977
      %2350 = vmatpush.bf16.msra.mxu0 %v1973
      %2351 = vmatpush.bf16.msra.mxu0 %v1969
      %2352 = vmatpush.bf16.msra.mxu0 %v1965
      %2353 = vmatpush.bf16.msra.mxu0 %v1961
      %2354 = vmatmul.bf16.gmra.mxu0 %v1493
      %v2355 = vpop.f32.mrf.mxu0
      %v2356 = vadd.f32 %v2342, %v2355
      %v2357 = vpop.f32.mrf.mxu0
      %v2358 = vadd.f32 %v2344, %v2357
      %2359 = vdwg.mxu0
      %2360 = vmatpush.bf16.msra.mxu0 %v2021
      %2361 = vmatpush.bf16.msra.mxu0 %v2017
      %2362 = vmatpush.bf16.msra.mxu0 %v2013
      %2363 = vmatpush.bf16.msra.mxu0 %v2009
      %2364 = vmatpush.bf16.msra.mxu0 %v2005
      %2365 = vmatpush.bf16.msra.mxu0 %v2001
      %2366 = vmatpush.bf16.msra.mxu0 %v1997
      %2367 = vmatpush.bf16.msra.mxu0 %v1993
      %2368 = vmatmul.bf16.gmra.mxu0 %v1505
      %v2369 = vpop.f32.mrf.mxu0
      %v2370 = vadd.f32 %v2356, %v2369
      %v2371 = vpop.f32.mrf.mxu0
      %v2372 = vadd.f32 %v2358, %v2371
      %2373 = vdwg.mxu0
      %v2506 = vunpack.c.l.b16 %v1174
      %v2507 = vunpack.c.h.b16 %v1174
      %v2508 = vunpack.c.l.b16 %v1175
      %v2509 = vunpack.c.h.b16 %v1175
      %v2510 = vunpack.c.l.b16 %v1176
      %v2511 = vunpack.c.h.b16 %v1176
      %v2512 = vunpack.c.l.b16 %v1177
      %v2513 = vunpack.c.h.b16 %v1177
      %v2514 = vunpack.c.l.b16 %v1178
      %v2515 = vunpack.c.h.b16 %v1178
      %v2516 = vunpack.c.l.b16 %v1179
      %v2517 = vunpack.c.h.b16 %v1179
      %v2518 = vunpack.c.l.b16 %v1180
      %v2519 = vunpack.c.h.b16 %v1180
      %v2520 = vunpack.c.l.b16 %v1181
      %v2521 = vunpack.c.h.b16 %v1181
      %v2522 = vunpack.c.l.b16 %v1182
      %v2523 = vunpack.c.h.b16 %v1182
      %v2524 = vunpack.c.l.b16 %v1183
      %v2525 = vunpack.c.h.b16 %v1183
      %v2526 = vunpack.c.l.b16 %v1184
      %v2527 = vunpack.c.h.b16 %v1184
      %v2528 = vunpack.c.l.b16 %v1185
      %v2529 = vunpack.c.h.b16 %v1185
      %v2530 = vunpack.c.l.b16 %v1186
      %v2531 = vunpack.c.h.b16 %v1186
      %v2532 = vunpack.c.l.b16 %v1187
      %v2533 = vunpack.c.h.b16 %v1187
      %v2534 = vunpack.c.l.b16 %v1188
      %v2535 = vunpack.c.h.b16 %v1188
      %v2536 = vunpack.c.l.b16 %v1189
      %v2537 = vunpack.c.h.b16 %v1189
      %v2538 = vunpack.c.l.b16 %v1190
      %v2539 = vunpack.c.h.b16 %v1190
      %v2540 = vunpack.c.l.b16 %v1191
      %v2541 = vunpack.c.h.b16 %v1191
      %v2542 = vunpack.c.l.b16 %v1192
      %v2543 = vunpack.c.h.b16 %v1192
      %v2544 = vunpack.c.l.b16 %v1193
      %v2545 = vunpack.c.h.b16 %v1193
      %v2546 = vunpack.c.l.b16 %v1194
      %v2547 = vunpack.c.h.b16 %v1194
      %v2548 = vunpack.c.l.b16 %v1195
      %v2549 = vunpack.c.h.b16 %v1195
      %v2550 = vunpack.c.l.b16 %v1196
      %v2551 = vunpack.c.h.b16 %v1196
      %v2552 = vunpack.c.l.b16 %v1197
      %v2553 = vunpack.c.h.b16 %v1197
      %v2554 = vunpack.c.l.b16 %v1198
      %v2555 = vunpack.c.h.b16 %v1198
      %v2556 = vunpack.c.l.b16 %v1199
      %v2557 = vunpack.c.h.b16 %v1199
      %v2558 = vunpack.c.l.b16 %v1200
      %v2559 = vunpack.c.h.b16 %v1200
      %v2560 = vunpack.c.l.b16 %v1201
      %v2561 = vunpack.c.h.b16 %v1201
      %v2562 = vunpack.c.l.b16 %v1202
      %v2563 = vunpack.c.h.b16 %v1202
      %v2564 = vunpack.c.l.b16 %v1203
      %v2565 = vunpack.c.h.b16 %v1203
      %v2566 = vunpack.c.l.b16 %v1204
      %v2567 = vunpack.c.h.b16 %v1204
      %v2568 = vunpack.c.l.b16 %v1205
      %v2569 = vunpack.c.h.b16 %v1205
      %v2570 = vunpack.c.l.b16 %v1206
      %v2571 = vunpack.c.h.b16 %v1206
      %v2572 = vunpack.c.l.b16 %v1207
      %v2573 = vunpack.c.h.b16 %v1207
      %v2574 = vunpack.c.l.b16 %v1208
      %v2575 = vunpack.c.h.b16 %v1208
      %v2576 = vunpack.c.l.b16 %v1209
      %v2577 = vunpack.c.h.b16 %v1209
      %v2578 = vunpack.c.l.b16 %v1210
      %v2579 = vunpack.c.h.b16 %v1210
      %v2580 = vunpack.c.l.b16 %v1211
      %v2581 = vunpack.c.h.b16 %v1211
      %v2582 = vunpack.c.l.b16 %v1212
      %v2583 = vunpack.c.h.b16 %v1212
      %v2584 = vunpack.c.l.b16 %v1213
      %v2585 = vunpack.c.h.b16 %v1213
      %v2586 = vunpack.c.l.b16 %v1214
      %v2587 = vunpack.c.h.b16 %v1214
      %v2588 = vunpack.c.l.b16 %v1215
      %v2589 = vunpack.c.h.b16 %v1215
      %v2590 = vunpack.c.l.b16 %v1216
      %v2591 = vunpack.c.h.b16 %v1216
      %v2592 = vunpack.c.l.b16 %v1217
      %v2593 = vunpack.c.h.b16 %v1217
      %v2594 = vunpack.c.l.b16 %v1218
      %v2595 = vunpack.c.h.b16 %v1218
      %v2596 = vunpack.c.l.b16 %v1219
      %v2597 = vunpack.c.h.b16 %v1219
      %v2598 = vunpack.c.l.b16 %v1220
      %v2599 = vunpack.c.h.b16 %v1220
      %v2600 = vunpack.c.l.b16 %v1221
      %v2601 = vunpack.c.h.b16 %v1221
      %v2602 = vunpack.c.l.b16 %v1222
      %v2603 = vunpack.c.h.b16 %v1222
      %v2604 = vunpack.c.l.b16 %v1223
      %v2605 = vunpack.c.h.b16 %v1223
      %v2606 = vunpack.c.l.b16 %v1224
      %v2607 = vunpack.c.h.b16 %v1224
      %v2608 = vunpack.c.l.b16 %v1225
      %v2609 = vunpack.c.h.b16 %v1225
      %v2610 = vunpack.c.l.b16 %v1226
      %v2611 = vunpack.c.h.b16 %v1226
      %v2612 = vunpack.c.l.b16 %v1227
      %v2613 = vunpack.c.h.b16 %v1227
      %v2614 = vunpack.c.l.b16 %v1228
      %v2615 = vunpack.c.h.b16 %v1228
      %v2616 = vunpack.c.l.b16 %v1229
      %v2617 = vunpack.c.h.b16 %v1229
      %v2618 = vunpack.c.l.b16 %v1230
      %v2619 = vunpack.c.h.b16 %v1230
      %v2620 = vunpack.c.l.b16 %v1231
      %v2621 = vunpack.c.h.b16 %v1231
      %v2622 = vunpack.c.l.b16 %v1232
      %v2623 = vunpack.c.h.b16 %v1232
      %v2624 = vunpack.c.l.b16 %v1233
      %v2625 = vunpack.c.h.b16 %v1233
      %v2626 = vunpack.c.l.b16 %v1234
      %v2627 = vunpack.c.h.b16 %v1234
      %v2628 = vunpack.c.l.b16 %v1235
      %v2629 = vunpack.c.h.b16 %v1235
      %v2630 = vunpack.c.l.b16 %v1236
      %v2631 = vunpack.c.h.b16 %v1236
      %v2632 = vunpack.c.l.b16 %v1237
      %v2633 = vunpack.c.h.b16 %v1237
      %v2634 = vunpack.c.l.b16 %v1238
      %v2635 = vunpack.c.h.b16 %v1238
      %v2636 = vunpack.c.l.b16 %v1239
      %v2637 = vunpack.c.h.b16 %v1239
      %v2638 = vunpack.c.l.b16 %v1240
      %v2639 = vunpack.c.h.b16 %v1240
      %v2640 = vunpack.c.l.b16 %v1241
      %v2641 = vunpack.c.h.b16 %v1241
      %v2642 = vunpack.c.l.b16 %v1242
      %v2643 = vunpack.c.h.b16 %v1242
      %v2644 = vunpack.c.l.b16 %v1243
      %v2645 = vunpack.c.h.b16 %v1243
      %v2646 = vunpack.c.l.b16 %v1244
      %v2647 = vunpack.c.h.b16 %v1244
      %v2648 = vunpack.c.l.b16 %v1245
      %v2649 = vunpack.c.h.b16 %v1245
      %v2650 = vunpack.c.l.b16 %v1246
      %v2651 = vunpack.c.h.b16 %v1246
      %v2652 = vunpack.c.l.b16 %v1247
      %v2653 = vunpack.c.h.b16 %v1247
      %v2654 = vunpack.c.l.b16 %v1248
      %v2655 = vunpack.c.h.b16 %v1248
      %v2656 = vunpack.c.l.b16 %v1249
      %v2657 = vunpack.c.h.b16 %v1249
      %v2658 = vunpack.c.l.b16 %v1250
      %v2659 = vunpack.c.h.b16 %v1250
      %v2660 = vunpack.c.l.b16 %v1251
      %v2661 = vunpack.c.h.b16 %v1251
      %v2662 = vunpack.c.l.b16 %v1252
      %v2663 = vunpack.c.h.b16 %v1252
      %v2664 = vunpack.c.l.b16 %v1253
      %v2665 = vunpack.c.h.b16 %v1253
      %v2666 = vunpack.c.l.b16 %v1254
      %v2667 = vunpack.c.h.b16 %v1254
      %v2668 = vunpack.c.l.b16 %v1255
      %v2669 = vunpack.c.h.b16 %v1255
      %v2670 = vunpack.c.l.b16 %v1256
      %v2671 = vunpack.c.h.b16 %v1256
      %v2672 = vunpack.c.l.b16 %v1257
      %v2673 = vunpack.c.h.b16 %v1257
      %v2674 = vunpack.c.l.b16 %v1258
      %v2675 = vunpack.c.h.b16 %v1258
      %v2676 = vunpack.c.l.b16 %v1259
      %v2677 = vunpack.c.h.b16 %v1259
      %v2678 = vunpack.c.l.b16 %v1260
      %v2679 = vunpack.c.h.b16 %v1260
      %v2680 = vunpack.c.l.b16 %v1261
      %v2681 = vunpack.c.h.b16 %v1261
      %v2682 = vunpack.c.l.b16 %v1262
      %v2683 = vunpack.c.h.b16 %v1262
      %v2684 = vunpack.c.l.b16 %v1263
      %v2685 = vunpack.c.h.b16 %v1263
      %v2686 = vunpack.c.l.b16 %v1264
      %v2687 = vunpack.c.h.b16 %v1264
      %v2688 = vunpack.c.l.b16 %v1265
      %v2689 = vunpack.c.h.b16 %v1265
      %v2690 = vunpack.c.l.b16 %v1266
      %v2691 = vunpack.c.h.b16 %v1266
      %v2692 = vunpack.c.l.b16 %v1267
      %v2693 = vunpack.c.h.b16 %v1267
      %v2694 = vunpack.c.l.b16 %v1268
      %v2695 = vunpack.c.h.b16 %v1268
      %v2696 = vunpack.c.l.b16 %v1269
      %v2697 = vunpack.c.h.b16 %v1269
      %v2698 = vunpack.c.l.b16 %v1270
      %v2699 = vunpack.c.h.b16 %v1270
      %v2700 = vunpack.c.l.b16 %v1271
      %v2701 = vunpack.c.h.b16 %v1271
      %v2702 = vunpack.c.l.b16 %v1272
      %v2703 = vunpack.c.h.b16 %v1272
      %v2704 = vunpack.c.l.b16 %v1273
      %v2705 = vunpack.c.h.b16 %v1273
      %v2706 = vunpack.c.l.b16 %v1274
      %v2707 = vunpack.c.h.b16 %v1274
      %v2708 = vunpack.c.l.b16 %v1275
      %v2709 = vunpack.c.h.b16 %v1275
      %v2710 = vunpack.c.l.b16 %v1276
      %v2711 = vunpack.c.h.b16 %v1276
      %v2712 = vunpack.c.l.b16 %v1277
      %v2713 = vunpack.c.h.b16 %v1277
      %v2714 = vunpack.c.l.b16 %v1278
      %v2715 = vunpack.c.h.b16 %v1278
      %v2716 = vunpack.c.l.b16 %v1279
      %v2717 = vunpack.c.h.b16 %v1279
      %v2718 = vunpack.c.l.b16 %v1280
      %v2719 = vunpack.c.h.b16 %v1280
      %v2720 = vunpack.c.l.b16 %v1281
      %v2721 = vunpack.c.h.b16 %v1281
      %v2722 = vunpack.c.l.b16 %v1282
      %v2723 = vunpack.c.h.b16 %v1282
      %v2724 = vunpack.c.l.b16 %v1283
      %v2725 = vunpack.c.h.b16 %v1283
      %v2726 = vunpack.c.l.b16 %v1284
      %v2727 = vunpack.c.h.b16 %v1284
      %v2728 = vunpack.c.l.b16 %v1285
      %v2729 = vunpack.c.h.b16 %v1285
      %v2730 = vunpack.c.l.b16 %v1286
      %v2731 = vunpack.c.h.b16 %v1286
      %v2732 = vunpack.c.l.b16 %v1287
      %v2733 = vunpack.c.h.b16 %v1287
      %v2734 = vunpack.c.l.b16 %v1288
      %v2735 = vunpack.c.h.b16 %v1288
      %v2736 = vunpack.c.l.b16 %v1289
      %v2737 = vunpack.c.h.b16 %v1289
      %v2738 = vunpack.c.l.b16 %v1290
      %v2739 = vunpack.c.h.b16 %v1290
      %v2740 = vunpack.c.l.b16 %v1291
      %v2741 = vunpack.c.h.b16 %v1291
      %v2742 = vunpack.c.l.b16 %v1292
      %v2743 = vunpack.c.h.b16 %v1292
      %v2744 = vunpack.c.l.b16 %v1293
      %v2745 = vunpack.c.h.b16 %v1293
      %v2746 = vunpack.c.l.b16 %v1294
      %v2747 = vunpack.c.h.b16 %v1294
      %v2748 = vunpack.c.l.b16 %v1295
      %v2749 = vunpack.c.h.b16 %v1295
      %v2750 = vunpack.c.l.b16 %v1296
      %v2751 = vunpack.c.h.b16 %v1296
      %v2752 = vunpack.c.l.b16 %v1297
      %v2753 = vunpack.c.h.b16 %v1297
      %v2754 = vunpack.c.l.b16 %v1298
      %v2755 = vunpack.c.h.b16 %v1298
      %v2756 = vunpack.c.l.b16 %v1299
      %v2757 = vunpack.c.h.b16 %v1299
      %v2758 = vunpack.c.l.b16 %v1300
      %v2759 = vunpack.c.h.b16 %v1300
      %v2760 = vunpack.c.l.b16 %v1301
      %v2761 = vunpack.c.h.b16 %v1301
      %v2762 = vpack.c.b16 %v2510, %v2506
      %v2763 = vpack.c.b16 %v2511, %v2507
      %v2764 = vpack.c.b16 %v2512, %v2508
      %v2765 = vpack.c.b16 %v2513, %v2509
      %v2766 = vpack.c.b16 %v2518, %v2514
      %v2767 = vpack.c.b16 %v2519, %v2515
      %v2768 = vpack.c.b16 %v2520, %v2516
      %v2769 = vpack.c.b16 %v2521, %v2517
      %v2770 = vpack.c.b16 %v2526, %v2522
      %v2771 = vpack.c.b16 %v2527, %v2523
      %v2772 = vpack.c.b16 %v2528, %v2524
      %v2773 = vpack.c.b16 %v2529, %v2525
      %v2774 = vpack.c.b16 %v2534, %v2530
      %v2775 = vpack.c.b16 %v2535, %v2531
      %v2776 = vpack.c.b16 %v2536, %v2532
      %v2777 = vpack.c.b16 %v2537, %v2533
      %v2778 = vpack.c.b16 %v2542, %v2538
      %v2779 = vpack.c.b16 %v2543, %v2539
      %v2780 = vpack.c.b16 %v2544, %v2540
      %v2781 = vpack.c.b16 %v2545, %v2541
      %v2782 = vpack.c.b16 %v2550, %v2546
      %v2783 = vpack.c.b16 %v2551, %v2547
      %v2784 = vpack.c.b16 %v2552, %v2548
      %v2785 = vpack.c.b16 %v2553, %v2549
      %v2786 = vpack.c.b16 %v2558, %v2554
      %v2787 = vpack.c.b16 %v2559, %v2555
      %v2788 = vpack.c.b16 %v2560, %v2556
      %v2789 = vpack.c.b16 %v2561, %v2557
      %v2790 = vpack.c.b16 %v2566, %v2562
      %v2791 = vpack.c.b16 %v2567, %v2563
      %v2792 = vpack.c.b16 %v2568, %v2564
      %v2793 = vpack.c.b16 %v2569, %v2565
      %v2794 = vpack.c.b16 %v2574, %v2570
      %v2795 = vpack.c.b16 %v2575, %v2571
      %v2796 = vpack.c.b16 %v2576, %v2572
      %v2797 = vpack.c.b16 %v2577, %v2573
      %v2798 = vpack.c.b16 %v2582, %v2578
      %v2799 = vpack.c.b16 %v2583, %v2579
      %v2800 = vpack.c.b16 %v2584, %v2580
      %v2801 = vpack.c.b16 %v2585, %v2581
      %v2802 = vpack.c.b16 %v2590, %v2586
      %v2803 = vpack.c.b16 %v2591, %v2587
      %v2804 = vpack.c.b16 %v2592, %v2588
      %v2805 = vpack.c.b16 %v2593, %v2589
      %v2806 = vpack.c.b16 %v2598, %v2594
      %v2807 = vpack.c.b16 %v2599, %v2595
      %v2808 = vpack.c.b16 %v2600, %v2596
      %v2809 = vpack.c.b16 %v2601, %v2597
      %v2810 = vpack.c.b16 %v2606, %v2602
      %v2811 = vpack.c.b16 %v2607, %v2603
      %v2812 = vpack.c.b16 %v2608, %v2604
      %v2813 = vpack.c.b16 %v2609, %v2605
      %v2814 = vpack.c.b16 %v2614, %v2610
      %v2815 = vpack.c.b16 %v2615, %v2611
      %v2816 = vpack.c.b16 %v2616, %v2612
      %v2817 = vpack.c.b16 %v2617, %v2613
      %v2818 = vpack.c.b16 %v2622, %v2618
      %v2819 = vpack.c.b16 %v2623, %v2619
      %v2820 = vpack.c.b16 %v2624, %v2620
      %v2821 = vpack.c.b16 %v2625, %v2621
      %v2822 = vpack.c.b16 %v2630, %v2626
      %v2823 = vpack.c.b16 %v2631, %v2627
      %v2824 = vpack.c.b16 %v2632, %v2628
      %v2825 = vpack.c.b16 %v2633, %v2629
      %v2826 = vpack.c.b16 %v2638, %v2634
      %v2827 = vpack.c.b16 %v2639, %v2635
      %v2828 = vpack.c.b16 %v2640, %v2636
      %v2829 = vpack.c.b16 %v2641, %v2637
      %v2830 = vpack.c.b16 %v2646, %v2642
      %v2831 = vpack.c.b16 %v2647, %v2643
      %v2832 = vpack.c.b16 %v2648, %v2644
      %v2833 = vpack.c.b16 %v2649, %v2645
      %v2834 = vpack.c.b16 %v2654, %v2650
      %v2835 = vpack.c.b16 %v2655, %v2651
      %v2836 = vpack.c.b16 %v2656, %v2652
      %v2837 = vpack.c.b16 %v2657, %v2653
      %v2838 = vpack.c.b16 %v2662, %v2658
      %v2839 = vpack.c.b16 %v2663, %v2659
      %v2840 = vpack.c.b16 %v2664, %v2660
      %v2841 = vpack.c.b16 %v2665, %v2661
      %v2842 = vpack.c.b16 %v2670, %v2666
      %v2843 = vpack.c.b16 %v2671, %v2667
      %v2844 = vpack.c.b16 %v2672, %v2668
      %v2845 = vpack.c.b16 %v2673, %v2669
      %v2846 = vpack.c.b16 %v2678, %v2674
      %v2847 = vpack.c.b16 %v2679, %v2675
      %v2848 = vpack.c.b16 %v2680, %v2676
      %v2849 = vpack.c.b16 %v2681, %v2677
      %v2850 = vpack.c.b16 %v2686, %v2682
      %v2851 = vpack.c.b16 %v2687, %v2683
      %v2852 = vpack.c.b16 %v2688, %v2684
      %v2853 = vpack.c.b16 %v2689, %v2685
      %v2854 = vpack.c.b16 %v2694, %v2690
      %v2855 = vpack.c.b16 %v2695, %v2691
      %v2856 = vpack.c.b16 %v2696, %v2692
      %v2857 = vpack.c.b16 %v2697, %v2693
      %v2858 = vpack.c.b16 %v2702, %v2698
      %v2859 = vpack.c.b16 %v2703, %v2699
      %v2860 = vpack.c.b16 %v2704, %v2700
      %v2861 = vpack.c.b16 %v2705, %v2701
      %v2862 = vpack.c.b16 %v2710, %v2706
      %v2863 = vpack.c.b16 %v2711, %v2707
      %v2864 = vpack.c.b16 %v2712, %v2708
      %v2865 = vpack.c.b16 %v2713, %v2709
      %v2866 = vpack.c.b16 %v2718, %v2714
      %v2867 = vpack.c.b16 %v2719, %v2715
      %v2868 = vpack.c.b16 %v2720, %v2716
      %v2869 = vpack.c.b16 %v2721, %v2717
      %v2870 = vpack.c.b16 %v2726, %v2722
      %v2871 = vpack.c.b16 %v2727, %v2723
      %v2872 = vpack.c.b16 %v2728, %v2724
      %v2873 = vpack.c.b16 %v2729, %v2725
      %v2874 = vpack.c.b16 %v2734, %v2730
      %v2875 = vpack.c.b16 %v2735, %v2731
      %v2876 = vpack.c.b16 %v2736, %v2732
      %v2877 = vpack.c.b16 %v2737, %v2733
      %v2878 = vpack.c.b16 %v2742, %v2738
      %v2879 = vpack.c.b16 %v2743, %v2739
      %v2880 = vpack.c.b16 %v2744, %v2740
      %v2881 = vpack.c.b16 %v2745, %v2741
      %v2882 = vpack.c.b16 %v2750, %v2746
      %v2883 = vpack.c.b16 %v2751, %v2747
      %v2884 = vpack.c.b16 %v2752, %v2748
      %v2885 = vpack.c.b16 %v2753, %v2749
      %v2886 = vpack.c.b16 %v2758, %v2754
      %v2887 = vpack.c.b16 %v2759, %v2755
      %v2888 = vpack.c.b16 %v2760, %v2756
      %v2889 = vpack.c.b16 %v2761, %v2757
      %3018 = vmatpush.bf16.msra.mxu0 %v2790
      %3019 = vmatpush.bf16.msra.mxu0 %v2786
      %3020 = vmatpush.bf16.msra.mxu0 %v2782
      %3021 = vmatpush.bf16.msra.mxu0 %v2778
      %3022 = vmatpush.bf16.msra.mxu0 %v2774
      %3023 = vmatpush.bf16.msra.mxu0 %v2770
      %3024 = vmatpush.bf16.msra.mxu0 %v2766
      %3025 = vmatpush.bf16.msra.mxu0 %v2762
      %3026 = vmatmul.bf16.gmra.mxu0 %v1449
      %v3027 = vpop.f32.mrf.mxu0
      %v3028 = vadd.f32 %v2202, %v3027
      %v3029 = vpop.f32.mrf.mxu0
      %v3030 = vadd.f32 %v2204, %v3029
      %3031 = vdwg.mxu0
      %3032 = vmatpush.bf16.msra.mxu0 %v2822
      %3033 = vmatpush.bf16.msra.mxu0 %v2818
      %3034 = vmatpush.bf16.msra.mxu0 %v2814
      %3035 = vmatpush.bf16.msra.mxu0 %v2810
      %3036 = vmatpush.bf16.msra.mxu0 %v2806
      %3037 = vmatpush.bf16.msra.mxu0 %v2802
      %3038 = vmatpush.bf16.msra.mxu0 %v2798
      %3039 = vmatpush.bf16.msra.mxu0 %v2794
      %3040 = vmatmul.bf16.gmra.mxu0 %v1450
      %v3041 = vpop.f32.mrf.mxu0
      %v3042 = vadd.f32 %v3028, %v3041
      %v3043 = vpop.f32.mrf.mxu0
      %v3044 = vadd.f32 %v3030, %v3043
      %3045 = vdwg.mxu0
      %3046 = vmatpush.bf16.msra.mxu0 %v2854
      %3047 = vmatpush.bf16.msra.mxu0 %v2850
      %3048 = vmatpush.bf16.msra.mxu0 %v2846
      %3049 = vmatpush.bf16.msra.mxu0 %v2842
      %3050 = vmatpush.bf16.msra.mxu0 %v2838
      %3051 = vmatpush.bf16.msra.mxu0 %v2834
      %3052 = vmatpush.bf16.msra.mxu0 %v2830
      %3053 = vmatpush.bf16.msra.mxu0 %v2826
      %3054 = vmatmul.bf16.gmra.mxu0 %v1451
      %v3055 = vpop.f32.mrf.mxu0
      %v3056 = vadd.f32 %v3042, %v3055
      %v3057 = vpop.f32.mrf.mxu0
      %v3058 = vadd.f32 %v3044, %v3057
      %3059 = vdwg.mxu0
      %3060 = vmatpush.bf16.msra.mxu0 %v2886
      %3061 = vmatpush.bf16.msra.mxu0 %v2882
      %3062 = vmatpush.bf16.msra.mxu0 %v2878
      %3063 = vmatpush.bf16.msra.mxu0 %v2874
      %3064 = vmatpush.bf16.msra.mxu0 %v2870
      %3065 = vmatpush.bf16.msra.mxu0 %v2866
      %3066 = vmatpush.bf16.msra.mxu0 %v2862
      %3067 = vmatpush.bf16.msra.mxu0 %v2858
      %3068 = vmatmul.bf16.gmra.mxu0 %v1452
      %v3069 = vpop.f32.mrf.mxu0
      %v3070 = vadd.f32 %v3056, %v3069
      %v3071 = vpop.f32.mrf.mxu0
      %v3072 = vadd.f32 %v3058, %v3071
      %3073 = vdwg.mxu0
      %3074 = vmatpush.bf16.msra.mxu0 %v2791
      %3075 = vmatpush.bf16.msra.mxu0 %v2787
      %3076 = vmatpush.bf16.msra.mxu0 %v2783
      %3077 = vmatpush.bf16.msra.mxu0 %v2779
      %3078 = vmatpush.bf16.msra.mxu0 %v2775
      %3079 = vmatpush.bf16.msra.mxu0 %v2771
      %3080 = vmatpush.bf16.msra.mxu0 %v2767
      %3081 = vmatpush.bf16.msra.mxu0 %v2763
      %3082 = vmatmul.bf16.gmra.mxu0 %v1449
      %v3083 = vpop.f32.mrf.mxu0
      %v3084 = vadd.f32 %v2258, %v3083
      %v3085 = vpop.f32.mrf.mxu0
      %v3086 = vadd.f32 %v2260, %v3085
      %3087 = vdwg.mxu0
      %3088 = vmatpush.bf16.msra.mxu0 %v2823
      %3089 = vmatpush.bf16.msra.mxu0 %v2819
      %3090 = vmatpush.bf16.msra.mxu0 %v2815
      %3091 = vmatpush.bf16.msra.mxu0 %v2811
      %3092 = vmatpush.bf16.msra.mxu0 %v2807
      %3093 = vmatpush.bf16.msra.mxu0 %v2803
      %3094 = vmatpush.bf16.msra.mxu0 %v2799
      %3095 = vmatpush.bf16.msra.mxu0 %v2795
      %3096 = vmatmul.bf16.gmra.mxu0 %v1450
      %v3097 = vpop.f32.mrf.mxu0
      %v3098 = vadd.f32 %v3084, %v3097
      %v3099 = vpop.f32.mrf.mxu0
      %v3100 = vadd.f32 %v3086, %v3099
      %3101 = vdwg.mxu0
      %3102 = vmatpush.bf16.msra.mxu0 %v2855
      %3103 = vmatpush.bf16.msra.mxu0 %v2851
      %3104 = vmatpush.bf16.msra.mxu0 %v2847
      %3105 = vmatpush.bf16.msra.mxu0 %v2843
      %3106 = vmatpush.bf16.msra.mxu0 %v2839
      %3107 = vmatpush.bf16.msra.mxu0 %v2835
      %3108 = vmatpush.bf16.msra.mxu0 %v2831
      %3109 = vmatpush.bf16.msra.mxu0 %v2827
      %3110 = vmatmul.bf16.gmra.mxu0 %v1451
      %v3111 = vpop.f32.mrf.mxu0
      %v3112 = vadd.f32 %v3098, %v3111
      %v3113 = vpop.f32.mrf.mxu0
      %v3114 = vadd.f32 %v3100, %v3113
      %3115 = vdwg.mxu0
      %3116 = vmatpush.bf16.msra.mxu0 %v2887
      %3117 = vmatpush.bf16.msra.mxu0 %v2883
      %3118 = vmatpush.bf16.msra.mxu0 %v2879
      %3119 = vmatpush.bf16.msra.mxu0 %v2875
      %3120 = vmatpush.bf16.msra.mxu0 %v2871
      %3121 = vmatpush.bf16.msra.mxu0 %v2867
      %3122 = vmatpush.bf16.msra.mxu0 %v2863
      %3123 = vmatpush.bf16.msra.mxu0 %v2859
      %3124 = vmatmul.bf16.gmra.mxu0 %v1452
      %v3125 = vpop.f32.mrf.mxu0
      %v3126 = vadd.f32 %v3112, %v3125
      %v3127 = vpop.f32.mrf.mxu0
      %v3128 = vadd.f32 %v3114, %v3127
      %3129 = vdwg.mxu0
      %3130 = vmatpush.bf16.msra.mxu0 %v2792
      %3131 = vmatpush.bf16.msra.mxu0 %v2788
      %3132 = vmatpush.bf16.msra.mxu0 %v2784
      %3133 = vmatpush.bf16.msra.mxu0 %v2780
      %3134 = vmatpush.bf16.msra.mxu0 %v2776
      %3135 = vmatpush.bf16.msra.mxu0 %v2772
      %3136 = vmatpush.bf16.msra.mxu0 %v2768
      %3137 = vmatpush.bf16.msra.mxu0 %v2764
      %3138 = vmatmul.bf16.gmra.mxu0 %v1449
      %v3139 = vpop.f32.mrf.mxu0
      %v3140 = vadd.f32 %v2314, %v3139
      %v3141 = vpop.f32.mrf.mxu0
      %v3142 = vadd.f32 %v2316, %v3141
      %3143 = vdwg.mxu0
      %3144 = vmatpush.bf16.msra.mxu0 %v2824
      %3145 = vmatpush.bf16.msra.mxu0 %v2820
      %3146 = vmatpush.bf16.msra.mxu0 %v2816
      %3147 = vmatpush.bf16.msra.mxu0 %v2812
      %3148 = vmatpush.bf16.msra.mxu0 %v2808
      %3149 = vmatpush.bf16.msra.mxu0 %v2804
      %3150 = vmatpush.bf16.msra.mxu0 %v2800
      %3151 = vmatpush.bf16.msra.mxu0 %v2796
      %3152 = vmatmul.bf16.gmra.mxu0 %v1450
      %v3153 = vpop.f32.mrf.mxu0
      %v3154 = vadd.f32 %v3140, %v3153
      %v3155 = vpop.f32.mrf.mxu0
      %v3156 = vadd.f32 %v3142, %v3155
      %3157 = vdwg.mxu0
      %3158 = vmatpush.bf16.msra.mxu0 %v2856
      %3159 = vmatpush.bf16.msra.mxu0 %v2852
      %3160 = vmatpush.bf16.msra.mxu0 %v2848
      %3161 = vmatpush.bf16.msra.mxu0 %v2844
      %3162 = vmatpush.bf16.msra.mxu0 %v2840
      %3163 = vmatpush.bf16.msra.mxu0 %v2836
      %3164 = vmatpush.bf16.msra.mxu0 %v2832
      %3165 = vmatpush.bf16.msra.mxu0 %v2828
      %3166 = vmatmul.bf16.gmra.mxu0 %v1451
      %v3167 = vpop.f32.mrf.mxu0
      %v3168 = vadd.f32 %v3154, %v3167
      %v3169 = vpop.f32.mrf.mxu0
      %v3170 = vadd.f32 %v3156, %v3169
      %3171 = vdwg.mxu0
      %3172 = vmatpush.bf16.msra.mxu0 %v2888
      %3173 = vmatpush.bf16.msra.mxu0 %v2884
      %3174 = vmatpush.bf16.msra.mxu0 %v2880
      %3175 = vmatpush.bf16.msra.mxu0 %v2876
      %3176 = vmatpush.bf16.msra.mxu0 %v2872
      %3177 = vmatpush.bf16.msra.mxu0 %v2868
      %3178 = vmatpush.bf16.msra.mxu0 %v2864
      %3179 = vmatpush.bf16.msra.mxu0 %v2860
      %3180 = vmatmul.bf16.gmra.mxu0 %v1452
      %v3181 = vpop.f32.mrf.mxu0
      %v3182 = vadd.f32 %v3168, %v3181
      %v3183 = vpop.f32.mrf.mxu0
      %v3184 = vadd.f32 %v3170, %v3183
      %3185 = vdwg.mxu0
      %3186 = vmatpush.bf16.msra.mxu0 %v2793
      %3187 = vmatpush.bf16.msra.mxu0 %v2789
      %3188 = vmatpush.bf16.msra.mxu0 %v2785
      %3189 = vmatpush.bf16.msra.mxu0 %v2781
      %3190 = vmatpush.bf16.msra.mxu0 %v2777
      %3191 = vmatpush.bf16.msra.mxu0 %v2773
      %3192 = vmatpush.bf16.msra.mxu0 %v2769
      %3193 = vmatpush.bf16.msra.mxu0 %v2765
      %3194 = vmatmul.bf16.gmra.mxu0 %v1449
      %v3195 = vpop.f32.mrf.mxu0
      %v3196 = vadd.f32 %v2370, %v3195
      %v3197 = vpop.f32.mrf.mxu0
      %v3198 = vadd.f32 %v2372, %v3197
      %3199 = vdwg.mxu0
      %3200 = vmatpush.bf16.msra.mxu0 %v2825
      %3201 = vmatpush.bf16.msra.mxu0 %v2821
      %3202 = vmatpush.bf16.msra.mxu0 %v2817
      %3203 = vmatpush.bf16.msra.mxu0 %v2813
      %3204 = vmatpush.bf16.msra.mxu0 %v2809
      %3205 = vmatpush.bf16.msra.mxu0 %v2805
      %3206 = vmatpush.bf16.msra.mxu0 %v2801
      %3207 = vmatpush.bf16.msra.mxu0 %v2797
      %3208 = vmatmul.bf16.gmra.mxu0 %v1450
      %v3209 = vpop.f32.mrf.mxu0
      %v3210 = vadd.f32 %v3196, %v3209
      %v3211 = vpop.f32.mrf.mxu0
      %v3212 = vadd.f32 %v3198, %v3211
      %3213 = vdwg.mxu0
      %3214 = vmatpush.bf16.msra.mxu0 %v2857
      %3215 = vmatpush.bf16.msra.mxu0 %v2853
      %3216 = vmatpush.bf16.msra.mxu0 %v2849
      %3217 = vmatpush.bf16.msra.mxu0 %v2845
      %3218 = vmatpush.bf16.msra.mxu0 %v2841
      %3219 = vmatpush.bf16.msra.mxu0 %v2837
      %3220 = vmatpush.bf16.msra.mxu0 %v2833
      %3221 = vmatpush.bf16.msra.mxu0 %v2829
      %3222 = vmatmul.bf16.gmra.mxu0 %v1451
      %v3223 = vpop.f32.mrf.mxu0
      %v3224 = vadd.f32 %v3210, %v3223
      %v3225 = vpop.f32.mrf.mxu0
      %v3226 = vadd.f32 %v3212, %v3225
      %3227 = vdwg.mxu0
      %3228 = vmatpush.bf16.msra.mxu0 %v2889
      %3229 = vmatpush.bf16.msra.mxu0 %v2885
      %3230 = vmatpush.bf16.msra.mxu0 %v2881
      %3231 = vmatpush.bf16.msra.mxu0 %v2877
      %3232 = vmatpush.bf16.msra.mxu0 %v2873
      %3233 = vmatpush.bf16.msra.mxu0 %v2869
      %3234 = vmatpush.bf16.msra.mxu0 %v2865
      %3235 = vmatpush.bf16.msra.mxu0 %v2861
      %3236 = vmatmul.bf16.gmra.mxu0 %v1452
      %v3237 = vpop.f32.mrf.mxu0
      %v3238 = vadd.f32 %v3224, %v3237
      %v3239 = vpop.f32.mrf.mxu0
      %v3240 = vadd.f32 %v3226, %v3239
      %3241 = vdwg.mxu0
      %v3242 = vld [vmem:[#allocation3] sm:$0xee]
      %v3243 = vld [vmem:[#allocation3 + $0x8] sm:$0xee]
      %s3244 = scalar_lea.vmem %s453, 2048
      %v3245 = vld [vmem:[%s3244] sm:$0xff]
      %v3246 = vld [vmem:[%s3244 + $0x8] sm:$0xff]
      %v3247 = vld [vmem:[%s3244 + $0x10] sm:$0xff]
      %v3248 = vld [vmem:[%s3244 + $0x18] sm:$0xff]
      %v3249 = vld [vmem:[%s3244 + $0x20] sm:$0xff]
      %v3250 = vld [vmem:[%s3244 + $0x28] sm:$0xff]
      %v3251 = vld [vmem:[%s3244 + $0x30] sm:$0xff]
      %v3252 = vld [vmem:[%s3244 + $0x38] sm:$0xff]
      %v3253 = vld [vmem:[%s3244 + $0x40] sm:$0xff]
      %v3254 = vld [vmem:[%s3244 + $0x48] sm:$0xff]
      %v3255 = vld [vmem:[%s3244 + $0x50] sm:$0xff]
      %v3256 = vld [vmem:[%s3244 + $0x58] sm:$0xff]
      %v3257 = vld [vmem:[%s3244 + $0x60] sm:$0xff]
      %v3258 = vld [vmem:[%s3244 + $0x68] sm:$0xff]
      %v3259 = vld [vmem:[%s3244 + $0x70] sm:$0xff]
      %v3260 = vld [vmem:[%s3244 + $0x78] sm:$0xff]
      %v3261 = vld [vmem:[%s3244 + $0x80] sm:$0xff]
      %v3262 = vld [vmem:[%s3244 + $0x88] sm:$0xff]
      %v3263 = vld [vmem:[%s3244 + $0x90] sm:$0xff]
      %v3264 = vld [vmem:[%s3244 + $0x98] sm:$0xff]
      %v3265 = vld [vmem:[%s3244 + $0xa0] sm:$0xff]
      %v3266 = vld [vmem:[%s3244 + $0xa8] sm:$0xff]
      %v3267 = vld [vmem:[%s3244 + $0xb0] sm:$0xff]
      %v3268 = vld [vmem:[%s3244 + $0xb8] sm:$0xff]
      %v3269 = vld [vmem:[%s3244 + $0xc0] sm:$0xff]
      %v3270 = vld [vmem:[%s3244 + $0xc8] sm:$0xff]
      %v3271 = vld [vmem:[%s3244 + $0xd0] sm:$0xff]
      %v3272 = vld [vmem:[%s3244 + $0xd8] sm:$0xff]
      %v3273 = vld [vmem:[%s3244 + $0xe0] sm:$0xff]
      %v3274 = vld [vmem:[%s3244 + $0xe8] sm:$0xff]
      %v3275 = vld [vmem:[%s3244 + $0xf0] sm:$0xff]
      %v3276 = vld [vmem:[%s3244 + $0xf8] sm:$0xff]
      %v3277 = vld [vmem:[%s3244 + $0x100] sm:$0xff]
      %v3278 = vld [vmem:[%s3244 + $0x108] sm:$0xff]
      %v3279 = vld [vmem:[%s3244 + $0x110] sm:$0xff]
      %v3280 = vld [vmem:[%s3244 + $0x118] sm:$0xff]
      %v3281 = vld [vmem:[%s3244 + $0x120] sm:$0xff]
      %v3282 = vld [vmem:[%s3244 + $0x128] sm:$0xff]
      %v3283 = vld [vmem:[%s3244 + $0x130] sm:$0xff]
      %v3284 = vld [vmem:[%s3244 + $0x138] sm:$0xff]
      %v3285 = vld [vmem:[%s3244 + $0x140] sm:$0xff]
      %v3286 = vld [vmem:[%s3244 + $0x148] sm:$0xff]
      %v3287 = vld [vmem:[%s3244 + $0x150] sm:$0xff]
      %v3288 = vld [vmem:[%s3244 + $0x158] sm:$0xff]
      %v3289 = vld [vmem:[%s3244 + $0x160] sm:$0xff]
      %v3290 = vld [vmem:[%s3244 + $0x168] sm:$0xff]
      %v3291 = vld [vmem:[%s3244 + $0x170] sm:$0xff]
      %v3292 = vld [vmem:[%s3244 + $0x178] sm:$0xff]
      %v3293 = vld [vmem:[%s3244 + $0x180] sm:$0xff]
      %v3294 = vld [vmem:[%s3244 + $0x188] sm:$0xff]
      %v3295 = vld [vmem:[%s3244 + $0x190] sm:$0xff]
      %v3296 = vld [vmem:[%s3244 + $0x198] sm:$0xff]
      %v3297 = vld [vmem:[%s3244 + $0x1a0] sm:$0xff]
      %v3298 = vld [vmem:[%s3244 + $0x1a8] sm:$0xff]
      %v3299 = vld [vmem:[%s3244 + $0x1b0] sm:$0xff]
      %v3300 = vld [vmem:[%s3244 + $0x1b8] sm:$0xff]
      %v3301 = vld [vmem:[%s3244 + $0x1c0] sm:$0xff]
      %v3302 = vld [vmem:[%s3244 + $0x1c8] sm:$0xff]
      %v3303 = vld [vmem:[%s3244 + $0x1d0] sm:$0xff]
      %v3304 = vld [vmem:[%s3244 + $0x1d8] sm:$0xff]
      %v3305 = vld [vmem:[%s3244 + $0x1e0] sm:$0xff]
      %v3306 = vld [vmem:[%s3244 + $0x1e8] sm:$0xff]
      %v3307 = vld [vmem:[%s3244 + $0x1f0] sm:$0xff]
      %v3308 = vld [vmem:[%s3244 + $0x1f8] sm:$0xff]
      %v3309 = vld [vmem:[%s3244 + $0x200] sm:$0xff]
      %v3310 = vld [vmem:[%s3244 + $0x208] sm:$0xff]
      %v3311 = vld [vmem:[%s3244 + $0x210] sm:$0xff]
      %v3312 = vld [vmem:[%s3244 + $0x218] sm:$0xff]
      %v3313 = vld [vmem:[%s3244 + $0x220] sm:$0xff]
      %v3314 = vld [vmem:[%s3244 + $0x228] sm:$0xff]
      %v3315 = vld [vmem:[%s3244 + $0x230] sm:$0xff]
      %v3316 = vld [vmem:[%s3244 + $0x238] sm:$0xff]
      %v3317 = vld [vmem:[%s3244 + $0x240] sm:$0xff]
      %v3318 = vld [vmem:[%s3244 + $0x248] sm:$0xff]
      %v3319 = vld [vmem:[%s3244 + $0x250] sm:$0xff]
      %v3320 = vld [vmem:[%s3244 + $0x258] sm:$0xff]
      %v3321 = vld [vmem:[%s3244 + $0x260] sm:$0xff]
      %v3322 = vld [vmem:[%s3244 + $0x268] sm:$0xff]
      %v3323 = vld [vmem:[%s3244 + $0x270] sm:$0xff]
      %v3324 = vld [vmem:[%s3244 + $0x278] sm:$0xff]
      %v3325 = vld [vmem:[%s3244 + $0x280] sm:$0xff]
      %v3326 = vld [vmem:[%s3244 + $0x288] sm:$0xff]
      %v3327 = vld [vmem:[%s3244 + $0x290] sm:$0xff]
      %v3328 = vld [vmem:[%s3244 + $0x298] sm:$0xff]
      %v3329 = vld [vmem:[%s3244 + $0x2a0] sm:$0xff]
      %v3330 = vld [vmem:[%s3244 + $0x2a8] sm:$0xff]
      %v3331 = vld [vmem:[%s3244 + $0x2b0] sm:$0xff]
      %v3332 = vld [vmem:[%s3244 + $0x2b8] sm:$0xff]
      %v3333 = vld [vmem:[%s3244 + $0x2c0] sm:$0xff]
      %v3334 = vld [vmem:[%s3244 + $0x2c8] sm:$0xff]
      %v3335 = vld [vmem:[%s3244 + $0x2d0] sm:$0xff]
      %v3336 = vld [vmem:[%s3244 + $0x2d8] sm:$0xff]
      %v3337 = vld [vmem:[%s3244 + $0x2e0] sm:$0xff]
      %v3338 = vld [vmem:[%s3244 + $0x2e8] sm:$0xff]
      %v3339 = vld [vmem:[%s3244 + $0x2f0] sm:$0xff]
      %v3340 = vld [vmem:[%s3244 + $0x2f8] sm:$0xff]
      %v3341 = vld [vmem:[%s3244 + $0x300] sm:$0xff]
      %v3342 = vld [vmem:[%s3244 + $0x308] sm:$0xff]
      %v3343 = vld [vmem:[%s3244 + $0x310] sm:$0xff]
      %v3344 = vld [vmem:[%s3244 + $0x318] sm:$0xff]
      %v3345 = vld [vmem:[%s3244 + $0x320] sm:$0xff]
      %v3346 = vld [vmem:[%s3244 + $0x328] sm:$0xff]
      %v3347 = vld [vmem:[%s3244 + $0x330] sm:$0xff]
      %v3348 = vld [vmem:[%s3244 + $0x338] sm:$0xff]
      %v3349 = vld [vmem:[%s3244 + $0x340] sm:$0xff]
      %v3350 = vld [vmem:[%s3244 + $0x348] sm:$0xff]
      %v3351 = vld [vmem:[%s3244 + $0x350] sm:$0xff]
      %v3352 = vld [vmem:[%s3244 + $0x358] sm:$0xff]
      %v3353 = vld [vmem:[%s3244 + $0x360] sm:$0xff]
      %v3354 = vld [vmem:[%s3244 + $0x368] sm:$0xff]
      %v3355 = vld [vmem:[%s3244 + $0x370] sm:$0xff]
      %v3356 = vld [vmem:[%s3244 + $0x378] sm:$0xff]
      %v3357 = vld [vmem:[%s3244 + $0x380] sm:$0xff]
      %v3358 = vld [vmem:[%s3244 + $0x388] sm:$0xff]
      %v3359 = vld [vmem:[%s3244 + $0x390] sm:$0xff]
      %v3360 = vld [vmem:[%s3244 + $0x398] sm:$0xff]
      %v3361 = vld [vmem:[%s3244 + $0x3a0] sm:$0xff]
      %v3362 = vld [vmem:[%s3244 + $0x3a8] sm:$0xff]
      %v3363 = vld [vmem:[%s3244 + $0x3b0] sm:$0xff]
      %v3364 = vld [vmem:[%s3244 + $0x3b8] sm:$0xff]
      %v3365 = vld [vmem:[%s3244 + $0x3c0] sm:$0xff]
      %v3366 = vld [vmem:[%s3244 + $0x3c8] sm:$0xff]
      %v3367 = vld [vmem:[%s3244 + $0x3d0] sm:$0xff]
      %v3368 = vld [vmem:[%s3244 + $0x3d8] sm:$0xff]
      %v3369 = vld [vmem:[%s3244 + $0x3e0] sm:$0xff]
      %v3370 = vld [vmem:[%s3244 + $0x3e8] sm:$0xff]
      %v3371 = vld [vmem:[%s3244 + $0x3f0] sm:$0xff]
      %v3372 = vld [vmem:[%s3244 + $0x3f8] sm:$0xff]
      %v3375 = vunpack.c.l.b16 %v3242
      %v3376 = vunpack.c.h.b16 %v3242
      %v3377 = vunpack.c.l.b16 %v3243
      %v3378 = vunpack.c.h.b16 %v3243
      %v3379 = vpack.c.b16 %v1441, %v3375
      %v3380 = vpack.c.b16 %v1442, %v3376
      %v3381 = vpack.c.b16 %v1443, %v3377
      %v3382 = vpack.c.b16 %v1444, %v3378
      %vm3383 = vcmask 1046528
      %v3384 = vrot.slane %v3379, 1
      %v3385 = vrot.slane %v1453, 1
      %v3386 = vsel %vm3383, %v3384, %v3385
      %v3387 = vrot.slane %v3380, 1
      %v3388 = vrot.slane %v1454, 1
      %v3389 = vsel %vm3383, %v3387, %v3388
      %v3390 = vrot.slane %v3381, 1
      %v3391 = vrot.slane %v1455, 1
      %v3392 = vsel %vm3383, %v3390, %v3391
      %v3393 = vrot.slane %v3382, 1
      %v3394 = vrot.slane %v1456, 1
      %v3395 = vsel %vm3383, %v3393, %v3394
      %v3528 = vunpack.c.l.b16 %v3245
      %v3529 = vunpack.c.h.b16 %v3245
      %v3530 = vunpack.c.l.b16 %v3246
      %v3531 = vunpack.c.h.b16 %v3246
      %v3532 = vunpack.c.l.b16 %v3247
      %v3533 = vunpack.c.h.b16 %v3247
      %v3534 = vunpack.c.l.b16 %v3248
      %v3535 = vunpack.c.h.b16 %v3248
      %v3536 = vunpack.c.l.b16 %v3249
      %v3537 = vunpack.c.h.b16 %v3249
      %v3538 = vunpack.c.l.b16 %v3250
      %v3539 = vunpack.c.h.b16 %v3250
      %v3540 = vunpack.c.l.b16 %v3251
      %v3541 = vunpack.c.h.b16 %v3251
      %v3542 = vunpack.c.l.b16 %v3252
      %v3543 = vunpack.c.h.b16 %v3252
      %v3544 = vunpack.c.l.b16 %v3253
      %v3545 = vunpack.c.h.b16 %v3253
      %v3546 = vunpack.c.l.b16 %v3254
      %v3547 = vunpack.c.h.b16 %v3254
      %v3548 = vunpack.c.l.b16 %v3255
      %v3549 = vunpack.c.h.b16 %v3255
      %v3550 = vunpack.c.l.b16 %v3256
      %v3551 = vunpack.c.h.b16 %v3256
      %v3552 = vunpack.c.l.b16 %v3257
      %v3553 = vunpack.c.h.b16 %v3257
      %v3554 = vunpack.c.l.b16 %v3258
      %v3555 = vunpack.c.h.b16 %v3258
      %v3556 = vunpack.c.l.b16 %v3259
      %v3557 = vunpack.c.h.b16 %v3259
      %v3558 = vunpack.c.l.b16 %v3260
      %v3559 = vunpack.c.h.b16 %v3260
      %v3560 = vunpack.c.l.b16 %v3261
      %v3561 = vunpack.c.h.b16 %v3261
      %v3562 = vunpack.c.l.b16 %v3262
      %v3563 = vunpack.c.h.b16 %v3262
      %v3564 = vunpack.c.l.b16 %v3263
      %v3565 = vunpack.c.h.b16 %v3263
      %v3566 = vunpack.c.l.b16 %v3264
      %v3567 = vunpack.c.h.b16 %v3264
      %v3568 = vunpack.c.l.b16 %v3265
      %v3569 = vunpack.c.h.b16 %v3265
      %v3570 = vunpack.c.l.b16 %v3266
      %v3571 = vunpack.c.h.b16 %v3266
      %v3572 = vunpack.c.l.b16 %v3267
      %v3573 = vunpack.c.h.b16 %v3267
      %v3574 = vunpack.c.l.b16 %v3268
      %v3575 = vunpack.c.h.b16 %v3268
      %v3576 = vunpack.c.l.b16 %v3269
      %v3577 = vunpack.c.h.b16 %v3269
      %v3578 = vunpack.c.l.b16 %v3270
      %v3579 = vunpack.c.h.b16 %v3270
      %v3580 = vunpack.c.l.b16 %v3271
      %v3581 = vunpack.c.h.b16 %v3271
      %v3582 = vunpack.c.l.b16 %v3272
      %v3583 = vunpack.c.h.b16 %v3272
      %v3584 = vunpack.c.l.b16 %v3273
      %v3585 = vunpack.c.h.b16 %v3273
      %v3586 = vunpack.c.l.b16 %v3274
      %v3587 = vunpack.c.h.b16 %v3274
      %v3588 = vunpack.c.l.b16 %v3275
      %v3589 = vunpack.c.h.b16 %v3275
      %v3590 = vunpack.c.l.b16 %v3276
      %v3591 = vunpack.c.h.b16 %v3276
      %v3592 = vunpack.c.l.b16 %v3277
      %v3593 = vunpack.c.h.b16 %v3277
      %v3594 = vunpack.c.l.b16 %v3278
      %v3595 = vunpack.c.h.b16 %v3278
      %v3596 = vunpack.c.l.b16 %v3279
      %v3597 = vunpack.c.h.b16 %v3279
      %v3598 = vunpack.c.l.b16 %v3280
      %v3599 = vunpack.c.h.b16 %v3280
      %v3600 = vunpack.c.l.b16 %v3281
      %v3601 = vunpack.c.h.b16 %v3281
      %v3602 = vunpack.c.l.b16 %v3282
      %v3603 = vunpack.c.h.b16 %v3282
      %v3604 = vunpack.c.l.b16 %v3283
      %v3605 = vunpack.c.h.b16 %v3283
      %v3606 = vunpack.c.l.b16 %v3284
      %v3607 = vunpack.c.h.b16 %v3284
      %v3608 = vunpack.c.l.b16 %v3285
      %v3609 = vunpack.c.h.b16 %v3285
      %v3610 = vunpack.c.l.b16 %v3286
      %v3611 = vunpack.c.h.b16 %v3286
      %v3612 = vunpack.c.l.b16 %v3287
      %v3613 = vunpack.c.h.b16 %v3287
      %v3614 = vunpack.c.l.b16 %v3288
      %v3615 = vunpack.c.h.b16 %v3288
      %v3616 = vunpack.c.l.b16 %v3289
      %v3617 = vunpack.c.h.b16 %v3289
      %v3618 = vunpack.c.l.b16 %v3290
      %v3619 = vunpack.c.h.b16 %v3290
      %v3620 = vunpack.c.l.b16 %v3291
      %v3621 = vunpack.c.h.b16 %v3291
      %v3622 = vunpack.c.l.b16 %v3292
      %v3623 = vunpack.c.h.b16 %v3292
      %v3624 = vunpack.c.l.b16 %v3293
      %v3625 = vunpack.c.h.b16 %v3293
      %v3626 = vunpack.c.l.b16 %v3294
      %v3627 = vunpack.c.h.b16 %v3294
      %v3628 = vunpack.c.l.b16 %v3295
      %v3629 = vunpack.c.h.b16 %v3295
      %v3630 = vunpack.c.l.b16 %v3296
      %v3631 = vunpack.c.h.b16 %v3296
      %v3632 = vunpack.c.l.b16 %v3297
      %v3633 = vunpack.c.h.b16 %v3297
      %v3634 = vunpack.c.l.b16 %v3298
      %v3635 = vunpack.c.h.b16 %v3298
      %v3636 = vunpack.c.l.b16 %v3299
      %v3637 = vunpack.c.h.b16 %v3299
      %v3638 = vunpack.c.l.b16 %v3300
      %v3639 = vunpack.c.h.b16 %v3300
      %v3640 = vunpack.c.l.b16 %v3301
      %v3641 = vunpack.c.h.b16 %v3301
      %v3642 = vunpack.c.l.b16 %v3302
      %v3643 = vunpack.c.h.b16 %v3302
      %v3644 = vunpack.c.l.b16 %v3303
      %v3645 = vunpack.c.h.b16 %v3303
      %v3646 = vunpack.c.l.b16 %v3304
      %v3647 = vunpack.c.h.b16 %v3304
      %v3648 = vunpack.c.l.b16 %v3305
      %v3649 = vunpack.c.h.b16 %v3305
      %v3650 = vunpack.c.l.b16 %v3306
      %v3651 = vunpack.c.h.b16 %v3306
      %v3652 = vunpack.c.l.b16 %v3307
      %v3653 = vunpack.c.h.b16 %v3307
      %v3654 = vunpack.c.l.b16 %v3308
      %v3655 = vunpack.c.h.b16 %v3308
      %v3656 = vunpack.c.l.b16 %v3309
      %v3657 = vunpack.c.h.b16 %v3309
      %v3658 = vunpack.c.l.b16 %v3310
      %v3659 = vunpack.c.h.b16 %v3310
      %v3660 = vunpack.c.l.b16 %v3311
      %v3661 = vunpack.c.h.b16 %v3311
      %v3662 = vunpack.c.l.b16 %v3312
      %v3663 = vunpack.c.h.b16 %v3312
      %v3664 = vunpack.c.l.b16 %v3313
      %v3665 = vunpack.c.h.b16 %v3313
      %v3666 = vunpack.c.l.b16 %v3314
      %v3667 = vunpack.c.h.b16 %v3314
      %v3668 = vunpack.c.l.b16 %v3315
      %v3669 = vunpack.c.h.b16 %v3315
      %v3670 = vunpack.c.l.b16 %v3316
      %v3671 = vunpack.c.h.b16 %v3316
      %v3672 = vunpack.c.l.b16 %v3317
      %v3673 = vunpack.c.h.b16 %v3317
      %v3674 = vunpack.c.l.b16 %v3318
      %v3675 = vunpack.c.h.b16 %v3318
      %v3676 = vunpack.c.l.b16 %v3319
      %v3677 = vunpack.c.h.b16 %v3319
      %v3678 = vunpack.c.l.b16 %v3320
      %v3679 = vunpack.c.h.b16 %v3320
      %v3680 = vunpack.c.l.b16 %v3321
      %v3681 = vunpack.c.h.b16 %v3321
      %v3682 = vunpack.c.l.b16 %v3322
      %v3683 = vunpack.c.h.b16 %v3322
      %v3684 = vunpack.c.l.b16 %v3323
      %v3685 = vunpack.c.h.b16 %v3323
      %v3686 = vunpack.c.l.b16 %v3324
      %v3687 = vunpack.c.h.b16 %v3324
      %v3688 = vunpack.c.l.b16 %v3325
      %v3689 = vunpack.c.h.b16 %v3325
      %v3690 = vunpack.c.l.b16 %v3326
      %v3691 = vunpack.c.h.b16 %v3326
      %v3692 = vunpack.c.l.b16 %v3327
      %v3693 = vunpack.c.h.b16 %v3327
      %v3694 = vunpack.c.l.b16 %v3328
      %v3695 = vunpack.c.h.b16 %v3328
      %v3696 = vunpack.c.l.b16 %v3329
      %v3697 = vunpack.c.h.b16 %v3329
      %v3698 = vunpack.c.l.b16 %v3330
      %v3699 = vunpack.c.h.b16 %v3330
      %v3700 = vunpack.c.l.b16 %v3331
      %v3701 = vunpack.c.h.b16 %v3331
      %v3702 = vunpack.c.l.b16 %v3332
      %v3703 = vunpack.c.h.b16 %v3332
      %v3704 = vunpack.c.l.b16 %v3333
      %v3705 = vunpack.c.h.b16 %v3333
      %v3706 = vunpack.c.l.b16 %v3334
      %v3707 = vunpack.c.h.b16 %v3334
      %v3708 = vunpack.c.l.b16 %v3335
      %v3709 = vunpack.c.h.b16 %v3335
      %v3710 = vunpack.c.l.b16 %v3336
      %v3711 = vunpack.c.h.b16 %v3336
      %v3712 = vunpack.c.l.b16 %v3337
      %v3713 = vunpack.c.h.b16 %v3337
      %v3714 = vunpack.c.l.b16 %v3338
      %v3715 = vunpack.c.h.b16 %v3338
      %v3716 = vunpack.c.l.b16 %v3339
      %v3717 = vunpack.c.h.b16 %v3339
      %v3718 = vunpack.c.l.b16 %v3340
      %v3719 = vunpack.c.h.b16 %v3340
      %v3720 = vunpack.c.l.b16 %v3341
      %v3721 = vunpack.c.h.b16 %v3341
      %v3722 = vunpack.c.l.b16 %v3342
      %v3723 = vunpack.c.h.b16 %v3342
      %v3724 = vunpack.c.l.b16 %v3343
      %v3725 = vunpack.c.h.b16 %v3343
      %v3726 = vunpack.c.l.b16 %v3344
      %v3727 = vunpack.c.h.b16 %v3344
      %v3728 = vunpack.c.l.b16 %v3345
      %v3729 = vunpack.c.h.b16 %v3345
      %v3730 = vunpack.c.l.b16 %v3346
      %v3731 = vunpack.c.h.b16 %v3346
      %v3732 = vunpack.c.l.b16 %v3347
      %v3733 = vunpack.c.h.b16 %v3347
      %v3734 = vunpack.c.l.b16 %v3348
      %v3735 = vunpack.c.h.b16 %v3348
      %v3736 = vunpack.c.l.b16 %v3349
      %v3737 = vunpack.c.h.b16 %v3349
      %v3738 = vunpack.c.l.b16 %v3350
      %v3739 = vunpack.c.h.b16 %v3350
      %v3740 = vunpack.c.l.b16 %v3351
      %v3741 = vunpack.c.h.b16 %v3351
      %v3742 = vunpack.c.l.b16 %v3352
      %v3743 = vunpack.c.h.b16 %v3352
      %v3744 = vunpack.c.l.b16 %v3353
      %v3745 = vunpack.c.h.b16 %v3353
      %v3746 = vunpack.c.l.b16 %v3354
      %v3747 = vunpack.c.h.b16 %v3354
      %v3748 = vunpack.c.l.b16 %v3355
      %v3749 = vunpack.c.h.b16 %v3355
      %v3750 = vunpack.c.l.b16 %v3356
      %v3751 = vunpack.c.h.b16 %v3356
      %v3752 = vunpack.c.l.b16 %v3357
      %v3753 = vunpack.c.h.b16 %v3357
      %v3754 = vunpack.c.l.b16 %v3358
      %v3755 = vunpack.c.h.b16 %v3358
      %v3756 = vunpack.c.l.b16 %v3359
      %v3757 = vunpack.c.h.b16 %v3359
      %v3758 = vunpack.c.l.b16 %v3360
      %v3759 = vunpack.c.h.b16 %v3360
      %v3760 = vunpack.c.l.b16 %v3361
      %v3761 = vunpack.c.h.b16 %v3361
      %v3762 = vunpack.c.l.b16 %v3362
      %v3763 = vunpack.c.h.b16 %v3362
      %v3764 = vunpack.c.l.b16 %v3363
      %v3765 = vunpack.c.h.b16 %v3363
      %v3766 = vunpack.c.l.b16 %v3364
      %v3767 = vunpack.c.h.b16 %v3364
      %v3768 = vunpack.c.l.b16 %v3365
      %v3769 = vunpack.c.h.b16 %v3365
      %v3770 = vunpack.c.l.b16 %v3366
      %v3771 = vunpack.c.h.b16 %v3366
      %v3772 = vunpack.c.l.b16 %v3367
      %v3773 = vunpack.c.h.b16 %v3367
      %v3774 = vunpack.c.l.b16 %v3368
      %v3775 = vunpack.c.h.b16 %v3368
      %v3776 = vunpack.c.l.b16 %v3369
      %v3777 = vunpack.c.h.b16 %v3369
      %v3778 = vunpack.c.l.b16 %v3370
      %v3779 = vunpack.c.h.b16 %v3370
      %v3780 = vunpack.c.l.b16 %v3371
      %v3781 = vunpack.c.h.b16 %v3371
      %v3782 = vunpack.c.l.b16 %v3372
      %v3783 = vunpack.c.h.b16 %v3372
      %v3784 = vpack.c.b16 %v3532, %v3528
      %v3785 = vpack.c.b16 %v3533, %v3529
      %v3786 = vpack.c.b16 %v3534, %v3530
      %v3787 = vpack.c.b16 %v3535, %v3531
      %v3788 = vpack.c.b16 %v3540, %v3536
      %v3789 = vpack.c.b16 %v3541, %v3537
      %v3790 = vpack.c.b16 %v3542, %v3538
      %v3791 = vpack.c.b16 %v3543, %v3539
      %v3792 = vpack.c.b16 %v3548, %v3544
      %v3793 = vpack.c.b16 %v3549, %v3545
      %v3794 = vpack.c.b16 %v3550, %v3546
      %v3795 = vpack.c.b16 %v3551, %v3547
      %v3796 = vpack.c.b16 %v3556, %v3552
      %v3797 = vpack.c.b16 %v3557, %v3553
      %v3798 = vpack.c.b16 %v3558, %v3554
      %v3799 = vpack.c.b16 %v3559, %v3555
      %v3800 = vpack.c.b16 %v3564, %v3560
      %v3801 = vpack.c.b16 %v3565, %v3561
      %v3802 = vpack.c.b16 %v3566, %v3562
      %v3803 = vpack.c.b16 %v3567, %v3563
      %v3804 = vpack.c.b16 %v3572, %v3568
      %v3805 = vpack.c.b16 %v3573, %v3569
      %v3806 = vpack.c.b16 %v3574, %v3570
      %v3807 = vpack.c.b16 %v3575, %v3571
      %v3808 = vpack.c.b16 %v3580, %v3576
      %v3809 = vpack.c.b16 %v3581, %v3577
      %v3810 = vpack.c.b16 %v3582, %v3578
      %v3811 = vpack.c.b16 %v3583, %v3579
      %v3812 = vpack.c.b16 %v3588, %v3584
      %v3813 = vpack.c.b16 %v3589, %v3585
      %v3814 = vpack.c.b16 %v3590, %v3586
      %v3815 = vpack.c.b16 %v3591, %v3587
      %v3816 = vpack.c.b16 %v3596, %v3592
      %v3817 = vpack.c.b16 %v3597, %v3593
      %v3818 = vpack.c.b16 %v3598, %v3594
      %v3819 = vpack.c.b16 %v3599, %v3595
      %v3820 = vpack.c.b16 %v3604, %v3600
      %v3821 = vpack.c.b16 %v3605, %v3601
      %v3822 = vpack.c.b16 %v3606, %v3602
      %v3823 = vpack.c.b16 %v3607, %v3603
      %v3824 = vpack.c.b16 %v3612, %v3608
      %v3825 = vpack.c.b16 %v3613, %v3609
      %v3826 = vpack.c.b16 %v3614, %v3610
      %v3827 = vpack.c.b16 %v3615, %v3611
      %v3828 = vpack.c.b16 %v3620, %v3616
      %v3829 = vpack.c.b16 %v3621, %v3617
      %v3830 = vpack.c.b16 %v3622, %v3618
      %v3831 = vpack.c.b16 %v3623, %v3619
      %v3832 = vpack.c.b16 %v3628, %v3624
      %v3833 = vpack.c.b16 %v3629, %v3625
      %v3834 = vpack.c.b16 %v3630, %v3626
      %v3835 = vpack.c.b16 %v3631, %v3627
      %v3836 = vpack.c.b16 %v3636, %v3632
      %v3837 = vpack.c.b16 %v3637, %v3633
      %v3838 = vpack.c.b16 %v3638, %v3634
      %v3839 = vpack.c.b16 %v3639, %v3635
      %v3840 = vpack.c.b16 %v3644, %v3640
      %v3841 = vpack.c.b16 %v3645, %v3641
      %v3842 = vpack.c.b16 %v3646, %v3642
      %v3843 = vpack.c.b16 %v3647, %v3643
      %v3844 = vpack.c.b16 %v3652, %v3648
      %v3845 = vpack.c.b16 %v3653, %v3649
      %v3846 = vpack.c.b16 %v3654, %v3650
      %v3847 = vpack.c.b16 %v3655, %v3651
      %v3848 = vpack.c.b16 %v3660, %v3656
      %v3849 = vpack.c.b16 %v3661, %v3657
      %v3850 = vpack.c.b16 %v3662, %v3658
      %v3851 = vpack.c.b16 %v3663, %v3659
      %v3852 = vpack.c.b16 %v3668, %v3664
      %v3853 = vpack.c.b16 %v3669, %v3665
      %v3854 = vpack.c.b16 %v3670, %v3666
      %v3855 = vpack.c.b16 %v3671, %v3667
      %v3856 = vpack.c.b16 %v3676, %v3672
      %v3857 = vpack.c.b16 %v3677, %v3673
      %v3858 = vpack.c.b16 %v3678, %v3674
      %v3859 = vpack.c.b16 %v3679, %v3675
      %v3860 = vpack.c.b16 %v3684, %v3680
      %v3861 = vpack.c.b16 %v3685, %v3681
      %v3862 = vpack.c.b16 %v3686, %v3682
      %v3863 = vpack.c.b16 %v3687, %v3683
      %v3864 = vpack.c.b16 %v3692, %v3688
      %v3865 = vpack.c.b16 %v3693, %v3689
      %v3866 = vpack.c.b16 %v3694, %v3690
      %v3867 = vpack.c.b16 %v3695, %v3691
      %v3868 = vpack.c.b16 %v3700, %v3696
      %v3869 = vpack.c.b16 %v3701, %v3697
      %v3870 = vpack.c.b16 %v3702, %v3698
      %v3871 = vpack.c.b16 %v3703, %v3699
      %v3872 = vpack.c.b16 %v3708, %v3704
      %v3873 = vpack.c.b16 %v3709, %v3705
      %v3874 = vpack.c.b16 %v3710, %v3706
      %v3875 = vpack.c.b16 %v3711, %v3707
      %v3876 = vpack.c.b16 %v3716, %v3712
      %v3877 = vpack.c.b16 %v3717, %v3713
      %v3878 = vpack.c.b16 %v3718, %v3714
      %v3879 = vpack.c.b16 %v3719, %v3715
      %v3880 = vpack.c.b16 %v3724, %v3720
      %v3881 = vpack.c.b16 %v3725, %v3721
      %v3882 = vpack.c.b16 %v3726, %v3722
      %v3883 = vpack.c.b16 %v3727, %v3723
      %v3884 = vpack.c.b16 %v3732, %v3728
      %v3885 = vpack.c.b16 %v3733, %v3729
      %v3886 = vpack.c.b16 %v3734, %v3730
      %v3887 = vpack.c.b16 %v3735, %v3731
      %v3888 = vpack.c.b16 %v3740, %v3736
      %v3889 = vpack.c.b16 %v3741, %v3737
      %v3890 = vpack.c.b16 %v3742, %v3738
      %v3891 = vpack.c.b16 %v3743, %v3739
      %v3892 = vpack.c.b16 %v3748, %v3744
      %v3893 = vpack.c.b16 %v3749, %v3745
      %v3894 = vpack.c.b16 %v3750, %v3746
      %v3895 = vpack.c.b16 %v3751, %v3747
      %v3896 = vpack.c.b16 %v3756, %v3752
      %v3897 = vpack.c.b16 %v3757, %v3753
      %v3898 = vpack.c.b16 %v3758, %v3754
      %v3899 = vpack.c.b16 %v3759, %v3755
      %v3900 = vpack.c.b16 %v3764, %v3760
      %v3901 = vpack.c.b16 %v3765, %v3761
      %v3902 = vpack.c.b16 %v3766, %v3762
      %v3903 = vpack.c.b16 %v3767, %v3763
      %v3904 = vpack.c.b16 %v3772, %v3768
      %v3905 = vpack.c.b16 %v3773, %v3769
      %v3906 = vpack.c.b16 %v3774, %v3770
      %v3907 = vpack.c.b16 %v3775, %v3771
      %v3908 = vpack.c.b16 %v3780, %v3776
      %v3909 = vpack.c.b16 %v3781, %v3777
      %v3910 = vpack.c.b16 %v3782, %v3778
      %v3911 = vpack.c.b16 %v3783, %v3779
      %4040 = vmatpush.bf16.msra.mxu0 %v3812
      %4041 = vmatpush.bf16.msra.mxu0 %v3808
      %4042 = vmatpush.bf16.msra.mxu0 %v3804
      %4043 = vmatpush.bf16.msra.mxu0 %v3800
      %4044 = vmatpush.bf16.msra.mxu0 %v3796
      %4045 = vmatpush.bf16.msra.mxu0 %v3792
      %4046 = vmatpush.bf16.msra.mxu0 %v3788
      %4047 = vmatpush.bf16.msra.mxu0 %v3784
      %4048 = vmatmul.bf16.gmra.mxu0 %v3386
      %v4049 = vpop.f32.mrf.mxu0
      %v4050 = vadd.f32 0.0, %v4049
      %v4051 = vpop.f32.mrf.mxu0
      %v4052 = vadd.f32 0.0, %v4051
      %4053 = vdwg.mxu0
      %4054 = vmatpush.bf16.msra.mxu0 %v3844
      %4055 = vmatpush.bf16.msra.mxu0 %v3840
      %4056 = vmatpush.bf16.msra.mxu0 %v3836
      %4057 = vmatpush.bf16.msra.mxu0 %v3832
      %4058 = vmatpush.bf16.msra.mxu0 %v3828
      %4059 = vmatpush.bf16.msra.mxu0 %v3824
      %4060 = vmatpush.bf16.msra.mxu0 %v3820
      %4061 = vmatpush.bf16.msra.mxu0 %v3816
      %4062 = vmatmul.bf16.gmra.mxu0 %v3389
      %v4063 = vpop.f32.mrf.mxu0
      %v4064 = vadd.f32 %v4050, %v4063
      %v4065 = vpop.f32.mrf.mxu0
      %v4066 = vadd.f32 %v4052, %v4065
      %4067 = vdwg.mxu0
      %4068 = vmatpush.bf16.msra.mxu0 %v3876
      %4069 = vmatpush.bf16.msra.mxu0 %v3872
      %4070 = vmatpush.bf16.msra.mxu0 %v3868
      %4071 = vmatpush.bf16.msra.mxu0 %v3864
      %4072 = vmatpush.bf16.msra.mxu0 %v3860
      %4073 = vmatpush.bf16.msra.mxu0 %v3856
      %4074 = vmatpush.bf16.msra.mxu0 %v3852
      %4075 = vmatpush.bf16.msra.mxu0 %v3848
      %4076 = vmatmul.bf16.gmra.mxu0 %v3392
      %v4077 = vpop.f32.mrf.mxu0
      %v4078 = vadd.f32 %v4064, %v4077
      %v4079 = vpop.f32.mrf.mxu0
      %v4080 = vadd.f32 %v4066, %v4079
      %4081 = vdwg.mxu0
      %4082 = vmatpush.bf16.msra.mxu0 %v3908
      %4083 = vmatpush.bf16.msra.mxu0 %v3904
      %4084 = vmatpush.bf16.msra.mxu0 %v3900
      %4085 = vmatpush.bf16.msra.mxu0 %v3896
      %4086 = vmatpush.bf16.msra.mxu0 %v3892
      %4087 = vmatpush.bf16.msra.mxu0 %v3888
      %4088 = vmatpush.bf16.msra.mxu0 %v3884
      %4089 = vmatpush.bf16.msra.mxu0 %v3880
      %4090 = vmatmul.bf16.gmra.mxu0 %v3395
      %v4091 = vpop.f32.mrf.mxu0
      %v4092 = vadd.f32 %v4078, %v4091
      %v4093 = vpop.f32.mrf.mxu0
      %v4094 = vadd.f32 %v4080, %v4093
      %4095 = vdwg.mxu0
      %4096 = vmatpush.bf16.msra.mxu0 %v3813
      %4097 = vmatpush.bf16.msra.mxu0 %v3809
      %4098 = vmatpush.bf16.msra.mxu0 %v3805
      %4099 = vmatpush.bf16.msra.mxu0 %v3801
      %4100 = vmatpush.bf16.msra.mxu0 %v3797
      %4101 = vmatpush.bf16.msra.mxu0 %v3793
      %4102 = vmatpush.bf16.msra.mxu0 %v3789
      %4103 = vmatpush.bf16.msra.mxu0 %v3785
      %4104 = vmatmul.bf16.gmra.mxu0 %v3386
      %v4105 = vpop.f32.mrf.mxu0
      %v4106 = vadd.f32 0.0, %v4105
      %v4107 = vpop.f32.mrf.mxu0
      %v4108 = vadd.f32 0.0, %v4107
      %4109 = vdwg.mxu0
      %4110 = vmatpush.bf16.msra.mxu0 %v3845
      %4111 = vmatpush.bf16.msra.mxu0 %v3841
      %4112 = vmatpush.bf16.msra.mxu0 %v3837
      %4113 = vmatpush.bf16.msra.mxu0 %v3833
      %4114 = vmatpush.bf16.msra.mxu0 %v3829
      %4115 = vmatpush.bf16.msra.mxu0 %v3825
      %4116 = vmatpush.bf16.msra.mxu0 %v3821
      %4117 = vmatpush.bf16.msra.mxu0 %v3817
      %4118 = vmatmul.bf16.gmra.mxu0 %v3389
      %v4119 = vpop.f32.mrf.mxu0
      %v4120 = vadd.f32 %v4106, %v4119
      %v4121 = vpop.f32.mrf.mxu0
      %v4122 = vadd.f32 %v4108, %v4121
      %4123 = vdwg.mxu0
      %4124 = vmatpush.bf16.msra.mxu0 %v3877
      %4125 = vmatpush.bf16.msra.mxu0 %v3873
      %4126 = vmatpush.bf16.msra.mxu0 %v3869
      %4127 = vmatpush.bf16.msra.mxu0 %v3865
      %4128 = vmatpush.bf16.msra.mxu0 %v3861
      %4129 = vmatpush.bf16.msra.mxu0 %v3857
      %4130 = vmatpush.bf16.msra.mxu0 %v3853
      %4131 = vmatpush.bf16.msra.mxu0 %v3849
      %4132 = vmatmul.bf16.gmra.mxu0 %v3392
      %v4133 = vpop.f32.mrf.mxu0
      %v4134 = vadd.f32 %v4120, %v4133
      %v4135 = vpop.f32.mrf.mxu0
      %v4136 = vadd.f32 %v4122, %v4135
      %4137 = vdwg.mxu0
      %4138 = vmatpush.bf16.msra.mxu0 %v3909
      %4139 = vmatpush.bf16.msra.mxu0 %v3905
      %4140 = vmatpush.bf16.msra.mxu0 %v3901
      %4141 = vmatpush.bf16.msra.mxu0 %v3897
      %4142 = vmatpush.bf16.msra.mxu0 %v3893
      %4143 = vmatpush.bf16.msra.mxu0 %v3889
      %4144 = vmatpush.bf16.msra.mxu0 %v3885
      %4145 = vmatpush.bf16.msra.mxu0 %v3881
      %4146 = vmatmul.bf16.gmra.mxu0 %v3395
      %v4147 = vpop.f32.mrf.mxu0
      %v4148 = vadd.f32 %v4134, %v4147
      %v4149 = vpop.f32.mrf.mxu0
      %v4150 = vadd.f32 %v4136, %v4149
      %4151 = vdwg.mxu0
      %4152 = vmatpush.bf16.msra.mxu0 %v3814
      %4153 = vmatpush.bf16.msra.mxu0 %v3810
      %4154 = vmatpush.bf16.msra.mxu0 %v3806
      %4155 = vmatpush.bf16.msra.mxu0 %v3802
      %4156 = vmatpush.bf16.msra.mxu0 %v3798
      %4157 = vmatpush.bf16.msra.mxu0 %v3794
      %4158 = vmatpush.bf16.msra.mxu0 %v3790
      %4159 = vmatpush.bf16.msra.mxu0 %v3786
      %4160 = vmatmul.bf16.gmra.mxu0 %v3386
      %v4161 = vpop.f32.mrf.mxu0
      %v4162 = vadd.f32 0.0, %v4161
      %v4163 = vpop.f32.mrf.mxu0
      %v4164 = vadd.f32 0.0, %v4163
      %4165 = vdwg.mxu0
      %4166 = vmatpush.bf16.msra.mxu0 %v3846
      %4167 = vmatpush.bf16.msra.mxu0 %v3842
      %4168 = vmatpush.bf16.msra.mxu0 %v3838
      %4169 = vmatpush.bf16.msra.mxu0 %v3834
      %4170 = vmatpush.bf16.msra.mxu0 %v3830
      %4171 = vmatpush.bf16.msra.mxu0 %v3826
      %4172 = vmatpush.bf16.msra.mxu0 %v3822
      %4173 = vmatpush.bf16.msra.mxu0 %v3818
      %4174 = vmatmul.bf16.gmra.mxu0 %v3389
      %v4175 = vpop.f32.mrf.mxu0
      %v4176 = vadd.f32 %v4162, %v4175
      %v4177 = vpop.f32.mrf.mxu0
      %v4178 = vadd.f32 %v4164, %v4177
      %4179 = vdwg.mxu0
      %4180 = vmatpush.bf16.msra.mxu0 %v3878
      %4181 = vmatpush.bf16.msra.mxu0 %v3874
      %4182 = vmatpush.bf16.msra.mxu0 %v3870
      %4183 = vmatpush.bf16.msra.mxu0 %v3866
      %4184 = vmatpush.bf16.msra.mxu0 %v3862
      %4185 = vmatpush.bf16.msra.mxu0 %v3858
      %4186 = vmatpush.bf16.msra.mxu0 %v3854
      %4187 = vmatpush.bf16.msra.mxu0 %v3850
      %4188 = vmatmul.bf16.gmra.mxu0 %v3392
      %v4189 = vpop.f32.mrf.mxu0
      %v4190 = vadd.f32 %v4176, %v4189
      %v4191 = vpop.f32.mrf.mxu0
      %v4192 = vadd.f32 %v4178, %v4191
      %4193 = vdwg.mxu0
      %4194 = vmatpush.bf16.msra.mxu0 %v3910
      %4195 = vmatpush.bf16.msra.mxu0 %v3906
      %4196 = vmatpush.bf16.msra.mxu0 %v3902
      %4197 = vmatpush.bf16.msra.mxu0 %v3898
      %4198 = vmatpush.bf16.msra.mxu0 %v3894
      %4199 = vmatpush.bf16.msra.mxu0 %v3890
      %4200 = vmatpush.bf16.msra.mxu0 %v3886
      %4201 = vmatpush.bf16.msra.mxu0 %v3882
      %4202 = vmatmul.bf16.gmra.mxu0 %v3395
      %v4203 = vpop.f32.mrf.mxu0
      %v4204 = vadd.f32 %v4190, %v4203
      %v4205 = vpop.f32.mrf.mxu0
      %v4206 = vadd.f32 %v4192, %v4205
      %4207 = vdwg.mxu0
      %4208 = vmatpush.bf16.msra.mxu0 %v3815
      %4209 = vmatpush.bf16.msra.mxu0 %v3811
      %4210 = vmatpush.bf16.msra.mxu0 %v3807
      %4211 = vmatpush.bf16.msra.mxu0 %v3803
      %4212 = vmatpush.bf16.msra.mxu0 %v3799
      %4213 = vmatpush.bf16.msra.mxu0 %v3795
      %4214 = vmatpush.bf16.msra.mxu0 %v3791
      %4215 = vmatpush.bf16.msra.mxu0 %v3787
      %4216 = vmatmul.bf16.gmra.mxu0 %v3386
      %v4217 = vpop.f32.mrf.mxu0
      %v4218 = vadd.f32 0.0, %v4217
      %v4219 = vpop.f32.mrf.mxu0
      %v4220 = vadd.f32 0.0, %v4219
      %4221 = vdwg.mxu0
      %4222 = vmatpush.bf16.msra.mxu0 %v3847
      %4223 = vmatpush.bf16.msra.mxu0 %v3843
      %4224 = vmatpush.bf16.msra.mxu0 %v3839
      %4225 = vmatpush.bf16.msra.mxu0 %v3835
      %4226 = vmatpush.bf16.msra.mxu0 %v3831
      %4227 = vmatpush.bf16.msra.mxu0 %v3827
      %4228 = vmatpush.bf16.msra.mxu0 %v3823
      %4229 = vmatpush.bf16.msra.mxu0 %v3819
      %4230 = vmatmul.bf16.gmra.mxu0 %v3389
      %v4231 = vpop.f32.mrf.mxu0
      %v4232 = vadd.f32 %v4218, %v4231
      %v4233 = vpop.f32.mrf.mxu0
      %v4234 = vadd.f32 %v4220, %v4233
      %4235 = vdwg.mxu0
      %4236 = vmatpush.bf16.msra.mxu0 %v3879
      %4237 = vmatpush.bf16.msra.mxu0 %v3875
      %4238 = vmatpush.bf16.msra.mxu0 %v3871
      %4239 = vmatpush.bf16.msra.mxu0 %v3867
      %4240 = vmatpush.bf16.msra.mxu0 %v3863
      %4241 = vmatpush.bf16.msra.mxu0 %v3859
      %4242 = vmatpush.bf16.msra.mxu0 %v3855
      %4243 = vmatpush.bf16.msra.mxu0 %v3851
      %4244 = vmatmul.bf16.gmra.mxu0 %v3392
      %v4245 = vpop.f32.mrf.mxu0
      %v4246 = vadd.f32 %v4232, %v4245
      %v4247 = vpop.f32.mrf.mxu0
      %v4248 = vadd.f32 %v4234, %v4247
      %4249 = vdwg.mxu0
      %4250 = vmatpush.bf16.msra.mxu0 %v3911
      %4251 = vmatpush.bf16.msra.mxu0 %v3907
      %4252 = vmatpush.bf16.msra.mxu0 %v3903
      %4253 = vmatpush.bf16.msra.mxu0 %v3899
      %4254 = vmatpush.bf16.msra.mxu0 %v3895
      %4255 = vmatpush.bf16.msra.mxu0 %v3891
      %4256 = vmatpush.bf16.msra.mxu0 %v3887
      %4257 = vmatpush.bf16.msra.mxu0 %v3883
      %4258 = vmatmul.bf16.gmra.mxu0 %v3395
      %v4259 = vpop.f32.mrf.mxu0
      %v4260 = vadd.f32 %v4246, %v4259
      %v4261 = vpop.f32.mrf.mxu0
      %v4262 = vadd.f32 %v4248, %v4261
      %4263 = vdwg.mxu0
      %v4264 = vadd.f32 %v3070, %v4092
      %v4265 = vadd.f32 %v3126, %v4148
      %v4266 = vadd.f32 %v3182, %v4204
      %v4267 = vadd.f32 %v3238, %v4260
      %v4268 = vadd.f32 %v3072, %v4094
      %v4269 = vadd.f32 %v3128, %v4150
      %v4270 = vadd.f32 %v3184, %v4206
      %v4271 = vadd.f32 %v3240, %v4262
      %v4273 = vperm.slane %v1172, 0
      %v4274 = vperm.slane %v1172, 1
      %v4275 = vperm.slane %v1172, 2
      %v4276 = vperm.slane %v1172, 3
      %v4281 = vmul.f32 %v4264, %v4273
      %v4282 = vmul.f32 %v4265, %v4274
      %v4283 = vmul.f32 %v4266, %v4275
      %v4284 = vmul.f32 %v4267, %v4276
      %v4285 = vmul.f32 %v4268, %v4273
      %v4286 = vmul.f32 %v4269, %v4274
      %v4287 = vmul.f32 %v4270, %v4275
      %v4288 = vmul.f32 %v4271, %v4276
      %v4290 = vperm.slane %v1173, 0
      %v4291 = vperm.slane %v1173, 1
      %v4292 = vperm.slane %v1173, 2
      %v4293 = vperm.slane %v1173, 3
      %v4298 = vadd.f32 %v4281, %v4290
      %v4299 = vadd.f32 %v4282, %v4291
      %v4300 = vadd.f32 %v4283, %v4292
      %v4301 = vadd.f32 %v4284, %v4293
      %v4302 = vadd.f32 %v4285, %v4290
      %v4303 = vadd.f32 %v4286, %v4291
      %v4304 = vadd.f32 %v4287, %v4292
      %v4305 = vadd.f32 %v4288, %v4293
      %v4306 = vmax.f32 %v4298, 0.0
      %v4307 = vmax.f32 %v4299, 0.0
      %v4308 = vmax.f32 %v4300, 0.0
      %v4309 = vmax.f32 %v4301, 0.0
      %v4310 = vmax.f32 %v4302, 0.0
      %v4311 = vmax.f32 %v4303, 0.0
      %v4312 = vmax.f32 %v4304, 0.0
      %v4313 = vmax.f32 %v4305, 0.0
      %v4314 = vpack.c.bf16 %v4307, %v4306
      %v4315 = vpack.c.bf16 %v4309, %v4308
      %v4316 = vpack.c.bf16 %v4311, %v4310
      %v4317 = vpack.c.bf16 %v4313, %v4312
      %vm4318 = vsmask.f32 256
      %vm4319 = vsmask.f32 4368
      %vm4320 = vmor %vm4318, %vm4319
      %v4322 = vshrl.u32 %v4314, 16
      %v4324 = vrot.slane %v4322, 7
      %v4325 = vshll.u32 %v4314, 16
      %v4327 = vor.u32 %v4324, %v4325
      %v4329 = vshrl.u32 %v4315, 16
      %v4331 = vrot.slane %v4329, 7
      %v4332 = vshll.u32 %v4315, 16
      %v4334 = vor.u32 %v4331, %v4332
      %v4335 = vrot.slane %v4324, 4
      %v4337 = vshrl.u32 %v4316, 16
      %v4339 = vrot.slane %v4337, 7
      %v4340 = vshll.u32 %v4316, 16
      %v4342 = vor.u32 %v4339, %v4340
      %v4343 = vsel %vm4320, %v4335, %v4342
      %v4344 = vrot.slane %v4331, 4
      %v4346 = vshrl.u32 %v4317, 16
      %v4348 = vrot.slane %v4346, 7
      %v4349 = vshll.u32 %v4317, 16
      %v4351 = vor.u32 %v4348, %v4349
      %v4352 = vsel %vm4320, %v4344, %v4351
      %v4353 = vrot.slane %v4339, 4
      %v4354 = vrot.slane %v4348, 4
      %vm4361 = vcmask 1043456
      %vm4362 = vsmask.f32 7938
      %vm4363 = vmand %vm4361, %vm4362
      %vm4364 = vcmask 1047556
      %vm4365 = vsmask.f32 7954
      %vm4366 = vmand %vm4364, %vm4365
      %vm4367 = vmor %vm4366, %vm4363
      %v4368 = vsel %vm4367, %v4327, %v1166
      %4369 = vst [vmem:[#allocation3] sm:$0xff] %v4368
      %v4370 = vld [vmem:[#allocation3 + $0x8] sm:$0xff]
      %v4371 = vsel %vm4367, %v4334, %v4370
      %4372 = vst [vmem:[#allocation3 + $0x8] sm:$0xff] %v4371
      %4373 = vst [vmem:[#allocation3 + $0x10] sm:$0xff] %v4343
      %4374 = vst [vmem:[#allocation3 + $0x18] sm:$0xff] %v4352
      %vm4375 = vcmask 1040384
      %vm4376 = vmand %vm4375, %vm4318
      %vm4377 = vcmask 1044484
      %vm4378 = vsmask.f32 4352
      %vm4379 = vmand %vm4377, %vm4378
      %vm4380 = vmor %vm4379, %vm4376
      %v4381 = vld [vmem:[#allocation3 + $0x20] sm:$0x11]
      %v4382 = vsel %vm4380, %v4353, %v4381
      %4383 = vst [vmem:[#allocation3 + $0x20] sm:$0x11] %v4382
      %v4384 = vld [vmem:[#allocation3 + $0x28] sm:$0x11]
      %v4385 = vsel %vm4380, %v4354, %v4384
      %4386 = vst [vmem:[#allocation3 + $0x28] sm:$0x11] %v4385
      %v4387 = vld [vmem:[%s470] sm:$0xf]
      %v4388 = vld [vmem:[%s474] sm:$0xf]
      %v4389 = vunpack.c.l.bf16 %v1166
      %v4390 = vunpack.c.h.bf16 %v1166
      %v4391 = vunpack.c.l.bf16 %v1167
      %v4392 = vunpack.c.h.bf16 %v1167
      %v4393 = vunpack.c.l.bf16 %v1168
      %v4394 = vunpack.c.h.bf16 %v1168
      %v4395 = vunpack.c.l.bf16 %v1169
      %v4396 = vunpack.c.h.bf16 %v1169
      %v4397 = vunpack.c.l.bf16 %v1170
      %v4398 = vunpack.c.h.bf16 %v1170
      %v4399 = vunpack.c.l.bf16 %v1171
      %v4400 = vunpack.c.h.bf16 %v1171
      %v4401 = vld [vmem:[#allocation3] sm:$0xff]
      %v4402 = vld [vmem:[#allocation3 + $0x8] sm:$0xff]
      %v4403 = vld [vmem:[#allocation3 + $0x10] sm:$0xff]
      %v4404 = vld [vmem:[#allocation3 + $0x18] sm:$0xff]
      %v4405 = vld [vmem:[%s466] sm:$0xff]
      %v4406 = vld [vmem:[%s466 + $0x8] sm:$0xff]
      %v4407 = vld [vmem:[%s466 + $0x10] sm:$0xff]
      %v4408 = vld [vmem:[%s466 + $0x18] sm:$0xff]
      %v4409 = vld [vmem:[%s466 + $0x20] sm:$0xff]
      %v4410 = vld [vmem:[%s466 + $0x28] sm:$0xff]
      %v4411 = vld [vmem:[%s466 + $0x30] sm:$0xff]
      %v4412 = vld [vmem:[%s466 + $0x38] sm:$0xff]
      %v4413 = vld [vmem:[%s466 + $0x40] sm:$0xff]
      %v4414 = vld [vmem:[%s466 + $0x48] sm:$0xff]
      %v4415 = vld [vmem:[%s466 + $0x50] sm:$0xff]
      %v4416 = vld [vmem:[%s466 + $0x58] sm:$0xff]
      %v4417 = vld [vmem:[%s466 + $0x60] sm:$0xff]
      %v4418 = vld [vmem:[%s466 + $0x68] sm:$0xff]
      %v4419 = vld [vmem:[%s466 + $0x70] sm:$0xff]
      %v4420 = vld [vmem:[%s466 + $0x78] sm:$0xff]
      %v4421 = vld [vmem:[%s466 + $0x80] sm:$0xff]
      %v4422 = vld [vmem:[%s466 + $0x88] sm:$0xff]
      %v4423 = vld [vmem:[%s466 + $0x90] sm:$0xff]
      %v4424 = vld [vmem:[%s466 + $0x98] sm:$0xff]
      %v4425 = vld [vmem:[%s466 + $0xa0] sm:$0xff]
      %v4426 = vld [vmem:[%s466 + $0xa8] sm:$0xff]
      %v4427 = vld [vmem:[%s466 + $0xb0] sm:$0xff]
      %v4428 = vld [vmem:[%s466 + $0xb8] sm:$0xff]
      %v4429 = vld [vmem:[%s466 + $0xc0] sm:$0xff]
      %v4430 = vld [vmem:[%s466 + $0xc8] sm:$0xff]
      %v4431 = vld [vmem:[%s466 + $0xd0] sm:$0xff]
      %v4432 = vld [vmem:[%s466 + $0xd8] sm:$0xff]
      %v4433 = vld [vmem:[%s466 + $0xe0] sm:$0xff]
      %v4434 = vld [vmem:[%s466 + $0xe8] sm:$0xff]
      %v4435 = vld [vmem:[%s466 + $0xf0] sm:$0xff]
      %v4436 = vld [vmem:[%s466 + $0xf8] sm:$0xff]
      %v4437 = vld [vmem:[%s466 + $0x100] sm:$0xff]
      %v4438 = vld [vmem:[%s466 + $0x108] sm:$0xff]
      %v4439 = vld [vmem:[%s466 + $0x110] sm:$0xff]
      %v4440 = vld [vmem:[%s466 + $0x118] sm:$0xff]
      %v4441 = vld [vmem:[%s466 + $0x120] sm:$0xff]
      %v4442 = vld [vmem:[%s466 + $0x128] sm:$0xff]
      %v4443 = vld [vmem:[%s466 + $0x130] sm:$0xff]
      %v4444 = vld [vmem:[%s466 + $0x138] sm:$0xff]
      %v4445 = vld [vmem:[%s466 + $0x140] sm:$0xff]
      %v4446 = vld [vmem:[%s466 + $0x148] sm:$0xff]
      %v4447 = vld [vmem:[%s466 + $0x150] sm:$0xff]
      %v4448 = vld [vmem:[%s466 + $0x158] sm:$0xff]
      %v4449 = vld [vmem:[%s466 + $0x160] sm:$0xff]
      %v4450 = vld [vmem:[%s466 + $0x168] sm:$0xff]
      %v4451 = vld [vmem:[%s466 + $0x170] sm:$0xff]
      %v4452 = vld [vmem:[%s466 + $0x178] sm:$0xff]
      %v4453 = vld [vmem:[%s466 + $0x180] sm:$0xff]
      %v4454 = vld [vmem:[%s466 + $0x188] sm:$0xff]
      %v4455 = vld [vmem:[%s466 + $0x190] sm:$0xff]
      %v4456 = vld [vmem:[%s466 + $0x198] sm:$0xff]
      %v4457 = vld [vmem:[%s466 + $0x1a0] sm:$0xff]
      %v4458 = vld [vmem:[%s466 + $0x1a8] sm:$0xff]
      %v4459 = vld [vmem:[%s466 + $0x1b0] sm:$0xff]
      %v4460 = vld [vmem:[%s466 + $0x1b8] sm:$0xff]
      %v4461 = vld [vmem:[%s466 + $0x1c0] sm:$0xff]
      %v4462 = vld [vmem:[%s466 + $0x1c8] sm:$0xff]
      %v4463 = vld [vmem:[%s466 + $0x1d0] sm:$0xff]
      %v4464 = vld [vmem:[%s466 + $0x1d8] sm:$0xff]
      %v4465 = vld [vmem:[%s466 + $0x1e0] sm:$0xff]
      %v4466 = vld [vmem:[%s466 + $0x1e8] sm:$0xff]
      %v4467 = vld [vmem:[%s466 + $0x1f0] sm:$0xff]
      %v4468 = vld [vmem:[%s466 + $0x1f8] sm:$0xff]
      %v4469 = vld [vmem:[%s466 + $0x200] sm:$0xff]
      %v4470 = vld [vmem:[%s466 + $0x208] sm:$0xff]
      %v4471 = vld [vmem:[%s466 + $0x210] sm:$0xff]
      %v4472 = vld [vmem:[%s466 + $0x218] sm:$0xff]
      %v4473 = vld [vmem:[%s466 + $0x220] sm:$0xff]
      %v4474 = vld [vmem:[%s466 + $0x228] sm:$0xff]
      %v4475 = vld [vmem:[%s466 + $0x230] sm:$0xff]
      %v4476 = vld [vmem:[%s466 + $0x238] sm:$0xff]
      %v4477 = vld [vmem:[%s466 + $0x240] sm:$0xff]
      %v4478 = vld [vmem:[%s466 + $0x248] sm:$0xff]
      %v4479 = vld [vmem:[%s466 + $0x250] sm:$0xff]
      %v4480 = vld [vmem:[%s466 + $0x258] sm:$0xff]
      %v4481 = vld [vmem:[%s466 + $0x260] sm:$0xff]
      %v4482 = vld [vmem:[%s466 + $0x268] sm:$0xff]
      %v4483 = vld [vmem:[%s466 + $0x270] sm:$0xff]
      %v4484 = vld [vmem:[%s466 + $0x278] sm:$0xff]
      %v4485 = vld [vmem:[%s466 + $0x280] sm:$0xff]
      %v4486 = vld [vmem:[%s466 + $0x288] sm:$0xff]
      %v4487 = vld [vmem:[%s466 + $0x290] sm:$0xff]
      %v4488 = vld [vmem:[%s466 + $0x298] sm:$0xff]
      %v4489 = vld [vmem:[%s466 + $0x2a0] sm:$0xff]
      %v4490 = vld [vmem:[%s466 + $0x2a8] sm:$0xff]
      %v4491 = vld [vmem:[%s466 + $0x2b0] sm:$0xff]
      %v4492 = vld [vmem:[%s466 + $0x2b8] sm:$0xff]
      %v4493 = vld [vmem:[%s466 + $0x2c0] sm:$0xff]
      %v4494 = vld [vmem:[%s466 + $0x2c8] sm:$0xff]
      %v4495 = vld [vmem:[%s466 + $0x2d0] sm:$0xff]
      %v4496 = vld [vmem:[%s466 + $0x2d8] sm:$0xff]
      %v4497 = vld [vmem:[%s466 + $0x2e0] sm:$0xff]
      %v4498 = vld [vmem:[%s466 + $0x2e8] sm:$0xff]
      %v4499 = vld [vmem:[%s466 + $0x2f0] sm:$0xff]
      %v4500 = vld [vmem:[%s466 + $0x2f8] sm:$0xff]
      %v4501 = vld [vmem:[%s466 + $0x300] sm:$0xff]
      %v4502 = vld [vmem:[%s466 + $0x308] sm:$0xff]
      %v4503 = vld [vmem:[%s466 + $0x310] sm:$0xff]
      %v4504 = vld [vmem:[%s466 + $0x318] sm:$0xff]
      %v4505 = vld [vmem:[%s466 + $0x320] sm:$0xff]
      %v4506 = vld [vmem:[%s466 + $0x328] sm:$0xff]
      %v4507 = vld [vmem:[%s466 + $0x330] sm:$0xff]
      %v4508 = vld [vmem:[%s466 + $0x338] sm:$0xff]
      %v4509 = vld [vmem:[%s466 + $0x340] sm:$0xff]
      %v4510 = vld [vmem:[%s466 + $0x348] sm:$0xff]
      %v4511 = vld [vmem:[%s466 + $0x350] sm:$0xff]
      %v4512 = vld [vmem:[%s466 + $0x358] sm:$0xff]
      %v4513 = vld [vmem:[%s466 + $0x360] sm:$0xff]
      %v4514 = vld [vmem:[%s466 + $0x368] sm:$0xff]
      %v4515 = vld [vmem:[%s466 + $0x370] sm:$0xff]
      %v4516 = vld [vmem:[%s466 + $0x378] sm:$0xff]
      %v4517 = vld [vmem:[%s466 + $0x380] sm:$0xff]
      %v4518 = vld [vmem:[%s466 + $0x388] sm:$0xff]
      %v4519 = vld [vmem:[%s466 + $0x390] sm:$0xff]
      %v4520 = vld [vmem:[%s466 + $0x398] sm:$0xff]
      %v4521 = vld [vmem:[%s466 + $0x3a0] sm:$0xff]
      %v4522 = vld [vmem:[%s466 + $0x3a8] sm:$0xff]
      %v4523 = vld [vmem:[%s466 + $0x3b0] sm:$0xff]
      %v4524 = vld [vmem:[%s466 + $0x3b8] sm:$0xff]
      %v4525 = vld [vmem:[%s466 + $0x3c0] sm:$0xff]
      %v4526 = vld [vmem:[%s466 + $0x3c8] sm:$0xff]
      %v4527 = vld [vmem:[%s466 + $0x3d0] sm:$0xff]
      %v4528 = vld [vmem:[%s466 + $0x3d8] sm:$0xff]
      %v4529 = vld [vmem:[%s466 + $0x3e0] sm:$0xff]
      %v4530 = vld [vmem:[%s466 + $0x3e8] sm:$0xff]
      %v4531 = vld [vmem:[%s466 + $0x3f0] sm:$0xff]
      %v4532 = vld [vmem:[%s466 + $0x3f8] sm:$0xff]
      %v4533 = vld [vmem:[#allocation3 + $0x20] sm:$0x11]
      %v4534 = vld [vmem:[#allocation3 + $0x28] sm:$0x11]
      %s4535 = scalar_lea.vmem %s466, 1024
      %v4536 = vld [vmem:[%s4535] sm:$0xff]
      %v4537 = vld [vmem:[%s4535 + $0x8] sm:$0xff]
      %v4538 = vld [vmem:[%s4535 + $0x10] sm:$0xff]
      %v4539 = vld [vmem:[%s4535 + $0x18] sm:$0xff]
      %v4540 = vld [vmem:[%s4535 + $0x20] sm:$0xff]
      %v4541 = vld [vmem:[%s4535 + $0x28] sm:$0xff]
      %v4542 = vld [vmem:[%s4535 + $0x30] sm:$0xff]
      %v4543 = vld [vmem:[%s4535 + $0x38] sm:$0xff]
      %v4544 = vld [vmem:[%s4535 + $0x40] sm:$0xff]
      %v4545 = vld [vmem:[%s4535 + $0x48] sm:$0xff]
      %v4546 = vld [vmem:[%s4535 + $0x50] sm:$0xff]
      %v4547 = vld [vmem:[%s4535 + $0x58] sm:$0xff]
      %v4548 = vld [vmem:[%s4535 + $0x60] sm:$0xff]
      %v4549 = vld [vmem:[%s4535 + $0x68] sm:$0xff]
      %v4550 = vld [vmem:[%s4535 + $0x70] sm:$0xff]
      %v4551 = vld [vmem:[%s4535 + $0x78] sm:$0xff]
      %v4552 = vld [vmem:[%s4535 + $0x80] sm:$0xff]
      %v4553 = vld [vmem:[%s4535 + $0x88] sm:$0xff]
      %v4554 = vld [vmem:[%s4535 + $0x90] sm:$0xff]
      %v4555 = vld [vmem:[%s4535 + $0x98] sm:$0xff]
      %v4556 = vld [vmem:[%s4535 + $0xa0] sm:$0xff]
      %v4557 = vld [vmem:[%s4535 + $0xa8] sm:$0xff]
      %v4558 = vld [vmem:[%s4535 + $0xb0] sm:$0xff]
      %v4559 = vld [vmem:[%s4535 + $0xb8] sm:$0xff]
      %v4560 = vld [vmem:[%s4535 + $0xc0] sm:$0xff]
      %v4561 = vld [vmem:[%s4535 + $0xc8] sm:$0xff]
      %v4562 = vld [vmem:[%s4535 + $0xd0] sm:$0xff]
      %v4563 = vld [vmem:[%s4535 + $0xd8] sm:$0xff]
      %v4564 = vld [vmem:[%s4535 + $0xe0] sm:$0xff]
      %v4565 = vld [vmem:[%s4535 + $0xe8] sm:$0xff]
      %v4566 = vld [vmem:[%s4535 + $0xf0] sm:$0xff]
      %v4567 = vld [vmem:[%s4535 + $0xf8] sm:$0xff]
      %v4568 = vld [vmem:[%s4535 + $0x100] sm:$0xff]
      %v4569 = vld [vmem:[%s4535 + $0x108] sm:$0xff]
      %v4570 = vld [vmem:[%s4535 + $0x110] sm:$0xff]
      %v4571 = vld [vmem:[%s4535 + $0x118] sm:$0xff]
      %v4572 = vld [vmem:[%s4535 + $0x120] sm:$0xff]
      %v4573 = vld [vmem:[%s4535 + $0x128] sm:$0xff]
      %v4574 = vld [vmem:[%s4535 + $0x130] sm:$0xff]
      %v4575 = vld [vmem:[%s4535 + $0x138] sm:$0xff]
      %v4576 = vld [vmem:[%s4535 + $0x140] sm:$0xff]
      %v4577 = vld [vmem:[%s4535 + $0x148] sm:$0xff]
      %v4578 = vld [vmem:[%s4535 + $0x150] sm:$0xff]
      %v4579 = vld [vmem:[%s4535 + $0x158] sm:$0xff]
      %v4580 = vld [vmem:[%s4535 + $0x160] sm:$0xff]
      %v4581 = vld [vmem:[%s4535 + $0x168] sm:$0xff]
      %v4582 = vld [vmem:[%s4535 + $0x170] sm:$0xff]
      %v4583 = vld [vmem:[%s4535 + $0x178] sm:$0xff]
      %v4584 = vld [vmem:[%s4535 + $0x180] sm:$0xff]
      %v4585 = vld [vmem:[%s4535 + $0x188] sm:$0xff]
      %v4586 = vld [vmem:[%s4535 + $0x190] sm:$0xff]
      %v4587 = vld [vmem:[%s4535 + $0x198] sm:$0xff]
      %v4588 = vld [vmem:[%s4535 + $0x1a0] sm:$0xff]
      %v4589 = vld [vmem:[%s4535 + $0x1a8] sm:$0xff]
      %v4590 = vld [vmem:[%s4535 + $0x1b0] sm:$0xff]
      %v4591 = vld [vmem:[%s4535 + $0x1b8] sm:$0xff]
      %v4592 = vld [vmem:[%s4535 + $0x1c0] sm:$0xff]
      %v4593 = vld [vmem:[%s4535 + $0x1c8] sm:$0xff]
      %v4594 = vld [vmem:[%s4535 + $0x1d0] sm:$0xff]
      %v4595 = vld [vmem:[%s4535 + $0x1d8] sm:$0xff]
      %v4596 = vld [vmem:[%s4535 + $0x1e0] sm:$0xff]
      %v4597 = vld [vmem:[%s4535 + $0x1e8] sm:$0xff]
      %v4598 = vld [vmem:[%s4535 + $0x1f0] sm:$0xff]
      %v4599 = vld [vmem:[%s4535 + $0x1f8] sm:$0xff]
      %v4600 = vld [vmem:[%s4535 + $0x200] sm:$0xff]
      %v4601 = vld [vmem:[%s4535 + $0x208] sm:$0xff]
      %v4602 = vld [vmem:[%s4535 + $0x210] sm:$0xff]
      %v4603 = vld [vmem:[%s4535 + $0x218] sm:$0xff]
      %v4604 = vld [vmem:[%s4535 + $0x220] sm:$0xff]
      %v4605 = vld [vmem:[%s4535 + $0x228] sm:$0xff]
      %v4606 = vld [vmem:[%s4535 + $0x230] sm:$0xff]
      %v4607 = vld [vmem:[%s4535 + $0x238] sm:$0xff]
      %v4608 = vld [vmem:[%s4535 + $0x240] sm:$0xff]
      %v4609 = vld [vmem:[%s4535 + $0x248] sm:$0xff]
      %v4610 = vld [vmem:[%s4535 + $0x250] sm:$0xff]
      %v4611 = vld [vmem:[%s4535 + $0x258] sm:$0xff]
      %v4612 = vld [vmem:[%s4535 + $0x260] sm:$0xff]
      %v4613 = vld [vmem:[%s4535 + $0x268] sm:$0xff]
      %v4614 = vld [vmem:[%s4535 + $0x270] sm:$0xff]
      %v4615 = vld [vmem:[%s4535 + $0x278] sm:$0xff]
      %v4616 = vld [vmem:[%s4535 + $0x280] sm:$0xff]
      %v4617 = vld [vmem:[%s4535 + $0x288] sm:$0xff]
      %v4618 = vld [vmem:[%s4535 + $0x290] sm:$0xff]
      %v4619 = vld [vmem:[%s4535 + $0x298] sm:$0xff]
      %v4620 = vld [vmem:[%s4535 + $0x2a0] sm:$0xff]
      %v4621 = vld [vmem:[%s4535 + $0x2a8] sm:$0xff]
      %v4622 = vld [vmem:[%s4535 + $0x2b0] sm:$0xff]
      %v4623 = vld [vmem:[%s4535 + $0x2b8] sm:$0xff]
      %v4624 = vld [vmem:[%s4535 + $0x2c0] sm:$0xff]
      %v4625 = vld [vmem:[%s4535 + $0x2c8] sm:$0xff]
      %v4626 = vld [vmem:[%s4535 + $0x2d0] sm:$0xff]
      %v4627 = vld [vmem:[%s4535 + $0x2d8] sm:$0xff]
      %v4628 = vld [vmem:[%s4535 + $0x2e0] sm:$0xff]
      %v4629 = vld [vmem:[%s4535 + $0x2e8] sm:$0xff]
      %v4630 = vld [vmem:[%s4535 + $0x2f0] sm:$0xff]
      %v4631 = vld [vmem:[%s4535 + $0x2f8] sm:$0xff]
      %v4632 = vld [vmem:[%s4535 + $0x300] sm:$0xff]
      %v4633 = vld [vmem:[%s4535 + $0x308] sm:$0xff]
      %v4634 = vld [vmem:[%s4535 + $0x310] sm:$0xff]
      %v4635 = vld [vmem:[%s4535 + $0x318] sm:$0xff]
      %v4636 = vld [vmem:[%s4535 + $0x320] sm:$0xff]
      %v4637 = vld [vmem:[%s4535 + $0x328] sm:$0xff]
      %v4638 = vld [vmem:[%s4535 + $0x330] sm:$0xff]
      %v4639 = vld [vmem:[%s4535 + $0x338] sm:$0xff]
      %v4640 = vld [vmem:[%s4535 + $0x340] sm:$0xff]
      %v4641 = vld [vmem:[%s4535 + $0x348] sm:$0xff]
      %v4642 = vld [vmem:[%s4535 + $0x350] sm:$0xff]
      %v4643 = vld [vmem:[%s4535 + $0x358] sm:$0xff]
      %v4644 = vld [vmem:[%s4535 + $0x360] sm:$0xff]
      %v4645 = vld [vmem:[%s4535 + $0x368] sm:$0xff]
      %v4646 = vld [vmem:[%s4535 + $0x370] sm:$0xff]
      %v4647 = vld [vmem:[%s4535 + $0x378] sm:$0xff]
      %v4648 = vld [vmem:[%s4535 + $0x380] sm:$0xff]
      %v4649 = vld [vmem:[%s4535 + $0x388] sm:$0xff]
      %v4650 = vld [vmem:[%s4535 + $0x390] sm:$0xff]
      %v4651 = vld [vmem:[%s4535 + $0x398] sm:$0xff]
      %v4652 = vld [vmem:[%s4535 + $0x3a0] sm:$0xff]
      %v4653 = vld [vmem:[%s4535 + $0x3a8] sm:$0xff]
      %v4654 = vld [vmem:[%s4535 + $0x3b0] sm:$0xff]
      %v4655 = vld [vmem:[%s4535 + $0x3b8] sm:$0xff]
      %v4656 = vld [vmem:[%s4535 + $0x3c0] sm:$0xff]
      %v4657 = vld [vmem:[%s4535 + $0x3c8] sm:$0xff]
      %v4658 = vld [vmem:[%s4535 + $0x3d0] sm:$0xff]
      %v4659 = vld [vmem:[%s4535 + $0x3d8] sm:$0xff]
      %v4660 = vld [vmem:[%s4535 + $0x3e0] sm:$0xff]
      %v4661 = vld [vmem:[%s4535 + $0x3e8] sm:$0xff]
      %v4662 = vld [vmem:[%s4535 + $0x3f0] sm:$0xff]
      %v4663 = vld [vmem:[%s4535 + $0x3f8] sm:$0xff]
      %v4670 = vunpack.c.l.b16 %v4401
      %v4671 = vunpack.c.h.b16 %v4401
      %v4672 = vunpack.c.l.b16 %v4402
      %v4673 = vunpack.c.h.b16 %v4402
      %v4674 = vunpack.c.l.b16 %v4403
      %v4675 = vunpack.c.h.b16 %v4403
      %v4676 = vunpack.c.l.b16 %v4404
      %v4677 = vunpack.c.h.b16 %v4404
      %v4678 = vunpack.c.l.b16 %v4533
      %v4679 = vunpack.c.h.b16 %v4533
      %v4680 = vunpack.c.l.b16 %v4534
      %v4681 = vunpack.c.h.b16 %v4534
      %v4682 = vpack.c.b16 %v4674, %v4670
      %v4683 = vpack.c.b16 %v4675, %v4671
      %v4684 = vpack.c.b16 %v4676, %v4672
      %v4685 = vpack.c.b16 %v4677, %v4673
      %v4686 = vpack.c.b16 %v4678, %v4678
      %v4687 = vpack.c.b16 %v4679, %v4679
      %v4688 = vpack.c.b16 %v4680, %v4680
      %v4689 = vpack.c.b16 %v4681, %v4681
      %v4691 = vshrl.u32 %v4682, 16
      %v4693 = vshll.u32 %v4682, 16
      %v4695 = vrot.slane %v4693, 1
      %v4696 = vor.u32 %v4691, %v4695
      %v4698 = vshll.u32 %v4686, 16
      %v4700 = vrot.slane %v4698, 1
      %v4701 = vsel %vm1457, %v4696, %v4700
      %v4703 = vshrl.u32 %v4683, 16
      %v4705 = vshll.u32 %v4683, 16
      %v4707 = vrot.slane %v4705, 1
      %v4708 = vor.u32 %v4703, %v4707
      %v4710 = vshll.u32 %v4687, 16
      %v4712 = vrot.slane %v4710, 1
      %v4713 = vsel %vm1457, %v4708, %v4712
      %v4715 = vshrl.u32 %v4684, 16
      %v4717 = vshll.u32 %v4684, 16
      %v4719 = vrot.slane %v4717, 1
      %v4720 = vor.u32 %v4715, %v4719
      %v4722 = vshll.u32 %v4688, 16
      %v4724 = vrot.slane %v4722, 1
      %v4725 = vsel %vm1457, %v4720, %v4724
      %v4727 = vshrl.u32 %v4685, 16
      %v4729 = vshll.u32 %v4685, 16
      %v4731 = vrot.slane %v4729, 1
      %v4732 = vor.u32 %v4727, %v4731
      %v4734 = vshll.u32 %v4689, 16
      %v4736 = vrot.slane %v4734, 1
      %v4737 = vsel %vm1457, %v4732, %v4736
      %v4870 = vunpack.c.l.b16 %v4536
      %v4871 = vunpack.c.h.b16 %v4536
      %v4872 = vunpack.c.l.b16 %v4537
      %v4873 = vunpack.c.h.b16 %v4537
      %v4874 = vunpack.c.l.b16 %v4538
      %v4875 = vunpack.c.h.b16 %v4538
      %v4876 = vunpack.c.l.b16 %v4539
      %v4877 = vunpack.c.h.b16 %v4539
      %v4878 = vunpack.c.l.b16 %v4540
      %v4879 = vunpack.c.h.b16 %v4540
      %v4880 = vunpack.c.l.b16 %v4541
      %v4881 = vunpack.c.h.b16 %v4541
      %v4882 = vunpack.c.l.b16 %v4542
      %v4883 = vunpack.c.h.b16 %v4542
      %v4884 = vunpack.c.l.b16 %v4543
      %v4885 = vunpack.c.h.b16 %v4543
      %v4886 = vunpack.c.l.b16 %v4544
      %v4887 = vunpack.c.h.b16 %v4544
      %v4888 = vunpack.c.l.b16 %v4545
      %v4889 = vunpack.c.h.b16 %v4545
      %v4890 = vunpack.c.l.b16 %v4546
      %v4891 = vunpack.c.h.b16 %v4546
      %v4892 = vunpack.c.l.b16 %v4547
      %v4893 = vunpack.c.h.b16 %v4547
      %v4894 = vunpack.c.l.b16 %v4548
      %v4895 = vunpack.c.h.b16 %v4548
      %v4896 = vunpack.c.l.b16 %v4549
      %v4897 = vunpack.c.h.b16 %v4549
      %v4898 = vunpack.c.l.b16 %v4550
      %v4899 = vunpack.c.h.b16 %v4550
      %v4900 = vunpack.c.l.b16 %v4551
      %v4901 = vunpack.c.h.b16 %v4551
      %v4902 = vunpack.c.l.b16 %v4552
      %v4903 = vunpack.c.h.b16 %v4552
      %v4904 = vunpack.c.l.b16 %v4553
      %v4905 = vunpack.c.h.b16 %v4553
      %v4906 = vunpack.c.l.b16 %v4554
      %v4907 = vunpack.c.h.b16 %v4554
      %v4908 = vunpack.c.l.b16 %v4555
      %v4909 = vunpack.c.h.b16 %v4555
      %v4910 = vunpack.c.l.b16 %v4556
      %v4911 = vunpack.c.h.b16 %v4556
      %v4912 = vunpack.c.l.b16 %v4557
      %v4913 = vunpack.c.h.b16 %v4557
      %v4914 = vunpack.c.l.b16 %v4558
      %v4915 = vunpack.c.h.b16 %v4558
      %v4916 = vunpack.c.l.b16 %v4559
      %v4917 = vunpack.c.h.b16 %v4559
      %v4918 = vunpack.c.l.b16 %v4560
      %v4919 = vunpack.c.h.b16 %v4560
      %v4920 = vunpack.c.l.b16 %v4561
      %v4921 = vunpack.c.h.b16 %v4561
      %v4922 = vunpack.c.l.b16 %v4562
      %v4923 = vunpack.c.h.b16 %v4562
      %v4924 = vunpack.c.l.b16 %v4563
      %v4925 = vunpack.c.h.b16 %v4563
      %v4926 = vunpack.c.l.b16 %v4564
      %v4927 = vunpack.c.h.b16 %v4564
      %v4928 = vunpack.c.l.b16 %v4565
      %v4929 = vunpack.c.h.b16 %v4565
      %v4930 = vunpack.c.l.b16 %v4566
      %v4931 = vunpack.c.h.b16 %v4566
      %v4932 = vunpack.c.l.b16 %v4567
      %v4933 = vunpack.c.h.b16 %v4567
      %v4934 = vunpack.c.l.b16 %v4568
      %v4935 = vunpack.c.h.b16 %v4568
      %v4936 = vunpack.c.l.b16 %v4569
      %v4937 = vunpack.c.h.b16 %v4569
      %v4938 = vunpack.c.l.b16 %v4570
      %v4939 = vunpack.c.h.b16 %v4570
      %v4940 = vunpack.c.l.b16 %v4571
      %v4941 = vunpack.c.h.b16 %v4571
      %v4942 = vunpack.c.l.b16 %v4572
      %v4943 = vunpack.c.h.b16 %v4572
      %v4944 = vunpack.c.l.b16 %v4573
      %v4945 = vunpack.c.h.b16 %v4573
      %v4946 = vunpack.c.l.b16 %v4574
      %v4947 = vunpack.c.h.b16 %v4574
      %v4948 = vunpack.c.l.b16 %v4575
      %v4949 = vunpack.c.h.b16 %v4575
      %v4950 = vunpack.c.l.b16 %v4576
      %v4951 = vunpack.c.h.b16 %v4576
      %v4952 = vunpack.c.l.b16 %v4577
      %v4953 = vunpack.c.h.b16 %v4577
      %v4954 = vunpack.c.l.b16 %v4578
      %v4955 = vunpack.c.h.b16 %v4578
      %v4956 = vunpack.c.l.b16 %v4579
      %v4957 = vunpack.c.h.b16 %v4579
      %v4958 = vunpack.c.l.b16 %v4580
      %v4959 = vunpack.c.h.b16 %v4580
      %v4960 = vunpack.c.l.b16 %v4581
      %v4961 = vunpack.c.h.b16 %v4581
      %v4962 = vunpack.c.l.b16 %v4582
      %v4963 = vunpack.c.h.b16 %v4582
      %v4964 = vunpack.c.l.b16 %v4583
      %v4965 = vunpack.c.h.b16 %v4583
      %v4966 = vunpack.c.l.b16 %v4584
      %v4967 = vunpack.c.h.b16 %v4584
      %v4968 = vunpack.c.l.b16 %v4585
      %v4969 = vunpack.c.h.b16 %v4585
      %v4970 = vunpack.c.l.b16 %v4586
      %v4971 = vunpack.c.h.b16 %v4586
      %v4972 = vunpack.c.l.b16 %v4587
      %v4973 = vunpack.c.h.b16 %v4587
      %v4974 = vunpack.c.l.b16 %v4588
      %v4975 = vunpack.c.h.b16 %v4588
      %v4976 = vunpack.c.l.b16 %v4589
      %v4977 = vunpack.c.h.b16 %v4589
      %v4978 = vunpack.c.l.b16 %v4590
      %v4979 = vunpack.c.h.b16 %v4590
      %v4980 = vunpack.c.l.b16 %v4591
      %v4981 = vunpack.c.h.b16 %v4591
      %v4982 = vunpack.c.l.b16 %v4592
      %v4983 = vunpack.c.h.b16 %v4592
      %v4984 = vunpack.c.l.b16 %v4593
      %v4985 = vunpack.c.h.b16 %v4593
      %v4986 = vunpack.c.l.b16 %v4594
      %v4987 = vunpack.c.h.b16 %v4594
      %v4988 = vunpack.c.l.b16 %v4595
      %v4989 = vunpack.c.h.b16 %v4595
      %v4990 = vunpack.c.l.b16 %v4596
      %v4991 = vunpack.c.h.b16 %v4596
      %v4992 = vunpack.c.l.b16 %v4597
      %v4993 = vunpack.c.h.b16 %v4597
      %v4994 = vunpack.c.l.b16 %v4598
      %v4995 = vunpack.c.h.b16 %v4598
      %v4996 = vunpack.c.l.b16 %v4599
      %v4997 = vunpack.c.h.b16 %v4599
      %v4998 = vunpack.c.l.b16 %v4600
      %v4999 = vunpack.c.h.b16 %v4600
      %v5000 = vunpack.c.l.b16 %v4601
      %v5001 = vunpack.c.h.b16 %v4601
      %v5002 = vunpack.c.l.b16 %v4602
      %v5003 = vunpack.c.h.b16 %v4602
      %v5004 = vunpack.c.l.b16 %v4603
      %v5005 = vunpack.c.h.b16 %v4603
      %v5006 = vunpack.c.l.b16 %v4604
      %v5007 = vunpack.c.h.b16 %v4604
      %v5008 = vunpack.c.l.b16 %v4605
      %v5009 = vunpack.c.h.b16 %v4605
      %v5010 = vunpack.c.l.b16 %v4606
      %v5011 = vunpack.c.h.b16 %v4606
      %v5012 = vunpack.c.l.b16 %v4607
      %v5013 = vunpack.c.h.b16 %v4607
      %v5014 = vunpack.c.l.b16 %v4608
      %v5015 = vunpack.c.h.b16 %v4608
      %v5016 = vunpack.c.l.b16 %v4609
      %v5017 = vunpack.c.h.b16 %v4609
      %v5018 = vunpack.c.l.b16 %v4610
      %v5019 = vunpack.c.h.b16 %v4610
      %v5020 = vunpack.c.l.b16 %v4611
      %v5021 = vunpack.c.h.b16 %v4611
      %v5022 = vunpack.c.l.b16 %v4612
      %v5023 = vunpack.c.h.b16 %v4612
      %v5024 = vunpack.c.l.b16 %v4613
      %v5025 = vunpack.c.h.b16 %v4613
      %v5026 = vunpack.c.l.b16 %v4614
      %v5027 = vunpack.c.h.b16 %v4614
      %v5028 = vunpack.c.l.b16 %v4615
      %v5029 = vunpack.c.h.b16 %v4615
      %v5030 = vunpack.c.l.b16 %v4616
      %v5031 = vunpack.c.h.b16 %v4616
      %v5032 = vunpack.c.l.b16 %v4617
      %v5033 = vunpack.c.h.b16 %v4617
      %v5034 = vunpack.c.l.b16 %v4618
      %v5035 = vunpack.c.h.b16 %v4618
      %v5036 = vunpack.c.l.b16 %v4619
      %v5037 = vunpack.c.h.b16 %v4619
      %v5038 = vunpack.c.l.b16 %v4620
      %v5039 = vunpack.c.h.b16 %v4620
      %v5040 = vunpack.c.l.b16 %v4621
      %v5041 = vunpack.c.h.b16 %v4621
      %v5042 = vunpack.c.l.b16 %v4622
      %v5043 = vunpack.c.h.b16 %v4622
      %v5044 = vunpack.c.l.b16 %v4623
      %v5045 = vunpack.c.h.b16 %v4623
      %v5046 = vunpack.c.l.b16 %v4624
      %v5047 = vunpack.c.h.b16 %v4624
      %v5048 = vunpack.c.l.b16 %v4625
      %v5049 = vunpack.c.h.b16 %v4625
      %v5050 = vunpack.c.l.b16 %v4626
      %v5051 = vunpack.c.h.b16 %v4626
      %v5052 = vunpack.c.l.b16 %v4627
      %v5053 = vunpack.c.h.b16 %v4627
      %v5054 = vunpack.c.l.b16 %v4628
      %v5055 = vunpack.c.h.b16 %v4628
      %v5056 = vunpack.c.l.b16 %v4629
      %v5057 = vunpack.c.h.b16 %v4629
      %v5058 = vunpack.c.l.b16 %v4630
      %v5059 = vunpack.c.h.b16 %v4630
      %v5060 = vunpack.c.l.b16 %v4631
      %v5061 = vunpack.c.h.b16 %v4631
      %v5062 = vunpack.c.l.b16 %v4632
      %v5063 = vunpack.c.h.b16 %v4632
      %v5064 = vunpack.c.l.b16 %v4633
      %v5065 = vunpack.c.h.b16 %v4633
      %v5066 = vunpack.c.l.b16 %v4634
      %v5067 = vunpack.c.h.b16 %v4634
      %v5068 = vunpack.c.l.b16 %v4635
      %v5069 = vunpack.c.h.b16 %v4635
      %v5070 = vunpack.c.l.b16 %v4636
      %v5071 = vunpack.c.h.b16 %v4636
      %v5072 = vunpack.c.l.b16 %v4637
      %v5073 = vunpack.c.h.b16 %v4637
      %v5074 = vunpack.c.l.b16 %v4638
      %v5075 = vunpack.c.h.b16 %v4638
      %v5076 = vunpack.c.l.b16 %v4639
      %v5077 = vunpack.c.h.b16 %v4639
      %v5078 = vunpack.c.l.b16 %v4640
      %v5079 = vunpack.c.h.b16 %v4640
      %v5080 = vunpack.c.l.b16 %v4641
      %v5081 = vunpack.c.h.b16 %v4641
      %v5082 = vunpack.c.l.b16 %v4642
      %v5083 = vunpack.c.h.b16 %v4642
      %v5084 = vunpack.c.l.b16 %v4643
      %v5085 = vunpack.c.h.b16 %v4643
      %v5086 = vunpack.c.l.b16 %v4644
      %v5087 = vunpack.c.h.b16 %v4644
      %v5088 = vunpack.c.l.b16 %v4645
      %v5089 = vunpack.c.h.b16 %v4645
      %v5090 = vunpack.c.l.b16 %v4646
      %v5091 = vunpack.c.h.b16 %v4646
      %v5092 = vunpack.c.l.b16 %v4647
      %v5093 = vunpack.c.h.b16 %v4647
      %v5094 = vunpack.c.l.b16 %v4648
      %v5095 = vunpack.c.h.b16 %v4648
      %v5096 = vunpack.c.l.b16 %v4649
      %v5097 = vunpack.c.h.b16 %v4649
      %v5098 = vunpack.c.l.b16 %v4650
      %v5099 = vunpack.c.h.b16 %v4650
      %v5100 = vunpack.c.l.b16 %v4651
      %v5101 = vunpack.c.h.b16 %v4651
      %v5102 = vunpack.c.l.b16 %v4652
      %v5103 = vunpack.c.h.b16 %v4652
      %v5104 = vunpack.c.l.b16 %v4653
      %v5105 = vunpack.c.h.b16 %v4653
      %v5106 = vunpack.c.l.b16 %v4654
      %v5107 = vunpack.c.h.b16 %v4654
      %v5108 = vunpack.c.l.b16 %v4655
      %v5109 = vunpack.c.h.b16 %v4655
      %v5110 = vunpack.c.l.b16 %v4656
      %v5111 = vunpack.c.h.b16 %v4656
      %v5112 = vunpack.c.l.b16 %v4657
      %v5113 = vunpack.c.h.b16 %v4657
      %v5114 = vunpack.c.l.b16 %v4658
      %v5115 = vunpack.c.h.b16 %v4658
      %v5116 = vunpack.c.l.b16 %v4659
      %v5117 = vunpack.c.h.b16 %v4659
      %v5118 = vunpack.c.l.b16 %v4660
      %v5119 = vunpack.c.h.b16 %v4660
      %v5120 = vunpack.c.l.b16 %v4661
      %v5121 = vunpack.c.h.b16 %v4661
      %v5122 = vunpack.c.l.b16 %v4662
      %v5123 = vunpack.c.h.b16 %v4662
      %v5124 = vunpack.c.l.b16 %v4663
      %v5125 = vunpack.c.h.b16 %v4663
      %v5126 = vpack.c.b16 %v4874, %v4870
      %v5127 = vpack.c.b16 %v4875, %v4871
      %v5128 = vpack.c.b16 %v4876, %v4872
      %v5129 = vpack.c.b16 %v4877, %v4873
      %v5130 = vpack.c.b16 %v4882, %v4878
      %v5131 = vpack.c.b16 %v4883, %v4879
      %v5132 = vpack.c.b16 %v4884, %v4880
      %v5133 = vpack.c.b16 %v4885, %v4881
      %v5134 = vpack.c.b16 %v4890, %v4886
      %v5135 = vpack.c.b16 %v4891, %v4887
      %v5136 = vpack.c.b16 %v4892, %v4888
      %v5137 = vpack.c.b16 %v4893, %v4889
      %v5138 = vpack.c.b16 %v4898, %v4894
      %v5139 = vpack.c.b16 %v4899, %v4895
      %v5140 = vpack.c.b16 %v4900, %v4896
      %v5141 = vpack.c.b16 %v4901, %v4897
      %v5142 = vpack.c.b16 %v4906, %v4902
      %v5143 = vpack.c.b16 %v4907, %v4903
      %v5144 = vpack.c.b16 %v4908, %v4904
      %v5145 = vpack.c.b16 %v4909, %v4905
      %v5146 = vpack.c.b16 %v4914, %v4910
      %v5147 = vpack.c.b16 %v4915, %v4911
      %v5148 = vpack.c.b16 %v4916, %v4912
      %v5149 = vpack.c.b16 %v4917, %v4913
      %v5150 = vpack.c.b16 %v4922, %v4918
      %v5151 = vpack.c.b16 %v4923, %v4919
      %v5152 = vpack.c.b16 %v4924, %v4920
      %v5153 = vpack.c.b16 %v4925, %v4921
      %v5154 = vpack.c.b16 %v4930, %v4926
      %v5155 = vpack.c.b16 %v4931, %v4927
      %v5156 = vpack.c.b16 %v4932, %v4928
      %v5157 = vpack.c.b16 %v4933, %v4929
      %v5158 = vpack.c.b16 %v4938, %v4934
      %v5159 = vpack.c.b16 %v4939, %v4935
      %v5160 = vpack.c.b16 %v4940, %v4936
      %v5161 = vpack.c.b16 %v4941, %v4937
      %v5162 = vpack.c.b16 %v4946, %v4942
      %v5163 = vpack.c.b16 %v4947, %v4943
      %v5164 = vpack.c.b16 %v4948, %v4944
      %v5165 = vpack.c.b16 %v4949, %v4945
      %v5166 = vpack.c.b16 %v4954, %v4950
      %v5167 = vpack.c.b16 %v4955, %v4951
      %v5168 = vpack.c.b16 %v4956, %v4952
      %v5169 = vpack.c.b16 %v4957, %v4953
      %v5170 = vpack.c.b16 %v4962, %v4958
      %v5171 = vpack.c.b16 %v4963, %v4959
      %v5172 = vpack.c.b16 %v4964, %v4960
      %v5173 = vpack.c.b16 %v4965, %v4961
      %v5174 = vpack.c.b16 %v4970, %v4966
      %v5175 = vpack.c.b16 %v4971, %v4967
      %v5176 = vpack.c.b16 %v4972, %v4968
      %v5177 = vpack.c.b16 %v4973, %v4969
      %v5178 = vpack.c.b16 %v4978, %v4974
      %v5179 = vpack.c.b16 %v4979, %v4975
      %v5180 = vpack.c.b16 %v4980, %v4976
      %v5181 = vpack.c.b16 %v4981, %v4977
      %v5182 = vpack.c.b16 %v4986, %v4982
      %v5183 = vpack.c.b16 %v4987, %v4983
      %v5184 = vpack.c.b16 %v4988, %v4984
      %v5185 = vpack.c.b16 %v4989, %v4985
      %v5186 = vpack.c.b16 %v4994, %v4990
      %v5187 = vpack.c.b16 %v4995, %v4991
      %v5188 = vpack.c.b16 %v4996, %v4992
      %v5189 = vpack.c.b16 %v4997, %v4993
      %v5190 = vpack.c.b16 %v5002, %v4998
      %v5191 = vpack.c.b16 %v5003, %v4999
      %v5192 = vpack.c.b16 %v5004, %v5000
      %v5193 = vpack.c.b16 %v5005, %v5001
      %v5194 = vpack.c.b16 %v5010, %v5006
      %v5195 = vpack.c.b16 %v5011, %v5007
      %v5196 = vpack.c.b16 %v5012, %v5008
      %v5197 = vpack.c.b16 %v5013, %v5009
      %v5198 = vpack.c.b16 %v5018, %v5014
      %v5199 = vpack.c.b16 %v5019, %v5015
      %v5200 = vpack.c.b16 %v5020, %v5016
      %v5201 = vpack.c.b16 %v5021, %v5017
      %v5202 = vpack.c.b16 %v5026, %v5022
      %v5203 = vpack.c.b16 %v5027, %v5023
      %v5204 = vpack.c.b16 %v5028, %v5024
      %v5205 = vpack.c.b16 %v5029, %v5025
      %v5206 = vpack.c.b16 %v5034, %v5030
      %v5207 = vpack.c.b16 %v5035, %v5031
      %v5208 = vpack.c.b16 %v5036, %v5032
      %v5209 = vpack.c.b16 %v5037, %v5033
      %v5210 = vpack.c.b16 %v5042, %v5038
      %v5211 = vpack.c.b16 %v5043, %v5039
      %v5212 = vpack.c.b16 %v5044, %v5040
      %v5213 = vpack.c.b16 %v5045, %v5041
      %v5214 = vpack.c.b16 %v5050, %v5046
      %v5215 = vpack.c.b16 %v5051, %v5047
      %v5216 = vpack.c.b16 %v5052, %v5048
      %v5217 = vpack.c.b16 %v5053, %v5049
      %v5218 = vpack.c.b16 %v5058, %v5054
      %v5219 = vpack.c.b16 %v5059, %v5055
      %v5220 = vpack.c.b16 %v5060, %v5056
      %v5221 = vpack.c.b16 %v5061, %v5057
      %v5222 = vpack.c.b16 %v5066, %v5062
      %v5223 = vpack.c.b16 %v5067, %v5063
      %v5224 = vpack.c.b16 %v5068, %v5064
      %v5225 = vpack.c.b16 %v5069, %v5065
      %v5226 = vpack.c.b16 %v5074, %v5070
      %v5227 = vpack.c.b16 %v5075, %v5071
      %v5228 = vpack.c.b16 %v5076, %v5072
      %v5229 = vpack.c.b16 %v5077, %v5073
      %v5230 = vpack.c.b16 %v5082, %v5078
      %v5231 = vpack.c.b16 %v5083, %v5079
      %v5232 = vpack.c.b16 %v5084, %v5080
      %v5233 = vpack.c.b16 %v5085, %v5081
      %v5234 = vpack.c.b16 %v5090, %v5086
      %v5235 = vpack.c.b16 %v5091, %v5087
      %v5236 = vpack.c.b16 %v5092, %v5088
      %v5237 = vpack.c.b16 %v5093, %v5089
      %v5238 = vpack.c.b16 %v5098, %v5094
      %v5239 = vpack.c.b16 %v5099, %v5095
      %v5240 = vpack.c.b16 %v5100, %v5096
      %v5241 = vpack.c.b16 %v5101, %v5097
      %v5242 = vpack.c.b16 %v5106, %v5102
      %v5243 = vpack.c.b16 %v5107, %v5103
      %v5244 = vpack.c.b16 %v5108, %v5104
      %v5245 = vpack.c.b16 %v5109, %v5105
      %v5246 = vpack.c.b16 %v5114, %v5110
      %v5247 = vpack.c.b16 %v5115, %v5111
      %v5248 = vpack.c.b16 %v5116, %v5112
      %v5249 = vpack.c.b16 %v5117, %v5113
      %v5250 = vpack.c.b16 %v5122, %v5118
      %v5251 = vpack.c.b16 %v5123, %v5119
      %v5252 = vpack.c.b16 %v5124, %v5120
      %v5253 = vpack.c.b16 %v5125, %v5121
      %5382 = vmatpush.bf16.msra.mxu0 %v5154
      %5383 = vmatpush.bf16.msra.mxu0 %v5150
      %5384 = vmatpush.bf16.msra.mxu0 %v5146
      %5385 = vmatpush.bf16.msra.mxu0 %v5142
      %5386 = vmatpush.bf16.msra.mxu0 %v5138
      %5387 = vmatpush.bf16.msra.mxu0 %v5134
      %5388 = vmatpush.bf16.msra.mxu0 %v5130
      %5389 = vmatpush.bf16.msra.mxu0 %v5126
      %5390 = vmatmul.bf16.gmra.mxu0 %v4701
      %v5391 = vpop.f32.mrf.mxu0
      %v5392 = vadd.f32 0.0, %v5391
      %v5393 = vpop.f32.mrf.mxu0
      %v5394 = vadd.f32 0.0, %v5393
      %5395 = vdwg.mxu0
      %5396 = vmatpush.bf16.msra.mxu0 %v5186
      %5397 = vmatpush.bf16.msra.mxu0 %v5182
      %5398 = vmatpush.bf16.msra.mxu0 %v5178
      %5399 = vmatpush.bf16.msra.mxu0 %v5174
      %5400 = vmatpush.bf16.msra.mxu0 %v5170
      %5401 = vmatpush.bf16.msra.mxu0 %v5166
      %5402 = vmatpush.bf16.msra.mxu0 %v5162
      %5403 = vmatpush.bf16.msra.mxu0 %v5158
      %5404 = vmatmul.bf16.gmra.mxu0 %v4713
      %v5405 = vpop.f32.mrf.mxu0
      %v5406 = vadd.f32 %v5392, %v5405
      %v5407 = vpop.f32.mrf.mxu0
      %v5408 = vadd.f32 %v5394, %v5407
      %5409 = vdwg.mxu0
      %5410 = vmatpush.bf16.msra.mxu0 %v5218
      %5411 = vmatpush.bf16.msra.mxu0 %v5214
      %5412 = vmatpush.bf16.msra.mxu0 %v5210
      %5413 = vmatpush.bf16.msra.mxu0 %v5206
      %5414 = vmatpush.bf16.msra.mxu0 %v5202
      %5415 = vmatpush.bf16.msra.mxu0 %v5198
      %5416 = vmatpush.bf16.msra.mxu0 %v5194
      %5417 = vmatpush.bf16.msra.mxu0 %v5190
      %5418 = vmatmul.bf16.gmra.mxu0 %v4725
      %v5419 = vpop.f32.mrf.mxu0
      %v5420 = vadd.f32 %v5406, %v5419
      %v5421 = vpop.f32.mrf.mxu0
      %v5422 = vadd.f32 %v5408, %v5421
      %5423 = vdwg.mxu0
      %5424 = vmatpush.bf16.msra.mxu0 %v5250
      %5425 = vmatpush.bf16.msra.mxu0 %v5246
      %5426 = vmatpush.bf16.msra.mxu0 %v5242
      %5427 = vmatpush.bf16.msra.mxu0 %v5238
      %5428 = vmatpush.bf16.msra.mxu0 %v5234
      %5429 = vmatpush.bf16.msra.mxu0 %v5230
      %5430 = vmatpush.bf16.msra.mxu0 %v5226
      %5431 = vmatpush.bf16.msra.mxu0 %v5222
      %5432 = vmatmul.bf16.gmra.mxu0 %v4737
      %v5433 = vpop.f32.mrf.mxu0
      %v5434 = vadd.f32 %v5420, %v5433
      %v5435 = vpop.f32.mrf.mxu0
      %v5436 = vadd.f32 %v5422, %v5435
      %5437 = vdwg.mxu0
      %5438 = vmatpush.bf16.msra.mxu0 %v5155
      %5439 = vmatpush.bf16.msra.mxu0 %v5151
      %5440 = vmatpush.bf16.msra.mxu0 %v5147
      %5441 = vmatpush.bf16.msra.mxu0 %v5143
      %5442 = vmatpush.bf16.msra.mxu0 %v5139
      %5443 = vmatpush.bf16.msra.mxu0 %v5135
      %5444 = vmatpush.bf16.msra.mxu0 %v5131
      %5445 = vmatpush.bf16.msra.mxu0 %v5127
      %5446 = vmatmul.bf16.gmra.mxu0 %v4701
      %v5447 = vpop.f32.mrf.mxu0
      %v5448 = vadd.f32 0.0, %v5447
      %v5449 = vpop.f32.mrf.mxu0
      %v5450 = vadd.f32 0.0, %v5449
      %5451 = vdwg.mxu0
      %5452 = vmatpush.bf16.msra.mxu0 %v5187
      %5453 = vmatpush.bf16.msra.mxu0 %v5183
      %5454 = vmatpush.bf16.msra.mxu0 %v5179
      %5455 = vmatpush.bf16.msra.mxu0 %v5175
      %5456 = vmatpush.bf16.msra.mxu0 %v5171
      %5457 = vmatpush.bf16.msra.mxu0 %v5167
      %5458 = vmatpush.bf16.msra.mxu0 %v5163
      %5459 = vmatpush.bf16.msra.mxu0 %v5159
      %5460 = vmatmul.bf16.gmra.mxu0 %v4713
      %v5461 = vpop.f32.mrf.mxu0
      %v5462 = vadd.f32 %v5448, %v5461
      %v5463 = vpop.f32.mrf.mxu0
      %v5464 = vadd.f32 %v5450, %v5463
      %5465 = vdwg.mxu0
      %5466 = vmatpush.bf16.msra.mxu0 %v5219
      %5467 = vmatpush.bf16.msra.mxu0 %v5215
      %5468 = vmatpush.bf16.msra.mxu0 %v5211
      %5469 = vmatpush.bf16.msra.mxu0 %v5207
      %5470 = vmatpush.bf16.msra.mxu0 %v5203
      %5471 = vmatpush.bf16.msra.mxu0 %v5199
      %5472 = vmatpush.bf16.msra.mxu0 %v5195
      %5473 = vmatpush.bf16.msra.mxu0 %v5191
      %5474 = vmatmul.bf16.gmra.mxu0 %v4725
      %v5475 = vpop.f32.mrf.mxu0
      %v5476 = vadd.f32 %v5462, %v5475
      %v5477 = vpop.f32.mrf.mxu0
      %v5478 = vadd.f32 %v5464, %v5477
      %5479 = vdwg.mxu0
      %5480 = vmatpush.bf16.msra.mxu0 %v5251
      %5481 = vmatpush.bf16.msra.mxu0 %v5247
      %5482 = vmatpush.bf16.msra.mxu0 %v5243
      %5483 = vmatpush.bf16.msra.mxu0 %v5239
      %5484 = vmatpush.bf16.msra.mxu0 %v5235
      %5485 = vmatpush.bf16.msra.mxu0 %v5231
      %5486 = vmatpush.bf16.msra.mxu0 %v5227
      %5487 = vmatpush.bf16.msra.mxu0 %v5223
      %5488 = vmatmul.bf16.gmra.mxu0 %v4737
      %v5489 = vpop.f32.mrf.mxu0
      %v5490 = vadd.f32 %v5476, %v5489
      %v5491 = vpop.f32.mrf.mxu0
      %v5492 = vadd.f32 %v5478, %v5491
      %5493 = vdwg.mxu0
      %5494 = vmatpush.bf16.msra.mxu0 %v5156
      %5495 = vmatpush.bf16.msra.mxu0 %v5152
      %5496 = vmatpush.bf16.msra.mxu0 %v5148
      %5497 = vmatpush.bf16.msra.mxu0 %v5144
      %5498 = vmatpush.bf16.msra.mxu0 %v5140
      %5499 = vmatpush.bf16.msra.mxu0 %v5136
      %5500 = vmatpush.bf16.msra.mxu0 %v5132
      %5501 = vmatpush.bf16.msra.mxu0 %v5128
      %5502 = vmatmul.bf16.gmra.mxu0 %v4701
      %v5503 = vpop.f32.mrf.mxu0
      %v5504 = vadd.f32 0.0, %v5503
      %v5505 = vpop.f32.mrf.mxu0
      %v5506 = vadd.f32 0.0, %v5505
      %5507 = vdwg.mxu0
      %5508 = vmatpush.bf16.msra.mxu0 %v5188
      %5509 = vmatpush.bf16.msra.mxu0 %v5184
      %5510 = vmatpush.bf16.msra.mxu0 %v5180
      %5511 = vmatpush.bf16.msra.mxu0 %v5176
      %5512 = vmatpush.bf16.msra.mxu0 %v5172
      %5513 = vmatpush.bf16.msra.mxu0 %v5168
      %5514 = vmatpush.bf16.msra.mxu0 %v5164
      %5515 = vmatpush.bf16.msra.mxu0 %v5160
      %5516 = vmatmul.bf16.gmra.mxu0 %v4713
      %v5517 = vpop.f32.mrf.mxu0
      %v5518 = vadd.f32 %v5504, %v5517
      %v5519 = vpop.f32.mrf.mxu0
      %v5520 = vadd.f32 %v5506, %v5519
      %5521 = vdwg.mxu0
      %5522 = vmatpush.bf16.msra.mxu0 %v5220
      %5523 = vmatpush.bf16.msra.mxu0 %v5216
      %5524 = vmatpush.bf16.msra.mxu0 %v5212
      %5525 = vmatpush.bf16.msra.mxu0 %v5208
      %5526 = vmatpush.bf16.msra.mxu0 %v5204
      %5527 = vmatpush.bf16.msra.mxu0 %v5200
      %5528 = vmatpush.bf16.msra.mxu0 %v5196
      %5529 = vmatpush.bf16.msra.mxu0 %v5192
      %5530 = vmatmul.bf16.gmra.mxu0 %v4725
      %v5531 = vpop.f32.mrf.mxu0
      %v5532 = vadd.f32 %v5518, %v5531
      %v5533 = vpop.f32.mrf.mxu0
      %v5534 = vadd.f32 %v5520, %v5533
      %5535 = vdwg.mxu0
      %5536 = vmatpush.bf16.msra.mxu0 %v5252
      %5537 = vmatpush.bf16.msra.mxu0 %v5248
      %5538 = vmatpush.bf16.msra.mxu0 %v5244
      %5539 = vmatpush.bf16.msra.mxu0 %v5240
      %5540 = vmatpush.bf16.msra.mxu0 %v5236
      %5541 = vmatpush.bf16.msra.mxu0 %v5232
      %5542 = vmatpush.bf16.msra.mxu0 %v5228
      %5543 = vmatpush.bf16.msra.mxu0 %v5224
      %5544 = vmatmul.bf16.gmra.mxu0 %v4737
      %v5545 = vpop.f32.mrf.mxu0
      %v5546 = vadd.f32 %v5532, %v5545
      %v5547 = vpop.f32.mrf.mxu0
      %v5548 = vadd.f32 %v5534, %v5547
      %5549 = vdwg.mxu0
      %5550 = vmatpush.bf16.msra.mxu0 %v5157
      %5551 = vmatpush.bf16.msra.mxu0 %v5153
      %5552 = vmatpush.bf16.msra.mxu0 %v5149
      %5553 = vmatpush.bf16.msra.mxu0 %v5145
      %5554 = vmatpush.bf16.msra.mxu0 %v5141
      %5555 = vmatpush.bf16.msra.mxu0 %v5137
      %5556 = vmatpush.bf16.msra.mxu0 %v5133
      %5557 = vmatpush.bf16.msra.mxu0 %v5129
      %5558 = vmatmul.bf16.gmra.mxu0 %v4701
      %v5559 = vpop.f32.mrf.mxu0
      %v5560 = vadd.f32 0.0, %v5559
      %v5561 = vpop.f32.mrf.mxu0
      %v5562 = vadd.f32 0.0, %v5561
      %5563 = vdwg.mxu0
      %5564 = vmatpush.bf16.msra.mxu0 %v5189
      %5565 = vmatpush.bf16.msra.mxu0 %v5185
      %5566 = vmatpush.bf16.msra.mxu0 %v5181
      %5567 = vmatpush.bf16.msra.mxu0 %v5177
      %5568 = vmatpush.bf16.msra.mxu0 %v5173
      %5569 = vmatpush.bf16.msra.mxu0 %v5169
      %5570 = vmatpush.bf16.msra.mxu0 %v5165
      %5571 = vmatpush.bf16.msra.mxu0 %v5161
      %5572 = vmatmul.bf16.gmra.mxu0 %v4713
      %v5573 = vpop.f32.mrf.mxu0
      %v5574 = vadd.f32 %v5560, %v5573
      %v5575 = vpop.f32.mrf.mxu0
      %v5576 = vadd.f32 %v5562, %v5575
      %5577 = vdwg.mxu0
      %5578 = vmatpush.bf16.msra.mxu0 %v5221
      %5579 = vmatpush.bf16.msra.mxu0 %v5217
      %5580 = vmatpush.bf16.msra.mxu0 %v5213
      %5581 = vmatpush.bf16.msra.mxu0 %v5209
      %5582 = vmatpush.bf16.msra.mxu0 %v5205
      %5583 = vmatpush.bf16.msra.mxu0 %v5201
      %5584 = vmatpush.bf16.msra.mxu0 %v5197
      %5585 = vmatpush.bf16.msra.mxu0 %v5193
      %5586 = vmatmul.bf16.gmra.mxu0 %v4725
      %v5587 = vpop.f32.mrf.mxu0
      %v5588 = vadd.f32 %v5574, %v5587
      %v5589 = vpop.f32.mrf.mxu0
      %v5590 = vadd.f32 %v5576, %v5589
      %5591 = vdwg.mxu0
      %5592 = vmatpush.bf16.msra.mxu0 %v5253
      %5593 = vmatpush.bf16.msra.mxu0 %v5249
      %5594 = vmatpush.bf16.msra.mxu0 %v5245
      %5595 = vmatpush.bf16.msra.mxu0 %v5241
      %5596 = vmatpush.bf16.msra.mxu0 %v5237
      %5597 = vmatpush.bf16.msra.mxu0 %v5233
      %5598 = vmatpush.bf16.msra.mxu0 %v5229
      %5599 = vmatpush.bf16.msra.mxu0 %v5225
      %5600 = vmatmul.bf16.gmra.mxu0 %v4737
      %v5601 = vpop.f32.mrf.mxu0
      %v5602 = vadd.f32 %v5588, %v5601
      %v5603 = vpop.f32.mrf.mxu0
      %v5604 = vadd.f32 %v5590, %v5603
      %5605 = vdwg.mxu0
      %v5738 = vunpack.c.l.b16 %v4405
      %v5739 = vunpack.c.h.b16 %v4405
      %v5740 = vunpack.c.l.b16 %v4406
      %v5741 = vunpack.c.h.b16 %v4406
      %v5742 = vunpack.c.l.b16 %v4407
      %v5743 = vunpack.c.h.b16 %v4407
      %v5744 = vunpack.c.l.b16 %v4408
      %v5745 = vunpack.c.h.b16 %v4408
      %v5746 = vunpack.c.l.b16 %v4409
      %v5747 = vunpack.c.h.b16 %v4409
      %v5748 = vunpack.c.l.b16 %v4410
      %v5749 = vunpack.c.h.b16 %v4410
      %v5750 = vunpack.c.l.b16 %v4411
      %v5751 = vunpack.c.h.b16 %v4411
      %v5752 = vunpack.c.l.b16 %v4412
      %v5753 = vunpack.c.h.b16 %v4412
      %v5754 = vunpack.c.l.b16 %v4413
      %v5755 = vunpack.c.h.b16 %v4413
      %v5756 = vunpack.c.l.b16 %v4414
      %v5757 = vunpack.c.h.b16 %v4414
      %v5758 = vunpack.c.l.b16 %v4415
      %v5759 = vunpack.c.h.b16 %v4415
      %v5760 = vunpack.c.l.b16 %v4416
      %v5761 = vunpack.c.h.b16 %v4416
      %v5762 = vunpack.c.l.b16 %v4417
      %v5763 = vunpack.c.h.b16 %v4417
      %v5764 = vunpack.c.l.b16 %v4418
      %v5765 = vunpack.c.h.b16 %v4418
      %v5766 = vunpack.c.l.b16 %v4419
      %v5767 = vunpack.c.h.b16 %v4419
      %v5768 = vunpack.c.l.b16 %v4420
      %v5769 = vunpack.c.h.b16 %v4420
      %v5770 = vunpack.c.l.b16 %v4421
      %v5771 = vunpack.c.h.b16 %v4421
      %v5772 = vunpack.c.l.b16 %v4422
      %v5773 = vunpack.c.h.b16 %v4422
      %v5774 = vunpack.c.l.b16 %v4423
      %v5775 = vunpack.c.h.b16 %v4423
      %v5776 = vunpack.c.l.b16 %v4424
      %v5777 = vunpack.c.h.b16 %v4424
      %v5778 = vunpack.c.l.b16 %v4425
      %v5779 = vunpack.c.h.b16 %v4425
      %v5780 = vunpack.c.l.b16 %v4426
      %v5781 = vunpack.c.h.b16 %v4426
      %v5782 = vunpack.c.l.b16 %v4427
      %v5783 = vunpack.c.h.b16 %v4427
      %v5784 = vunpack.c.l.b16 %v4428
      %v5785 = vunpack.c.h.b16 %v4428
      %v5786 = vunpack.c.l.b16 %v4429
      %v5787 = vunpack.c.h.b16 %v4429
      %v5788 = vunpack.c.l.b16 %v4430
      %v5789 = vunpack.c.h.b16 %v4430
      %v5790 = vunpack.c.l.b16 %v4431
      %v5791 = vunpack.c.h.b16 %v4431
      %v5792 = vunpack.c.l.b16 %v4432
      %v5793 = vunpack.c.h.b16 %v4432
      %v5794 = vunpack.c.l.b16 %v4433
      %v5795 = vunpack.c.h.b16 %v4433
      %v5796 = vunpack.c.l.b16 %v4434
      %v5797 = vunpack.c.h.b16 %v4434
      %v5798 = vunpack.c.l.b16 %v4435
      %v5799 = vunpack.c.h.b16 %v4435
      %v5800 = vunpack.c.l.b16 %v4436
      %v5801 = vunpack.c.h.b16 %v4436
      %v5802 = vunpack.c.l.b16 %v4437
      %v5803 = vunpack.c.h.b16 %v4437
      %v5804 = vunpack.c.l.b16 %v4438
      %v5805 = vunpack.c.h.b16 %v4438
      %v5806 = vunpack.c.l.b16 %v4439
      %v5807 = vunpack.c.h.b16 %v4439
      %v5808 = vunpack.c.l.b16 %v4440
      %v5809 = vunpack.c.h.b16 %v4440
      %v5810 = vunpack.c.l.b16 %v4441
      %v5811 = vunpack.c.h.b16 %v4441
      %v5812 = vunpack.c.l.b16 %v4442
      %v5813 = vunpack.c.h.b16 %v4442
      %v5814 = vunpack.c.l.b16 %v4443
      %v5815 = vunpack.c.h.b16 %v4443
      %v5816 = vunpack.c.l.b16 %v4444
      %v5817 = vunpack.c.h.b16 %v4444
      %v5818 = vunpack.c.l.b16 %v4445
      %v5819 = vunpack.c.h.b16 %v4445
      %v5820 = vunpack.c.l.b16 %v4446
      %v5821 = vunpack.c.h.b16 %v4446
      %v5822 = vunpack.c.l.b16 %v4447
      %v5823 = vunpack.c.h.b16 %v4447
      %v5824 = vunpack.c.l.b16 %v4448
      %v5825 = vunpack.c.h.b16 %v4448
      %v5826 = vunpack.c.l.b16 %v4449
      %v5827 = vunpack.c.h.b16 %v4449
      %v5828 = vunpack.c.l.b16 %v4450
      %v5829 = vunpack.c.h.b16 %v4450
      %v5830 = vunpack.c.l.b16 %v4451
      %v5831 = vunpack.c.h.b16 %v4451
      %v5832 = vunpack.c.l.b16 %v4452
      %v5833 = vunpack.c.h.b16 %v4452
      %v5834 = vunpack.c.l.b16 %v4453
      %v5835 = vunpack.c.h.b16 %v4453
      %v5836 = vunpack.c.l.b16 %v4454
      %v5837 = vunpack.c.h.b16 %v4454
      %v5838 = vunpack.c.l.b16 %v4455
      %v5839 = vunpack.c.h.b16 %v4455
      %v5840 = vunpack.c.l.b16 %v4456
      %v5841 = vunpack.c.h.b16 %v4456
      %v5842 = vunpack.c.l.b16 %v4457
      %v5843 = vunpack.c.h.b16 %v4457
      %v5844 = vunpack.c.l.b16 %v4458
      %v5845 = vunpack.c.h.b16 %v4458
      %v5846 = vunpack.c.l.b16 %v4459
      %v5847 = vunpack.c.h.b16 %v4459
      %v5848 = vunpack.c.l.b16 %v4460
      %v5849 = vunpack.c.h.b16 %v4460
      %v5850 = vunpack.c.l.b16 %v4461
      %v5851 = vunpack.c.h.b16 %v4461
      %v5852 = vunpack.c.l.b16 %v4462
      %v5853 = vunpack.c.h.b16 %v4462
      %v5854 = vunpack.c.l.b16 %v4463
      %v5855 = vunpack.c.h.b16 %v4463
      %v5856 = vunpack.c.l.b16 %v4464
      %v5857 = vunpack.c.h.b16 %v4464
      %v5858 = vunpack.c.l.b16 %v4465
      %v5859 = vunpack.c.h.b16 %v4465
      %v5860 = vunpack.c.l.b16 %v4466
      %v5861 = vunpack.c.h.b16 %v4466
      %v5862 = vunpack.c.l.b16 %v4467
      %v5863 = vunpack.c.h.b16 %v4467
      %v5864 = vunpack.c.l.b16 %v4468
      %v5865 = vunpack.c.h.b16 %v4468
      %v5866 = vunpack.c.l.b16 %v4469
      %v5867 = vunpack.c.h.b16 %v4469
      %v5868 = vunpack.c.l.b16 %v4470
      %v5869 = vunpack.c.h.b16 %v4470
      %v5870 = vunpack.c.l.b16 %v4471
      %v5871 = vunpack.c.h.b16 %v4471
      %v5872 = vunpack.c.l.b16 %v4472
      %v5873 = vunpack.c.h.b16 %v4472
      %v5874 = vunpack.c.l.b16 %v4473
      %v5875 = vunpack.c.h.b16 %v4473
      %v5876 = vunpack.c.l.b16 %v4474
      %v5877 = vunpack.c.h.b16 %v4474
      %v5878 = vunpack.c.l.b16 %v4475
      %v5879 = vunpack.c.h.b16 %v4475
      %v5880 = vunpack.c.l.b16 %v4476
      %v5881 = vunpack.c.h.b16 %v4476
      %v5882 = vunpack.c.l.b16 %v4477
      %v5883 = vunpack.c.h.b16 %v4477
      %v5884 = vunpack.c.l.b16 %v4478
      %v5885 = vunpack.c.h.b16 %v4478
      %v5886 = vunpack.c.l.b16 %v4479
      %v5887 = vunpack.c.h.b16 %v4479
      %v5888 = vunpack.c.l.b16 %v4480
      %v5889 = vunpack.c.h.b16 %v4480
      %v5890 = vunpack.c.l.b16 %v4481
      %v5891 = vunpack.c.h.b16 %v4481
      %v5892 = vunpack.c.l.b16 %v4482
      %v5893 = vunpack.c.h.b16 %v4482
      %v5894 = vunpack.c.l.b16 %v4483
      %v5895 = vunpack.c.h.b16 %v4483
      %v5896 = vunpack.c.l.b16 %v4484
      %v5897 = vunpack.c.h.b16 %v4484
      %v5898 = vunpack.c.l.b16 %v4485
      %v5899 = vunpack.c.h.b16 %v4485
      %v5900 = vunpack.c.l.b16 %v4486
      %v5901 = vunpack.c.h.b16 %v4486
      %v5902 = vunpack.c.l.b16 %v4487
      %v5903 = vunpack.c.h.b16 %v4487
      %v5904 = vunpack.c.l.b16 %v4488
      %v5905 = vunpack.c.h.b16 %v4488
      %v5906 = vunpack.c.l.b16 %v4489
      %v5907 = vunpack.c.h.b16 %v4489
      %v5908 = vunpack.c.l.b16 %v4490
      %v5909 = vunpack.c.h.b16 %v4490
      %v5910 = vunpack.c.l.b16 %v4491
      %v5911 = vunpack.c.h.b16 %v4491
      %v5912 = vunpack.c.l.b16 %v4492
      %v5913 = vunpack.c.h.b16 %v4492
      %v5914 = vunpack.c.l.b16 %v4493
      %v5915 = vunpack.c.h.b16 %v4493
      %v5916 = vunpack.c.l.b16 %v4494
      %v5917 = vunpack.c.h.b16 %v4494
      %v5918 = vunpack.c.l.b16 %v4495
      %v5919 = vunpack.c.h.b16 %v4495
      %v5920 = vunpack.c.l.b16 %v4496
      %v5921 = vunpack.c.h.b16 %v4496
      %v5922 = vunpack.c.l.b16 %v4497
      %v5923 = vunpack.c.h.b16 %v4497
      %v5924 = vunpack.c.l.b16 %v4498
      %v5925 = vunpack.c.h.b16 %v4498
      %v5926 = vunpack.c.l.b16 %v4499
      %v5927 = vunpack.c.h.b16 %v4499
      %v5928 = vunpack.c.l.b16 %v4500
      %v5929 = vunpack.c.h.b16 %v4500
      %v5930 = vunpack.c.l.b16 %v4501
      %v5931 = vunpack.c.h.b16 %v4501
      %v5932 = vunpack.c.l.b16 %v4502
      %v5933 = vunpack.c.h.b16 %v4502
      %v5934 = vunpack.c.l.b16 %v4503
      %v5935 = vunpack.c.h.b16 %v4503
      %v5936 = vunpack.c.l.b16 %v4504
      %v5937 = vunpack.c.h.b16 %v4504
      %v5938 = vunpack.c.l.b16 %v4505
      %v5939 = vunpack.c.h.b16 %v4505
      %v5940 = vunpack.c.l.b16 %v4506
      %v5941 = vunpack.c.h.b16 %v4506
      %v5942 = vunpack.c.l.b16 %v4507
      %v5943 = vunpack.c.h.b16 %v4507
      %v5944 = vunpack.c.l.b16 %v4508
      %v5945 = vunpack.c.h.b16 %v4508
      %v5946 = vunpack.c.l.b16 %v4509
      %v5947 = vunpack.c.h.b16 %v4509
      %v5948 = vunpack.c.l.b16 %v4510
      %v5949 = vunpack.c.h.b16 %v4510
      %v5950 = vunpack.c.l.b16 %v4511
      %v5951 = vunpack.c.h.b16 %v4511
      %v5952 = vunpack.c.l.b16 %v4512
      %v5953 = vunpack.c.h.b16 %v4512
      %v5954 = vunpack.c.l.b16 %v4513
      %v5955 = vunpack.c.h.b16 %v4513
      %v5956 = vunpack.c.l.b16 %v4514
      %v5957 = vunpack.c.h.b16 %v4514
      %v5958 = vunpack.c.l.b16 %v4515
      %v5959 = vunpack.c.h.b16 %v4515
      %v5960 = vunpack.c.l.b16 %v4516
      %v5961 = vunpack.c.h.b16 %v4516
      %v5962 = vunpack.c.l.b16 %v4517
      %v5963 = vunpack.c.h.b16 %v4517
      %v5964 = vunpack.c.l.b16 %v4518
      %v5965 = vunpack.c.h.b16 %v4518
      %v5966 = vunpack.c.l.b16 %v4519
      %v5967 = vunpack.c.h.b16 %v4519
      %v5968 = vunpack.c.l.b16 %v4520
      %v5969 = vunpack.c.h.b16 %v4520
      %v5970 = vunpack.c.l.b16 %v4521
      %v5971 = vunpack.c.h.b16 %v4521
      %v5972 = vunpack.c.l.b16 %v4522
      %v5973 = vunpack.c.h.b16 %v4522
      %v5974 = vunpack.c.l.b16 %v4523
      %v5975 = vunpack.c.h.b16 %v4523
      %v5976 = vunpack.c.l.b16 %v4524
      %v5977 = vunpack.c.h.b16 %v4524
      %v5978 = vunpack.c.l.b16 %v4525
      %v5979 = vunpack.c.h.b16 %v4525
      %v5980 = vunpack.c.l.b16 %v4526
      %v5981 = vunpack.c.h.b16 %v4526
      %v5982 = vunpack.c.l.b16 %v4527
      %v5983 = vunpack.c.h.b16 %v4527
      %v5984 = vunpack.c.l.b16 %v4528
      %v5985 = vunpack.c.h.b16 %v4528
      %v5986 = vunpack.c.l.b16 %v4529
      %v5987 = vunpack.c.h.b16 %v4529
      %v5988 = vunpack.c.l.b16 %v4530
      %v5989 = vunpack.c.h.b16 %v4530
      %v5990 = vunpack.c.l.b16 %v4531
      %v5991 = vunpack.c.h.b16 %v4531
      %v5992 = vunpack.c.l.b16 %v4532
      %v5993 = vunpack.c.h.b16 %v4532
      %v5994 = vpack.c.b16 %v5742, %v5738
      %v5995 = vpack.c.b16 %v5743, %v5739
      %v5996 = vpack.c.b16 %v5744, %v5740
      %v5997 = vpack.c.b16 %v5745, %v5741
      %v5998 = vpack.c.b16 %v5750, %v5746
      %v5999 = vpack.c.b16 %v5751, %v5747
      %v6000 = vpack.c.b16 %v5752, %v5748
      %v6001 = vpack.c.b16 %v5753, %v5749
      %v6002 = vpack.c.b16 %v5758, %v5754
      %v6003 = vpack.c.b16 %v5759, %v5755
      %v6004 = vpack.c.b16 %v5760, %v5756
      %v6005 = vpack.c.b16 %v5761, %v5757
      %v6006 = vpack.c.b16 %v5766, %v5762
      %v6007 = vpack.c.b16 %v5767, %v5763
      %v6008 = vpack.c.b16 %v5768, %v5764
      %v6009 = vpack.c.b16 %v5769, %v5765
      %v6010 = vpack.c.b16 %v5774, %v5770
      %v6011 = vpack.c.b16 %v5775, %v5771
      %v6012 = vpack.c.b16 %v5776, %v5772
      %v6013 = vpack.c.b16 %v5777, %v5773
      %v6014 = vpack.c.b16 %v5782, %v5778
      %v6015 = vpack.c.b16 %v5783, %v5779
      %v6016 = vpack.c.b16 %v5784, %v5780
      %v6017 = vpack.c.b16 %v5785, %v5781
      %v6018 = vpack.c.b16 %v5790, %v5786
      %v6019 = vpack.c.b16 %v5791, %v5787
      %v6020 = vpack.c.b16 %v5792, %v5788
      %v6021 = vpack.c.b16 %v5793, %v5789
      %v6022 = vpack.c.b16 %v5798, %v5794
      %v6023 = vpack.c.b16 %v5799, %v5795
      %v6024 = vpack.c.b16 %v5800, %v5796
      %v6025 = vpack.c.b16 %v5801, %v5797
      %v6026 = vpack.c.b16 %v5806, %v5802
      %v6027 = vpack.c.b16 %v5807, %v5803
      %v6028 = vpack.c.b16 %v5808, %v5804
      %v6029 = vpack.c.b16 %v5809, %v5805
      %v6030 = vpack.c.b16 %v5814, %v5810
      %v6031 = vpack.c.b16 %v5815, %v5811
      %v6032 = vpack.c.b16 %v5816, %v5812
      %v6033 = vpack.c.b16 %v5817, %v5813
      %v6034 = vpack.c.b16 %v5822, %v5818
      %v6035 = vpack.c.b16 %v5823, %v5819
      %v6036 = vpack.c.b16 %v5824, %v5820
      %v6037 = vpack.c.b16 %v5825, %v5821
      %v6038 = vpack.c.b16 %v5830, %v5826
      %v6039 = vpack.c.b16 %v5831, %v5827
      %v6040 = vpack.c.b16 %v5832, %v5828
      %v6041 = vpack.c.b16 %v5833, %v5829
      %v6042 = vpack.c.b16 %v5838, %v5834
      %v6043 = vpack.c.b16 %v5839, %v5835
      %v6044 = vpack.c.b16 %v5840, %v5836
      %v6045 = vpack.c.b16 %v5841, %v5837
      %v6046 = vpack.c.b16 %v5846, %v5842
      %v6047 = vpack.c.b16 %v5847, %v5843
      %v6048 = vpack.c.b16 %v5848, %v5844
      %v6049 = vpack.c.b16 %v5849, %v5845
      %v6050 = vpack.c.b16 %v5854, %v5850
      %v6051 = vpack.c.b16 %v5855, %v5851
      %v6052 = vpack.c.b16 %v5856, %v5852
      %v6053 = vpack.c.b16 %v5857, %v5853
      %v6054 = vpack.c.b16 %v5862, %v5858
      %v6055 = vpack.c.b16 %v5863, %v5859
      %v6056 = vpack.c.b16 %v5864, %v5860
      %v6057 = vpack.c.b16 %v5865, %v5861
      %v6058 = vpack.c.b16 %v5870, %v5866
      %v6059 = vpack.c.b16 %v5871, %v5867
      %v6060 = vpack.c.b16 %v5872, %v5868
      %v6061 = vpack.c.b16 %v5873, %v5869
      %v6062 = vpack.c.b16 %v5878, %v5874
      %v6063 = vpack.c.b16 %v5879, %v5875
      %v6064 = vpack.c.b16 %v5880, %v5876
      %v6065 = vpack.c.b16 %v5881, %v5877
      %v6066 = vpack.c.b16 %v5886, %v5882
      %v6067 = vpack.c.b16 %v5887, %v5883
      %v6068 = vpack.c.b16 %v5888, %v5884
      %v6069 = vpack.c.b16 %v5889, %v5885
      %v6070 = vpack.c.b16 %v5894, %v5890
      %v6071 = vpack.c.b16 %v5895, %v5891
      %v6072 = vpack.c.b16 %v5896, %v5892
      %v6073 = vpack.c.b16 %v5897, %v5893
      %v6074 = vpack.c.b16 %v5902, %v5898
      %v6075 = vpack.c.b16 %v5903, %v5899
      %v6076 = vpack.c.b16 %v5904, %v5900
      %v6077 = vpack.c.b16 %v5905, %v5901
      %v6078 = vpack.c.b16 %v5910, %v5906
      %v6079 = vpack.c.b16 %v5911, %v5907
      %v6080 = vpack.c.b16 %v5912, %v5908
      %v6081 = vpack.c.b16 %v5913, %v5909
      %v6082 = vpack.c.b16 %v5918, %v5914
      %v6083 = vpack.c.b16 %v5919, %v5915
      %v6084 = vpack.c.b16 %v5920, %v5916
      %v6085 = vpack.c.b16 %v5921, %v5917
      %v6086 = vpack.c.b16 %v5926, %v5922
      %v6087 = vpack.c.b16 %v5927, %v5923
      %v6088 = vpack.c.b16 %v5928, %v5924
      %v6089 = vpack.c.b16 %v5929, %v5925
      %v6090 = vpack.c.b16 %v5934, %v5930
      %v6091 = vpack.c.b16 %v5935, %v5931
      %v6092 = vpack.c.b16 %v5936, %v5932
      %v6093 = vpack.c.b16 %v5937, %v5933
      %v6094 = vpack.c.b16 %v5942, %v5938
      %v6095 = vpack.c.b16 %v5943, %v5939
      %v6096 = vpack.c.b16 %v5944, %v5940
      %v6097 = vpack.c.b16 %v5945, %v5941
      %v6098 = vpack.c.b16 %v5950, %v5946
      %v6099 = vpack.c.b16 %v5951, %v5947
      %v6100 = vpack.c.b16 %v5952, %v5948
      %v6101 = vpack.c.b16 %v5953, %v5949
      %v6102 = vpack.c.b16 %v5958, %v5954
      %v6103 = vpack.c.b16 %v5959, %v5955
      %v6104 = vpack.c.b16 %v5960, %v5956
      %v6105 = vpack.c.b16 %v5961, %v5957
      %v6106 = vpack.c.b16 %v5966, %v5962
      %v6107 = vpack.c.b16 %v5967, %v5963
      %v6108 = vpack.c.b16 %v5968, %v5964
      %v6109 = vpack.c.b16 %v5969, %v5965
      %v6110 = vpack.c.b16 %v5974, %v5970
      %v6111 = vpack.c.b16 %v5975, %v5971
      %v6112 = vpack.c.b16 %v5976, %v5972
      %v6113 = vpack.c.b16 %v5977, %v5973
      %v6114 = vpack.c.b16 %v5982, %v5978
      %v6115 = vpack.c.b16 %v5983, %v5979
      %v6116 = vpack.c.b16 %v5984, %v5980
      %v6117 = vpack.c.b16 %v5985, %v5981
      %v6118 = vpack.c.b16 %v5990, %v5986
      %v6119 = vpack.c.b16 %v5991, %v5987
      %v6120 = vpack.c.b16 %v5992, %v5988
      %v6121 = vpack.c.b16 %v5993, %v5989
      %6250 = vmatpush.bf16.msra.mxu0 %v6022
      %6251 = vmatpush.bf16.msra.mxu0 %v6018
      %6252 = vmatpush.bf16.msra.mxu0 %v6014
      %6253 = vmatpush.bf16.msra.mxu0 %v6010
      %6254 = vmatpush.bf16.msra.mxu0 %v6006
      %6255 = vmatpush.bf16.msra.mxu0 %v6002
      %6256 = vmatpush.bf16.msra.mxu0 %v5998
      %6257 = vmatpush.bf16.msra.mxu0 %v5994
      %6258 = vmatmul.bf16.gmra.mxu0 %v4682
      %v6259 = vpop.f32.mrf.mxu0
      %v6260 = vadd.f32 %v5434, %v6259
      %v6261 = vpop.f32.mrf.mxu0
      %v6262 = vadd.f32 %v5436, %v6261
      %6263 = vdwg.mxu0
      %6264 = vmatpush.bf16.msra.mxu0 %v6054
      %6265 = vmatpush.bf16.msra.mxu0 %v6050
      %6266 = vmatpush.bf16.msra.mxu0 %v6046
      %6267 = vmatpush.bf16.msra.mxu0 %v6042
      %6268 = vmatpush.bf16.msra.mxu0 %v6038
      %6269 = vmatpush.bf16.msra.mxu0 %v6034
      %6270 = vmatpush.bf16.msra.mxu0 %v6030
      %6271 = vmatpush.bf16.msra.mxu0 %v6026
      %6272 = vmatmul.bf16.gmra.mxu0 %v4683
      %v6273 = vpop.f32.mrf.mxu0
      %v6274 = vadd.f32 %v6260, %v6273
      %v6275 = vpop.f32.mrf.mxu0
      %v6276 = vadd.f32 %v6262, %v6275
      %6277 = vdwg.mxu0
      %6278 = vmatpush.bf16.msra.mxu0 %v6086
      %6279 = vmatpush.bf16.msra.mxu0 %v6082
      %6280 = vmatpush.bf16.msra.mxu0 %v6078
      %6281 = vmatpush.bf16.msra.mxu0 %v6074
      %6282 = vmatpush.bf16.msra.mxu0 %v6070
      %6283 = vmatpush.bf16.msra.mxu0 %v6066
      %6284 = vmatpush.bf16.msra.mxu0 %v6062
      %6285 = vmatpush.bf16.msra.mxu0 %v6058
      %6286 = vmatmul.bf16.gmra.mxu0 %v4684
      %v6287 = vpop.f32.mrf.mxu0
      %v6288 = vadd.f32 %v6274, %v6287
      %v6289 = vpop.f32.mrf.mxu0
      %v6290 = vadd.f32 %v6276, %v6289
      %6291 = vdwg.mxu0
      %6292 = vmatpush.bf16.msra.mxu0 %v6118
      %6293 = vmatpush.bf16.msra.mxu0 %v6114
      %6294 = vmatpush.bf16.msra.mxu0 %v6110
      %6295 = vmatpush.bf16.msra.mxu0 %v6106
      %6296 = vmatpush.bf16.msra.mxu0 %v6102
      %6297 = vmatpush.bf16.msra.mxu0 %v6098
      %6298 = vmatpush.bf16.msra.mxu0 %v6094
      %6299 = vmatpush.bf16.msra.mxu0 %v6090
      %6300 = vmatmul.bf16.gmra.mxu0 %v4685
      %v6301 = vpop.f32.mrf.mxu0
      %v6302 = vadd.f32 %v6288, %v6301
      %v6303 = vpop.f32.mrf.mxu0
      %v6304 = vadd.f32 %v6290, %v6303
      %6305 = vdwg.mxu0
      %6306 = vmatpush.bf16.msra.mxu0 %v6023
      %6307 = vmatpush.bf16.msra.mxu0 %v6019
      %6308 = vmatpush.bf16.msra.mxu0 %v6015
      %6309 = vmatpush.bf16.msra.mxu0 %v6011
      %6310 = vmatpush.bf16.msra.mxu0 %v6007
      %6311 = vmatpush.bf16.msra.mxu0 %v6003
      %6312 = vmatpush.bf16.msra.mxu0 %v5999
      %6313 = vmatpush.bf16.msra.mxu0 %v5995
      %6314 = vmatmul.bf16.gmra.mxu0 %v4682
      %v6315 = vpop.f32.mrf.mxu0
      %v6316 = vadd.f32 %v5490, %v6315
      %v6317 = vpop.f32.mrf.mxu0
      %v6318 = vadd.f32 %v5492, %v6317
      %6319 = vdwg.mxu0
      %6320 = vmatpush.bf16.msra.mxu0 %v6055
      %6321 = vmatpush.bf16.msra.mxu0 %v6051
      %6322 = vmatpush.bf16.msra.mxu0 %v6047
      %6323 = vmatpush.bf16.msra.mxu0 %v6043
      %6324 = vmatpush.bf16.msra.mxu0 %v6039
      %6325 = vmatpush.bf16.msra.mxu0 %v6035
      %6326 = vmatpush.bf16.msra.mxu0 %v6031
      %6327 = vmatpush.bf16.msra.mxu0 %v6027
      %6328 = vmatmul.bf16.gmra.mxu0 %v4683
      %v6329 = vpop.f32.mrf.mxu0
      %v6330 = vadd.f32 %v6316, %v6329
      %v6331 = vpop.f32.mrf.mxu0
      %v6332 = vadd.f32 %v6318, %v6331
      %6333 = vdwg.mxu0
      %6334 = vmatpush.bf16.msra.mxu0 %v6087
      %6335 = vmatpush.bf16.msra.mxu0 %v6083
      %6336 = vmatpush.bf16.msra.mxu0 %v6079
      %6337 = vmatpush.bf16.msra.mxu0 %v6075
      %6338 = vmatpush.bf16.msra.mxu0 %v6071
      %6339 = vmatpush.bf16.msra.mxu0 %v6067
      %6340 = vmatpush.bf16.msra.mxu0 %v6063
      %6341 = vmatpush.bf16.msra.mxu0 %v6059
      %6342 = vmatmul.bf16.gmra.mxu0 %v4684
      %v6343 = vpop.f32.mrf.mxu0
      %v6344 = vadd.f32 %v6330, %v6343
      %v6345 = vpop.f32.mrf.mxu0
      %v6346 = vadd.f32 %v6332, %v6345
      %6347 = vdwg.mxu0
      %6348 = vmatpush.bf16.msra.mxu0 %v6119
      %6349 = vmatpush.bf16.msra.mxu0 %v6115
      %6350 = vmatpush.bf16.msra.mxu0 %v6111
      %6351 = vmatpush.bf16.msra.mxu0 %v6107
      %6352 = vmatpush.bf16.msra.mxu0 %v6103
      %6353 = vmatpush.bf16.msra.mxu0 %v6099
      %6354 = vmatpush.bf16.msra.mxu0 %v6095
      %6355 = vmatpush.bf16.msra.mxu0 %v6091
      %6356 = vmatmul.bf16.gmra.mxu0 %v4685
      %v6357 = vpop.f32.mrf.mxu0
      %v6358 = vadd.f32 %v6344, %v6357
      %v6359 = vpop.f32.mrf.mxu0
      %v6360 = vadd.f32 %v6346, %v6359
      %6361 = vdwg.mxu0
      %6362 = vmatpush.bf16.msra.mxu0 %v6024
      %6363 = vmatpush.bf16.msra.mxu0 %v6020
      %6364 = vmatpush.bf16.msra.mxu0 %v6016
      %6365 = vmatpush.bf16.msra.mxu0 %v6012
      %6366 = vmatpush.bf16.msra.mxu0 %v6008
      %6367 = vmatpush.bf16.msra.mxu0 %v6004
      %6368 = vmatpush.bf16.msra.mxu0 %v6000
      %6369 = vmatpush.bf16.msra.mxu0 %v5996
      %6370 = vmatmul.bf16.gmra.mxu0 %v4682
      %v6371 = vpop.f32.mrf.mxu0
      %v6372 = vadd.f32 %v5546, %v6371
      %v6373 = vpop.f32.mrf.mxu0
      %v6374 = vadd.f32 %v5548, %v6373
      %6375 = vdwg.mxu0
      %6376 = vmatpush.bf16.msra.mxu0 %v6056
      %6377 = vmatpush.bf16.msra.mxu0 %v6052
      %6378 = vmatpush.bf16.msra.mxu0 %v6048
      %6379 = vmatpush.bf16.msra.mxu0 %v6044
      %6380 = vmatpush.bf16.msra.mxu0 %v6040
      %6381 = vmatpush.bf16.msra.mxu0 %v6036
      %6382 = vmatpush.bf16.msra.mxu0 %v6032
      %6383 = vmatpush.bf16.msra.mxu0 %v6028
      %6384 = vmatmul.bf16.gmra.mxu0 %v4683
      %v6385 = vpop.f32.mrf.mxu0
      %v6386 = vadd.f32 %v6372, %v6385
      %v6387 = vpop.f32.mrf.mxu0
      %v6388 = vadd.f32 %v6374, %v6387
      %6389 = vdwg.mxu0
      %6390 = vmatpush.bf16.msra.mxu0 %v6088
      %6391 = vmatpush.bf16.msra.mxu0 %v6084
      %6392 = vmatpush.bf16.msra.mxu0 %v6080
      %6393 = vmatpush.bf16.msra.mxu0 %v6076
      %6394 = vmatpush.bf16.msra.mxu0 %v6072
      %6395 = vmatpush.bf16.msra.mxu0 %v6068
      %6396 = vmatpush.bf16.msra.mxu0 %v6064
      %6397 = vmatpush.bf16.msra.mxu0 %v6060
      %6398 = vmatmul.bf16.gmra.mxu0 %v4684
      %v6399 = vpop.f32.mrf.mxu0
      %v6400 = vadd.f32 %v6386, %v6399
      %v6401 = vpop.f32.mrf.mxu0
      %v6402 = vadd.f32 %v6388, %v6401
      %6403 = vdwg.mxu0
      %6404 = vmatpush.bf16.msra.mxu0 %v6120
      %6405 = vmatpush.bf16.msra.mxu0 %v6116
      %6406 = vmatpush.bf16.msra.mxu0 %v6112
      %6407 = vmatpush.bf16.msra.mxu0 %v6108
      %6408 = vmatpush.bf16.msra.mxu0 %v6104
      %6409 = vmatpush.bf16.msra.mxu0 %v6100
      %6410 = vmatpush.bf16.msra.mxu0 %v6096
      %6411 = vmatpush.bf16.msra.mxu0 %v6092
      %6412 = vmatmul.bf16.gmra.mxu0 %v4685
      %v6413 = vpop.f32.mrf.mxu0
      %v6414 = vadd.f32 %v6400, %v6413
      %v6415 = vpop.f32.mrf.mxu0
      %v6416 = vadd.f32 %v6402, %v6415
      %6417 = vdwg.mxu0
      %6418 = vmatpush.bf16.msra.mxu0 %v6025
      %6419 = vmatpush.bf16.msra.mxu0 %v6021
      %6420 = vmatpush.bf16.msra.mxu0 %v6017
      %6421 = vmatpush.bf16.msra.mxu0 %v6013
      %6422 = vmatpush.bf16.msra.mxu0 %v6009
      %6423 = vmatpush.bf16.msra.mxu0 %v6005
      %6424 = vmatpush.bf16.msra.mxu0 %v6001
      %6425 = vmatpush.bf16.msra.mxu0 %v5997
      %6426 = vmatmul.bf16.gmra.mxu0 %v4682
      %v6427 = vpop.f32.mrf.mxu0
      %v6428 = vadd.f32 %v5602, %v6427
      %v6429 = vpop.f32.mrf.mxu0
      %v6430 = vadd.f32 %v5604, %v6429
      %6431 = vdwg.mxu0
      %6432 = vmatpush.bf16.msra.mxu0 %v6057
      %6433 = vmatpush.bf16.msra.mxu0 %v6053
      %6434 = vmatpush.bf16.msra.mxu0 %v6049
      %6435 = vmatpush.bf16.msra.mxu0 %v6045
      %6436 = vmatpush.bf16.msra.mxu0 %v6041
      %6437 = vmatpush.bf16.msra.mxu0 %v6037
      %6438 = vmatpush.bf16.msra.mxu0 %v6033
      %6439 = vmatpush.bf16.msra.mxu0 %v6029
      %6440 = vmatmul.bf16.gmra.mxu0 %v4683
      %v6441 = vpop.f32.mrf.mxu0
      %v6442 = vadd.f32 %v6428, %v6441
      %v6443 = vpop.f32.mrf.mxu0
      %v6444 = vadd.f32 %v6430, %v6443
      %6445 = vdwg.mxu0
      %6446 = vmatpush.bf16.msra.mxu0 %v6089
      %6447 = vmatpush.bf16.msra.mxu0 %v6085
      %6448 = vmatpush.bf16.msra.mxu0 %v6081
      %6449 = vmatpush.bf16.msra.mxu0 %v6077
      %6450 = vmatpush.bf16.msra.mxu0 %v6073
      %6451 = vmatpush.bf16.msra.mxu0 %v6069
      %6452 = vmatpush.bf16.msra.mxu0 %v6065
      %6453 = vmatpush.bf16.msra.mxu0 %v6061
      %6454 = vmatmul.bf16.gmra.mxu0 %v4684
      %v6455 = vpop.f32.mrf.mxu0
      %v6456 = vadd.f32 %v6442, %v6455
      %v6457 = vpop.f32.mrf.mxu0
      %v6458 = vadd.f32 %v6444, %v6457
      %6459 = vdwg.mxu0
      %6460 = vmatpush.bf16.msra.mxu0 %v6121
      %6461 = vmatpush.bf16.msra.mxu0 %v6117
      %6462 = vmatpush.bf16.msra.mxu0 %v6113
      %6463 = vmatpush.bf16.msra.mxu0 %v6109
      %6464 = vmatpush.bf16.msra.mxu0 %v6105
      %6465 = vmatpush.bf16.msra.mxu0 %v6101
      %6466 = vmatpush.bf16.msra.mxu0 %v6097
      %6467 = vmatpush.bf16.msra.mxu0 %v6093
      %6468 = vmatmul.bf16.gmra.mxu0 %v4685
      %v6469 = vpop.f32.mrf.mxu0
      %v6470 = vadd.f32 %v6456, %v6469
      %v6471 = vpop.f32.mrf.mxu0
      %v6472 = vadd.f32 %v6458, %v6471
      %6473 = vdwg.mxu0
      %v6474 = vld [vmem:[#allocation3] sm:$0xee]
      %v6475 = vld [vmem:[#allocation3 + $0x8] sm:$0xee]
      %s6476 = scalar_lea.vmem %s466, 2048
      %v6477 = vld [vmem:[%s6476] sm:$0xff]
      %v6478 = vld [vmem:[%s6476 + $0x8] sm:$0xff]
      %v6479 = vld [vmem:[%s6476 + $0x10] sm:$0xff]
      %v6480 = vld [vmem:[%s6476 + $0x18] sm:$0xff]
      %v6481 = vld [vmem:[%s6476 + $0x20] sm:$0xff]
      %v6482 = vld [vmem:[%s6476 + $0x28] sm:$0xff]
      %v6483 = vld [vmem:[%s6476 + $0x30] sm:$0xff]
      %v6484 = vld [vmem:[%s6476 + $0x38] sm:$0xff]
      %v6485 = vld [vmem:[%s6476 + $0x40] sm:$0xff]
      %v6486 = vld [vmem:[%s6476 + $0x48] sm:$0xff]
      %v6487 = vld [vmem:[%s6476 + $0x50] sm:$0xff]
      %v6488 = vld [vmem:[%s6476 + $0x58] sm:$0xff]
      %v6489 = vld [vmem:[%s6476 + $0x60] sm:$0xff]
      %v6490 = vld [vmem:[%s6476 + $0x68] sm:$0xff]
      %v6491 = vld [vmem:[%s6476 + $0x70] sm:$0xff]
      %v6492 = vld [vmem:[%s6476 + $0x78] sm:$0xff]
      %v6493 = vld [vmem:[%s6476 + $0x80] sm:$0xff]
      %v6494 = vld [vmem:[%s6476 + $0x88] sm:$0xff]
      %v6495 = vld [vmem:[%s6476 + $0x90] sm:$0xff]
      %v6496 = vld [vmem:[%s6476 + $0x98] sm:$0xff]
      %v6497 = vld [vmem:[%s6476 + $0xa0] sm:$0xff]
      %v6498 = vld [vmem:[%s6476 + $0xa8] sm:$0xff]
      %v6499 = vld [vmem:[%s6476 + $0xb0] sm:$0xff]
      %v6500 = vld [vmem:[%s6476 + $0xb8] sm:$0xff]
      %v6501 = vld [vmem:[%s6476 + $0xc0] sm:$0xff]
      %v6502 = vld [vmem:[%s6476 + $0xc8] sm:$0xff]
      %v6503 = vld [vmem:[%s6476 + $0xd0] sm:$0xff]
      %v6504 = vld [vmem:[%s6476 + $0xd8] sm:$0xff]
      %v6505 = vld [vmem:[%s6476 + $0xe0] sm:$0xff]
      %v6506 = vld [vmem:[%s6476 + $0xe8] sm:$0xff]
      %v6507 = vld [vmem:[%s6476 + $0xf0] sm:$0xff]
      %v6508 = vld [vmem:[%s6476 + $0xf8] sm:$0xff]
      %v6509 = vld [vmem:[%s6476 + $0x100] sm:$0xff]
      %v6510 = vld [vmem:[%s6476 + $0x108] sm:$0xff]
      %v6511 = vld [vmem:[%s6476 + $0x110] sm:$0xff]
      %v6512 = vld [vmem:[%s6476 + $0x118] sm:$0xff]
      %v6513 = vld [vmem:[%s6476 + $0x120] sm:$0xff]
      %v6514 = vld [vmem:[%s6476 + $0x128] sm:$0xff]
      %v6515 = vld [vmem:[%s6476 + $0x130] sm:$0xff]
      %v6516 = vld [vmem:[%s6476 + $0x138] sm:$0xff]
      %v6517 = vld [vmem:[%s6476 + $0x140] sm:$0xff]
      %v6518 = vld [vmem:[%s6476 + $0x148] sm:$0xff]
      %v6519 = vld [vmem:[%s6476 + $0x150] sm:$0xff]
      %v6520 = vld [vmem:[%s6476 + $0x158] sm:$0xff]
      %v6521 = vld [vmem:[%s6476 + $0x160] sm:$0xff]
      %v6522 = vld [vmem:[%s6476 + $0x168] sm:$0xff]
      %v6523 = vld [vmem:[%s6476 + $0x170] sm:$0xff]
      %v6524 = vld [vmem:[%s6476 + $0x178] sm:$0xff]
      %v6525 = vld [vmem:[%s6476 + $0x180] sm:$0xff]
      %v6526 = vld [vmem:[%s6476 + $0x188] sm:$0xff]
      %v6527 = vld [vmem:[%s6476 + $0x190] sm:$0xff]
      %v6528 = vld [vmem:[%s6476 + $0x198] sm:$0xff]
      %v6529 = vld [vmem:[%s6476 + $0x1a0] sm:$0xff]
      %v6530 = vld [vmem:[%s6476 + $0x1a8] sm:$0xff]
      %v6531 = vld [vmem:[%s6476 + $0x1b0] sm:$0xff]
      %v6532 = vld [vmem:[%s6476 + $0x1b8] sm:$0xff]
      %v6533 = vld [vmem:[%s6476 + $0x1c0] sm:$0xff]
      %v6534 = vld [vmem:[%s6476 + $0x1c8] sm:$0xff]
      %v6535 = vld [vmem:[%s6476 + $0x1d0] sm:$0xff]
      %v6536 = vld [vmem:[%s6476 + $0x1d8] sm:$0xff]
      %v6537 = vld [vmem:[%s6476 + $0x1e0] sm:$0xff]
      %v6538 = vld [vmem:[%s6476 + $0x1e8] sm:$0xff]
      %v6539 = vld [vmem:[%s6476 + $0x1f0] sm:$0xff]
      %v6540 = vld [vmem:[%s6476 + $0x1f8] sm:$0xff]
      %v6541 = vld [vmem:[%s6476 + $0x200] sm:$0xff]
      %v6542 = vld [vmem:[%s6476 + $0x208] sm:$0xff]
      %v6543 = vld [vmem:[%s6476 + $0x210] sm:$0xff]
      %v6544 = vld [vmem:[%s6476 + $0x218] sm:$0xff]
      %v6545 = vld [vmem:[%s6476 + $0x220] sm:$0xff]
      %v6546 = vld [vmem:[%s6476 + $0x228] sm:$0xff]
      %v6547 = vld [vmem:[%s6476 + $0x230] sm:$0xff]
      %v6548 = vld [vmem:[%s6476 + $0x238] sm:$0xff]
      %v6549 = vld [vmem:[%s6476 + $0x240] sm:$0xff]
      %v6550 = vld [vmem:[%s6476 + $0x248] sm:$0xff]
      %v6551 = vld [vmem:[%s6476 + $0x250] sm:$0xff]
      %v6552 = vld [vmem:[%s6476 + $0x258] sm:$0xff]
      %v6553 = vld [vmem:[%s6476 + $0x260] sm:$0xff]
      %v6554 = vld [vmem:[%s6476 + $0x268] sm:$0xff]
      %v6555 = vld [vmem:[%s6476 + $0x270] sm:$0xff]
      %v6556 = vld [vmem:[%s6476 + $0x278] sm:$0xff]
      %v6557 = vld [vmem:[%s6476 + $0x280] sm:$0xff]
      %v6558 = vld [vmem:[%s6476 + $0x288] sm:$0xff]
      %v6559 = vld [vmem:[%s6476 + $0x290] sm:$0xff]
      %v6560 = vld [vmem:[%s6476 + $0x298] sm:$0xff]
      %v6561 = vld [vmem:[%s6476 + $0x2a0] sm:$0xff]
      %v6562 = vld [vmem:[%s6476 + $0x2a8] sm:$0xff]
      %v6563 = vld [vmem:[%s6476 + $0x2b0] sm:$0xff]
      %v6564 = vld [vmem:[%s6476 + $0x2b8] sm:$0xff]
      %v6565 = vld [vmem:[%s6476 + $0x2c0] sm:$0xff]
      %v6566 = vld [vmem:[%s6476 + $0x2c8] sm:$0xff]
      %v6567 = vld [vmem:[%s6476 + $0x2d0] sm:$0xff]
      %v6568 = vld [vmem:[%s6476 + $0x2d8] sm:$0xff]
      %v6569 = vld [vmem:[%s6476 + $0x2e0] sm:$0xff]
      %v6570 = vld [vmem:[%s6476 + $0x2e8] sm:$0xff]
      %v6571 = vld [vmem:[%s6476 + $0x2f0] sm:$0xff]
      %v6572 = vld [vmem:[%s6476 + $0x2f8] sm:$0xff]
      %v6573 = vld [vmem:[%s6476 + $0x300] sm:$0xff]
      %v6574 = vld [vmem:[%s6476 + $0x308] sm:$0xff]
      %v6575 = vld [vmem:[%s6476 + $0x310] sm:$0xff]
      %v6576 = vld [vmem:[%s6476 + $0x318] sm:$0xff]
      %v6577 = vld [vmem:[%s6476 + $0x320] sm:$0xff]
      %v6578 = vld [vmem:[%s6476 + $0x328] sm:$0xff]
      %v6579 = vld [vmem:[%s6476 + $0x330] sm:$0xff]
      %v6580 = vld [vmem:[%s6476 + $0x338] sm:$0xff]
      %v6581 = vld [vmem:[%s6476 + $0x340] sm:$0xff]
      %v6582 = vld [vmem:[%s6476 + $0x348] sm:$0xff]
      %v6583 = vld [vmem:[%s6476 + $0x350] sm:$0xff]
      %v6584 = vld [vmem:[%s6476 + $0x358] sm:$0xff]
      %v6585 = vld [vmem:[%s6476 + $0x360] sm:$0xff]
      %v6586 = vld [vmem:[%s6476 + $0x368] sm:$0xff]
      %v6587 = vld [vmem:[%s6476 + $0x370] sm:$0xff]
      %v6588 = vld [vmem:[%s6476 + $0x378] sm:$0xff]
      %v6589 = vld [vmem:[%s6476 + $0x380] sm:$0xff]
      %v6590 = vld [vmem:[%s6476 + $0x388] sm:$0xff]
      %v6591 = vld [vmem:[%s6476 + $0x390] sm:$0xff]
      %v6592 = vld [vmem:[%s6476 + $0x398] sm:$0xff]
      %v6593 = vld [vmem:[%s6476 + $0x3a0] sm:$0xff]
      %v6594 = vld [vmem:[%s6476 + $0x3a8] sm:$0xff]
      %v6595 = vld [vmem:[%s6476 + $0x3b0] sm:$0xff]
      %v6596 = vld [vmem:[%s6476 + $0x3b8] sm:$0xff]
      %v6597 = vld [vmem:[%s6476 + $0x3c0] sm:$0xff]
      %v6598 = vld [vmem:[%s6476 + $0x3c8] sm:$0xff]
      %v6599 = vld [vmem:[%s6476 + $0x3d0] sm:$0xff]
      %v6600 = vld [vmem:[%s6476 + $0x3d8] sm:$0xff]
      %v6601 = vld [vmem:[%s6476 + $0x3e0] sm:$0xff]
      %v6602 = vld [vmem:[%s6476 + $0x3e8] sm:$0xff]
      %v6603 = vld [vmem:[%s6476 + $0x3f0] sm:$0xff]
      %v6604 = vld [vmem:[%s6476 + $0x3f8] sm:$0xff]
      %v6607 = vunpack.c.l.b16 %v6474
      %v6608 = vunpack.c.h.b16 %v6474
      %v6609 = vunpack.c.l.b16 %v6475
      %v6610 = vunpack.c.h.b16 %v6475
      %v6611 = vpack.c.b16 %v4674, %v6607
      %v6612 = vpack.c.b16 %v4675, %v6608
      %v6613 = vpack.c.b16 %v4676, %v6609
      %v6614 = vpack.c.b16 %v4677, %v6610
      %v6615 = vrot.slane %v6611, 1
      %v6616 = vrot.slane %v4686, 1
      %v6617 = vsel %vm3383, %v6615, %v6616
      %v6618 = vrot.slane %v6612, 1
      %v6619 = vrot.slane %v4687, 1
      %v6620 = vsel %vm3383, %v6618, %v6619
      %v6621 = vrot.slane %v6613, 1
      %v6622 = vrot.slane %v4688, 1
      %v6623 = vsel %vm3383, %v6621, %v6622
      %v6624 = vrot.slane %v6614, 1
      %v6625 = vrot.slane %v4689, 1
      %v6626 = vsel %vm3383, %v6624, %v6625
      %v6759 = vunpack.c.l.b16 %v6477
      %v6760 = vunpack.c.h.b16 %v6477
      %v6761 = vunpack.c.l.b16 %v6478
      %v6762 = vunpack.c.h.b16 %v6478
      %v6763 = vunpack.c.l.b16 %v6479
      %v6764 = vunpack.c.h.b16 %v6479
      %v6765 = vunpack.c.l.b16 %v6480
      %v6766 = vunpack.c.h.b16 %v6480
      %v6767 = vunpack.c.l.b16 %v6481
      %v6768 = vunpack.c.h.b16 %v6481
      %v6769 = vunpack.c.l.b16 %v6482
      %v6770 = vunpack.c.h.b16 %v6482
      %v6771 = vunpack.c.l.b16 %v6483
      %v6772 = vunpack.c.h.b16 %v6483
      %v6773 = vunpack.c.l.b16 %v6484
      %v6774 = vunpack.c.h.b16 %v6484
      %v6775 = vunpack.c.l.b16 %v6485
      %v6776 = vunpack.c.h.b16 %v6485
      %v6777 = vunpack.c.l.b16 %v6486
      %v6778 = vunpack.c.h.b16 %v6486
      %v6779 = vunpack.c.l.b16 %v6487
      %v6780 = vunpack.c.h.b16 %v6487
      %v6781 = vunpack.c.l.b16 %v6488
      %v6782 = vunpack.c.h.b16 %v6488
      %v6783 = vunpack.c.l.b16 %v6489
      %v6784 = vunpack.c.h.b16 %v6489
      %v6785 = vunpack.c.l.b16 %v6490
      %v6786 = vunpack.c.h.b16 %v6490
      %v6787 = vunpack.c.l.b16 %v6491
      %v6788 = vunpack.c.h.b16 %v6491
      %v6789 = vunpack.c.l.b16 %v6492
      %v6790 = vunpack.c.h.b16 %v6492
      %v6791 = vunpack.c.l.b16 %v6493
      %v6792 = vunpack.c.h.b16 %v6493
      %v6793 = vunpack.c.l.b16 %v6494
      %v6794 = vunpack.c.h.b16 %v6494
      %v6795 = vunpack.c.l.b16 %v6495
      %v6796 = vunpack.c.h.b16 %v6495
      %v6797 = vunpack.c.l.b16 %v6496
      %v6798 = vunpack.c.h.b16 %v6496
      %v6799 = vunpack.c.l.b16 %v6497
      %v6800 = vunpack.c.h.b16 %v6497
      %v6801 = vunpack.c.l.b16 %v6498
      %v6802 = vunpack.c.h.b16 %v6498
      %v6803 = vunpack.c.l.b16 %v6499
      %v6804 = vunpack.c.h.b16 %v6499
      %v6805 = vunpack.c.l.b16 %v6500
      %v6806 = vunpack.c.h.b16 %v6500
      %v6807 = vunpack.c.l.b16 %v6501
      %v6808 = vunpack.c.h.b16 %v6501
      %v6809 = vunpack.c.l.b16 %v6502
      %v6810 = vunpack.c.h.b16 %v6502
      %v6811 = vunpack.c.l.b16 %v6503
      %v6812 = vunpack.c.h.b16 %v6503
      %v6813 = vunpack.c.l.b16 %v6504
      %v6814 = vunpack.c.h.b16 %v6504
      %v6815 = vunpack.c.l.b16 %v6505
      %v6816 = vunpack.c.h.b16 %v6505
      %v6817 = vunpack.c.l.b16 %v6506
      %v6818 = vunpack.c.h.b16 %v6506
      %v6819 = vunpack.c.l.b16 %v6507
      %v6820 = vunpack.c.h.b16 %v6507
      %v6821 = vunpack.c.l.b16 %v6508
      %v6822 = vunpack.c.h.b16 %v6508
      %v6823 = vunpack.c.l.b16 %v6509
      %v6824 = vunpack.c.h.b16 %v6509
      %v6825 = vunpack.c.l.b16 %v6510
      %v6826 = vunpack.c.h.b16 %v6510
      %v6827 = vunpack.c.l.b16 %v6511
      %v6828 = vunpack.c.h.b16 %v6511
      %v6829 = vunpack.c.l.b16 %v6512
      %v6830 = vunpack.c.h.b16 %v6512
      %v6831 = vunpack.c.l.b16 %v6513
      %v6832 = vunpack.c.h.b16 %v6513
      %v6833 = vunpack.c.l.b16 %v6514
      %v6834 = vunpack.c.h.b16 %v6514
      %v6835 = vunpack.c.l.b16 %v6515
      %v6836 = vunpack.c.h.b16 %v6515
      %v6837 = vunpack.c.l.b16 %v6516
      %v6838 = vunpack.c.h.b16 %v6516
      %v6839 = vunpack.c.l.b16 %v6517
      %v6840 = vunpack.c.h.b16 %v6517
      %v6841 = vunpack.c.l.b16 %v6518
      %v6842 = vunpack.c.h.b16 %v6518
      %v6843 = vunpack.c.l.b16 %v6519
      %v6844 = vunpack.c.h.b16 %v6519
      %v6845 = vunpack.c.l.b16 %v6520
      %v6846 = vunpack.c.h.b16 %v6520
      %v6847 = vunpack.c.l.b16 %v6521
      %v6848 = vunpack.c.h.b16 %v6521
      %v6849 = vunpack.c.l.b16 %v6522
      %v6850 = vunpack.c.h.b16 %v6522
      %v6851 = vunpack.c.l.b16 %v6523
      %v6852 = vunpack.c.h.b16 %v6523
      %v6853 = vunpack.c.l.b16 %v6524
      %v6854 = vunpack.c.h.b16 %v6524
      %v6855 = vunpack.c.l.b16 %v6525
      %v6856 = vunpack.c.h.b16 %v6525
      %v6857 = vunpack.c.l.b16 %v6526
      %v6858 = vunpack.c.h.b16 %v6526
      %v6859 = vunpack.c.l.b16 %v6527
      %v6860 = vunpack.c.h.b16 %v6527
      %v6861 = vunpack.c.l.b16 %v6528
      %v6862 = vunpack.c.h.b16 %v6528
      %v6863 = vunpack.c.l.b16 %v6529
      %v6864 = vunpack.c.h.b16 %v6529
      %v6865 = vunpack.c.l.b16 %v6530
      %v6866 = vunpack.c.h.b16 %v6530
      %v6867 = vunpack.c.l.b16 %v6531
      %v6868 = vunpack.c.h.b16 %v6531
      %v6869 = vunpack.c.l.b16 %v6532
      %v6870 = vunpack.c.h.b16 %v6532
      %v6871 = vunpack.c.l.b16 %v6533
      %v6872 = vunpack.c.h.b16 %v6533
      %v6873 = vunpack.c.l.b16 %v6534
      %v6874 = vunpack.c.h.b16 %v6534
      %v6875 = vunpack.c.l.b16 %v6535
      %v6876 = vunpack.c.h.b16 %v6535
      %v6877 = vunpack.c.l.b16 %v6536
      %v6878 = vunpack.c.h.b16 %v6536
      %v6879 = vunpack.c.l.b16 %v6537
      %v6880 = vunpack.c.h.b16 %v6537
      %v6881 = vunpack.c.l.b16 %v6538
      %v6882 = vunpack.c.h.b16 %v6538
      %v6883 = vunpack.c.l.b16 %v6539
      %v6884 = vunpack.c.h.b16 %v6539
      %v6885 = vunpack.c.l.b16 %v6540
      %v6886 = vunpack.c.h.b16 %v6540
      %v6887 = vunpack.c.l.b16 %v6541
      %v6888 = vunpack.c.h.b16 %v6541
      %v6889 = vunpack.c.l.b16 %v6542
      %v6890 = vunpack.c.h.b16 %v6542
      %v6891 = vunpack.c.l.b16 %v6543
      %v6892 = vunpack.c.h.b16 %v6543
      %v6893 = vunpack.c.l.b16 %v6544
      %v6894 = vunpack.c.h.b16 %v6544
      %v6895 = vunpack.c.l.b16 %v6545
      %v6896 = vunpack.c.h.b16 %v6545
      %v6897 = vunpack.c.l.b16 %v6546
      %v6898 = vunpack.c.h.b16 %v6546
      %v6899 = vunpack.c.l.b16 %v6547
      %v6900 = vunpack.c.h.b16 %v6547
      %v6901 = vunpack.c.l.b16 %v6548
      %v6902 = vunpack.c.h.b16 %v6548
      %v6903 = vunpack.c.l.b16 %v6549
      %v6904 = vunpack.c.h.b16 %v6549
      %v6905 = vunpack.c.l.b16 %v6550
      %v6906 = vunpack.c.h.b16 %v6550
      %v6907 = vunpack.c.l.b16 %v6551
      %v6908 = vunpack.c.h.b16 %v6551
      %v6909 = vunpack.c.l.b16 %v6552
      %v6910 = vunpack.c.h.b16 %v6552
      %v6911 = vunpack.c.l.b16 %v6553
      %v6912 = vunpack.c.h.b16 %v6553
      %v6913 = vunpack.c.l.b16 %v6554
      %v6914 = vunpack.c.h.b16 %v6554
      %v6915 = vunpack.c.l.b16 %v6555
      %v6916 = vunpack.c.h.b16 %v6555
      %v6917 = vunpack.c.l.b16 %v6556
      %v6918 = vunpack.c.h.b16 %v6556
      %v6919 = vunpack.c.l.b16 %v6557
      %v6920 = vunpack.c.h.b16 %v6557
      %v6921 = vunpack.c.l.b16 %v6558
      %v6922 = vunpack.c.h.b16 %v6558
      %v6923 = vunpack.c.l.b16 %v6559
      %v6924 = vunpack.c.h.b16 %v6559
      %v6925 = vunpack.c.l.b16 %v6560
      %v6926 = vunpack.c.h.b16 %v6560
      %v6927 = vunpack.c.l.b16 %v6561
      %v6928 = vunpack.c.h.b16 %v6561
      %v6929 = vunpack.c.l.b16 %v6562
      %v6930 = vunpack.c.h.b16 %v6562
      %v6931 = vunpack.c.l.b16 %v6563
      %v6932 = vunpack.c.h.b16 %v6563
      %v6933 = vunpack.c.l.b16 %v6564
      %v6934 = vunpack.c.h.b16 %v6564
      %v6935 = vunpack.c.l.b16 %v6565
      %v6936 = vunpack.c.h.b16 %v6565
      %v6937 = vunpack.c.l.b16 %v6566
      %v6938 = vunpack.c.h.b16 %v6566
      %v6939 = vunpack.c.l.b16 %v6567
      %v6940 = vunpack.c.h.b16 %v6567
      %v6941 = vunpack.c.l.b16 %v6568
      %v6942 = vunpack.c.h.b16 %v6568
      %v6943 = vunpack.c.l.b16 %v6569
      %v6944 = vunpack.c.h.b16 %v6569
      %v6945 = vunpack.c.l.b16 %v6570
      %v6946 = vunpack.c.h.b16 %v6570
      %v6947 = vunpack.c.l.b16 %v6571
      %v6948 = vunpack.c.h.b16 %v6571
      %v6949 = vunpack.c.l.b16 %v6572
      %v6950 = vunpack.c.h.b16 %v6572
      %v6951 = vunpack.c.l.b16 %v6573
      %v6952 = vunpack.c.h.b16 %v6573
      %v6953 = vunpack.c.l.b16 %v6574
      %v6954 = vunpack.c.h.b16 %v6574
      %v6955 = vunpack.c.l.b16 %v6575
      %v6956 = vunpack.c.h.b16 %v6575
      %v6957 = vunpack.c.l.b16 %v6576
      %v6958 = vunpack.c.h.b16 %v6576
      %v6959 = vunpack.c.l.b16 %v6577
      %v6960 = vunpack.c.h.b16 %v6577
      %v6961 = vunpack.c.l.b16 %v6578
      %v6962 = vunpack.c.h.b16 %v6578
      %v6963 = vunpack.c.l.b16 %v6579
      %v6964 = vunpack.c.h.b16 %v6579
      %v6965 = vunpack.c.l.b16 %v6580
      %v6966 = vunpack.c.h.b16 %v6580
      %v6967 = vunpack.c.l.b16 %v6581
      %v6968 = vunpack.c.h.b16 %v6581
      %v6969 = vunpack.c.l.b16 %v6582
      %v6970 = vunpack.c.h.b16 %v6582
      %v6971 = vunpack.c.l.b16 %v6583
      %v6972 = vunpack.c.h.b16 %v6583
      %v6973 = vunpack.c.l.b16 %v6584
      %v6974 = vunpack.c.h.b16 %v6584
      %v6975 = vunpack.c.l.b16 %v6585
      %v6976 = vunpack.c.h.b16 %v6585
      %v6977 = vunpack.c.l.b16 %v6586
      %v6978 = vunpack.c.h.b16 %v6586
      %v6979 = vunpack.c.l.b16 %v6587
      %v6980 = vunpack.c.h.b16 %v6587
      %v6981 = vunpack.c.l.b16 %v6588
      %v6982 = vunpack.c.h.b16 %v6588
      %v6983 = vunpack.c.l.b16 %v6589
      %v6984 = vunpack.c.h.b16 %v6589
      %v6985 = vunpack.c.l.b16 %v6590
      %v6986 = vunpack.c.h.b16 %v6590
      %v6987 = vunpack.c.l.b16 %v6591
      %v6988 = vunpack.c.h.b16 %v6591
      %v6989 = vunpack.c.l.b16 %v6592
      %v6990 = vunpack.c.h.b16 %v6592
      %v6991 = vunpack.c.l.b16 %v6593
      %v6992 = vunpack.c.h.b16 %v6593
      %v6993 = vunpack.c.l.b16 %v6594
      %v6994 = vunpack.c.h.b16 %v6594
      %v6995 = vunpack.c.l.b16 %v6595
      %v6996 = vunpack.c.h.b16 %v6595
      %v6997 = vunpack.c.l.b16 %v6596
      %v6998 = vunpack.c.h.b16 %v6596
      %v6999 = vunpack.c.l.b16 %v6597
      %v7000 = vunpack.c.h.b16 %v6597
      %v7001 = vunpack.c.l.b16 %v6598
      %v7002 = vunpack.c.h.b16 %v6598
      %v7003 = vunpack.c.l.b16 %v6599
      %v7004 = vunpack.c.h.b16 %v6599
      %v7005 = vunpack.c.l.b16 %v6600
      %v7006 = vunpack.c.h.b16 %v6600
      %v7007 = vunpack.c.l.b16 %v6601
      %v7008 = vunpack.c.h.b16 %v6601
      %v7009 = vunpack.c.l.b16 %v6602
      %v7010 = vunpack.c.h.b16 %v6602
      %v7011 = vunpack.c.l.b16 %v6603
      %v7012 = vunpack.c.h.b16 %v6603
      %v7013 = vunpack.c.l.b16 %v6604
      %v7014 = vunpack.c.h.b16 %v6604
      %v7015 = vpack.c.b16 %v6763, %v6759
      %v7016 = vpack.c.b16 %v6764, %v6760
      %v7017 = vpack.c.b16 %v6765, %v6761
      %v7018 = vpack.c.b16 %v6766, %v6762
      %v7019 = vpack.c.b16 %v6771, %v6767
      %v7020 = vpack.c.b16 %v6772, %v6768
      %v7021 = vpack.c.b16 %v6773, %v6769
      %v7022 = vpack.c.b16 %v6774, %v6770
      %v7023 = vpack.c.b16 %v6779, %v6775
      %v7024 = vpack.c.b16 %v6780, %v6776
      %v7025 = vpack.c.b16 %v6781, %v6777
      %v7026 = vpack.c.b16 %v6782, %v6778
      %v7027 = vpack.c.b16 %v6787, %v6783
      %v7028 = vpack.c.b16 %v6788, %v6784
      %v7029 = vpack.c.b16 %v6789, %v6785
      %v7030 = vpack.c.b16 %v6790, %v6786
      %v7031 = vpack.c.b16 %v6795, %v6791
      %v7032 = vpack.c.b16 %v6796, %v6792
      %v7033 = vpack.c.b16 %v6797, %v6793
      %v7034 = vpack.c.b16 %v6798, %v6794
      %v7035 = vpack.c.b16 %v6803, %v6799
      %v7036 = vpack.c.b16 %v6804, %v6800
      %v7037 = vpack.c.b16 %v6805, %v6801
      %v7038 = vpack.c.b16 %v6806, %v6802
      %v7039 = vpack.c.b16 %v6811, %v6807
      %v7040 = vpack.c.b16 %v6812, %v6808
      %v7041 = vpack.c.b16 %v6813, %v6809
      %v7042 = vpack.c.b16 %v6814, %v6810
      %v7043 = vpack.c.b16 %v6819, %v6815
      %v7044 = vpack.c.b16 %v6820, %v6816
      %v7045 = vpack.c.b16 %v6821, %v6817
      %v7046 = vpack.c.b16 %v6822, %v6818
      %v7047 = vpack.c.b16 %v6827, %v6823
      %v7048 = vpack.c.b16 %v6828, %v6824
      %v7049 = vpack.c.b16 %v6829, %v6825
      %v7050 = vpack.c.b16 %v6830, %v6826
      %v7051 = vpack.c.b16 %v6835, %v6831
      %v7052 = vpack.c.b16 %v6836, %v6832
      %v7053 = vpack.c.b16 %v6837, %v6833
      %v7054 = vpack.c.b16 %v6838, %v6834
      %v7055 = vpack.c.b16 %v6843, %v6839
      %v7056 = vpack.c.b16 %v6844, %v6840
      %v7057 = vpack.c.b16 %v6845, %v6841
      %v7058 = vpack.c.b16 %v6846, %v6842
      %v7059 = vpack.c.b16 %v6851, %v6847
      %v7060 = vpack.c.b16 %v6852, %v6848
      %v7061 = vpack.c.b16 %v6853, %v6849
      %v7062 = vpack.c.b16 %v6854, %v6850
      %v7063 = vpack.c.b16 %v6859, %v6855
      %v7064 = vpack.c.b16 %v6860, %v6856
      %v7065 = vpack.c.b16 %v6861, %v6857
      %v7066 = vpack.c.b16 %v6862, %v6858
      %v7067 = vpack.c.b16 %v6867, %v6863
      %v7068 = vpack.c.b16 %v6868, %v6864
      %v7069 = vpack.c.b16 %v6869, %v6865
      %v7070 = vpack.c.b16 %v6870, %v6866
      %v7071 = vpack.c.b16 %v6875, %v6871
      %v7072 = vpack.c.b16 %v6876, %v6872
      %v7073 = vpack.c.b16 %v6877, %v6873
      %v7074 = vpack.c.b16 %v6878, %v6874
      %v7075 = vpack.c.b16 %v6883, %v6879
      %v7076 = vpack.c.b16 %v6884, %v6880
      %v7077 = vpack.c.b16 %v6885, %v6881
      %v7078 = vpack.c.b16 %v6886, %v6882
      %v7079 = vpack.c.b16 %v6891, %v6887
      %v7080 = vpack.c.b16 %v6892, %v6888
      %v7081 = vpack.c.b16 %v6893, %v6889
      %v7082 = vpack.c.b16 %v6894, %v6890
      %v7083 = vpack.c.b16 %v6899, %v6895
      %v7084 = vpack.c.b16 %v6900, %v6896
      %v7085 = vpack.c.b16 %v6901, %v6897
      %v7086 = vpack.c.b16 %v6902, %v6898
      %v7087 = vpack.c.b16 %v6907, %v6903
      %v7088 = vpack.c.b16 %v6908, %v6904
      %v7089 = vpack.c.b16 %v6909, %v6905
      %v7090 = vpack.c.b16 %v6910, %v6906
      %v7091 = vpack.c.b16 %v6915, %v6911
      %v7092 = vpack.c.b16 %v6916, %v6912
      %v7093 = vpack.c.b16 %v6917, %v6913
      %v7094 = vpack.c.b16 %v6918, %v6914
      %v7095 = vpack.c.b16 %v6923, %v6919
      %v7096 = vpack.c.b16 %v6924, %v6920
      %v7097 = vpack.c.b16 %v6925, %v6921
      %v7098 = vpack.c.b16 %v6926, %v6922
      %v7099 = vpack.c.b16 %v6931, %v6927
      %v7100 = vpack.c.b16 %v6932, %v6928
      %v7101 = vpack.c.b16 %v6933, %v6929
      %v7102 = vpack.c.b16 %v6934, %v6930
      %v7103 = vpack.c.b16 %v6939, %v6935
      %v7104 = vpack.c.b16 %v6940, %v6936
      %v7105 = vpack.c.b16 %v6941, %v6937
      %v7106 = vpack.c.b16 %v6942, %v6938
      %v7107 = vpack.c.b16 %v6947, %v6943
      %v7108 = vpack.c.b16 %v6948, %v6944
      %v7109 = vpack.c.b16 %v6949, %v6945
      %v7110 = vpack.c.b16 %v6950, %v6946
      %v7111 = vpack.c.b16 %v6955, %v6951
      %v7112 = vpack.c.b16 %v6956, %v6952
      %v7113 = vpack.c.b16 %v6957, %v6953
      %v7114 = vpack.c.b16 %v6958, %v6954
      %v7115 = vpack.c.b16 %v6963, %v6959
      %v7116 = vpack.c.b16 %v6964, %v6960
      %v7117 = vpack.c.b16 %v6965, %v6961
      %v7118 = vpack.c.b16 %v6966, %v6962
      %v7119 = vpack.c.b16 %v6971, %v6967
      %v7120 = vpack.c.b16 %v6972, %v6968
      %v7121 = vpack.c.b16 %v6973, %v6969
      %v7122 = vpack.c.b16 %v6974, %v6970
      %v7123 = vpack.c.b16 %v6979, %v6975
      %v7124 = vpack.c.b16 %v6980, %v6976
      %v7125 = vpack.c.b16 %v6981, %v6977
      %v7126 = vpack.c.b16 %v6982, %v6978
      %v7127 = vpack.c.b16 %v6987, %v6983
      %v7128 = vpack.c.b16 %v6988, %v6984
      %v7129 = vpack.c.b16 %v6989, %v6985
      %v7130 = vpack.c.b16 %v6990, %v6986
      %v7131 = vpack.c.b16 %v6995, %v6991
      %v7132 = vpack.c.b16 %v6996, %v6992
      %v7133 = vpack.c.b16 %v6997, %v6993
      %v7134 = vpack.c.b16 %v6998, %v6994
      %v7135 = vpack.c.b16 %v7003, %v6999
      %v7136 = vpack.c.b16 %v7004, %v7000
      %v7137 = vpack.c.b16 %v7005, %v7001
      %v7138 = vpack.c.b16 %v7006, %v7002
      %v7139 = vpack.c.b16 %v7011, %v7007
      %v7140 = vpack.c.b16 %v7012, %v7008
      %v7141 = vpack.c.b16 %v7013, %v7009
      %v7142 = vpack.c.b16 %v7014, %v7010
      %7271 = vmatpush.bf16.msra.mxu0 %v7043
      %7272 = vmatpush.bf16.msra.mxu0 %v7039
      %7273 = vmatpush.bf16.msra.mxu0 %v7035
      %7274 = vmatpush.bf16.msra.mxu0 %v7031
      %7275 = vmatpush.bf16.msra.mxu0 %v7027
      %7276 = vmatpush.bf16.msra.mxu0 %v7023
      %7277 = vmatpush.bf16.msra.mxu0 %v7019
      %7278 = vmatpush.bf16.msra.mxu0 %v7015
      %7279 = vmatmul.bf16.gmra.mxu0 %v6617
      %v7280 = vpop.f32.mrf.mxu0
      %v7281 = vadd.f32 0.0, %v7280
      %v7282 = vpop.f32.mrf.mxu0
      %v7283 = vadd.f32 0.0, %v7282
      %7284 = vdwg.mxu0
      %7285 = vmatpush.bf16.msra.mxu0 %v7075
      %7286 = vmatpush.bf16.msra.mxu0 %v7071
      %7287 = vmatpush.bf16.msra.mxu0 %v7067
      %7288 = vmatpush.bf16.msra.mxu0 %v7063
      %7289 = vmatpush.bf16.msra.mxu0 %v7059
      %7290 = vmatpush.bf16.msra.mxu0 %v7055
      %7291 = vmatpush.bf16.msra.mxu0 %v7051
      %7292 = vmatpush.bf16.msra.mxu0 %v7047
      %7293 = vmatmul.bf16.gmra.mxu0 %v6620
      %v7294 = vpop.f32.mrf.mxu0
      %v7295 = vadd.f32 %v7281, %v7294
      %v7296 = vpop.f32.mrf.mxu0
      %v7297 = vadd.f32 %v7283, %v7296
      %7298 = vdwg.mxu0
      %7299 = vmatpush.bf16.msra.mxu0 %v7107
      %7300 = vmatpush.bf16.msra.mxu0 %v7103
      %7301 = vmatpush.bf16.msra.mxu0 %v7099
      %7302 = vmatpush.bf16.msra.mxu0 %v7095
      %7303 = vmatpush.bf16.msra.mxu0 %v7091
      %7304 = vmatpush.bf16.msra.mxu0 %v7087
      %7305 = vmatpush.bf16.msra.mxu0 %v7083
      %7306 = vmatpush.bf16.msra.mxu0 %v7079
      %7307 = vmatmul.bf16.gmra.mxu0 %v6623
      %v7308 = vpop.f32.mrf.mxu0
      %v7309 = vadd.f32 %v7295, %v7308
      %v7310 = vpop.f32.mrf.mxu0
      %v7311 = vadd.f32 %v7297, %v7310
      %7312 = vdwg.mxu0
      %7313 = vmatpush.bf16.msra.mxu0 %v7139
      %7314 = vmatpush.bf16.msra.mxu0 %v7135
      %7315 = vmatpush.bf16.msra.mxu0 %v7131
      %7316 = vmatpush.bf16.msra.mxu0 %v7127
      %7317 = vmatpush.bf16.msra.mxu0 %v7123
      %7318 = vmatpush.bf16.msra.mxu0 %v7119
      %7319 = vmatpush.bf16.msra.mxu0 %v7115
      %7320 = vmatpush.bf16.msra.mxu0 %v7111
      %7321 = vmatmul.bf16.gmra.mxu0 %v6626
      %v7322 = vpop.f32.mrf.mxu0
      %v7323 = vadd.f32 %v7309, %v7322
      %v7324 = vpop.f32.mrf.mxu0
      %v7325 = vadd.f32 %v7311, %v7324
      %7326 = vdwg.mxu0
      %7327 = vmatpush.bf16.msra.mxu0 %v7044
      %7328 = vmatpush.bf16.msra.mxu0 %v7040
      %7329 = vmatpush.bf16.msra.mxu0 %v7036
      %7330 = vmatpush.bf16.msra.mxu0 %v7032
      %7331 = vmatpush.bf16.msra.mxu0 %v7028
      %7332 = vmatpush.bf16.msra.mxu0 %v7024
      %7333 = vmatpush.bf16.msra.mxu0 %v7020
      %7334 = vmatpush.bf16.msra.mxu0 %v7016
      %7335 = vmatmul.bf16.gmra.mxu0 %v6617
      %v7336 = vpop.f32.mrf.mxu0
      %v7337 = vadd.f32 0.0, %v7336
      %v7338 = vpop.f32.mrf.mxu0
      %v7339 = vadd.f32 0.0, %v7338
      %7340 = vdwg.mxu0
      %7341 = vmatpush.bf16.msra.mxu0 %v7076
      %7342 = vmatpush.bf16.msra.mxu0 %v7072
      %7343 = vmatpush.bf16.msra.mxu0 %v7068
      %7344 = vmatpush.bf16.msra.mxu0 %v7064
      %7345 = vmatpush.bf16.msra.mxu0 %v7060
      %7346 = vmatpush.bf16.msra.mxu0 %v7056
      %7347 = vmatpush.bf16.msra.mxu0 %v7052
      %7348 = vmatpush.bf16.msra.mxu0 %v7048
      %7349 = vmatmul.bf16.gmra.mxu0 %v6620
      %v7350 = vpop.f32.mrf.mxu0
      %v7351 = vadd.f32 %v7337, %v7350
      %v7352 = vpop.f32.mrf.mxu0
      %v7353 = vadd.f32 %v7339, %v7352
      %7354 = vdwg.mxu0
      %7355 = vmatpush.bf16.msra.mxu0 %v7108
      %7356 = vmatpush.bf16.msra.mxu0 %v7104
      %7357 = vmatpush.bf16.msra.mxu0 %v7100
      %7358 = vmatpush.bf16.msra.mxu0 %v7096
      %7359 = vmatpush.bf16.msra.mxu0 %v7092
      %7360 = vmatpush.bf16.msra.mxu0 %v7088
      %7361 = vmatpush.bf16.msra.mxu0 %v7084
      %7362 = vmatpush.bf16.msra.mxu0 %v7080
      %7363 = vmatmul.bf16.gmra.mxu0 %v6623
      %v7364 = vpop.f32.mrf.mxu0
      %v7365 = vadd.f32 %v7351, %v7364
      %v7366 = vpop.f32.mrf.mxu0
      %v7367 = vadd.f32 %v7353, %v7366
      %7368 = vdwg.mxu0
      %7369 = vmatpush.bf16.msra.mxu0 %v7140
      %7370 = vmatpush.bf16.msra.mxu0 %v7136
      %7371 = vmatpush.bf16.msra.mxu0 %v7132
      %7372 = vmatpush.bf16.msra.mxu0 %v7128
      %7373 = vmatpush.bf16.msra.mxu0 %v7124
      %7374 = vmatpush.bf16.msra.mxu0 %v7120
      %7375 = vmatpush.bf16.msra.mxu0 %v7116
      %7376 = vmatpush.bf16.msra.mxu0 %v7112
      %7377 = vmatmul.bf16.gmra.mxu0 %v6626
      %v7378 = vpop.f32.mrf.mxu0
      %v7379 = vadd.f32 %v7365, %v7378
      %v7380 = vpop.f32.mrf.mxu0
      %v7381 = vadd.f32 %v7367, %v7380
      %7382 = vdwg.mxu0
      %7383 = vmatpush.bf16.msra.mxu0 %v7045
      %7384 = vmatpush.bf16.msra.mxu0 %v7041
      %7385 = vmatpush.bf16.msra.mxu0 %v7037
      %7386 = vmatpush.bf16.msra.mxu0 %v7033
      %7387 = vmatpush.bf16.msra.mxu0 %v7029
      %7388 = vmatpush.bf16.msra.mxu0 %v7025
      %7389 = vmatpush.bf16.msra.mxu0 %v7021
      %7390 = vmatpush.bf16.msra.mxu0 %v7017
      %7391 = vmatmul.bf16.gmra.mxu0 %v6617
      %v7392 = vpop.f32.mrf.mxu0
      %v7393 = vadd.f32 0.0, %v7392
      %v7394 = vpop.f32.mrf.mxu0
      %v7395 = vadd.f32 0.0, %v7394
      %7396 = vdwg.mxu0
      %7397 = vmatpush.bf16.msra.mxu0 %v7077
      %7398 = vmatpush.bf16.msra.mxu0 %v7073
      %7399 = vmatpush.bf16.msra.mxu0 %v7069
      %7400 = vmatpush.bf16.msra.mxu0 %v7065
      %7401 = vmatpush.bf16.msra.mxu0 %v7061
      %7402 = vmatpush.bf16.msra.mxu0 %v7057
      %7403 = vmatpush.bf16.msra.mxu0 %v7053
      %7404 = vmatpush.bf16.msra.mxu0 %v7049
      %7405 = vmatmul.bf16.gmra.mxu0 %v6620
      %v7406 = vpop.f32.mrf.mxu0
      %v7407 = vadd.f32 %v7393, %v7406
      %v7408 = vpop.f32.mrf.mxu0
      %v7409 = vadd.f32 %v7395, %v7408
      %7410 = vdwg.mxu0
      %7411 = vmatpush.bf16.msra.mxu0 %v7109
      %7412 = vmatpush.bf16.msra.mxu0 %v7105
      %7413 = vmatpush.bf16.msra.mxu0 %v7101
      %7414 = vmatpush.bf16.msra.mxu0 %v7097
      %7415 = vmatpush.bf16.msra.mxu0 %v7093
      %7416 = vmatpush.bf16.msra.mxu0 %v7089
      %7417 = vmatpush.bf16.msra.mxu0 %v7085
      %7418 = vmatpush.bf16.msra.mxu0 %v7081
      %7419 = vmatmul.bf16.gmra.mxu0 %v6623
      %v7420 = vpop.f32.mrf.mxu0
      %v7421 = vadd.f32 %v7407, %v7420
      %v7422 = vpop.f32.mrf.mxu0
      %v7423 = vadd.f32 %v7409, %v7422
      %7424 = vdwg.mxu0
      %7425 = vmatpush.bf16.msra.mxu0 %v7141
      %7426 = vmatpush.bf16.msra.mxu0 %v7137
      %7427 = vmatpush.bf16.msra.mxu0 %v7133
      %7428 = vmatpush.bf16.msra.mxu0 %v7129
      %7429 = vmatpush.bf16.msra.mxu0 %v7125
      %7430 = vmatpush.bf16.msra.mxu0 %v7121
      %7431 = vmatpush.bf16.msra.mxu0 %v7117
      %7432 = vmatpush.bf16.msra.mxu0 %v7113
      %7433 = vmatmul.bf16.gmra.mxu0 %v6626
      %v7434 = vpop.f32.mrf.mxu0
      %v7435 = vadd.f32 %v7421, %v7434
      %v7436 = vpop.f32.mrf.mxu0
      %v7437 = vadd.f32 %v7423, %v7436
      %7438 = vdwg.mxu0
      %7439 = vmatpush.bf16.msra.mxu0 %v7046
      %7440 = vmatpush.bf16.msra.mxu0 %v7042
      %7441 = vmatpush.bf16.msra.mxu0 %v7038
      %7442 = vmatpush.bf16.msra.mxu0 %v7034
      %7443 = vmatpush.bf16.msra.mxu0 %v7030
      %7444 = vmatpush.bf16.msra.mxu0 %v7026
      %7445 = vmatpush.bf16.msra.mxu0 %v7022
      %7446 = vmatpush.bf16.msra.mxu0 %v7018
      %7447 = vmatmul.bf16.gmra.mxu0 %v6617
      %v7448 = vpop.f32.mrf.mxu0
      %v7449 = vadd.f32 0.0, %v7448
      %v7450 = vpop.f32.mrf.mxu0
      %v7451 = vadd.f32 0.0, %v7450
      %7452 = vdwg.mxu0
      %7453 = vmatpush.bf16.msra.mxu0 %v7078
      %7454 = vmatpush.bf16.msra.mxu0 %v7074
      %7455 = vmatpush.bf16.msra.mxu0 %v7070
      %7456 = vmatpush.bf16.msra.mxu0 %v7066
      %7457 = vmatpush.bf16.msra.mxu0 %v7062
      %7458 = vmatpush.bf16.msra.mxu0 %v7058
      %7459 = vmatpush.bf16.msra.mxu0 %v7054
      %7460 = vmatpush.bf16.msra.mxu0 %v7050
      %7461 = vmatmul.bf16.gmra.mxu0 %v6620
      %v7462 = vpop.f32.mrf.mxu0
      %v7463 = vadd.f32 %v7449, %v7462
      %v7464 = vpop.f32.mrf.mxu0
      %v7465 = vadd.f32 %v7451, %v7464
      %7466 = vdwg.mxu0
      %7467 = vmatpush.bf16.msra.mxu0 %v7110
      %7468 = vmatpush.bf16.msra.mxu0 %v7106
      %7469 = vmatpush.bf16.msra.mxu0 %v7102
      %7470 = vmatpush.bf16.msra.mxu0 %v7098
      %7471 = vmatpush.bf16.msra.mxu0 %v7094
      %7472 = vmatpush.bf16.msra.mxu0 %v7090
      %7473 = vmatpush.bf16.msra.mxu0 %v7086
      %7474 = vmatpush.bf16.msra.mxu0 %v7082
      %7475 = vmatmul.bf16.gmra.mxu0 %v6623
      %v7476 = vpop.f32.mrf.mxu0
      %v7477 = vadd.f32 %v7463, %v7476
      %v7478 = vpop.f32.mrf.mxu0
      %v7479 = vadd.f32 %v7465, %v7478
      %7480 = vdwg.mxu0
      %7481 = vmatpush.bf16.msra.mxu0 %v7142
      %7482 = vmatpush.bf16.msra.mxu0 %v7138
      %7483 = vmatpush.bf16.msra.mxu0 %v7134
      %7484 = vmatpush.bf16.msra.mxu0 %v7130
      %7485 = vmatpush.bf16.msra.mxu0 %v7126
      %7486 = vmatpush.bf16.msra.mxu0 %v7122
      %7487 = vmatpush.bf16.msra.mxu0 %v7118
      %7488 = vmatpush.bf16.msra.mxu0 %v7114
      %7489 = vmatmul.bf16.gmra.mxu0 %v6626
      %v7490 = vpop.f32.mrf.mxu0
      %v7491 = vadd.f32 %v7477, %v7490
      %v7492 = vpop.f32.mrf.mxu0
      %v7493 = vadd.f32 %v7479, %v7492
      %7494 = vdwg.mxu0
      %v7495 = vadd.f32 %v6302, %v7323
      %v7496 = vadd.f32 %v6358, %v7379
      %v7497 = vadd.f32 %v6414, %v7435
      %v7498 = vadd.f32 %v6470, %v7491
      %v7499 = vadd.f32 %v6304, %v7325
      %v7500 = vadd.f32 %v6360, %v7381
      %v7501 = vadd.f32 %v6416, %v7437
      %v7502 = vadd.f32 %v6472, %v7493
      %v7504 = vperm.slane %v4387, 0
      %v7505 = vperm.slane %v4387, 1
      %v7506 = vperm.slane %v4387, 2
      %v7507 = vperm.slane %v4387, 3
      %v7512 = vmul.f32 %v7495, %v7504
      %v7513 = vmul.f32 %v7496, %v7505
      %v7514 = vmul.f32 %v7497, %v7506
      %v7515 = vmul.f32 %v7498, %v7507
      %v7516 = vmul.f32 %v7499, %v7504
      %v7517 = vmul.f32 %v7500, %v7505
      %v7518 = vmul.f32 %v7501, %v7506
      %v7519 = vmul.f32 %v7502, %v7507
      %v7521 = vperm.slane %v4388, 0
      %v7522 = vperm.slane %v4388, 1
      %v7523 = vperm.slane %v4388, 2
      %v7524 = vperm.slane %v4388, 3
      %v7529 = vadd.f32 %v7512, %v7521
      %v7530 = vadd.f32 %v7513, %v7522
      %v7531 = vadd.f32 %v7514, %v7523
      %v7532 = vadd.f32 %v7515, %v7524
      %v7533 = vadd.f32 %v7516, %v7521
      %v7534 = vadd.f32 %v7517, %v7522
      %v7535 = vadd.f32 %v7518, %v7523
      %v7536 = vadd.f32 %v7519, %v7524
      %vm7549 = vcmask 1046528
      %v7550 = vrot.slane %v4389, 1
      %v7551 = vrot.slane %v4393, 1
      %v7552 = vsel %vm7549, %v7550, %v7551
      %v7553 = vrot.slane %v4390, 1
      %v7554 = vrot.slane %v4394, 1
      %v7555 = vsel %vm7549, %v7553, %v7554
      %v7556 = vrot.slane %v4391, 1
      %v7557 = vrot.slane %v4395, 1
      %v7558 = vsel %vm7549, %v7556, %v7557
      %v7559 = vrot.slane %v4392, 1
      %v7560 = vrot.slane %v4396, 1
      %v7561 = vsel %vm7549, %v7559, %v7560
      %v7562 = vrot.slane %v4397, 1
      %v7563 = vsel %vm7549, %v7551, %v7562
      %v7564 = vrot.slane %v4398, 1
      %v7565 = vsel %vm7549, %v7554, %v7564
      %v7566 = vrot.slane %v4399, 1
      %v7567 = vsel %vm7549, %v7557, %v7566
      %v7568 = vrot.slane %v4400, 1
      %v7569 = vsel %vm7549, %v7560, %v7568
      %v7578 = vadd.f32 %v7529, %v7552
      %v7579 = vadd.f32 %v7530, %v7555
      %v7580 = vadd.f32 %v7531, %v7558
      %v7581 = vadd.f32 %v7532, %v7561
      %v7582 = vadd.f32 %v7533, %v7563
      %v7583 = vadd.f32 %v7534, %v7565
      %v7584 = vadd.f32 %v7535, %v7567
      %v7585 = vadd.f32 %v7536, %v7569
      %v7586 = vmax.f32 %v7578, 0.0
      %v7587 = vmax.f32 %v7579, 0.0
      %v7588 = vmax.f32 %v7580, 0.0
      %v7589 = vmax.f32 %v7581, 0.0
      %v7590 = vmax.f32 %v7582, 0.0
      %v7591 = vmax.f32 %v7583, 0.0
      %v7592 = vmax.f32 %v7584, 0.0
      %v7593 = vmax.f32 %v7585, 0.0
      %v7594 = vpack.c.bf16 %v7587, %v7586
      %v7595 = vpack.c.bf16 %v7589, %v7588
      %v7596 = vpack.c.bf16 %v7591, %v7590
      %v7597 = vpack.c.bf16 %v7593, %v7592
      %v7599 = vshrl.u32 %v7594, 16
      %v7601 = vrot.slane %v7599, 7
      %v7602 = vshll.u32 %v7594, 16
      %v7604 = vor.u32 %v7601, %v7602
      %v7606 = vshrl.u32 %v7595, 16
      %v7608 = vrot.slane %v7606, 7
      %v7609 = vshll.u32 %v7595, 16
      %v7611 = vor.u32 %v7608, %v7609
      %v7612 = vrot.slane %v7601, 4
      %v7614 = vshrl.u32 %v7596, 16
      %v7616 = vrot.slane %v7614, 7
      %v7617 = vshll.u32 %v7596, 16
      %v7619 = vor.u32 %v7616, %v7617
      %v7620 = vsel %vm4320, %v7612, %v7619
      %v7621 = vrot.slane %v7608, 4
      %v7623 = vshrl.u32 %v7597, 16
      %v7625 = vrot.slane %v7623, 7
      %v7626 = vshll.u32 %v7597, 16
      %v7628 = vor.u32 %v7625, %v7626
      %v7629 = vsel %vm4320, %v7621, %v7628
      %v7630 = vrot.slane %v7616, 4
      %v7631 = vrot.slane %v7625, 4
      %v7638 = vsel %vm4367, %v7604, %v4401
      %7639 = vst [vmem:[#allocation3] sm:$0xff] %v7638
      %v7640 = vld [vmem:[#allocation3 + $0x8] sm:$0xff]
      %v7641 = vsel %vm4367, %v7611, %v7640
      %7642 = vst [vmem:[#allocation3 + $0x8] sm:$0xff] %v7641
      %7643 = vst [vmem:[#allocation3 + $0x10] sm:$0xff] %v7620
      %7644 = vst [vmem:[#allocation3 + $0x18] sm:$0xff] %v7629
      %v7645 = vld [vmem:[#allocation3 + $0x20] sm:$0x11]
      %v7646 = vsel %vm4380, %v7630, %v7645
      %7647 = vst [vmem:[#allocation3 + $0x20] sm:$0x11] %v7646
      %v7648 = vld [vmem:[#allocation3 + $0x28] sm:$0x11]
      %v7649 = vsel %vm4380, %v7631, %v7648
      %7650 = vst [vmem:[#allocation3 + $0x28] sm:$0x11] %v7649
      %p7651 = scmp.eq.s32.totalorder %s26, 1
      // Predicated region
      $region65: #{alphazero_image_block.1} parent=59 // pred_check
        %p7652 = pneg %p7651
      $region66: #{alphazero_image_block.1} parent=59 // pred_check_branch
        %7654 = sbr.rel (%p7652) target = $region68
      $region67: #{alphazero_image_block.1} parent=59 // pred_region
        %7655 = vst [vmem:[%s479] sm:$0xff] %v7586
        %7656 = vst [vmem:[%s479 + $0x8] sm:$0xff] %v7587
        %7657 = vst [vmem:[%s479 + $0x10] sm:$0xff] %v7588
        %7658 = vst [vmem:[%s479 + $0x18] sm:$0xff] %v7589
        %7659 = vst [vmem:[%s479 + $0x20] sm:$0xff] %v7590
        %7660 = vst [vmem:[%s479 + $0x28] sm:$0xff] %v7591
        %7661 = vst [vmem:[%s479 + $0x30] sm:$0xff] %v7592
        %7662 = vst [vmem:[%s479 + $0x38] sm:$0xff] %v7593
      $region68: #{alphazero_image_block.1} parent=59 // pred_fallthru
        _
      %p7663 = scmp.lt.s32.totalorder %s25, 1
      %s7664 = scalar_select %p7663, %s25, 1
      %s7665 = smul.addr %s7664, 8
      %s7666 = smul.addr %s7665, 8
      %s7667 = scalar_lea.vmem %s10, %s7666
      // Predicated region
      $region69: #{alphazero_image_block.1} parent=59 // pred_check
        %p7668 = pneg %p296
      $region70: #{alphazero_image_block.1} parent=59 // pred_check_branch
        %7670 = sbr.rel (%p7668) target = $region72
      $region71: #{alphazero_image_block.1} parent=59 // pred_region
        _
      $region72: #{alphazero_image_block.1} parent=59 // pred_fallthru
        _
    $region60: #{alphazero_image_block.1} parent=5 // pred_fallthru
      _
    %p7671 = scmp.le.s32.totalorder 2, %s16
    // Predicated region
    $region73: #{alphazero_image_block.1} parent=5 // pred_check
      %p7672 = pneg %p7671
    $region74: #{alphazero_image_block.1} parent=5 // pred_check_branch
      %7674 = sbr.rel (%p7672) target = $region76
    $region75: #{alphazero_image_block.1} parent=5 // pred_region
      %s7675 = ssub.s32 %s16, 2
      // Predicated region
      $region77: #{alphazero_image_block.1} parent=75 // pred_check
        %p7676 = pneg %p302
      $region78: #{alphazero_image_block.1} parent=75 // pred_check_branch
        %7678 = sbr.rel (%p7676) target = $region80
      $region79: #{alphazero_image_block.1} parent=75 // pred_region
        %p7679 = scmp.lt.s32.totalorder %s27, 1
        %s7680 = scalar_select %p7679, %s27, 1
        %s7681 = smul.addr %s7680, 8
        %s7682 = smul.addr %s7681, 8
        %s7683 = scalar_lea.vmem %s10, %s7682
      $region80: #{alphazero_image_block.1} parent=75 // pred_fallthru
        _
    $region76: #{alphazero_image_block.1} parent=5 // pred_fallthru
      _
  $region6: #{alphazero_image_block.1} parent=0 // loop_footer
    %s20 = sadd.s32 1, %s16
  $region7: #{alphazero_image_block.1} parent=0 // loop_footer_branch
    %15 = sbr.rel target = $region3
  $region8: #{alphazero_image_block.1} parent=0 // loop_exit
    _

</llo_original>
